<compile_context>
chip_gen: v7x
topology: tpu7x:2x2x1
jax: 0.10.0
libtpu: 0.0.40
codegen_flags: <defaults>
</compile_context>

<pallas_src>
import functools
import math

import jax
import jax.numpy as jnp
from jax import lax
from jax.experimental import pallas as pl
from jax.experimental.pallas import tpu as pltpu

# ----- small synthetic CLIP config (lane-dense: D is a multiple of 128) -----
B = 2            # batch (number of prompts)
D = 128          # hidden size (full 128-lane vregs)
H = 4            # attention heads
HD = D // H      # head dim
MLP = 4 * D      # mlp hidden
VOCAB = 256      # synthetic vocab
N_LAYERS = 2     # transformer layers
CLIP_STOP = 1    # z = hidden_states[-CLIP_stop]
LN_EPS = 1e-5
MAX_POS = 77     # CLIP position-embedding table size


def get_target_prompt_token_count(token_count):
    if token_count < 75:
        return 75
    return math.ceil(token_count / 10) * 10


# ---------------------------------------------------------------------------
# Pallas kernel
# ---------------------------------------------------------------------------
def _layer_norm(v, g, b):
    """LayerNorm with f32 statistics."""
    mu = jnp.mean(v, axis=-1, keepdims=True)
    var = jnp.mean((v - mu) ** 2, axis=-1, keepdims=True)
    return (v - mu) * lax.rsqrt(var + LN_EPS) * g + b


def clip_transformer_kernel(x_ref, mult_ref,
                            ln1g, ln1b, wqkv, bqkv, wo, bo,
                            ln2g, ln2b, w1, b1, w2, b2,
                            flng, flnb,
                            o_ref, sumz_ref, sumzw_ref,
                            x_scr, mask_scr,
                            *, s_real):
    """One CLIP encoder layer per grid step; grid = (batch, layer).

    The residual stream stays in the VMEM scratch `x_scr` across layer steps.
    At the last layer step, the final LayerNorm is applied, padded rows are
    zeroed, the per-token multipliers are applied, and per-row sums of z and
    z*mult are emitted for the global mean-preserving rescale (done in XLA).
    Matmuls use bf16 operands with f32 accumulation.
    """
    l = pl.program_id(1)
    n_l = pl.num_programs(1)
    s_pad = x_scr.shape[0]

    # ---- first layer step: load residual, build causal mask (VMEM scratch) --
    @pl.when(l == 0)
    def _():
        x_scr[...] = x_ref[0]
        row = lax.broadcasted_iota(jnp.int32, (s_pad, s_pad), 0)
        col = lax.broadcasted_iota(jnp.int32, (s_pad, s_pad), 1)
        # causal additive bias; also masks padded key columns for real rows.
        mask_scr[...] = jnp.where(col <= row, 0.0, -1e30).astype(jnp.float32)

    x = x_scr[...]                                 # [S, D] f32 residual stream

    # ---- LayerNorm 1 + fused q/k/v projection (scale pre-folded into wqkv) --
    h = _layer_norm(x, ln1g[0], ln1b[0])
    qkv = jnp.dot(h.astype(jnp.bfloat16), wqkv[0],
                  preferred_element_type=jnp.float32) + bqkv[0]       # [S, 3D]
    q = qkv[:, :D].astype(jnp.bfloat16)
    k = qkv[:, D:2 * D].astype(jnp.bfloat16)
    v = qkv[:, 2 * D:].astype(jnp.bfloat16)
    wo_l = wo[0]                                   # [D, D] bf16

    # ---- Multi-head causal attention; wo folded into per-head accumulation --
    ones_col = jnp.ones((s_pad, 1), jnp.bfloat16)  # denom via MXU, not XLU
    attn = jnp.zeros((s_pad, D), jnp.float32)
    for hh in range(H):
        sl = slice(hh * HD, (hh + 1) * HD)
        s = lax.dot_general(q[:, sl], k[:, sl], (((1,), (1,)), ((), ())),
                            preferred_element_type=jnp.float32)
        s = s + mask_scr[...]
        s = s - jnp.max(s, axis=-1, keepdims=True)
        p = jnp.exp(s).astype(jnp.bfloat16)                           # [S, S]
        ctx = jnp.dot(p, v[:, sl], preferred_element_type=jnp.float32)   # [S,HD]
        den = jnp.dot(p, ones_col, preferred_element_type=jnp.float32)   # [S,1]
        ctx = ctx * pl.reciprocal(den, approx=True)   # normalize the small ctx
        attn = attn + jnp.dot(ctx.astype(jnp.bfloat16), wo_l[sl, :],
                              preferred_element_type=jnp.float32)     # [S, D]
    x = x + attn + bo[0]

    # ---- LayerNorm 2 + MLP (quick_gelu, sigmoid in bf16) ----
    h2 = _layer_norm(x, ln2g[0], ln2b[0])
    ff = jnp.dot(h2.astype(jnp.bfloat16), w1[0],
                 preferred_element_type=jnp.float32) + b1[0]          # [S, MLP]
    ffb = ff.astype(jnp.bfloat16)
    act = ffb * jax.nn.sigmoid(1.702 * ffb)        # quick_gelu, bf16 EUP
    ff2 = jnp.dot(act, w2[0], preferred_element_type=jnp.float32) + b2[0]
    x = x + ff2
    x_scr[...] = x

    # ---- last layer step: final LayerNorm + multipliers + sums ----
    @pl.when(l == n_l - 1)
    def _():
        y = _layer_norm(x, flng[...], flnb[...])
        rows = lax.broadcasted_iota(jnp.int32, (s_pad, 1), 0)
        y = jnp.where(rows < s_real, y, 0.0)       # zero padded query rows
        zw = y * mult_ref[0]                       # per-token multipliers
        o_ref[0] = zw
        sumz_ref[0] = jnp.sum(y, axis=0, keepdims=True)    # [1, D]
        sumzw_ref[0] = jnp.sum(zw, axis=0, keepdims=True)  # [1, D]


# ---------------------------------------------------------------------------
# Pallas wrapper
# ---------------------------------------------------------------------------
def _layer_spec(shape):
    rest = len(shape) - 1
    return pl.BlockSpec((1,) + tuple(shape[1:]),
                        lambda b, l, _r=rest: (l,) + (0,) * _r)


def _const_spec(shape):
    n = len(shape)
    return pl.BlockSpec(tuple(shape), lambda b, l, _n=n: (0,) * _n)


def clip_transformer(x_pad, mult_pad, p, n_used, s_real):
    """grid=(B, L): one prompt per TensorCore (v7x), layer weights streamed."""
    Bn, S_p, Dd = x_pad.shape
    layer_weights = [p['ln1_g'][:n_used], p['ln1_b'][:n_used],
                     p['wqkv'][:n_used], p['bqkv'][:n_used],
                     p['wo'][:n_used], p['bo'][:n_used],
                     p['ln2_g'][:n_used], p['ln2_b'][:n_used],
                     p['w1'][:n_used], p['b1'][:n_used],
                     p['w2'][:n_used], p['b2'][:n_used]]
    final_ln = [p['final_ln_g'], p['final_ln_b']]

    in_specs = [pl.BlockSpec((1, S_p, Dd), lambda b, l: (b, 0, 0)),   # x
                pl.BlockSpec((1, S_p, 1), lambda b, l: (b, 0, 0))]    # multipliers
    in_specs += [_layer_spec(w.shape) for w in layer_weights]
    in_specs += [_const_spec(w.shape) for w in final_ln]

    out_shape = (jax.ShapeDtypeStruct((Bn, S_p, Dd), jnp.float32),    # z*mult
                 jax.ShapeDtypeStruct((Bn, 1, Dd), jnp.float32),      # sum(z)
                 jax.ShapeDtypeStruct((Bn, 1, Dd), jnp.float32))      # sum(z*mult)
    out_specs = [pl.BlockSpec((1, S_p, Dd), lambda b, l: (b, 0, 0)),
                 pl.BlockSpec((1, 1, Dd), lambda b, l: (b, 0, 0)),
                 pl.BlockSpec((1, 1, Dd), lambda b, l: (b, 0, 0))]

    grid_spec = pltpu.PrefetchScalarGridSpec(
        num_scalar_prefetch=0,
        grid=(Bn, n_used),
        in_specs=in_specs,
        out_specs=out_specs,
        scratch_shapes=[pltpu.VMEM((S_p, Dd), jnp.float32),    # residual stream
                        pltpu.VMEM((S_p, S_p), jnp.float32)])  # causal mask

    return pl.pallas_call(
        functools.partial(clip_transformer_kernel, s_real=s_real),
        out_shape=out_shape,
        grid_spec=grid_spec,
        compiler_params=pltpu.CompilerParams(
            dimension_semantics=("parallel", "arbitrary"),
            vmem_limit_bytes=48 * 1024 * 1024),
    )(x_pad, mult_pad, *layer_weights, *final_ln)


# ---------------------------------------------------------------------------
# Forward pass (mirrors FrozenCLIPEmbedderWithCustomWords.forward)
# ---------------------------------------------------------------------------
def frozen_clip_forward(tokens, multipliers, params, clip_stop=CLIP_STOP):
    Bn, T = tokens.shape
    # position_ids as built in forward(): [min(x, 75) for x in range(T-1)] + [76]
    position_ids = jnp.asarray([min(x, 75) for x in range(T - 1)] + [76],
                               dtype=jnp.int32)
    # Token + position embedding gather left to XLA (one cheap gather op).
    x = (jnp.take(params['token_emb'], tokens, axis=0)
         + jnp.take(params['pos_emb'], position_ids, axis=0)[None, :, :]
         ).astype(jnp.float32)

    # Pad the sequence dim to a lane-dense multiple of 128 (77 -> 128).
    s_pad = ((T + 127) // 128) * 128
    x_pad = jnp.pad(x, ((0, 0), (0, s_pad - T), (0, 0)))
    mult_pad = jnp.pad(multipliers.astype(jnp.float32),
                       ((0, 0), (0, s_pad - T)), constant_values=1.0)[:, :, None]

    # "CLIP skip": hidden_states[-clip_stop] == output after this many layers.
    n_used = N_LAYERS - clip_stop + 1
    zw, sum_z, sum_zw = clip_transformer(x_pad, mult_pad, params, n_used, T)

    # Global mean-preserving rescale: means share the same count, so the ratio
    # of sums equals original_mean / new_mean.  (No zero-guard, as in the
    # reference.)
    ratio = jnp.sum(sum_z) / jnp.sum(sum_zw)
    return zw[:, :T, :] * ratio


# ---------------------------------------------------------------------------
# Deterministic synthetic parameters (weights staged in bf16 for the MXU)
# ---------------------------------------------------------------------------
def init_params(key):
    keys = iter(jax.random.split(key, 32))

    def nrm(shape):
        return 0.02 * jax.random.normal(next(keys), shape, jnp.float32)

    ones = lambda s: jnp.ones(s, jnp.float32)
    zeros = lambda s: jnp.zeros(s, jnp.float32)
    L = N_LAYERS
    scale = 1.0 / math.sqrt(HD)

    # stacked per-layer weights; q/k/v fused into one [D, 3D] projection with
    # the 1/sqrt(HD) attention scale folded into the q columns (weight + bias).
    wqkv = nrm((L, D, 3 * D))
    bqkv = nrm((L, 1, 3 * D))
    wqkv = wqkv.at[:, :, :D].multiply(scale)
    bqkv = bqkv.at[:, :, :D].multiply(scale)

    return dict(
        token_emb=nrm((VOCAB, D)),
        pos_emb=nrm((MAX_POS, D)),
        ln1_g=ones((L, 1, D)), ln1_b=zeros((L, 1, D)),
        wqkv=wqkv.astype(jnp.bfloat16), bqkv=bqkv,
        wo=nrm((L, D, D)).astype(jnp.bfloat16), bo=nrm((L, 1, D)),
        ln2_g=ones((L, 1, D)), ln2_b=zeros((L, 1, D)),
        w1=nrm((L, D, MLP)).astype(jnp.bfloat16), b1=nrm((L, 1, MLP)),
        w2=nrm((L, MLP, D)).astype(jnp.bfloat16), b2=nrm((L, 1, D)),
        final_ln_g=ones((1, D)), final_ln_b=zeros((1, D)),
    )


# ---------------------------------------------------------------------------
if __name__ == "__main__":
    key = jax.random.PRNGKey(0)
    pkey, tkey = jax.random.split(key)
    params = init_params(pkey)

    # TODO(synk): tokenizer / prompt_parser.parse_prompt_attention is host-side
    # string processing; we directly build its output (padded ids + multipliers).
    BOS, EOS = 1, 2
    prompt_lens = [5, 10]                       # per-prompt token counts (< 75)
    token_count = max(prompt_lens)
    target = get_target_prompt_token_count(token_count) + 2   # = 77

    rows, mrows = [], []
    for bi, Lp in enumerate(prompt_lens):
        toks = jax.random.randint(jax.random.fold_in(tkey, bi), (Lp,), 3, VOCAB,
                                  dtype=jnp.int32)
        w = 1.0 + 0.1 * (bi + 1)                # emphasis weight, e.g. "(word)"
        pad = target - 1 - Lp
        rows.append(jnp.concatenate([jnp.array([BOS], jnp.int32), toks,
                                     jnp.full((pad,), EOS, jnp.int32)]))
        mrows.append(jnp.concatenate([jnp.array([1.0], jnp.float32),
                                      jnp.full((Lp,), w, jnp.float32),
                                      jnp.ones((pad,), jnp.float32)]))
    tokens = jnp.stack(rows)                    # [B, 77] int32
    multipliers = jnp.stack(mrows)              # [B, 77] float32

    z = jax.jit(frozen_clip_forward)(tokens, multipliers, params)
    jax.block_until_ready(z)
    assert z.shape == (B, target, D) and z.dtype == jnp.float32
    assert bool(jnp.all(jnp.isfinite(z)))
    print("KERNEL_OK")
</pallas_src>

<mosaic_0001>
module attributes {stable_mosaic.version = 11 : i64} {
  func.func @clip_transformer_kernel(%arg0: i32, %arg1: i32, %arg2: memref<1x128x128xf32, #tpu.memory_space<vmem>>, %arg3: memref<1x128x1xf32, #tpu.memory_space<vmem>>, %arg4: memref<1x1x128xf32, #tpu.memory_space<vmem>>, %arg5: memref<1x1x128xf32, #tpu.memory_space<vmem>>, %arg6: memref<1x128x384xbf16, #tpu.memory_space<vmem>>, %arg7: memref<1x1x384xf32, #tpu.memory_space<vmem>>, %arg8: memref<1x128x128xbf16, #tpu.memory_space<vmem>>, %arg9: memref<1x1x128xf32, #tpu.memory_space<vmem>>, %arg10: memref<1x1x128xf32, #tpu.memory_space<vmem>>, %arg11: memref<1x1x128xf32, #tpu.memory_space<vmem>>, %arg12: memref<1x128x512xbf16, #tpu.memory_space<vmem>>, %arg13: memref<1x1x512xf32, #tpu.memory_space<vmem>>, %arg14: memref<1x512x128xbf16, #tpu.memory_space<vmem>>, %arg15: memref<1x1x128xf32, #tpu.memory_space<vmem>>, %arg16: memref<1x128xf32, #tpu.memory_space<vmem>>, %arg17: memref<1x128xf32, #tpu.memory_space<vmem>>, %arg18: memref<1x128x128xf32, #tpu.memory_space<vmem>>, %arg19: memref<1x1x128xf32, #tpu.memory_space<vmem>>, %arg20: memref<1x1x128xf32, #tpu.memory_space<vmem>>, %arg21: memref<128x128xf32, #tpu.memory_space<vmem>>, %arg22: memref<128x128xf32, #tpu.memory_space<vmem>>) attributes {dimension_semantics = [#tpu.dimension_semantics<parallel>, #tpu.dimension_semantics<arbitrary>], iteration_bounds = array<i64: 2, 2>, scalar_prefetch = 0 : i64, scratch_operands = 2 : i64, tpu.core_type = #tpu.core_type<tc>, window_params = [{transform_indices = @transform_0, window_bounds = array<i64: 1, 128, 128>}, {transform_indices = @transform_1, window_bounds = array<i64: 1, 128, 1>}, {transform_indices = @transform_2, window_bounds = array<i64: 1, 1, 128>}, {transform_indices = @transform_3, window_bounds = array<i64: 1, 1, 128>}, {transform_indices = @transform_4, window_bounds = array<i64: 1, 128, 384>}, {transform_indices = @transform_5, window_bounds = array<i64: 1, 1, 384>}, {transform_indices = @transform_6, window_bounds = array<i64: 1, 128, 128>}, {transform_indices = @transform_7, window_bounds = array<i64: 1, 1, 128>}, {transform_indices = @transform_8, window_bounds = array<i64: 1, 1, 128>}, {transform_indices = @transform_9, window_bounds = array<i64: 1, 1, 128>}, {transform_indices = @transform_10, window_bounds = array<i64: 1, 128, 512>}, {transform_indices = @transform_11, window_bounds = array<i64: 1, 1, 512>}, {transform_indices = @transform_12, window_bounds = array<i64: 1, 512, 128>}, {transform_indices = @transform_13, window_bounds = array<i64: 1, 1, 128>}, {pipeline_mode = #tpu.pipeline_mode<synchronous>, transform_indices = @transform_14, window_bounds = array<i64: 1, 128>}, {pipeline_mode = #tpu.pipeline_mode<synchronous>, transform_indices = @transform_15, window_bounds = array<i64: 1, 128>}, {transform_indices = @transform_16, window_bounds = array<i64: 1, 128, 128>}, {transform_indices = @transform_17, window_bounds = array<i64: 1, 1, 128>}, {transform_indices = @transform_18, window_bounds = array<i64: 1, 1, 128>}]} {
    %c0_i32 = arith.constant 0 : i32
    %0 = arith.cmpi eq, %arg1, %c0_i32 : i32
    %1 = arith.extui %0 : i1 to i32
    %c0_i32_0 = arith.constant 0 : i32
    %2 = arith.cmpi ne, %1, %c0_i32_0 : i32
    scf.if %2 {
      %c0_85 = arith.constant 0 : index
      %c0_86 = arith.constant 0 : index
      %c0_87 = arith.constant 0 : index
      %192 = vector.load %arg2[%c0_85, %c0_86, %c0_87] : memref<1x128x128xf32, #tpu.memory_space<vmem>>, vector<1x128x128xf32>
      %193 = vector.shape_cast %192 : vector<1x128x128xf32> to vector<128x128xf32>
      %c0_88 = arith.constant 0 : index
      %c0_89 = arith.constant 0 : index
      %194 = vector.load %arg21[%c0_88, %c0_89] : memref<128x128xf32, #tpu.memory_space<vmem>>, vector<128x128xf32>
      tpu.vector_store %arg21[%c0_88, %c0_89], %193 {strides = array<i32>} : memref<128x128xf32, #tpu.memory_space<vmem>>, vector<128x128xf32>,
      %195 = tpu.iota {dimensions = array<i32: 0>} : vector<128x128xi32>
      %196 = tpu.iota {dimensions = array<i32: 1>} : vector<128x128xi32>
      %197 = arith.cmpi sle, %196, %195 : vector<128x128xi32>
      %cst_90 = arith.constant 0.000000e+00 : f32
      %cst_91 = arith.constant -1.000000e+30 : f32
      %198 = vector.broadcast %cst_90 : f32 to vector<128x128xf32>
      %199 = vector.broadcast %cst_91 : f32 to vector<128x128xf32>
      %200 = arith.select %197, %198, %199 : vector<128x128xi1>, vector<128x128xf32>
      %c0_92 = arith.constant 0 : index
      %c0_93 = arith.constant 0 : index
      %201 = vector.load %arg22[%c0_92, %c0_93] : memref<128x128xf32, #tpu.memory_space<vmem>>, vector<128x128xf32>
      tpu.vector_store %arg22[%c0_92, %c0_93], %200 {strides = array<i32>} : memref<128x128xf32, #tpu.memory_space<vmem>>, vector<128x128xf32>,
    } else {
    }
    %c0 = arith.constant 0 : index
    %c0_1 = arith.constant 0 : index
    %3 = vector.load %arg21[%c0, %c0_1] : memref<128x128xf32, #tpu.memory_space<vmem>>, vector<128x128xf32>
    %c0_2 = arith.constant 0 : index
    %c0_3 = arith.constant 0 : index
    %c0_4 = arith.constant 0 : index
    %4 = vector.load %arg4[%c0_2, %c0_3, %c0_4] : memref<1x1x128xf32, #tpu.memory_space<vmem>>, vector<1x1x128xf32>
    %5 = vector.shape_cast %4 : vector<1x1x128xf32> to vector<1x128xf32>
    %c0_5 = arith.constant 0 : index
    %c0_6 = arith.constant 0 : index
    %c0_7 = arith.constant 0 : index
    %6 = vector.load %arg5[%c0_5, %c0_6, %c0_7] : memref<1x1x128xf32, #tpu.memory_space<vmem>>, vector<1x1x128xf32>
    %7 = vector.shape_cast %6 : vector<1x1x128xf32> to vector<1x128xf32>
    %cst = arith.constant dense<0.000000e+00> : vector<128xf32>
    %8 = vector.multi_reduction <add>, %3, %cst [1] : vector<128x128xf32> to vector<128xf32>
    %9 = vector.shape_cast %8 : vector<128xf32> to vector<128x1xf32>
    %cst_8 = arith.constant 1.280000e+02 : f32
    %10 = vector.broadcast %cst_8 : f32 to vector<128x1xf32>
    %11 = arith.divf %9, %10 : vector<128x1xf32>
    %12 = vector.broadcast %11 : vector<128x1xf32> to vector<128x128xf32>
    %13 = arith.subf %3, %12 : vector<128x128xf32>
    %14 = arith.mulf %13, %13 : vector<128x128xf32>
    %cst_9 = arith.constant dense<0.000000e+00> : vector<128xf32>
    %15 = vector.multi_reduction <add>, %14, %cst_9 [1] : vector<128x128xf32> to vector<128xf32>
    %16 = vector.shape_cast %15 : vector<128xf32> to vector<128x1xf32>
    %cst_10 = arith.constant 1.280000e+02 : f32
    %17 = vector.broadcast %cst_10 : f32 to vector<128x1xf32>
    %18 = arith.divf %16, %17 : vector<128x1xf32>
    %19 = vector.broadcast %11 : vector<128x1xf32> to vector<128x128xf32>
    %20 = arith.subf %3, %19 : vector<128x128xf32>
    %cst_11 = arith.constant 9.99999974E-6 : f32
    %21 = vector.broadcast %cst_11 : f32 to vector<128x1xf32>
    %22 = arith.addf %18, %21 : vector<128x1xf32>
    %23 = math.rsqrt %22 : vector<128x1xf32>
    %24 = vector.broadcast %23 : vector<128x1xf32> to vector<128x128xf32>
    %25 = arith.mulf %20, %24 : vector<128x128xf32>
    %26 = vector.broadcast %5 : vector<1x128xf32> to vector<128x128xf32>
    %27 = arith.mulf %25, %26 : vector<128x128xf32>
    %28 = vector.broadcast %7 : vector<1x128xf32> to vector<128x128xf32>
    %29 = arith.addf %27, %28 : vector<128x128xf32>
    %30 = arith.truncf %29 : vector<128x128xf32> to vector<128x128xbf16>
    %c0_12 = arith.constant 0 : index
    %c0_13 = arith.constant 0 : index
    %c0_14 = arith.constant 0 : index
    %31 = vector.load %arg6[%c0_12, %c0_13, %c0_14] : memref<1x128x384xbf16, #tpu.memory_space<vmem>>, vector<1x128x384xbf16>
    %32 = vector.shape_cast %31 : vector<1x128x384xbf16> to vector<128x384xbf16>
    %cst_15 = arith.constant dense<0.000000e+00> : vector<128x384xf32>
    %33 = tpu.matmul %30, %32, %cst_15 {dimension_numbers = #tpu.dot_dimension_numbers<[1], [0], [0], [1], [0, 0, 1, 1], [], []>} : vector<128x128xbf16>, vector<128x384xbf16>, vector<128x384xf32> -> vector<128x384xf32>
    %c0_16 = arith.constant 0 : index
    %c0_17 = arith.constant 0 : index
    %c0_18 = arith.constant 0 : index
    %34 = vector.load %arg7[%c0_16, %c0_17, %c0_18] : memref<1x1x384xf32, #tpu.memory_space<vmem>>, vector<1x1x384xf32>
    %35 = vector.shape_cast %34 : vector<1x1x384xf32> to vector<1x384xf32>
    %36 = vector.broadcast %35 : vector<1x384xf32> to vector<128x384xf32>
    %37 = arith.addf %33, %36 : vector<128x384xf32>
    %38 = vector.extract_strided_slice %37 {offsets = [0, 0], sizes = [128, 128], strides = [1, 1]} : vector<128x384xf32> to vector<128x128xf32>
    %39 = arith.truncf %38 : vector<128x128xf32> to vector<128x128xbf16>
    %40 = vector.extract_strided_slice %37 {offsets = [0, 128], sizes = [128, 128], strides = [1, 1]} : vector<128x384xf32> to vector<128x128xf32>
    %41 = arith.truncf %40 : vector<128x128xf32> to vector<128x128xbf16>
    %42 = vector.extract_strided_slice %37 {offsets = [0, 256], sizes = [128, 128], strides = [1, 1]} : vector<128x384xf32> to vector<128x128xf32>
    %43 = arith.truncf %42 : vector<128x128xf32> to vector<128x128xbf16>
    %c0_19 = arith.constant 0 : index
    %c0_20 = arith.constant 0 : index
    %c0_21 = arith.constant 0 : index
    %44 = vector.load %arg8[%c0_19, %c0_20, %c0_21] : memref<1x128x128xbf16, #tpu.memory_space<vmem>>, vector<1x128x128xbf16>
    %45 = vector.shape_cast %44 : vector<1x128x128xbf16> to vector<128x128xbf16>
    %cst_22 = arith.constant 1.000000e+00 : bf16
    %46 = vector.broadcast %cst_22 : bf16 to vector<128x1xbf16>
    %cst_23 = arith.constant 0.000000e+00 : f32
    %47 = vector.broadcast %cst_23 : f32 to vector<128x128xf32>
    %48 = vector.extract_strided_slice %39 {offsets = [0, 0], sizes = [128, 32], strides = [1, 1]} : vector<128x128xbf16> to vector<128x32xbf16>
    %49 = vector.extract_strided_slice %41 {offsets = [0, 0], sizes = [128, 32], strides = [1, 1]} : vector<128x128xbf16> to vector<128x32xbf16>
    %cst_24 = arith.constant dense<0.000000e+00> : vector<128x128xf32>
    %50 = tpu.matmul %48, %49, %cst_24 {dimension_numbers = #tpu.dot_dimension_numbers<[1], [1], [0], [0], [0, 0, 1, 0], [], []>} : vector<128x32xbf16>, vector<128x32xbf16>, vector<128x128xf32> -> vector<128x128xf32>
    %c0_25 = arith.constant 0 : index
    %c0_26 = arith.constant 0 : index
    %51 = vector.load %arg22[%c0_25, %c0_26] : memref<128x128xf32, #tpu.memory_space<vmem>>, vector<128x128xf32>
    %52 = arith.addf %50, %51 : vector<128x128xf32>
    %cst_27 = arith.constant dense<0xFF800000> : vector<128xf32>
    %53 = vector.multi_reduction <maximumf>, %52, %cst_27 [1] : vector<128x128xf32> to vector<128xf32>
    %54 = vector.shape_cast %53 : vector<128xf32> to vector<128x1xf32>
    %55 = vector.broadcast %54 : vector<128x1xf32> to vector<128x128xf32>
    %56 = arith.subf %52, %55 : vector<128x128xf32>
    %57 = math.exp %56 : vector<128x128xf32>
    %58 = arith.truncf %57 : vector<128x128xf32> to vector<128x128xbf16>
    %59 = vector.extract_strided_slice %43 {offsets = [0, 0], sizes = [128, 32], strides = [1, 1]} : vector<128x128xbf16> to vector<128x32xbf16>
    %cst_28 = arith.constant dense<0.000000e+00> : vector<128x32xf32>
    %60 = tpu.matmul %58, %59, %cst_28 {dimension_numbers = #tpu.dot_dimension_numbers<[1], [0], [0], [1], [0, 0, 1, 1], [], []>} : vector<128x128xbf16>, vector<128x32xbf16>, vector<128x32xf32> -> vector<128x32xf32>
    %cst_29 = arith.constant dense<0.000000e+00> : vector<128x1xf32>
    %61 = tpu.matmul %58, %46, %cst_29 {dimension_numbers = #tpu.dot_dimension_numbers<[1], [0], [0], [1], [0, 0, 1, 1], [], []>} : vector<128x128xbf16>, vector<128x1xbf16>, vector<128x1xf32> -> vector<128x1xf32>
    %62 = tpu.reciprocal %61 {approx = true} : vector<128x1xf32> -> vector<128x1xf32>
    %63 = vector.broadcast %62 : vector<128x1xf32> to vector<128x32xf32>
    %64 = arith.mulf %60, %63 : vector<128x32xf32>
    %65 = arith.truncf %64 : vector<128x32xf32> to vector<128x32xbf16>
    %66 = vector.extract_strided_slice %45 {offsets = [0, 0], sizes = [32, 128], strides = [1, 1]} : vector<128x128xbf16> to vector<32x128xbf16>
    %cst_30 = arith.constant dense<0.000000e+00> : vector<128x128xf32>
    %67 = tpu.matmul %65, %66, %cst_30 {dimension_numbers = #tpu.dot_dimension_numbers<[1], [0], [0], [1], [0, 0, 1, 1], [], []>} : vector<128x32xbf16>, vector<32x128xbf16>, vector<128x128xf32> -> vector<128x128xf32>
    %68 = arith.addf %47, %67 : vector<128x128xf32>
    %69 = vector.extract_strided_slice %39 {offsets = [0, 32], sizes = [128, 32], strides = [1, 1]} : vector<128x128xbf16> to vector<128x32xbf16>
    %70 = vector.extract_strided_slice %41 {offsets = [0, 32], sizes = [128, 32], strides = [1, 1]} : vector<128x128xbf16> to vector<128x32xbf16>
    %cst_31 = arith.constant dense<0.000000e+00> : vector<128x128xf32>
    %71 = tpu.matmul %69, %70, %cst_31 {dimension_numbers = #tpu.dot_dimension_numbers<[1], [1], [0], [0], [0, 0, 1, 0], [], []>} : vector<128x32xbf16>, vector<128x32xbf16>, vector<128x128xf32> -> vector<128x128xf32>
    %c0_32 = arith.constant 0 : index
    %c0_33 = arith.constant 0 : index
    %72 = vector.load %arg22[%c0_32, %c0_33] : memref<128x128xf32, #tpu.memory_space<vmem>>, vector<128x128xf32>
    %73 = arith.addf %71, %72 : vector<128x128xf32>
    %cst_34 = arith.constant dense<0xFF800000> : vector<128xf32>
    %74 = vector.multi_reduction <maximumf>, %73, %cst_34 [1] : vector<128x128xf32> to vector<128xf32>
    %75 = vector.shape_cast %74 : vector<128xf32> to vector<128x1xf32>
    %76 = vector.broadcast %75 : vector<128x1xf32> to vector<128x128xf32>
    %77 = arith.subf %73, %76 : vector<128x128xf32>
    %78 = math.exp %77 : vector<128x128xf32>
    %79 = arith.truncf %78 : vector<128x128xf32> to vector<128x128xbf16>
    %80 = vector.extract_strided_slice %43 {offsets = [0, 32], sizes = [128, 32], strides = [1, 1]} : vector<128x128xbf16> to vector<128x32xbf16>
    %cst_35 = arith.constant dense<0.000000e+00> : vector<128x32xf32>
    %81 = tpu.matmul %79, %80, %cst_35 {dimension_numbers = #tpu.dot_dimension_numbers<[1], [0], [0], [1], [0, 0, 1, 1], [], []>} : vector<128x128xbf16>, vector<128x32xbf16>, vector<128x32xf32> -> vector<128x32xf32>
    %cst_36 = arith.constant dense<0.000000e+00> : vector<128x1xf32>
    %82 = tpu.matmul %79, %46, %cst_36 {dimension_numbers = #tpu.dot_dimension_numbers<[1], [0], [0], [1], [0, 0, 1, 1], [], []>} : vector<128x128xbf16>, vector<128x1xbf16>, vector<128x1xf32> -> vector<128x1xf32>
    %83 = tpu.reciprocal %82 {approx = true} : vector<128x1xf32> -> vector<128x1xf32>
    %84 = vector.broadcast %83 : vector<128x1xf32> to vector<128x32xf32>
    %85 = arith.mulf %81, %84 : vector<128x32xf32>
    %86 = arith.truncf %85 : vector<128x32xf32> to vector<128x32xbf16>
    %87 = vector.extract_strided_slice %45 {offsets = [32, 0], sizes = [32, 128], strides = [1, 1]} : vector<128x128xbf16> to vector<32x128xbf16>
    %cst_37 = arith.constant dense<0.000000e+00> : vector<128x128xf32>
    %88 = tpu.matmul %86, %87, %cst_37 {dimension_numbers = #tpu.dot_dimension_numbers<[1], [0], [0], [1], [0, 0, 1, 1], [], []>} : vector<128x32xbf16>, vector<32x128xbf16>, vector<128x128xf32> -> vector<128x128xf32>
    %89 = arith.addf %68, %88 : vector<128x128xf32>
    %90 = vector.extract_strided_slice %39 {offsets = [0, 64], sizes = [128, 32], strides = [1, 1]} : vector<128x128xbf16> to vector<128x32xbf16>
    %91 = vector.extract_strided_slice %41 {offsets = [0, 64], sizes = [128, 32], strides = [1, 1]} : vector<128x128xbf16> to vector<128x32xbf16>
    %cst_38 = arith.constant dense<0.000000e+00> : vector<128x128xf32>
    %92 = tpu.matmul %90, %91, %cst_38 {dimension_numbers = #tpu.dot_dimension_numbers<[1], [1], [0], [0], [0, 0, 1, 0], [], []>} : vector<128x32xbf16>, vector<128x32xbf16>, vector<128x128xf32> -> vector<128x128xf32>
    %c0_39 = arith.constant 0 : index
    %c0_40 = arith.constant 0 : index
    %93 = vector.load %arg22[%c0_39, %c0_40] : memref<128x128xf32, #tpu.memory_space<vmem>>, vector<128x128xf32>
    %94 = arith.addf %92, %93 : vector<128x128xf32>
    %cst_41 = arith.constant dense<0xFF800000> : vector<128xf32>
    %95 = vector.multi_reduction <maximumf>, %94, %cst_41 [1] : vector<128x128xf32> to vector<128xf32>
    %96 = vector.shape_cast %95 : vector<128xf32> to vector<128x1xf32>
    %97 = vector.broadcast %96 : vector<128x1xf32> to vector<128x128xf32>
    %98 = arith.subf %94, %97 : vector<128x128xf32>
    %99 = math.exp %98 : vector<128x128xf32>
    %100 = arith.truncf %99 : vector<128x128xf32> to vector<128x128xbf16>
    %101 = vector.extract_strided_slice %43 {offsets = [0, 64], sizes = [128, 32], strides = [1, 1]} : vector<128x128xbf16> to vector<128x32xbf16>
    %cst_42 = arith.constant dense<0.000000e+00> : vector<128x32xf32>
    %102 = tpu.matmul %100, %101, %cst_42 {dimension_numbers = #tpu.dot_dimension_numbers<[1], [0], [0], [1], [0, 0, 1, 1], [], []>} : vector<128x128xbf16>, vector<128x32xbf16>, vector<128x32xf32> -> vector<128x32xf32>
    %cst_43 = arith.constant dense<0.000000e+00> : vector<128x1xf32>
    %103 = tpu.matmul %100, %46, %cst_43 {dimension_numbers = #tpu.dot_dimension_numbers<[1], [0], [0], [1], [0, 0, 1, 1], [], []>} : vector<128x128xbf16>, vector<128x1xbf16>, vector<128x1xf32> -> vector<128x1xf32>
    %104 = tpu.reciprocal %103 {approx = true} : vector<128x1xf32> -> vector<128x1xf32>
    %105 = vector.broadcast %104 : vector<128x1xf32> to vector<128x32xf32>
    %106 = arith.mulf %102, %105 : vector<128x32xf32>
    %107 = arith.truncf %106 : vector<128x32xf32> to vector<128x32xbf16>
    %108 = vector.extract_strided_slice %45 {offsets = [64, 0], sizes = [32, 128], strides = [1, 1]} : vector<128x128xbf16> to vector<32x128xbf16>
    %cst_44 = arith.constant dense<0.000000e+00> : vector<128x128xf32>
    %109 = tpu.matmul %107, %108, %cst_44 {dimension_numbers = #tpu.dot_dimension_numbers<[1], [0], [0], [1], [0, 0, 1, 1], [], []>} : vector<128x32xbf16>, vector<32x128xbf16>, vector<128x128xf32> -> vector<128x128xf32>
    %110 = arith.addf %89, %109 : vector<128x128xf32>
    %111 = vector.extract_strided_slice %39 {offsets = [0, 96], sizes = [128, 32], strides = [1, 1]} : vector<128x128xbf16> to vector<128x32xbf16>
    %112 = vector.extract_strided_slice %41 {offsets = [0, 96], sizes = [128, 32], strides = [1, 1]} : vector<128x128xbf16> to vector<128x32xbf16>
    %cst_45 = arith.constant dense<0.000000e+00> : vector<128x128xf32>
    %113 = tpu.matmul %111, %112, %cst_45 {dimension_numbers = #tpu.dot_dimension_numbers<[1], [1], [0], [0], [0, 0, 1, 0], [], []>} : vector<128x32xbf16>, vector<128x32xbf16>, vector<128x128xf32> -> vector<128x128xf32>
    %c0_46 = arith.constant 0 : index
    %c0_47 = arith.constant 0 : index
    %114 = vector.load %arg22[%c0_46, %c0_47] : memref<128x128xf32, #tpu.memory_space<vmem>>, vector<128x128xf32>
    %115 = arith.addf %113, %114 : vector<128x128xf32>
    %cst_48 = arith.constant dense<0xFF800000> : vector<128xf32>
    %116 = vector.multi_reduction <maximumf>, %115, %cst_48 [1] : vector<128x128xf32> to vector<128xf32>
    %117 = vector.shape_cast %116 : vector<128xf32> to vector<128x1xf32>
    %118 = vector.broadcast %117 : vector<128x1xf32> to vector<128x128xf32>
    %119 = arith.subf %115, %118 : vector<128x128xf32>
    %120 = math.exp %119 : vector<128x128xf32>
    %121 = arith.truncf %120 : vector<128x128xf32> to vector<128x128xbf16>
    %122 = vector.extract_strided_slice %43 {offsets = [0, 96], sizes = [128, 32], strides = [1, 1]} : vector<128x128xbf16> to vector<128x32xbf16>
    %cst_49 = arith.constant dense<0.000000e+00> : vector<128x32xf32>
    %123 = tpu.matmul %121, %122, %cst_49 {dimension_numbers = #tpu.dot_dimension_numbers<[1], [0], [0], [1], [0, 0, 1, 1], [], []>} : vector<128x128xbf16>, vector<128x32xbf16>, vector<128x32xf32> -> vector<128x32xf32>
    %cst_50 = arith.constant dense<0.000000e+00> : vector<128x1xf32>
    %124 = tpu.matmul %121, %46, %cst_50 {dimension_numbers = #tpu.dot_dimension_numbers<[1], [0], [0], [1], [0, 0, 1, 1], [], []>} : vector<128x128xbf16>, vector<128x1xbf16>, vector<128x1xf32> -> vector<128x1xf32>
    %125 = tpu.reciprocal %124 {approx = true} : vector<128x1xf32> -> vector<128x1xf32>
    %126 = vector.broadcast %125 : vector<128x1xf32> to vector<128x32xf32>
    %127 = arith.mulf %123, %126 : vector<128x32xf32>
    %128 = arith.truncf %127 : vector<128x32xf32> to vector<128x32xbf16>
    %129 = vector.extract_strided_slice %45 {offsets = [96, 0], sizes = [32, 128], strides = [1, 1]} : vector<128x128xbf16> to vector<32x128xbf16>
    %cst_51 = arith.constant dense<0.000000e+00> : vector<128x128xf32>
    %130 = tpu.matmul %128, %129, %cst_51 {dimension_numbers = #tpu.dot_dimension_numbers<[1], [0], [0], [1], [0, 0, 1, 1], [], []>} : vector<128x32xbf16>, vector<32x128xbf16>, vector<128x128xf32> -> vector<128x128xf32>
    %131 = arith.addf %110, %130 : vector<128x128xf32>
    %132 = arith.addf %3, %131 : vector<128x128xf32>
    %c0_52 = arith.constant 0 : index
    %c0_53 = arith.constant 0 : index
    %c0_54 = arith.constant 0 : index
    %133 = vector.load %arg9[%c0_52, %c0_53, %c0_54] : memref<1x1x128xf32, #tpu.memory_space<vmem>>, vector<1x1x128xf32>
    %134 = vector.shape_cast %133 : vector<1x1x128xf32> to vector<1x128xf32>
    %135 = vector.broadcast %134 : vector<1x128xf32> to vector<128x128xf32>
    %136 = arith.addf %132, %135 : vector<128x128xf32>
    %c0_55 = arith.constant 0 : index
    %c0_56 = arith.constant 0 : index
    %c0_57 = arith.constant 0 : index
    %137 = vector.load %arg10[%c0_55, %c0_56, %c0_57] : memref<1x1x128xf32, #tpu.memory_space<vmem>>, vector<1x1x128xf32>
    %138 = vector.shape_cast %137 : vector<1x1x128xf32> to vector<1x128xf32>
    %c0_58 = arith.constant 0 : index
    %c0_59 = arith.constant 0 : index
    %c0_60 = arith.constant 0 : index
    %139 = vector.load %arg11[%c0_58, %c0_59, %c0_60] : memref<1x1x128xf32, #tpu.memory_space<vmem>>, vector<1x1x128xf32>
    %140 = vector.shape_cast %139 : vector<1x1x128xf32> to vector<1x128xf32>
    %cst_61 = arith.constant dense<0.000000e+00> : vector<128xf32>
    %141 = vector.multi_reduction <add>, %136, %cst_61 [1] : vector<128x128xf32> to vector<128xf32>
    %142 = vector.shape_cast %141 : vector<128xf32> to vector<128x1xf32>
    %cst_62 = arith.constant 1.280000e+02 : f32
    %143 = vector.broadcast %cst_62 : f32 to vector<128x1xf32>
    %144 = arith.divf %142, %143 : vector<128x1xf32>
    %145 = vector.broadcast %144 : vector<128x1xf32> to vector<128x128xf32>
    %146 = arith.subf %136, %145 : vector<128x128xf32>
    %147 = arith.mulf %146, %146 : vector<128x128xf32>
    %cst_63 = arith.constant dense<0.000000e+00> : vector<128xf32>
    %148 = vector.multi_reduction <add>, %147, %cst_63 [1] : vector<128x128xf32> to vector<128xf32>
    %149 = vector.shape_cast %148 : vector<128xf32> to vector<128x1xf32>
    %cst_64 = arith.constant 1.280000e+02 : f32
    %150 = vector.broadcast %cst_64 : f32 to vector<128x1xf32>
    %151 = arith.divf %149, %150 : vector<128x1xf32>
    %152 = vector.broadcast %144 : vector<128x1xf32> to vector<128x128xf32>
    %153 = arith.subf %136, %152 : vector<128x128xf32>
    %cst_65 = arith.constant 9.99999974E-6 : f32
    %154 = vector.broadcast %cst_65 : f32 to vector<128x1xf32>
    %155 = arith.addf %151, %154 : vector<128x1xf32>
    %156 = math.rsqrt %155 : vector<128x1xf32>
    %157 = vector.broadcast %156 : vector<128x1xf32> to vector<128x128xf32>
    %158 = arith.mulf %153, %157 : vector<128x128xf32>
    %159 = vector.broadcast %138 : vector<1x128xf32> to vector<128x128xf32>
    %160 = arith.mulf %158, %159 : vector<128x128xf32>
    %161 = vector.broadcast %140 : vector<1x128xf32> to vector<128x128xf32>
    %162 = arith.addf %160, %161 : vector<128x128xf32>
    %163 = arith.truncf %162 : vector<128x128xf32> to vector<128x128xbf16>
    %c0_66 = arith.constant 0 : index
    %c0_67 = arith.constant 0 : index
    %c0_68 = arith.constant 0 : index
    %164 = vector.load %arg12[%c0_66, %c0_67, %c0_68] : memref<1x128x512xbf16, #tpu.memory_space<vmem>>, vector<1x128x512xbf16>
    %165 = vector.shape_cast %164 : vector<1x128x512xbf16> to vector<128x512xbf16>
    %cst_69 = arith.constant dense<0.000000e+00> : vector<128x512xf32>
    %166 = tpu.matmul %163, %165, %cst_69 {dimension_numbers = #tpu.dot_dimension_numbers<[1], [0], [0], [1], [0, 0, 1, 1], [], []>} : vector<128x128xbf16>, vector<128x512xbf16>, vector<128x512xf32> -> vector<128x512xf32>
    %c0_70 = arith.constant 0 : index
    %c0_71 = arith.constant 0 : index
    %c0_72 = arith.constant 0 : index
    %167 = vector.load %arg13[%c0_70, %c0_71, %c0_72] : memref<1x1x512xf32, #tpu.memory_space<vmem>>, vector<1x1x512xf32>
    %168 = vector.shape_cast %167 : vector<1x1x512xf32> to vector<1x512xf32>
    %169 = vector.broadcast %168 : vector<1x512xf32> to vector<128x512xf32>
    %170 = arith.addf %166, %169 : vector<128x512xf32>
    %171 = arith.truncf %170 : vector<128x512xf32> to vector<128x512xbf16>
    %cst_73 = arith.constant 1.703130e+00 : bf16
    %172 = vector.broadcast %cst_73 : bf16 to vector<128x512xbf16>
    %173 = arith.mulf %172, %171 : vector<128x512xbf16>
    %174 = arith.negf %173 : vector<128x512xbf16>
    %175 = math.exp %174 : vector<128x512xbf16>
    %cst_74 = arith.constant 1.000000e+00 : bf16
    %176 = vector.broadcast %cst_74 : bf16 to vector<128x512xbf16>
    %177 = arith.addf %176, %175 : vector<128x512xbf16>
    %178 = arith.divf %176, %177 : vector<128x512xbf16>
    %179 = arith.mulf %171, %178 : vector<128x512xbf16>
    %c0_75 = arith.constant 0 : index
    %c0_76 = arith.constant 0 : index
    %c0_77 = arith.constant 0 : index
    %180 = vector.load %arg14[%c0_75, %c0_76, %c0_77] : memref<1x512x128xbf16, #tpu.memory_space<vmem>>, vector<1x512x128xbf16>
    %181 = vector.shape_cast %180 : vector<1x512x128xbf16> to vector<512x128xbf16>
    %cst_78 = arith.constant dense<0.000000e+00> : vector<128x128xf32>
    %182 = tpu.matmul %179, %181, %cst_78 {dimension_numbers = #tpu.dot_dimension_numbers<[1], [0], [0], [1], [0, 0, 1, 1], [], []>} : vector<128x512xbf16>, vector<512x128xbf16>, vector<128x128xf32> -> vector<128x128xf32>
    %c0_79 = arith.constant 0 : index
    %c0_80 = arith.constant 0 : index
    %c0_81 = arith.constant 0 : index
    %183 = vector.load %arg15[%c0_79, %c0_80, %c0_81] : memref<1x1x128xf32, #tpu.memory_space<vmem>>, vector<1x1x128xf32>
    %184 = vector.shape_cast %183 : vector<1x1x128xf32> to vector<1x128xf32>
    %185 = vector.broadcast %184 : vector<1x128xf32> to vector<128x128xf32>
    %186 = arith.addf %182, %185 : vector<128x128xf32>
    %187 = arith.addf %136, %186 : vector<128x128xf32>
    %c0_82 = arith.constant 0 : index
    %c0_83 = arith.constant 0 : index
    %188 = vector.load %arg21[%c0_82, %c0_83] : memref<128x128xf32, #tpu.memory_space<vmem>>, vector<128x128xf32>
    tpu.vector_store %arg21[%c0_82, %c0_83], %187 {strides = array<i32>} : memref<128x128xf32, #tpu.memory_space<vmem>>, vector<128x128xf32>,
    %c1_i32 = arith.constant 1 : i32
    %189 = arith.cmpi eq, %arg1, %c1_i32 : i32
    %190 = arith.extui %189 : i1 to i32
    %c0_i32_84 = arith.constant 0 : i32
    %191 = arith.cmpi ne, %190, %c0_i32_84 : i32
    scf.if %191 {
      %c0_85 = arith.constant 0 : index
      %c0_86 = arith.constant 0 : index
      %192 = vector.load %arg16[%c0_85, %c0_86] : memref<1x128xf32, #tpu.memory_space<vmem>>, vector<1x128xf32>
      %c0_87 = arith.constant 0 : index
      %c0_88 = arith.constant 0 : index
      %193 = vector.load %arg17[%c0_87, %c0_88] : memref<1x128xf32, #tpu.memory_space<vmem>>, vector<1x128xf32>
      %cst_89 = arith.constant dense<0.000000e+00> : vector<128xf32>
      %194 = vector.multi_reduction <add>, %187, %cst_89 [1] : vector<128x128xf32> to vector<128xf32>
      %195 = vector.shape_cast %194 : vector<128xf32> to vector<128x1xf32>
      %cst_90 = arith.constant 1.280000e+02 : f32
      %196 = vector.broadcast %cst_90 : f32 to vector<128x1xf32>
      %197 = arith.divf %195, %196 : vector<128x1xf32>
      %198 = vector.broadcast %197 : vector<128x1xf32> to vector<128x128xf32>
      %199 = arith.subf %187, %198 : vector<128x128xf32>
      %200 = arith.mulf %199, %199 : vector<128x128xf32>
      %cst_91 = arith.constant dense<0.000000e+00> : vector<128xf32>
      %201 = vector.multi_reduction <add>, %200, %cst_91 [1] : vector<128x128xf32> to vector<128xf32>
      %202 = vector.shape_cast %201 : vector<128xf32> to vector<128x1xf32>
      %cst_92 = arith.constant 1.280000e+02 : f32
      %203 = vector.broadcast %cst_92 : f32 to vector<128x1xf32>
      %204 = arith.divf %202, %203 : vector<128x1xf32>
      %205 = vector.broadcast %197 : vector<128x1xf32> to vector<128x128xf32>
      %206 = arith.subf %187, %205 : vector<128x128xf32>
      %cst_93 = arith.constant 9.99999974E-6 : f32
      %207 = vector.broadcast %cst_93 : f32 to vector<128x1xf32>
      %208 = arith.addf %204, %207 : vector<128x1xf32>
      %209 = math.rsqrt %208 : vector<128x1xf32>
      %210 = vector.broadcast %209 : vector<128x1xf32> to vector<128x128xf32>
      %211 = arith.mulf %206, %210 : vector<128x128xf32>
      %212 = vector.broadcast %192 : vector<1x128xf32> to vector<128x128xf32>
      %213 = arith.mulf %211, %212 : vector<128x128xf32>
      %214 = vector.broadcast %193 : vector<1x128xf32> to vector<128x128xf32>
      %215 = arith.addf %213, %214 : vector<128x128xf32>
      %216 = tpu.iota {dimensions = array<i32: 0>} : vector<128x1xi32>
      %c77_i32 = arith.constant 77 : i32
      %217 = vector.broadcast %c77_i32 : i32 to vector<128x1xi32>
      %218 = arith.cmpi slt, %216, %217 : vector<128x1xi32>
      %cst_94 = arith.constant 0.000000e+00 : f32
      %219 = vector.shape_cast %218 : vector<128x1xi1> to vector<128x1xi1>
      %220 = vector.broadcast %219 : vector<128x1xi1> to vector<128x128xi1>
      %221 = vector.broadcast %cst_94 : f32 to vector<128x128xf32>
      %222 = arith.select %220, %215, %221 : vector<128x128xi1>, vector<128x128xf32>
      %c0_95 = arith.constant 0 : index
      %c0_96 = arith.constant 0 : index
      %c0_97 = arith.constant 0 : index
      %223 = vector.load %arg3[%c0_95, %c0_96, %c0_97] : memref<1x128x1xf32, #tpu.memory_space<vmem>>, vector<1x128x1xf32>
      %224 = vector.shape_cast %223 : vector<1x128x1xf32> to vector<128x1xf32>
      %225 = vector.broadcast %224 : vector<128x1xf32> to vector<128x128xf32>
      %226 = arith.mulf %222, %225 : vector<128x128xf32>
      %c0_98 = arith.constant 0 : index
      %c0_99 = arith.constant 0 : index
      %c0_100 = arith.constant 0 : index
      %227 = vector.load %arg18[%c0_98, %c0_99, %c0_100] : memref<1x128x128xf32, #tpu.memory_space<vmem>>, vector<1x128x128xf32>
      %228 = vector.shape_cast %227 : vector<1x128x128xf32> to vector<128x128xf32>
      %229 = vector.shape_cast %226 : vector<128x128xf32> to vector<1x128x128xf32>
      tpu.vector_store %arg18[%c0_98, %c0_99, %c0_100], %229 {strides = array<i32>} : memref<1x128x128xf32, #tpu.memory_space<vmem>>, vector<1x128x128xf32>,
      %cst_101 = arith.constant dense<0.000000e+00> : vector<128xf32>
      %230 = vector.multi_reduction <add>, %222, %cst_101 [0] : vector<128x128xf32> to vector<128xf32>
      %231 = vector.shape_cast %230 : vector<128xf32> to vector<1x128xf32>
      %c0_102 = arith.constant 0 : index
      %c0_103 = arith.constant 0 : index
      %c0_104 = arith.constant 0 : index
      %232 = vector.load %arg19[%c0_102, %c0_103, %c0_104] : memref<1x1x128xf32, #tpu.memory_space<vmem>>, vector<1x1x128xf32>
      %233 = vector.shape_cast %232 : vector<1x1x128xf32> to vector<1x128xf32>
      %234 = vector.shape_cast %231 : vector<1x128xf32> to vector<1x1x128xf32>
      tpu.vector_store %arg19[%c0_102, %c0_103, %c0_104], %234 {strides = array<i32>} : memref<1x1x128xf32, #tpu.memory_space<vmem>>, vector<1x1x128xf32>,
      %cst_105 = arith.constant dense<0.000000e+00> : vector<128xf32>
      %235 = vector.multi_reduction <add>, %226, %cst_105 [0] : vector<128x128xf32> to vector<128xf32>
      %236 = vector.shape_cast %235 : vector<128xf32> to vector<1x128xf32>
      %c0_106 = arith.constant 0 : index
      %c0_107 = arith.constant 0 : index
      %c0_108 = arith.constant 0 : index
      %237 = vector.load %arg20[%c0_106, %c0_107, %c0_108] : memref<1x1x128xf32, #tpu.memory_space<vmem>>, vector<1x1x128xf32>
      %238 = vector.shape_cast %237 : vector<1x1x128xf32> to vector<1x128xf32>
      %239 = vector.shape_cast %236 : vector<1x128xf32> to vector<1x1x128xf32>
      tpu.vector_store %arg20[%c0_106, %c0_107, %c0_108], %239 {strides = array<i32>} : memref<1x1x128xf32, #tpu.memory_space<vmem>>, vector<1x1x128xf32>,
    } else {
    }
    return
  }
  func.func @transform_0(%arg0: i32, %arg1: i32) -> (i32, i32, i32) {
    %c0_i32 = arith.constant 0 : i32
    %c0_i32_0 = arith.constant 0 : i32
    %c0_i32_1 = arith.constant 0 : i32
    return %arg0, %c0_i32, %c0_i32_0 : i32, i32, i32
  }
  func.func @transform_1(%arg0: i32, %arg1: i32) -> (i32, i32, i32) {
    %c0_i32 = arith.constant 0 : i32
    %c0_i32_0 = arith.constant 0 : i32
    %c0_i32_1 = arith.constant 0 : i32
    return %arg0, %c0_i32, %c0_i32_0 : i32, i32, i32
  }
  func.func @transform_2(%arg0: i32, %arg1: i32) -> (i32, i32, i32) {
    %c0_i32 = arith.constant 0 : i32
    %c0_i32_0 = arith.constant 0 : i32
    %c0_i32_1 = arith.constant 0 : i32
    return %arg1, %c0_i32, %c0_i32_0 : i32, i32, i32
  }
  func.func @transform_3(%arg0: i32, %arg1: i32) -> (i32, i32, i32) {
    %c0_i32 = arith.constant 0 : i32
    %c0_i32_0 = arith.constant 0 : i32
    %c0_i32_1 = arith.constant 0 : i32
    return %arg1, %c0_i32, %c0_i32_0 : i32, i32, i32
  }
  func.func @transform_4(%arg0: i32, %arg1: i32) -> (i32, i32, i32) {
    %c0_i32 = arith.constant 0 : i32
    %c0_i32_0 = arith.constant 0 : i32
    %c0_i32_1 = arith.constant 0 : i32
    return %arg1, %c0_i32, %c0_i32_0 : i32, i32, i32
  }
  func.func @transform_5(%arg0: i32, %arg1: i32) -> (i32, i32, i32) {
    %c0_i32 = arith.constant 0 : i32
    %c0_i32_0 = arith.constant 0 : i32
    %c0_i32_1 = arith.constant 0 : i32
    return %arg1, %c0_i32, %c0_i32_0 : i32, i32, i32
  }
  func.func @transform_6(%arg0: i32, %arg1: i32) -> (i32, i32, i32) {
    %c0_i32 = arith.constant 0 : i32
    %c0_i32_0 = arith.constant 0 : i32
    %c0_i32_1 = arith.constant 0 : i32
    return %arg1, %c0_i32, %c0_i32_0 : i32, i32, i32
  }
  func.func @transform_7(%arg0: i32, %arg1: i32) -> (i32, i32, i32) {
    %c0_i32 = arith.constant 0 : i32
    %c0_i32_0 = arith.constant 0 : i32
    %c0_i32_1 = arith.constant 0 : i32
    return %arg1, %c0_i32, %c0_i32_0 : i32, i32, i32
  }
  func.func @transform_8(%arg0: i32, %arg1: i32) -> (i32, i32, i32) {
    %c0_i32 = arith.constant 0 : i32
    %c0_i32_0 = arith.constant 0 : i32
    %c0_i32_1 = arith.constant 0 : i32
    return %arg1, %c0_i32, %c0_i32_0 : i32, i32, i32
  }
  func.func @transform_9(%arg0: i32, %arg1: i32) -> (i32, i32, i32) {
    %c0_i32 = arith.constant 0 : i32
    %c0_i32_0 = arith.constant 0 : i32
    %c0_i32_1 = arith.constant 0 : i32
    return %arg1, %c0_i32, %c0_i32_0 : i32, i32, i32
  }
  func.func @transform_10(%arg0: i32, %arg1: i32) -> (i32, i32, i32) {
    %c0_i32 = arith.constant 0 : i32
    %c0_i32_0 = arith.constant 0 : i32
    %c0_i32_1 = arith.constant 0 : i32
    return %arg1, %c0_i32, %c0_i32_0 : i32, i32, i32
  }
  func.func @transform_11(%arg0: i32, %arg1: i32) -> (i32, i32, i32) {
    %c0_i32 = arith.constant 0 : i32
    %c0_i32_0 = arith.constant 0 : i32
    %c0_i32_1 = arith.constant 0 : i32
    return %arg1, %c0_i32, %c0_i32_0 : i32, i32, i32
  }
  func.func @transform_12(%arg0: i32, %arg1: i32) -> (i32, i32, i32) {
    %c0_i32 = arith.constant 0 : i32
    %c0_i32_0 = arith.constant 0 : i32
    %c0_i32_1 = arith.constant 0 : i32
    return %arg1, %c0_i32, %c0_i32_0 : i32, i32, i32
  }
  func.func @transform_13(%arg0: i32, %arg1: i32) -> (i32, i32, i32) {
    %c0_i32 = arith.constant 0 : i32
    %c0_i32_0 = arith.constant 0 : i32
    %c0_i32_1 = arith.constant 0 : i32
    return %arg1, %c0_i32, %c0_i32_0 : i32, i32, i32
  }
  func.func @transform_14(%arg0: i32, %arg1: i32) -> (i32, i32) {
    %c0_i32 = arith.constant 0 : i32
    %c0_i32_0 = arith.constant 0 : i32
    %c0_i32_1 = arith.constant 0 : i32
    return %c0_i32, %c0_i32_0 : i32, i32
  }
  func.func @transform_15(%arg0: i32, %arg1: i32) -> (i32, i32) {
    %c0_i32 = arith.constant 0 : i32
    %c0_i32_0 = arith.constant 0 : i32
    %c0_i32_1 = arith.constant 0 : i32
    return %c0_i32, %c0_i32_0 : i32, i32
  }
  func.func @transform_16(%arg0: i32, %arg1: i32) -> (i32, i32, i32) {
    %c0_i32 = arith.constant 0 : i32
    %c0_i32_0 = arith.constant 0 : i32
    %c0_i32_1 = arith.constant 0 : i32
    return %arg0, %c0_i32, %c0_i32_0 : i32, i32, i32
  }
  func.func @transform_17(%arg0: i32, %arg1: i32) -> (i32, i32, i32) {
    %c0_i32 = arith.constant 0 : i32
    %c0_i32_0 = arith.constant 0 : i32
    %c0_i32_1 = arith.constant 0 : i32
    return %arg0, %c0_i32, %c0_i32_0 : i32, i32, i32
  }
  func.func @transform_18(%arg0: i32, %arg1: i32) -> (i32, i32, i32) {
    %c0_i32 = arith.constant 0 : i32
    %c0_i32_0 = arith.constant 0 : i32
    %c0_i32_1 = arith.constant 0 : i32
    return %arg0, %c0_i32, %c0_i32_0 : i32, i32, i32
  }
}

</mosaic_0001>

<llo_original>
// kernel: frozen_clip_forward.1
$region0: #{frozen_clip_forward.1}
  #allocation0 [shape = 'u32[]', space=smem, size = 0x4, offset = 0x4, fixed_abs, tag = 'smem constant byte address 0x4 - core index']
  #allocation1 [shape = 'u32[144,128]{1,0:T(1,128)}', space=vmem, size = 0x12000, scoped, tag = 'internal scratch']
  #allocation2 [shape = 'f32[128,128]{1,0:T(8,128)}', space=vmem, size = 0x10000, scoped, tag = 'scratch operand']
  #allocation3 [shape = 'f32[128,128]{1,0:T(8,128)}', space=vmem, size = 0x10000, scoped, tag = 'scratch operand']
  %s0 = inlined_call_operand.vmem [shape: f32[2,128,128], index: 0, kind: input, shape index: {}]
  %s1 = inlined_call_operand.vmem [shape: f32[2,128,1], index: 1, kind: input, shape index: {}]
  %s2 = inlined_call_operand.vmem [shape: f32[2,1,128], index: 2, kind: input, shape index: {}]
  %s3 = inlined_call_operand.vmem [shape: f32[2,1,128], index: 3, kind: input, shape index: {}]
  %s4 = inlined_call_operand.vmem [shape: bf16[2,128,384], index: 4, kind: input, shape index: {}]
  %s5 = inlined_call_operand.vmem [shape: f32[2,1,384], index: 5, kind: input, shape index: {}]
  %s6 = inlined_call_operand.vmem [shape: bf16[2,128,128], index: 6, kind: input, shape index: {}]
  %s7 = inlined_call_operand.vmem [shape: f32[2,1,128], index: 7, kind: input, shape index: {}]
  %s8 = inlined_call_operand.vmem [shape: f32[2,1,128], index: 8, kind: input, shape index: {}]
  %s9 = inlined_call_operand.vmem [shape: f32[2,1,128], index: 9, kind: input, shape index: {}]
  %s10 = inlined_call_operand.vmem [shape: bf16[2,128,512], index: 10, kind: input, shape index: {}]
  %s11 = inlined_call_operand.vmem [shape: f32[2,1,512], index: 11, kind: input, shape index: {}]
  %s12 = inlined_call_operand.vmem [shape: bf16[2,512,128], index: 12, kind: input, shape index: {}]
  %s13 = inlined_call_operand.vmem [shape: f32[2,1,128], index: 13, kind: input, shape index: {}]
  %s14 = inlined_call_operand.vmem [shape: f32[1,128], index: 14, kind: input, shape index: {}]
  %s15 = inlined_call_operand.vmem [shape: f32[1,128], index: 15, kind: input, shape index: {}]
  %s16 = inlined_call_operand.vmem [shape: f32[2,128,128], index: 16, kind: output, shape index: {0}]
  %s17 = inlined_call_operand.vmem [shape: f32[2,1,128], index: 17, kind: output, shape index: {1}]
  %s18 = inlined_call_operand.vmem [shape: f32[2,1,128], index: 18, kind: output, shape index: {2}]
  %19 = xla_tuple %s16, %s17, %s18
  %s20 = sld [smem:[#allocation0]]
  $region121: #{frozen_clip_forward.1} parent=0
    _
  %s22 = ssub.s32 1, %s20
  %s23 = scalar_select 0, %s22, %s20
  loop: start=0, step=1, limit=6
  $region2: #{frozen_clip_forward.1} parent=0 // loop_pre_header
    _
  $region3: #{frozen_clip_forward.1} parent=0 // loop_header
    %s25 = sphi 0, %s29
    %p26 = scmp.ge.s32.totalorder %s25, 6
    %s32 = sphi 0, %s44
    %s33 = sphi 0, %s40
    %s34 = sphi 0, %s32
    %s35 = sphi 0, %s33
    %s36 = sphi 0, %s34
    %s37 = sphi 0, %s35
    %s47 = sphi 0, %s49
    %s50 = sphi 0, %s47
    %s51 = sphi 0, %s50
    %s67 = sphi 0, %s51
    %s73 = sphi 0, %s75
    %s76 = sphi 0, %s73
    %s77 = sphi 0, %s76
    %s93 = sphi 0, %s77
    %s99 = sphi 0, %s101
    %s102 = sphi 0, %s99
    %s103 = sphi 0, %s102
    %s119 = sphi 0, %s103
    %s125 = sphi 0, %s127
    %s128 = sphi 0, %s125
    %s129 = sphi 0, %s128
    %s145 = sphi 0, %s129
    %s151 = sphi 0, %s153
    %s154 = sphi 0, %s151
    %s155 = sphi 0, %s154
    %s171 = sphi 0, %s155
    %s177 = sphi 0, %s179
    %s180 = sphi 0, %s177
    %s181 = sphi 0, %s180
    %s197 = sphi 0, %s181
    %s203 = sphi 0, %s205
    %s206 = sphi 0, %s203
    %s207 = sphi 0, %s206
    %s223 = sphi 0, %s207
    %s229 = sphi 0, %s231
    %s232 = sphi 0, %s229
    %s233 = sphi 0, %s232
    %s249 = sphi 0, %s233
    %s255 = sphi 0, %s257
    %s258 = sphi 0, %s255
    %s259 = sphi 0, %s258
    %s275 = sphi 0, %s259
    %s281 = sphi 0, %s283
    %s284 = sphi 0, %s281
    %s285 = sphi 0, %s284
    %s301 = sphi 0, %s285
    %s307 = sphi 0, %s309
    %s310 = sphi 0, %s307
    %s311 = sphi 0, %s310
    %s327 = sphi 0, %s311
    %s333 = sphi 0, %s335
    %s336 = sphi 0, %s333
    %s337 = sphi 0, %s336
    %s353 = sphi 0, %s337
    %s359 = sphi 0, %s361
    %s362 = sphi 0, %s359
    %s363 = sphi 0, %s362
    %s379 = sphi 0, %s363
    %s385 = sphi 0, %s387
    %s388 = sphi 0, %s385
    %s389 = sphi 0, %s388
    %s405 = sphi 0, %s389
    %s409 = sphi 0, %s409
    %s411 = sphi 0, %s409
    %s412 = sphi 0, %s411
    %s426 = sphi 0, %s412
    %s430 = sphi 0, %s430
    %s432 = sphi 0, %s430
    %s433 = sphi 0, %s432
    %s447 = sphi 0, %s433
    %s453 = sphi 0, %s455
    %s456 = sphi 0, %s453
    %s457 = sphi 0, %s456
    %s473 = sphi 0, %s457
    %s479 = sphi 0, %s481
    %s482 = sphi 0, %s479
    %s483 = sphi 0, %s482
    %s499 = sphi 0, %s483
    %s505 = sphi 0, %s507
    %s508 = sphi 0, %s505
    %s509 = sphi 0, %s508
    %s525 = sphi 0, %s509
  $region4: #{frozen_clip_forward.1} parent=0 // loop_header_branch
    %28 = sbr.rel (%p26) target = $region8
  $region5: #{frozen_clip_forward.1} parent=0 // loop_body
    %s30 = ssub.s32 %s25, 1
    %s31 = ssub.s32 %s25, 2
    %s38 = sadd.s32 1, %s33
    %p39 = scmp.ge.s32.totalorder %s38, 2
    %s40 = scalar_select %p39, 0, %s38
    %s41 = sadd.s32 1, %s32
    %s42 = scalar_select %p39, %s41, %s32
    %p43 = scmp.ge.s32.totalorder %s42, 2
    %s44 = scalar_select %p43, 0, %s42
    %s45 = ssub.s32 %s32, %s44
    %p46 = scmp.eq.s32.totalorder %s45, 0
    %s48 = sadd.s32 %s47, 1
    %s49 = scalar_select %p46, %s47, %s48
    %p52 = pneg %p46
    %p53 = scmp.eq.s32.totalorder %s25, 3
    %p54 = por %p52, %p53
    %p55 = scmp.ne.s32.totalorder %s47, %s50
    %p56 = scmp.eq.s32.totalorder %s25, 0
    %p57 = por %p55, %p56
    %p58 = scmp.ne.s32.totalorder %s47, %s50
    %p59 = scmp.eq.s32.totalorder %s30, 3
    %p60 = por %p58, %p59
    %p61 = scmp.ne.s32.totalorder %s50, %s51
    %p62 = scmp.eq.s32.totalorder %s30, 0
    %p63 = por %p61, %p62
    %p64 = scmp.ne.s32.totalorder %s50, %s51
    %p65 = scmp.eq.s32.totalorder %s31, 3
    %p66 = por %p64, %p65
    %p68 = scmp.ne.s32.totalorder %s51, %s67
    %p69 = scmp.eq.s32.totalorder %s31, 0
    %p70 = por %p68, %p69
    %s71 = ssub.s32 %s32, %s44
    %p72 = scmp.eq.s32.totalorder %s71, 0
    %s74 = sadd.s32 %s73, 1
    %s75 = scalar_select %p72, %s73, %s74
    %p78 = pneg %p72
    %p79 = scmp.eq.s32.totalorder %s25, 3
    %p80 = por %p78, %p79
    %p81 = scmp.ne.s32.totalorder %s73, %s76
    %p82 = scmp.eq.s32.totalorder %s25, 0
    %p83 = por %p81, %p82
    %p84 = scmp.ne.s32.totalorder %s73, %s76
    %p85 = scmp.eq.s32.totalorder %s30, 3
    %p86 = por %p84, %p85
    %p87 = scmp.ne.s32.totalorder %s76, %s77
    %p88 = scmp.eq.s32.totalorder %s30, 0
    %p89 = por %p87, %p88
    %p90 = scmp.ne.s32.totalorder %s76, %s77
    %p91 = scmp.eq.s32.totalorder %s31, 3
    %p92 = por %p90, %p91
    %p94 = scmp.ne.s32.totalorder %s77, %s93
    %p95 = scmp.eq.s32.totalorder %s31, 0
    %p96 = por %p94, %p95
    %s97 = ssub.s32 %s33, %s40
    %p98 = scmp.eq.s32.totalorder %s97, 0
    %s100 = sadd.s32 %s99, 1
    %s101 = scalar_select %p98, %s99, %s100
    %p104 = pneg %p98
    %p105 = scmp.eq.s32.totalorder %s25, 3
    %p106 = por %p104, %p105
    %p107 = scmp.ne.s32.totalorder %s99, %s102
    %p108 = scmp.eq.s32.totalorder %s25, 0
    %p109 = por %p107, %p108
    %p110 = scmp.ne.s32.totalorder %s99, %s102
    %p111 = scmp.eq.s32.totalorder %s30, 3
    %p112 = por %p110, %p111
    %p113 = scmp.ne.s32.totalorder %s102, %s103
    %p114 = scmp.eq.s32.totalorder %s30, 0
    %p115 = por %p113, %p114
    %p116 = scmp.ne.s32.totalorder %s102, %s103
    %p117 = scmp.eq.s32.totalorder %s31, 3
    %p118 = por %p116, %p117
    %p120 = scmp.ne.s32.totalorder %s103, %s119
    %p121 = scmp.eq.s32.totalorder %s31, 0
    %p122 = por %p120, %p121
    %s123 = ssub.s32 %s33, %s40
    %p124 = scmp.eq.s32.totalorder %s123, 0
    %s126 = sadd.s32 %s125, 1
    %s127 = scalar_select %p124, %s125, %s126
    %p130 = pneg %p124
    %p131 = scmp.eq.s32.totalorder %s25, 3
    %p132 = por %p130, %p131
    %p133 = scmp.ne.s32.totalorder %s125, %s128
    %p134 = scmp.eq.s32.totalorder %s25, 0
    %p135 = por %p133, %p134
    %p136 = scmp.ne.s32.totalorder %s125, %s128
    %p137 = scmp.eq.s32.totalorder %s30, 3
    %p138 = por %p136, %p137
    %p139 = scmp.ne.s32.totalorder %s128, %s129
    %p140 = scmp.eq.s32.totalorder %s30, 0
    %p141 = por %p139, %p140
    %p142 = scmp.ne.s32.totalorder %s128, %s129
    %p143 = scmp.eq.s32.totalorder %s31, 3
    %p144 = por %p142, %p143
    %p146 = scmp.ne.s32.totalorder %s129, %s145
    %p147 = scmp.eq.s32.totalorder %s31, 0
    %p148 = por %p146, %p147
    %s149 = ssub.s32 %s33, %s40
    %p150 = scmp.eq.s32.totalorder %s149, 0
    %s152 = sadd.s32 %s151, 1
    %s153 = scalar_select %p150, %s151, %s152
    %p156 = pneg %p150
    %p157 = scmp.eq.s32.totalorder %s25, 3
    %p158 = por %p156, %p157
    %p159 = scmp.ne.s32.totalorder %s151, %s154
    %p160 = scmp.eq.s32.totalorder %s25, 0
    %p161 = por %p159, %p160
    %p162 = scmp.ne.s32.totalorder %s151, %s154
    %p163 = scmp.eq.s32.totalorder %s30, 3
    %p164 = por %p162, %p163
    %p165 = scmp.ne.s32.totalorder %s154, %s155
    %p166 = scmp.eq.s32.totalorder %s30, 0
    %p167 = por %p165, %p166
    %p168 = scmp.ne.s32.totalorder %s154, %s155
    %p169 = scmp.eq.s32.totalorder %s31, 3
    %p170 = por %p168, %p169
    %p172 = scmp.ne.s32.totalorder %s155, %s171
    %p173 = scmp.eq.s32.totalorder %s31, 0
    %p174 = por %p172, %p173
    %s175 = ssub.s32 %s33, %s40
    %p176 = scmp.eq.s32.totalorder %s175, 0
    %s178 = sadd.s32 %s177, 1
    %s179 = scalar_select %p176, %s177, %s178
    %p182 = pneg %p176
    %p183 = scmp.eq.s32.totalorder %s25, 3
    %p184 = por %p182, %p183
    %p185 = scmp.ne.s32.totalorder %s177, %s180
    %p186 = scmp.eq.s32.totalorder %s25, 0
    %p187 = por %p185, %p186
    %p188 = scmp.ne.s32.totalorder %s177, %s180
    %p189 = scmp.eq.s32.totalorder %s30, 3
    %p190 = por %p188, %p189
    %p191 = scmp.ne.s32.totalorder %s180, %s181
    %p192 = scmp.eq.s32.totalorder %s30, 0
    %p193 = por %p191, %p192
    %p194 = scmp.ne.s32.totalorder %s180, %s181
    %p195 = scmp.eq.s32.totalorder %s31, 3
    %p196 = por %p194, %p195
    %p198 = scmp.ne.s32.totalorder %s181, %s197
    %p199 = scmp.eq.s32.totalorder %s31, 0
    %p200 = por %p198, %p199
    %s201 = ssub.s32 %s33, %s40
    %p202 = scmp.eq.s32.totalorder %s201, 0
    %s204 = sadd.s32 %s203, 1
    %s205 = scalar_select %p202, %s203, %s204
    %p208 = pneg %p202
    %p209 = scmp.eq.s32.totalorder %s25, 3
    %p210 = por %p208, %p209
    %p211 = scmp.ne.s32.totalorder %s203, %s206
    %p212 = scmp.eq.s32.totalorder %s25, 0
    %p213 = por %p211, %p212
    %p214 = scmp.ne.s32.totalorder %s203, %s206
    %p215 = scmp.eq.s32.totalorder %s30, 3
    %p216 = por %p214, %p215
    %p217 = scmp.ne.s32.totalorder %s206, %s207
    %p218 = scmp.eq.s32.totalorder %s30, 0
    %p219 = por %p217, %p218
    %p220 = scmp.ne.s32.totalorder %s206, %s207
    %p221 = scmp.eq.s32.totalorder %s31, 3
    %p222 = por %p220, %p221
    %p224 = scmp.ne.s32.totalorder %s207, %s223
    %p225 = scmp.eq.s32.totalorder %s31, 0
    %p226 = por %p224, %p225
    %s227 = ssub.s32 %s33, %s40
    %p228 = scmp.eq.s32.totalorder %s227, 0
    %s230 = sadd.s32 %s229, 1
    %s231 = scalar_select %p228, %s229, %s230
    %p234 = pneg %p228
    %p235 = scmp.eq.s32.totalorder %s25, 3
    %p236 = por %p234, %p235
    %p237 = scmp.ne.s32.totalorder %s229, %s232
    %p238 = scmp.eq.s32.totalorder %s25, 0
    %p239 = por %p237, %p238
    %p240 = scmp.ne.s32.totalorder %s229, %s232
    %p241 = scmp.eq.s32.totalorder %s30, 3
    %p242 = por %p240, %p241
    %p243 = scmp.ne.s32.totalorder %s232, %s233
    %p244 = scmp.eq.s32.totalorder %s30, 0
    %p245 = por %p243, %p244
    %p246 = scmp.ne.s32.totalorder %s232, %s233
    %p247 = scmp.eq.s32.totalorder %s31, 3
    %p248 = por %p246, %p247
    %p250 = scmp.ne.s32.totalorder %s233, %s249
    %p251 = scmp.eq.s32.totalorder %s31, 0
    %p252 = por %p250, %p251
    %s253 = ssub.s32 %s33, %s40
    %p254 = scmp.eq.s32.totalorder %s253, 0
    %s256 = sadd.s32 %s255, 1
    %s257 = scalar_select %p254, %s255, %s256
    %p260 = pneg %p254
    %p261 = scmp.eq.s32.totalorder %s25, 3
    %p262 = por %p260, %p261
    %p263 = scmp.ne.s32.totalorder %s255, %s258
    %p264 = scmp.eq.s32.totalorder %s25, 0
    %p265 = por %p263, %p264
    %p266 = scmp.ne.s32.totalorder %s255, %s258
    %p267 = scmp.eq.s32.totalorder %s30, 3
    %p268 = por %p266, %p267
    %p269 = scmp.ne.s32.totalorder %s258, %s259
    %p270 = scmp.eq.s32.totalorder %s30, 0
    %p271 = por %p269, %p270
    %p272 = scmp.ne.s32.totalorder %s258, %s259
    %p273 = scmp.eq.s32.totalorder %s31, 3
    %p274 = por %p272, %p273
    %p276 = scmp.ne.s32.totalorder %s259, %s275
    %p277 = scmp.eq.s32.totalorder %s31, 0
    %p278 = por %p276, %p277
    %s279 = ssub.s32 %s33, %s40
    %p280 = scmp.eq.s32.totalorder %s279, 0
    %s282 = sadd.s32 %s281, 1
    %s283 = scalar_select %p280, %s281, %s282
    %p286 = pneg %p280
    %p287 = scmp.eq.s32.totalorder %s25, 3
    %p288 = por %p286, %p287
    %p289 = scmp.ne.s32.totalorder %s281, %s284
    %p290 = scmp.eq.s32.totalorder %s25, 0
    %p291 = por %p289, %p290
    %p292 = scmp.ne.s32.totalorder %s281, %s284
    %p293 = scmp.eq.s32.totalorder %s30, 3
    %p294 = por %p292, %p293
    %p295 = scmp.ne.s32.totalorder %s284, %s285
    %p296 = scmp.eq.s32.totalorder %s30, 0
    %p297 = por %p295, %p296
    %p298 = scmp.ne.s32.totalorder %s284, %s285
    %p299 = scmp.eq.s32.totalorder %s31, 3
    %p300 = por %p298, %p299
    %p302 = scmp.ne.s32.totalorder %s285, %s301
    %p303 = scmp.eq.s32.totalorder %s31, 0
    %p304 = por %p302, %p303
    %s305 = ssub.s32 %s33, %s40
    %p306 = scmp.eq.s32.totalorder %s305, 0
    %s308 = sadd.s32 %s307, 1
    %s309 = scalar_select %p306, %s307, %s308
    %p312 = pneg %p306
    %p313 = scmp.eq.s32.totalorder %s25, 3
    %p314 = por %p312, %p313
    %p315 = scmp.ne.s32.totalorder %s307, %s310
    %p316 = scmp.eq.s32.totalorder %s25, 0
    %p317 = por %p315, %p316
    %p318 = scmp.ne.s32.totalorder %s307, %s310
    %p319 = scmp.eq.s32.totalorder %s30, 3
    %p320 = por %p318, %p319
    %p321 = scmp.ne.s32.totalorder %s310, %s311
    %p322 = scmp.eq.s32.totalorder %s30, 0
    %p323 = por %p321, %p322
    %p324 = scmp.ne.s32.totalorder %s310, %s311
    %p325 = scmp.eq.s32.totalorder %s31, 3
    %p326 = por %p324, %p325
    %p328 = scmp.ne.s32.totalorder %s311, %s327
    %p329 = scmp.eq.s32.totalorder %s31, 0
    %p330 = por %p328, %p329
    %s331 = ssub.s32 %s33, %s40
    %p332 = scmp.eq.s32.totalorder %s331, 0
    %s334 = sadd.s32 %s333, 1
    %s335 = scalar_select %p332, %s333, %s334
    %p338 = pneg %p332
    %p339 = scmp.eq.s32.totalorder %s25, 3
    %p340 = por %p338, %p339
    %p341 = scmp.ne.s32.totalorder %s333, %s336
    %p342 = scmp.eq.s32.totalorder %s25, 0
    %p343 = por %p341, %p342
    %p344 = scmp.ne.s32.totalorder %s333, %s336
    %p345 = scmp.eq.s32.totalorder %s30, 3
    %p346 = por %p344, %p345
    %p347 = scmp.ne.s32.totalorder %s336, %s337
    %p348 = scmp.eq.s32.totalorder %s30, 0
    %p349 = por %p347, %p348
    %p350 = scmp.ne.s32.totalorder %s336, %s337
    %p351 = scmp.eq.s32.totalorder %s31, 3
    %p352 = por %p350, %p351
    %p354 = scmp.ne.s32.totalorder %s337, %s353
    %p355 = scmp.eq.s32.totalorder %s31, 0
    %p356 = por %p354, %p355
    %s357 = ssub.s32 %s33, %s40
    %p358 = scmp.eq.s32.totalorder %s357, 0
    %s360 = sadd.s32 %s359, 1
    %s361 = scalar_select %p358, %s359, %s360
    %p364 = pneg %p358
    %p365 = scmp.eq.s32.totalorder %s25, 3
    %p366 = por %p364, %p365
    %p367 = scmp.ne.s32.totalorder %s359, %s362
    %p368 = scmp.eq.s32.totalorder %s25, 0
    %p369 = por %p367, %p368
    %p370 = scmp.ne.s32.totalorder %s359, %s362
    %p371 = scmp.eq.s32.totalorder %s30, 3
    %p372 = por %p370, %p371
    %p373 = scmp.ne.s32.totalorder %s362, %s363
    %p374 = scmp.eq.s32.totalorder %s30, 0
    %p375 = por %p373, %p374
    %p376 = scmp.ne.s32.totalorder %s362, %s363
    %p377 = scmp.eq.s32.totalorder %s31, 3
    %p378 = por %p376, %p377
    %p380 = scmp.ne.s32.totalorder %s363, %s379
    %p381 = scmp.eq.s32.totalorder %s31, 0
    %p382 = por %p380, %p381
    %s383 = ssub.s32 %s33, %s40
    %p384 = scmp.eq.s32.totalorder %s383, 0
    %s386 = sadd.s32 %s385, 1
    %s387 = scalar_select %p384, %s385, %s386
    %p390 = pneg %p384
    %p391 = scmp.eq.s32.totalorder %s25, 3
    %p392 = por %p390, %p391
    %p393 = scmp.ne.s32.totalorder %s385, %s388
    %p394 = scmp.eq.s32.totalorder %s25, 0
    %p395 = por %p393, %p394
    %p396 = scmp.ne.s32.totalorder %s385, %s388
    %p397 = scmp.eq.s32.totalorder %s30, 3
    %p398 = por %p396, %p397
    %p399 = scmp.ne.s32.totalorder %s388, %s389
    %p400 = scmp.eq.s32.totalorder %s30, 0
    %p401 = por %p399, %p400
    %p402 = scmp.ne.s32.totalorder %s388, %s389
    %p403 = scmp.eq.s32.totalorder %s31, 3
    %p404 = por %p402, %p403
    %p406 = scmp.ne.s32.totalorder %s389, %s405
    %p407 = scmp.eq.s32.totalorder %s31, 0
    %p408 = por %p406, %p407
    %s410 = sadd.s32 %s409, 1
    %p413 = scmp.eq.s32.totalorder %s25, 3
    %p414 = scmp.ne.s32.totalorder %s409, %s411
    %p415 = scmp.eq.s32.totalorder %s25, 0
    %p416 = por %p414, %p415
    %p417 = scmp.ne.s32.totalorder %s409, %s411
    %p418 = scmp.eq.s32.totalorder %s30, 3
    %p419 = por %p417, %p418
    %p420 = scmp.ne.s32.totalorder %s411, %s412
    %p421 = scmp.eq.s32.totalorder %s30, 0
    %p422 = por %p420, %p421
    %p423 = scmp.ne.s32.totalorder %s411, %s412
    %p424 = scmp.eq.s32.totalorder %s31, 3
    %p425 = por %p423, %p424
    %p427 = scmp.ne.s32.totalorder %s412, %s426
    %p428 = scmp.eq.s32.totalorder %s31, 0
    %p429 = por %p427, %p428
    %s431 = sadd.s32 %s430, 1
    %p434 = scmp.eq.s32.totalorder %s25, 3
    %p435 = scmp.ne.s32.totalorder %s430, %s432
    %p436 = scmp.eq.s32.totalorder %s25, 0
    %p437 = por %p435, %p436
    %p438 = scmp.ne.s32.totalorder %s430, %s432
    %p439 = scmp.eq.s32.totalorder %s30, 3
    %p440 = por %p438, %p439
    %p441 = scmp.ne.s32.totalorder %s432, %s433
    %p442 = scmp.eq.s32.totalorder %s30, 0
    %p443 = por %p441, %p442
    %p444 = scmp.ne.s32.totalorder %s432, %s433
    %p445 = scmp.eq.s32.totalorder %s31, 3
    %p446 = por %p444, %p445
    %p448 = scmp.ne.s32.totalorder %s433, %s447
    %p449 = scmp.eq.s32.totalorder %s31, 0
    %p450 = por %p448, %p449
    %s451 = ssub.s32 %s32, %s44
    %p452 = scmp.eq.s32.totalorder %s451, 0
    %s454 = sadd.s32 %s453, 1
    %s455 = scalar_select %p452, %s453, %s454
    %p458 = pneg %p452
    %p459 = scmp.eq.s32.totalorder %s25, 3
    %p460 = por %p458, %p459
    %p461 = scmp.ne.s32.totalorder %s453, %s456
    %p462 = scmp.eq.s32.totalorder %s25, 0
    %p463 = por %p461, %p462
    %p464 = scmp.ne.s32.totalorder %s453, %s456
    %p465 = scmp.eq.s32.totalorder %s30, 3
    %p466 = por %p464, %p465
    %p467 = scmp.ne.s32.totalorder %s456, %s457
    %p468 = scmp.eq.s32.totalorder %s30, 0
    %p469 = por %p467, %p468
    %p470 = scmp.ne.s32.totalorder %s456, %s457
    %p471 = scmp.eq.s32.totalorder %s31, 3
    %p472 = por %p470, %p471
    %p474 = scmp.ne.s32.totalorder %s457, %s473
    %p475 = scmp.eq.s32.totalorder %s31, 0
    %p476 = por %p474, %p475
    %s477 = ssub.s32 %s32, %s44
    %p478 = scmp.eq.s32.totalorder %s477, 0
    %s480 = sadd.s32 %s479, 1
    %s481 = scalar_select %p478, %s479, %s480
    %p484 = pneg %p478
    %p485 = scmp.eq.s32.totalorder %s25, 3
    %p486 = por %p484, %p485
    %p487 = scmp.ne.s32.totalorder %s479, %s482
    %p488 = scmp.eq.s32.totalorder %s25, 0
    %p489 = por %p487, %p488
    %p490 = scmp.ne.s32.totalorder %s479, %s482
    %p491 = scmp.eq.s32.totalorder %s30, 3
    %p492 = por %p490, %p491
    %p493 = scmp.ne.s32.totalorder %s482, %s483
    %p494 = scmp.eq.s32.totalorder %s30, 0
    %p495 = por %p493, %p494
    %p496 = scmp.ne.s32.totalorder %s482, %s483
    %p497 = scmp.eq.s32.totalorder %s31, 3
    %p498 = por %p496, %p497
    %p500 = scmp.ne.s32.totalorder %s483, %s499
    %p501 = scmp.eq.s32.totalorder %s31, 0
    %p502 = por %p500, %p501
    %s503 = ssub.s32 %s32, %s44
    %p504 = scmp.eq.s32.totalorder %s503, 0
    %s506 = sadd.s32 %s505, 1
    %s507 = scalar_select %p504, %s505, %s506
    %p510 = pneg %p504
    %p511 = scmp.eq.s32.totalorder %s25, 3
    %p512 = por %p510, %p511
    %p513 = scmp.ne.s32.totalorder %s505, %s508
    %p514 = scmp.eq.s32.totalorder %s25, 0
    %p515 = por %p513, %p514
    %p516 = scmp.ne.s32.totalorder %s505, %s508
    %p517 = scmp.eq.s32.totalorder %s30, 3
    %p518 = por %p516, %p517
    %p519 = scmp.ne.s32.totalorder %s508, %s509
    %p520 = scmp.eq.s32.totalorder %s30, 0
    %p521 = por %p519, %p520
    %p522 = scmp.ne.s32.totalorder %s508, %s509
    %p523 = scmp.eq.s32.totalorder %s31, 3
    %p524 = por %p522, %p523
    %p526 = scmp.ne.s32.totalorder %s509, %s525
    %p527 = scmp.eq.s32.totalorder %s31, 0
    %p528 = por %p526, %p527
    %p529 = scmp.le.s32.totalorder 1, %s25
    %p530 = scmp.lt.s32.totalorder %s25, 5
    %p531 = pnand %p529, %p530
    %p532 = pneg %p531
    // Predicated region
    $region9: #{frozen_clip_forward.1} parent=5 // pred_check
      _
    $region10: #{frozen_clip_forward.1} parent=5 // pred_check_branch
      %534 = sbr.rel (%p531) target = $region12
    $region11: #{frozen_clip_forward.1} parent=5 // pred_region
      %s535 = ssub.s32 %s25, 1
      // Predicated region
      $region13: #{frozen_clip_forward.1} parent=11 // pred_check
        %p536 = pneg %p422
      $region14: #{frozen_clip_forward.1} parent=11 // pred_check_branch
        %538 = sbr.rel (%p536) target = $region16
      $region15: #{frozen_clip_forward.1} parent=11 // pred_region
        _
      $region16: #{frozen_clip_forward.1} parent=11 // pred_fallthru
        _
      // Predicated region
      $region17: #{frozen_clip_forward.1} parent=11 // pred_check
        %p539 = pneg %p443
      $region18: #{frozen_clip_forward.1} parent=11 // pred_check_branch
        %541 = sbr.rel (%p539) target = $region20
      $region19: #{frozen_clip_forward.1} parent=11 // pred_region
        _
      $region20: #{frozen_clip_forward.1} parent=11 // pred_fallthru
        _
    $region12: #{frozen_clip_forward.1} parent=5 // pred_fallthru
      _
    %p542 = scmp.lt.s32.totalorder %s25, 4
    // Predicated region
    $region21: #{frozen_clip_forward.1} parent=5 // pred_check
      %p543 = pneg %p542
    $region22: #{frozen_clip_forward.1} parent=5 // pred_check_branch
      %545 = sbr.rel (%p543) target = $region24
    $region23: #{frozen_clip_forward.1} parent=5 // pred_region
      // Predicated region
      $region25: #{frozen_clip_forward.1} parent=23 // pred_check
        %p546 = pneg %p57
      $region26: #{frozen_clip_forward.1} parent=23 // pred_check_branch
        %548 = sbr.rel (%p546) target = $region28
      $region27: #{frozen_clip_forward.1} parent=23 // pred_region
        %p549 = scmp.lt.s32.totalorder %s32, 1
        %s550 = scalar_select %p549, %s32, 1
        %s551 = smul.addr %s550, 16
        %s552 = smul.addr %s551, 8
        %s553 = scalar_lea.vmem %s0, %s552
      $region28: #{frozen_clip_forward.1} parent=23 // pred_fallthru
        _
      // Predicated region
      $region29: #{frozen_clip_forward.1} parent=23 // pred_check
        %p554 = pneg %p83
      $region30: #{frozen_clip_forward.1} parent=23 // pred_check_branch
        %556 = sbr.rel (%p554) target = $region32
      $region31: #{frozen_clip_forward.1} parent=23 // pred_region
        %p557 = scmp.lt.s32.totalorder %s32, 1
        %s558 = scalar_select %p557, %s32, 1
        %s559 = smul.addr %s558, 16
        %s560 = smul.addr %s559, 8
        %s561 = scalar_lea.vmem %s1, %s560
      $region32: #{frozen_clip_forward.1} parent=23 // pred_fallthru
        _
      // Predicated region
      $region33: #{frozen_clip_forward.1} parent=23 // pred_check
        %p562 = pneg %p109
      $region34: #{frozen_clip_forward.1} parent=23 // pred_check_branch
        %564 = sbr.rel (%p562) target = $region36
      $region35: #{frozen_clip_forward.1} parent=23 // pred_region
        %p565 = scmp.lt.s32.totalorder %s33, 1
        %s566 = scalar_select %p565, %s33, 1
        %s567 = scalar_lea.vmem %s2, %s566
      $region36: #{frozen_clip_forward.1} parent=23 // pred_fallthru
        _
      // Predicated region
      $region37: #{frozen_clip_forward.1} parent=23 // pred_check
        %p568 = pneg %p135
      $region38: #{frozen_clip_forward.1} parent=23 // pred_check_branch
        %570 = sbr.rel (%p568) target = $region40
      $region39: #{frozen_clip_forward.1} parent=23 // pred_region
        %p571 = scmp.lt.s32.totalorder %s33, 1
        %s572 = scalar_select %p571, %s33, 1
        %s573 = scalar_lea.vmem %s3, %s572
      $region40: #{frozen_clip_forward.1} parent=23 // pred_fallthru
        _
      // Predicated region
      $region41: #{frozen_clip_forward.1} parent=23 // pred_check
        %p574 = pneg %p161
      $region42: #{frozen_clip_forward.1} parent=23 // pred_check_branch
        %576 = sbr.rel (%p574) target = $region44
      $region43: #{frozen_clip_forward.1} parent=23 // pred_region
        %p577 = scmp.lt.s32.totalorder %s33, 1
        %s578 = scalar_select %p577, %s33, 1
        %s579 = smul.addr %s578, 48
        %s580 = smul.addr %s579, 4
        %s581 = scalar_lea.vmem %s4, %s580
      $region44: #{frozen_clip_forward.1} parent=23 // pred_fallthru
        _
      // Predicated region
      $region45: #{frozen_clip_forward.1} parent=23 // pred_check
        %p582 = pneg %p187
      $region46: #{frozen_clip_forward.1} parent=23 // pred_check_branch
        %584 = sbr.rel (%p582) target = $region48
      $region47: #{frozen_clip_forward.1} parent=23 // pred_region
        %p585 = scmp.lt.s32.totalorder %s33, 1
        %s586 = scalar_select %p585, %s33, 1
        %s587 = smul.addr %s586, 3
        %s588 = scalar_lea.vmem %s5, %s587
      $region48: #{frozen_clip_forward.1} parent=23 // pred_fallthru
        _
      // Predicated region
      $region49: #{frozen_clip_forward.1} parent=23 // pred_check
        %p589 = pneg %p213
      $region50: #{frozen_clip_forward.1} parent=23 // pred_check_branch
        %591 = sbr.rel (%p589) target = $region52
      $region51: #{frozen_clip_forward.1} parent=23 // pred_region
        %p592 = scmp.lt.s32.totalorder %s33, 1
        %s593 = scalar_select %p592, %s33, 1
        %s594 = smul.addr %s593, 16
        %s595 = smul.addr %s594, 4
        %s596 = scalar_lea.vmem %s6, %s595
      $region52: #{frozen_clip_forward.1} parent=23 // pred_fallthru
        _
      // Predicated region
      $region53: #{frozen_clip_forward.1} parent=23 // pred_check
        %p597 = pneg %p239
      $region54: #{frozen_clip_forward.1} parent=23 // pred_check_branch
        %599 = sbr.rel (%p597) target = $region56
      $region55: #{frozen_clip_forward.1} parent=23 // pred_region
        %p600 = scmp.lt.s32.totalorder %s33, 1
        %s601 = scalar_select %p600, %s33, 1
        %s602 = scalar_lea.vmem %s7, %s601
      $region56: #{frozen_clip_forward.1} parent=23 // pred_fallthru
        _
      // Predicated region
      $region57: #{frozen_clip_forward.1} parent=23 // pred_check
        %p603 = pneg %p265
      $region58: #{frozen_clip_forward.1} parent=23 // pred_check_branch
        %605 = sbr.rel (%p603) target = $region60
      $region59: #{frozen_clip_forward.1} parent=23 // pred_region
        %p606 = scmp.lt.s32.totalorder %s33, 1
        %s607 = scalar_select %p606, %s33, 1
        %s608 = scalar_lea.vmem %s8, %s607
      $region60: #{frozen_clip_forward.1} parent=23 // pred_fallthru
        _
      // Predicated region
      $region61: #{frozen_clip_forward.1} parent=23 // pred_check
        %p609 = pneg %p291
      $region62: #{frozen_clip_forward.1} parent=23 // pred_check_branch
        %611 = sbr.rel (%p609) target = $region64
      $region63: #{frozen_clip_forward.1} parent=23 // pred_region
        %p612 = scmp.lt.s32.totalorder %s33, 1
        %s613 = scalar_select %p612, %s33, 1
        %s614 = scalar_lea.vmem %s9, %s613
      $region64: #{frozen_clip_forward.1} parent=23 // pred_fallthru
        _
      // Predicated region
      $region65: #{frozen_clip_forward.1} parent=23 // pred_check
        %p615 = pneg %p317
      $region66: #{frozen_clip_forward.1} parent=23 // pred_check_branch
        %617 = sbr.rel (%p615) target = $region68
      $region67: #{frozen_clip_forward.1} parent=23 // pred_region
        %p618 = scmp.lt.s32.totalorder %s33, 1
        %s619 = scalar_select %p618, %s33, 1
        %s620 = smul.addr %s619, 64
        %s621 = smul.addr %s620, 4
        %s622 = scalar_lea.vmem %s10, %s621
      $region68: #{frozen_clip_forward.1} parent=23 // pred_fallthru
        _
      // Predicated region
      $region69: #{frozen_clip_forward.1} parent=23 // pred_check
        %p623 = pneg %p343
      $region70: #{frozen_clip_forward.1} parent=23 // pred_check_branch
        %625 = sbr.rel (%p623) target = $region72
      $region71: #{frozen_clip_forward.1} parent=23 // pred_region
        %p626 = scmp.lt.s32.totalorder %s33, 1
        %s627 = scalar_select %p626, %s33, 1
        %s628 = smul.addr %s627, 4
        %s629 = scalar_lea.vmem %s11, %s628
      $region72: #{frozen_clip_forward.1} parent=23 // pred_fallthru
        _
      // Predicated region
      $region73: #{frozen_clip_forward.1} parent=23 // pred_check
        %p630 = pneg %p369
      $region74: #{frozen_clip_forward.1} parent=23 // pred_check_branch
        %632 = sbr.rel (%p630) target = $region76
      $region75: #{frozen_clip_forward.1} parent=23 // pred_region
        %p633 = scmp.lt.s32.totalorder %s33, 1
        %s634 = scalar_select %p633, %s33, 1
        %s635 = smul.addr %s634, 64
        %s636 = smul.addr %s635, 4
        %s637 = scalar_lea.vmem %s12, %s636
      $region76: #{frozen_clip_forward.1} parent=23 // pred_fallthru
        _
      // Predicated region
      $region77: #{frozen_clip_forward.1} parent=23 // pred_check
        %p638 = pneg %p395
      $region78: #{frozen_clip_forward.1} parent=23 // pred_check_branch
        %640 = sbr.rel (%p638) target = $region80
      $region79: #{frozen_clip_forward.1} parent=23 // pred_region
        %p641 = scmp.lt.s32.totalorder %s33, 1
        %s642 = scalar_select %p641, %s33, 1
        %s643 = scalar_lea.vmem %s13, %s642
      $region80: #{frozen_clip_forward.1} parent=23 // pred_fallthru
        _
    $region24: #{frozen_clip_forward.1} parent=5 // pred_fallthru
      _
    %p644 = scmp.le.s32.totalorder 1, %s25
    %p645 = scmp.lt.s32.totalorder %s25, 5
    %p646 = pnand %p644, %p645
    %p647 = pneg %p646
    // Predicated region
    $region81: #{frozen_clip_forward.1} parent=5 // pred_check
      _
    $region82: #{frozen_clip_forward.1} parent=5 // pred_check_branch
      %649 = sbr.rel (%p646) target = $region84
    $region83: #{frozen_clip_forward.1} parent=5 // pred_region
      %s650 = ssub.s32 %s25, 1
      %p651 = scmp.lt.s32.totalorder %s34, 1
      %s652 = scalar_select %p651, %s34, 1
      %s653 = smul.addr %s652, 16
      %s654 = smul.addr %s653, 8
      %s655 = scalar_lea.vmem %s0, %s654
      %p656 = pneg %p63
      %p657 = pneg %p60
      %p658 = scmp.lt.s32.totalorder %s34, 1
      %s659 = scalar_select %p658, %s34, 1
      %s660 = smul.addr %s659, 16
      %s661 = smul.addr %s660, 8
      %s662 = scalar_lea.vmem %s1, %s661
      %p663 = pneg %p89
      %p664 = pneg %p86
      %p665 = scmp.lt.s32.totalorder %s35, 1
      %s666 = scalar_select %p665, %s35, 1
      %s667 = scalar_lea.vmem %s2, %s666
      %p668 = pneg %p115
      %p669 = pneg %p112
      %p670 = scmp.lt.s32.totalorder %s35, 1
      %s671 = scalar_select %p670, %s35, 1
      %s672 = scalar_lea.vmem %s3, %s671
      %p673 = pneg %p141
      %p674 = pneg %p138
      %p675 = scmp.lt.s32.totalorder %s35, 1
      %s676 = scalar_select %p675, %s35, 1
      %s677 = smul.addr %s676, 48
      %s678 = smul.addr %s677, 4
      %s679 = scalar_lea.vmem %s4, %s678
      %p680 = pneg %p167
      %p681 = pneg %p164
      %p682 = scmp.lt.s32.totalorder %s35, 1
      %s683 = scalar_select %p682, %s35, 1
      %s684 = smul.addr %s683, 3
      %s685 = scalar_lea.vmem %s5, %s684
      %p686 = pneg %p193
      %p687 = pneg %p190
      %p688 = scmp.lt.s32.totalorder %s35, 1
      %s689 = scalar_select %p688, %s35, 1
      %s690 = smul.addr %s689, 16
      %s691 = smul.addr %s690, 4
      %s692 = scalar_lea.vmem %s6, %s691
      %p693 = pneg %p219
      %p694 = pneg %p216
      %p695 = scmp.lt.s32.totalorder %s35, 1
      %s696 = scalar_select %p695, %s35, 1
      %s697 = scalar_lea.vmem %s7, %s696
      %p698 = pneg %p245
      %p699 = pneg %p242
      %p700 = scmp.lt.s32.totalorder %s35, 1
      %s701 = scalar_select %p700, %s35, 1
      %s702 = scalar_lea.vmem %s8, %s701
      %p703 = pneg %p271
      %p704 = pneg %p268
      %p705 = scmp.lt.s32.totalorder %s35, 1
      %s706 = scalar_select %p705, %s35, 1
      %s707 = scalar_lea.vmem %s9, %s706
      %p708 = pneg %p297
      %p709 = pneg %p294
      %p710 = scmp.lt.s32.totalorder %s35, 1
      %s711 = scalar_select %p710, %s35, 1
      %s712 = smul.addr %s711, 64
      %s713 = smul.addr %s712, 4
      %s714 = scalar_lea.vmem %s10, %s713
      %p715 = pneg %p323
      %p716 = pneg %p320
      %p717 = scmp.lt.s32.totalorder %s35, 1
      %s718 = scalar_select %p717, %s35, 1
      %s719 = smul.addr %s718, 4
      %s720 = scalar_lea.vmem %s11, %s719
      %p721 = pneg %p349
      %p722 = pneg %p346
      %p723 = scmp.lt.s32.totalorder %s35, 1
      %s724 = scalar_select %p723, %s35, 1
      %s725 = smul.addr %s724, 64
      %s726 = smul.addr %s725, 4
      %s727 = scalar_lea.vmem %s12, %s726
      %p728 = pneg %p375
      %p729 = pneg %p372
      %p730 = scmp.lt.s32.totalorder %s35, 1
      %s731 = scalar_select %p730, %s35, 1
      %s732 = scalar_lea.vmem %s13, %s731
      %p733 = pneg %p401
      %p734 = pneg %p398
      %p735 = pneg %p422
      %p736 = pneg %p419
      %p737 = pneg %p443
      %p738 = pneg %p440
      %p739 = pneg %p469
      %p740 = pneg %p466
      %p741 = scmp.lt.s32.totalorder %s34, 1
      %s742 = scalar_select %p741, %s34, 1
      %s743 = smul.addr %s742, 16
      %s744 = smul.addr %s743, 8
      %s745 = scalar_lea.vmem %s16, %s744
      %p746 = pneg %p495
      %p747 = pneg %p492
      %p748 = scmp.lt.s32.totalorder %s34, 1
      %s749 = scalar_select %p748, %s34, 1
      %s750 = scalar_lea.vmem %s17, %s749
      %p751 = pneg %p521
      %p752 = pneg %p518
      %p753 = scmp.lt.s32.totalorder %s34, 1
      %s754 = scalar_select %p753, %s34, 1
      %s755 = scalar_lea.vmem %s18, %s754
      %p756 = scmp.lt.s32.totalorder %s34, 1
      %s757 = scalar_select %p756, %s34, 1
      %s758 = smul.addr %s757, 16
      %s759 = smul.addr %s758, 8
      %s760 = scalar_lea.vmem %s0, %s759
      %p761 = scmp.lt.s32.totalorder %s34, 1
      %s762 = scalar_select %p761, %s34, 1
      %s763 = smul.addr %s762, 16
      %s764 = smul.addr %s763, 8
      %s765 = scalar_lea.vmem %s1, %s764
      %p766 = scmp.lt.s32.totalorder %s35, 1
      %s767 = scalar_select %p766, %s35, 1
      %s768 = scalar_lea.vmem %s2, %s767
      %p769 = scmp.lt.s32.totalorder %s35, 1
      %s770 = scalar_select %p769, %s35, 1
      %s771 = scalar_lea.vmem %s3, %s770
      %p772 = scmp.lt.s32.totalorder %s35, 1
      %s773 = scalar_select %p772, %s35, 1
      %s774 = smul.addr %s773, 48
      %s775 = smul.addr %s774, 4
      %s776 = scalar_lea.vmem %s4, %s775
      %p777 = scmp.lt.s32.totalorder %s35, 1
      %s778 = scalar_select %p777, %s35, 1
      %s779 = smul.addr %s778, 3
      %s780 = scalar_lea.vmem %s5, %s779
      %p781 = scmp.lt.s32.totalorder %s35, 1
      %s782 = scalar_select %p781, %s35, 1
      %s783 = smul.addr %s782, 16
      %s784 = smul.addr %s783, 4
      %s785 = scalar_lea.vmem %s6, %s784
      %p786 = scmp.lt.s32.totalorder %s35, 1
      %s787 = scalar_select %p786, %s35, 1
      %s788 = scalar_lea.vmem %s7, %s787
      %p789 = scmp.lt.s32.totalorder %s35, 1
      %s790 = scalar_select %p789, %s35, 1
      %s791 = scalar_lea.vmem %s8, %s790
      %p792 = scmp.lt.s32.totalorder %s35, 1
      %s793 = scalar_select %p792, %s35, 1
      %s794 = scalar_lea.vmem %s9, %s793
      %p795 = scmp.lt.s32.totalorder %s35, 1
      %s796 = scalar_select %p795, %s35, 1
      %s797 = smul.addr %s796, 64
      %s798 = smul.addr %s797, 4
      %s799 = scalar_lea.vmem %s10, %s798
      %p800 = scmp.lt.s32.totalorder %s35, 1
      %s801 = scalar_select %p800, %s35, 1
      %s802 = smul.addr %s801, 4
      %s803 = scalar_lea.vmem %s11, %s802
      %p804 = scmp.lt.s32.totalorder %s35, 1
      %s805 = scalar_select %p804, %s35, 1
      %s806 = smul.addr %s805, 64
      %s807 = smul.addr %s806, 4
      %s808 = scalar_lea.vmem %s12, %s807
      %p809 = scmp.lt.s32.totalorder %s35, 1
      %s810 = scalar_select %p809, %s35, 1
      %s811 = scalar_lea.vmem %s13, %s810
      %p812 = scmp.lt.s32.totalorder %s34, 1
      %s813 = scalar_select %p812, %s34, 1
      %s814 = smul.addr %s813, 16
      %s815 = smul.addr %s814, 8
      %s816 = scalar_lea.vmem %s16, %s815
      %p817 = scmp.lt.s32.totalorder %s34, 1
      %s818 = scalar_select %p817, %s34, 1
      %s819 = scalar_lea.vmem %s17, %s818
      %p820 = scmp.lt.s32.totalorder %s34, 1
      %s821 = scalar_select %p820, %s34, 1
      %s822 = scalar_lea.vmem %s18, %s821
      %p826 = scmp.eq.s32.totalorder %s35, 0
      // Predicated region
      $region85: #{frozen_clip_forward.1} parent=83 // pred_check
        %p827 = pneg %p826
      $region86: #{frozen_clip_forward.1} parent=83 // pred_check_branch
        %829 = sbr.rel (%p827) target = $region88
      $region87: #{frozen_clip_forward.1} parent=83 // pred_region
        %v830 = vld [vmem:[%s760] sm:$0xff]
        %v831 = vld [vmem:[%s760 + $0x8] sm:$0xff]
        %v832 = vld [vmem:[%s760 + $0x10] sm:$0xff]
        %v833 = vld [vmem:[%s760 + $0x18] sm:$0xff]
        %v834 = vld [vmem:[%s760 + $0x20] sm:$0xff]
        %v835 = vld [vmem:[%s760 + $0x28] sm:$0xff]
        %v836 = vld [vmem:[%s760 + $0x30] sm:$0xff]
        %v837 = vld [vmem:[%s760 + $0x38] sm:$0xff]
        %v838 = vld [vmem:[%s760 + $0x40] sm:$0xff]
        %v839 = vld [vmem:[%s760 + $0x48] sm:$0xff]
        %v840 = vld [vmem:[%s760 + $0x50] sm:$0xff]
        %v841 = vld [vmem:[%s760 + $0x58] sm:$0xff]
        %v842 = vld [vmem:[%s760 + $0x60] sm:$0xff]
        %v843 = vld [vmem:[%s760 + $0x68] sm:$0xff]
        %v844 = vld [vmem:[%s760 + $0x70] sm:$0xff]
        %v845 = vld [vmem:[%s760 + $0x78] sm:$0xff]
        %846 = vst [vmem:[#allocation2] sm:$0xff] %v830
        %847 = vst [vmem:[#allocation2 + $0x8] sm:$0xff] %v831
        %848 = vst [vmem:[#allocation2 + $0x10] sm:$0xff] %v832
        %849 = vst [vmem:[#allocation2 + $0x18] sm:$0xff] %v833
        %850 = vst [vmem:[#allocation2 + $0x20] sm:$0xff] %v834
        %851 = vst [vmem:[#allocation2 + $0x28] sm:$0xff] %v835
        %852 = vst [vmem:[#allocation2 + $0x30] sm:$0xff] %v836
        %853 = vst [vmem:[#allocation2 + $0x38] sm:$0xff] %v837
        %854 = vst [vmem:[#allocation2 + $0x40] sm:$0xff] %v838
        %855 = vst [vmem:[#allocation2 + $0x48] sm:$0xff] %v839
        %856 = vst [vmem:[#allocation2 + $0x50] sm:$0xff] %v840
        %857 = vst [vmem:[#allocation2 + $0x58] sm:$0xff] %v841
        %858 = vst [vmem:[#allocation2 + $0x60] sm:$0xff] %v842
        %859 = vst [vmem:[#allocation2 + $0x68] sm:$0xff] %v843
        %860 = vst [vmem:[#allocation2 + $0x70] sm:$0xff] %v844
        %861 = vst [vmem:[#allocation2 + $0x78] sm:$0xff] %v845
        %v862 = vlaneseq
        %v863 = vshrl.u32 %v862, 7
        %v864 = vadd.s32 %v863, 8
        %v865 = vadd.s32 %v863, 16
        %v866 = vadd.s32 %v863, 24
        %v867 = vadd.s32 %v863, 32
        %v868 = vadd.s32 %v863, 40
        %v869 = vadd.s32 %v863, 48
        %v870 = vadd.s32 %v863, 56
        %v871 = vadd.s32 %v863, 64
        %v872 = vadd.s32 %v863, 72
        %v873 = vadd.s32 %v863, 80
        %v874 = vadd.s32 %v863, 88
        %v875 = vadd.s32 %v863, 96
        %v876 = vadd.s32 %v863, 104
        %v877 = vadd.s32 %v863, 112
        %v878 = vadd.s32 %v863, 120
        %v879 = vlaneseq
        %v880 = vand.u32 %v879, 127
        %vm881 = vcmp.le.s32.totalorder %v880, %v863
        %vm882 = vcmp.le.s32.totalorder %v880, %v864
        %vm883 = vcmp.le.s32.totalorder %v880, %v865
        %vm884 = vcmp.le.s32.totalorder %v880, %v866
        %vm885 = vcmp.le.s32.totalorder %v880, %v867
        %vm886 = vcmp.le.s32.totalorder %v880, %v868
        %vm887 = vcmp.le.s32.totalorder %v880, %v869
        %vm888 = vcmp.le.s32.totalorder %v880, %v870
        %vm889 = vcmp.le.s32.totalorder %v880, %v871
        %vm890 = vcmp.le.s32.totalorder %v880, %v872
        %vm891 = vcmp.le.s32.totalorder %v880, %v873
        %vm892 = vcmp.le.s32.totalorder %v880, %v874
        %vm893 = vcmp.le.s32.totalorder %v880, %v875
        %vm894 = vcmp.le.s32.totalorder %v880, %v876
        %vm895 = vcmp.le.s32.totalorder %v880, %v877
        %vm896 = vcmp.le.s32.totalorder %v880, %v878
        %v897 = vsel %vm881, 0.0, -1e+30
        %v898 = vsel %vm882, 0.0, -1e+30
        %v899 = vsel %vm883, 0.0, -1e+30
        %v900 = vsel %vm884, 0.0, -1e+30
        %v901 = vsel %vm885, 0.0, -1e+30
        %v902 = vsel %vm886, 0.0, -1e+30
        %v903 = vsel %vm887, 0.0, -1e+30
        %v904 = vsel %vm888, 0.0, -1e+30
        %v905 = vsel %vm889, 0.0, -1e+30
        %v906 = vsel %vm890, 0.0, -1e+30
        %v907 = vsel %vm891, 0.0, -1e+30
        %v908 = vsel %vm892, 0.0, -1e+30
        %v909 = vsel %vm893, 0.0, -1e+30
        %v910 = vsel %vm894, 0.0, -1e+30
        %v911 = vsel %vm895, 0.0, -1e+30
        %v912 = vsel %vm896, 0.0, -1e+30
        %913 = vst [vmem:[#allocation3] sm:$0xff] %v897
        %914 = vst [vmem:[#allocation3 + $0x8] sm:$0xff] %v898
        %915 = vst [vmem:[#allocation3 + $0x10] sm:$0xff] %v899
        %916 = vst [vmem:[#allocation3 + $0x18] sm:$0xff] %v900
        %917 = vst [vmem:[#allocation3 + $0x20] sm:$0xff] %v901
        %918 = vst [vmem:[#allocation3 + $0x28] sm:$0xff] %v902
        %919 = vst [vmem:[#allocation3 + $0x30] sm:$0xff] %v903
        %920 = vst [vmem:[#allocation3 + $0x38] sm:$0xff] %v904
        %921 = vst [vmem:[#allocation3 + $0x40] sm:$0xff] %v905
        %922 = vst [vmem:[#allocation3 + $0x48] sm:$0xff] %v906
        %923 = vst [vmem:[#allocation3 + $0x50] sm:$0xff] %v907
        %924 = vst [vmem:[#allocation3 + $0x58] sm:$0xff] %v908
        %925 = vst [vmem:[#allocation3 + $0x60] sm:$0xff] %v909
        %926 = vst [vmem:[#allocation3 + $0x68] sm:$0xff] %v910
        %927 = vst [vmem:[#allocation3 + $0x70] sm:$0xff] %v911
        %928 = vst [vmem:[#allocation3 + $0x78] sm:$0xff] %v912
      $region88: #{frozen_clip_forward.1} parent=83 // pred_fallthru
        _
      %v929 = vld [vmem:[#allocation2] sm:$0xff]
      %v930 = vld [vmem:[#allocation2 + $0x8] sm:$0xff]
      %v931 = vld [vmem:[#allocation2 + $0x10] sm:$0xff]
      %v932 = vld [vmem:[#allocation2 + $0x18] sm:$0xff]
      %v933 = vld [vmem:[#allocation2 + $0x20] sm:$0xff]
      %v934 = vld [vmem:[#allocation2 + $0x28] sm:$0xff]
      %v935 = vld [vmem:[#allocation2 + $0x30] sm:$0xff]
      %v936 = vld [vmem:[#allocation2 + $0x38] sm:$0xff]
      %v937 = vld [vmem:[#allocation2 + $0x40] sm:$0xff]
      %v938 = vld [vmem:[#allocation2 + $0x48] sm:$0xff]
      %v939 = vld [vmem:[#allocation2 + $0x50] sm:$0xff]
      %v940 = vld [vmem:[#allocation2 + $0x58] sm:$0xff]
      %v941 = vld [vmem:[#allocation2 + $0x60] sm:$0xff]
      %v942 = vld [vmem:[#allocation2 + $0x68] sm:$0xff]
      %v943 = vld [vmem:[#allocation2 + $0x70] sm:$0xff]
      %v944 = vld [vmem:[#allocation2 + $0x78] sm:$0xff]
      %v945 = vld [vmem:[%s768] sm:$0x1]
      %v946 = vld [vmem:[%s771] sm:$0x1]
      %947 = vadd.xlane.f32.xlu0 %v929
      %v948 = vpop.xlane.xlu0 %947
      %949 = vadd.xlane.f32.xlu0 %v930
      %v950 = vpop.xlane.xlu0 %949
      %951 = vadd.xlane.f32.xlu0 %v931
      %v952 = vpop.xlane.xlu0 %951
      %953 = vadd.xlane.f32.xlu0 %v932
      %v954 = vpop.xlane.xlu0 %953
      %955 = vadd.xlane.f32.xlu0 %v933
      %v956 = vpop.xlane.xlu0 %955
      %957 = vadd.xlane.f32.xlu0 %v934
      %v958 = vpop.xlane.xlu0 %957
      %959 = vadd.xlane.f32.xlu0 %v935
      %v960 = vpop.xlane.xlu0 %959
      %961 = vadd.xlane.f32.xlu0 %v936
      %v962 = vpop.xlane.xlu0 %961
      %963 = vadd.xlane.f32.xlu0 %v937
      %v964 = vpop.xlane.xlu0 %963
      %965 = vadd.xlane.f32.xlu0 %v938
      %v966 = vpop.xlane.xlu0 %965
      %967 = vadd.xlane.f32.xlu0 %v939
      %v968 = vpop.xlane.xlu0 %967
      %969 = vadd.xlane.f32.xlu0 %v940
      %v970 = vpop.xlane.xlu0 %969
      %971 = vadd.xlane.f32.xlu0 %v941
      %v972 = vpop.xlane.xlu0 %971
      %973 = vadd.xlane.f32.xlu0 %v942
      %v974 = vpop.xlane.xlu0 %973
      %975 = vadd.xlane.f32.xlu0 %v943
      %v976 = vpop.xlane.xlu0 %975
      %977 = vadd.xlane.f32.xlu0 %v944
      %v978 = vpop.xlane.xlu0 %977
      %v979 = vrcp.pop 128.0
      %v980 = vmul.f32 %v948, %v979
      %v981 = vmul.f32 %v950, %v979
      %v982 = vmul.f32 %v952, %v979
      %v983 = vmul.f32 %v954, %v979
      %v984 = vmul.f32 %v956, %v979
      %v985 = vmul.f32 %v958, %v979
      %v986 = vmul.f32 %v960, %v979
      %v987 = vmul.f32 %v962, %v979
      %v988 = vmul.f32 %v964, %v979
      %v989 = vmul.f32 %v966, %v979
      %v990 = vmul.f32 %v968, %v979
      %v991 = vmul.f32 %v970, %v979
      %v992 = vmul.f32 %v972, %v979
      %v993 = vmul.f32 %v974, %v979
      %v994 = vmul.f32 %v976, %v979
      %v995 = vmul.f32 %v978, %v979
      %v996 = vsub.f32 %v929, %v980
      %v997 = vsub.f32 %v930, %v981
      %v998 = vsub.f32 %v931, %v982
      %v999 = vsub.f32 %v932, %v983
      %v1000 = vsub.f32 %v933, %v984
      %v1001 = vsub.f32 %v934, %v985
      %v1002 = vsub.f32 %v935, %v986
      %v1003 = vsub.f32 %v936, %v987
      %v1004 = vsub.f32 %v937, %v988
      %v1005 = vsub.f32 %v938, %v989
      %v1006 = vsub.f32 %v939, %v990
      %v1007 = vsub.f32 %v940, %v991
      %v1008 = vsub.f32 %v941, %v992
      %v1009 = vsub.f32 %v942, %v993
      %v1010 = vsub.f32 %v943, %v994
      %v1011 = vsub.f32 %v944, %v995
      %v1012 = vmul.f32 %v996, %v996
      %v1013 = vmul.f32 %v997, %v997
      %v1014 = vmul.f32 %v998, %v998
      %v1015 = vmul.f32 %v999, %v999
      %v1016 = vmul.f32 %v1000, %v1000
      %v1017 = vmul.f32 %v1001, %v1001
      %v1018 = vmul.f32 %v1002, %v1002
      %v1019 = vmul.f32 %v1003, %v1003
      %v1020 = vmul.f32 %v1004, %v1004
      %v1021 = vmul.f32 %v1005, %v1005
      %v1022 = vmul.f32 %v1006, %v1006
      %v1023 = vmul.f32 %v1007, %v1007
      %v1024 = vmul.f32 %v1008, %v1008
      %v1025 = vmul.f32 %v1009, %v1009
      %v1026 = vmul.f32 %v1010, %v1010
      %v1027 = vmul.f32 %v1011, %v1011
      %1028 = vadd.xlane.f32.xlu0 %v1012
      %v1029 = vpop.xlane.xlu0 %1028
      %1030 = vadd.xlane.f32.xlu0 %v1013
      %v1031 = vpop.xlane.xlu0 %1030
      %1032 = vadd.xlane.f32.xlu0 %v1014
      %v1033 = vpop.xlane.xlu0 %1032
      %1034 = vadd.xlane.f32.xlu0 %v1015
      %v1035 = vpop.xlane.xlu0 %1034
      %1036 = vadd.xlane.f32.xlu0 %v1016
      %v1037 = vpop.xlane.xlu0 %1036
      %1038 = vadd.xlane.f32.xlu0 %v1017
      %v1039 = vpop.xlane.xlu0 %1038
      %1040 = vadd.xlane.f32.xlu0 %v1018
      %v1041 = vpop.xlane.xlu0 %1040
      %1042 = vadd.xlane.f32.xlu0 %v1019
      %v1043 = vpop.xlane.xlu0 %1042
      %1044 = vadd.xlane.f32.xlu0 %v1020
      %v1045 = vpop.xlane.xlu0 %1044
      %1046 = vadd.xlane.f32.xlu0 %v1021
      %v1047 = vpop.xlane.xlu0 %1046
      %1048 = vadd.xlane.f32.xlu0 %v1022
      %v1049 = vpop.xlane.xlu0 %1048
      %1050 = vadd.xlane.f32.xlu0 %v1023
      %v1051 = vpop.xlane.xlu0 %1050
      %1052 = vadd.xlane.f32.xlu0 %v1024
      %v1053 = vpop.xlane.xlu0 %1052
      %1054 = vadd.xlane.f32.xlu0 %v1025
      %v1055 = vpop.xlane.xlu0 %1054
      %1056 = vadd.xlane.f32.xlu0 %v1026
      %v1057 = vpop.xlane.xlu0 %1056
      %1058 = vadd.xlane.f32.xlu0 %v1027
      %v1059 = vpop.xlane.xlu0 %1058
      %v1060 = vmul.f32 %v1029, %v979
      %v1061 = vmul.f32 %v1031, %v979
      %v1062 = vmul.f32 %v1033, %v979
      %v1063 = vmul.f32 %v1035, %v979
      %v1064 = vmul.f32 %v1037, %v979
      %v1065 = vmul.f32 %v1039, %v979
      %v1066 = vmul.f32 %v1041, %v979
      %v1067 = vmul.f32 %v1043, %v979
      %v1068 = vmul.f32 %v1045, %v979
      %v1069 = vmul.f32 %v1047, %v979
      %v1070 = vmul.f32 %v1049, %v979
      %v1071 = vmul.f32 %v1051, %v979
      %v1072 = vmul.f32 %v1053, %v979
      %v1073 = vmul.f32 %v1055, %v979
      %v1074 = vmul.f32 %v1057, %v979
      %v1075 = vmul.f32 %v1059, %v979
      %v1076 = vadd.f32 %v1060, 1e-05
      %v1077 = vadd.f32 %v1061, 1e-05
      %v1078 = vadd.f32 %v1062, 1e-05
      %v1079 = vadd.f32 %v1063, 1e-05
      %v1080 = vadd.f32 %v1064, 1e-05
      %v1081 = vadd.f32 %v1065, 1e-05
      %v1082 = vadd.f32 %v1066, 1e-05
      %v1083 = vadd.f32 %v1067, 1e-05
      %v1084 = vadd.f32 %v1068, 1e-05
      %v1085 = vadd.f32 %v1069, 1e-05
      %v1086 = vadd.f32 %v1070, 1e-05
      %v1087 = vadd.f32 %v1071, 1e-05
      %v1088 = vadd.f32 %v1072, 1e-05
      %v1089 = vadd.f32 %v1073, 1e-05
      %v1090 = vadd.f32 %v1074, 1e-05
      %v1091 = vadd.f32 %v1075, 1e-05
      %v1092 = vrsqrt.pop %v1076
      %v1093 = vrsqrt.pop %v1077
      %v1094 = vrsqrt.pop %v1078
      %v1095 = vrsqrt.pop %v1079
      %v1096 = vrsqrt.pop %v1080
      %v1097 = vrsqrt.pop %v1081
      %v1098 = vrsqrt.pop %v1082
      %v1099 = vrsqrt.pop %v1083
      %v1100 = vrsqrt.pop %v1084
      %v1101 = vrsqrt.pop %v1085
      %v1102 = vrsqrt.pop %v1086
      %v1103 = vrsqrt.pop %v1087
      %v1104 = vrsqrt.pop %v1088
      %v1105 = vrsqrt.pop %v1089
      %v1106 = vrsqrt.pop %v1090
      %v1107 = vrsqrt.pop %v1091
      %v1108 = vmul.f32 %v996, %v1092
      %v1109 = vmul.f32 %v997, %v1093
      %v1110 = vmul.f32 %v998, %v1094
      %v1111 = vmul.f32 %v999, %v1095
      %v1112 = vmul.f32 %v1000, %v1096
      %v1113 = vmul.f32 %v1001, %v1097
      %v1114 = vmul.f32 %v1002, %v1098
      %v1115 = vmul.f32 %v1003, %v1099
      %v1116 = vmul.f32 %v1004, %v1100
      %v1117 = vmul.f32 %v1005, %v1101
      %v1118 = vmul.f32 %v1006, %v1102
      %v1119 = vmul.f32 %v1007, %v1103
      %v1120 = vmul.f32 %v1008, %v1104
      %v1121 = vmul.f32 %v1009, %v1105
      %v1122 = vmul.f32 %v1010, %v1106
      %v1123 = vmul.f32 %v1011, %v1107
      %v1125 = vlaneseq
      %v1126 = vshrl.u32 %v1125, 7
      %v1127 = vsub.s32 0, %v1126
      %v1128 = vrot.slane %v945, %v1127
      %v1130 = vmul.f32 %v1108, %v1128
      %v1131 = vmul.f32 %v1109, %v1128
      %v1132 = vmul.f32 %v1110, %v1128
      %v1133 = vmul.f32 %v1111, %v1128
      %v1134 = vmul.f32 %v1112, %v1128
      %v1135 = vmul.f32 %v1113, %v1128
      %v1136 = vmul.f32 %v1114, %v1128
      %v1137 = vmul.f32 %v1115, %v1128
      %v1138 = vmul.f32 %v1116, %v1128
      %v1139 = vmul.f32 %v1117, %v1128
      %v1140 = vmul.f32 %v1118, %v1128
      %v1141 = vmul.f32 %v1119, %v1128
      %v1142 = vmul.f32 %v1120, %v1128
      %v1143 = vmul.f32 %v1121, %v1128
      %v1144 = vmul.f32 %v1122, %v1128
      %v1145 = vmul.f32 %v1123, %v1128
      %v1147 = vlaneseq
      %v1148 = vshrl.u32 %v1147, 7
      %v1149 = vsub.s32 0, %v1148
      %v1150 = vrot.slane %v946, %v1149
      %v1152 = vadd.f32 %v1130, %v1150
      %v1153 = vadd.f32 %v1131, %v1150
      %v1154 = vadd.f32 %v1132, %v1150
      %v1155 = vadd.f32 %v1133, %v1150
      %v1156 = vadd.f32 %v1134, %v1150
      %v1157 = vadd.f32 %v1135, %v1150
      %v1158 = vadd.f32 %v1136, %v1150
      %v1159 = vadd.f32 %v1137, %v1150
      %v1160 = vadd.f32 %v1138, %v1150
      %v1161 = vadd.f32 %v1139, %v1150
      %v1162 = vadd.f32 %v1140, %v1150
      %v1163 = vadd.f32 %v1141, %v1150
      %v1164 = vadd.f32 %v1142, %v1150
      %v1165 = vadd.f32 %v1143, %v1150
      %v1166 = vadd.f32 %v1144, %v1150
      %v1167 = vadd.f32 %v1145, %v1150
      %v1168 = vpack.c.bf16 %v1153, %v1152
      %v1169 = vpack.c.bf16 %v1155, %v1154
      %v1170 = vpack.c.bf16 %v1157, %v1156
      %v1171 = vpack.c.bf16 %v1159, %v1158
      %v1172 = vpack.c.bf16 %v1161, %v1160
      %v1173 = vpack.c.bf16 %v1163, %v1162
      %v1174 = vpack.c.bf16 %v1165, %v1164
      %v1175 = vpack.c.bf16 %v1167, %v1166
      %v1176 = vld [vmem:[%s776] sm:$0xff]
      %v1177 = vld [vmem:[%s776 + $0x8] sm:$0xf]
      %v1178 = vld [vmem:[%s776 + $0xc] sm:$0xff]
      %v1179 = vld [vmem:[%s776 + $0x14] sm:$0xf]
      %v1180 = vld [vmem:[%s776 + $0x18] sm:$0xff]
      %v1181 = vld [vmem:[%s776 + $0x20] sm:$0xf]
      %v1182 = vld [vmem:[%s776 + $0x24] sm:$0xff]
      %v1183 = vld [vmem:[%s776 + $0x2c] sm:$0xf]
      %v1184 = vld [vmem:[%s776 + $0x30] sm:$0xff]
      %v1185 = vld [vmem:[%s776 + $0x38] sm:$0xf]
      %v1186 = vld [vmem:[%s776 + $0x3c] sm:$0xff]
      %v1187 = vld [vmem:[%s776 + $0x44] sm:$0xf]
      %v1188 = vld [vmem:[%s776 + $0x48] sm:$0xff]
      %v1189 = vld [vmem:[%s776 + $0x50] sm:$0xf]
      %v1190 = vld [vmem:[%s776 + $0x54] sm:$0xff]
      %v1191 = vld [vmem:[%s776 + $0x5c] sm:$0xf]
      %v1192 = vld [vmem:[%s776 + $0x60] sm:$0xff]
      %v1193 = vld [vmem:[%s776 + $0x68] sm:$0xf]
      %v1194 = vld [vmem:[%s776 + $0x6c] sm:$0xff]
      %v1195 = vld [vmem:[%s776 + $0x74] sm:$0xf]
      %v1196 = vld [vmem:[%s776 + $0x78] sm:$0xff]
      %v1197 = vld [vmem:[%s776 + $0x80] sm:$0xf]
      %v1198 = vld [vmem:[%s776 + $0x84] sm:$0xff]
      %v1199 = vld [vmem:[%s776 + $0x8c] sm:$0xf]
      %v1200 = vld [vmem:[%s776 + $0x90] sm:$0xff]
      %v1201 = vld [vmem:[%s776 + $0x98] sm:$0xf]
      %v1202 = vld [vmem:[%s776 + $0x9c] sm:$0xff]
      %v1203 = vld [vmem:[%s776 + $0xa4] sm:$0xf]
      %v1204 = vld [vmem:[%s776 + $0xa8] sm:$0xff]
      %v1205 = vld [vmem:[%s776 + $0xb0] sm:$0xf]
      %v1206 = vld [vmem:[%s776 + $0xb4] sm:$0xff]
      %v1207 = vld [vmem:[%s776 + $0xbc] sm:$0xf]
      %v1208 = vld [vmem:[%s780] sm:$0x7]
      %v1210 = vlaneseq
      %v1211 = vshrl.u32 %v1210, 7
      %v1212 = vsub.s32 0, %v1211
      %v1213 = vrot.slane %v1208, %v1212
      %v1214 = vlaneseq
      %v1215 = vshrl.u32 %v1214, 7
      %v1216 = vsub.s32 1, %v1215
      %v1217 = vrot.slane %v1208, %v1216
      %v1218 = vlaneseq
      %v1219 = vshrl.u32 %v1218, 7
      %v1220 = vsub.s32 2, %v1219
      %v1221 = vrot.slane %v1208, %v1220
      %v1257 = vunpack.c.l.b16 %v1176
      %v1258 = vunpack.c.h.b16 %v1176
      %v1259 = vunpack.c.l.b16 %v1177
      %v1260 = vunpack.c.l.b16 %v1178
      %v1261 = vunpack.c.h.b16 %v1178
      %v1262 = vunpack.c.l.b16 %v1179
      %v1263 = vunpack.c.l.b16 %v1180
      %v1264 = vunpack.c.h.b16 %v1180
      %v1265 = vunpack.c.l.b16 %v1181
      %v1266 = vunpack.c.l.b16 %v1182
      %v1267 = vunpack.c.h.b16 %v1182
      %v1268 = vunpack.c.l.b16 %v1183
      %v1269 = vunpack.c.l.b16 %v1184
      %v1270 = vunpack.c.h.b16 %v1184
      %v1271 = vunpack.c.l.b16 %v1185
      %v1272 = vunpack.c.l.b16 %v1186
      %v1273 = vunpack.c.h.b16 %v1186
      %v1274 = vunpack.c.l.b16 %v1187
      %v1275 = vunpack.c.l.b16 %v1188
      %v1276 = vunpack.c.h.b16 %v1188
      %v1277 = vunpack.c.l.b16 %v1189
      %v1278 = vunpack.c.l.b16 %v1190
      %v1279 = vunpack.c.h.b16 %v1190
      %v1280 = vunpack.c.l.b16 %v1191
      %v1281 = vunpack.c.l.b16 %v1192
      %v1282 = vunpack.c.h.b16 %v1192
      %v1283 = vunpack.c.l.b16 %v1193
      %v1284 = vunpack.c.l.b16 %v1194
      %v1285 = vunpack.c.h.b16 %v1194
      %v1286 = vunpack.c.l.b16 %v1195
      %v1287 = vunpack.c.l.b16 %v1196
      %v1288 = vunpack.c.h.b16 %v1196
      %v1289 = vunpack.c.l.b16 %v1197
      %v1290 = vunpack.c.l.b16 %v1198
      %v1291 = vunpack.c.h.b16 %v1198
      %v1292 = vunpack.c.l.b16 %v1199
      %v1293 = vunpack.c.l.b16 %v1200
      %v1294 = vunpack.c.h.b16 %v1200
      %v1295 = vunpack.c.l.b16 %v1201
      %v1296 = vunpack.c.l.b16 %v1202
      %v1297 = vunpack.c.h.b16 %v1202
      %v1298 = vunpack.c.l.b16 %v1203
      %v1299 = vunpack.c.l.b16 %v1204
      %v1300 = vunpack.c.h.b16 %v1204
      %v1301 = vunpack.c.l.b16 %v1205
      %v1302 = vunpack.c.l.b16 %v1206
      %v1303 = vunpack.c.h.b16 %v1206
      %v1304 = vunpack.c.l.b16 %v1207
      %v1305 = vpack.c.b16 %v1260, %v1257
      %v1306 = vpack.c.b16 %v1261, %v1258
      %v1307 = vpack.c.b16 %v1262, %v1259
      %v1308 = vpack.c.b16 %v1266, %v1263
      %v1309 = vpack.c.b16 %v1267, %v1264
      %v1310 = vpack.c.b16 %v1268, %v1265
      %v1311 = vpack.c.b16 %v1272, %v1269
      %v1312 = vpack.c.b16 %v1273, %v1270
      %v1313 = vpack.c.b16 %v1274, %v1271
      %v1314 = vpack.c.b16 %v1278, %v1275
      %v1315 = vpack.c.b16 %v1279, %v1276
      %v1316 = vpack.c.b16 %v1280, %v1277
      %v1317 = vpack.c.b16 %v1284, %v1281
      %v1318 = vpack.c.b16 %v1285, %v1282
      %v1319 = vpack.c.b16 %v1286, %v1283
      %v1320 = vpack.c.b16 %v1290, %v1287
      %v1321 = vpack.c.b16 %v1291, %v1288
      %v1322 = vpack.c.b16 %v1292, %v1289
      %v1323 = vpack.c.b16 %v1296, %v1293
      %v1324 = vpack.c.b16 %v1297, %v1294
      %v1325 = vpack.c.b16 %v1298, %v1295
      %v1326 = vpack.c.b16 %v1302, %v1299
      %v1327 = vpack.c.b16 %v1303, %v1300
      %v1328 = vpack.c.b16 %v1304, %v1301
      %1353 = vmatprep.subr.bf16.mxu0 %v1306
      %1354 = vmatpush1.bf16.msra.mxu0 %v1305
      %1355 = vmatprep.subr.bf16.mxu0 %v1309
      %1356 = vmatpush1.bf16.msra.mxu0 %v1308
      %1357 = vmatprep.subr.bf16.mxu0 %v1312
      %1358 = vmatpush1.bf16.msra.mxu0 %v1311
      %1359 = vmatprep.subr.bf16.mxu0 %v1315
      %1360 = vmatpush1.bf16.msra.mxu0 %v1314
      %1361 = vmatprep.subr.bf16.mxu0 %v1318
      %1362 = vmatpush1.bf16.msra.mxu0 %v1317
      %1363 = vmatprep.subr.bf16.mxu0 %v1321
      %1364 = vmatpush1.bf16.msra.mxu0 %v1320
      %1365 = vmatprep.subr.bf16.mxu0 %v1324
      %1366 = vmatpush1.bf16.msra.mxu0 %v1323
      %1367 = vmatprep.subr.bf16.mxu0 %v1327
      %1368 = vmatpush1.bf16.msra.mxu0 %v1326
      %1369 = vmatprep.subr.bf16.mxu0 0
      %1370 = vmatpush1.bf16.msra.mxu0 0
      %1371 = vmatprep.subr.bf16.mxu0 0
      %1372 = vmatpush1.bf16.msra.mxu0 0
      %1373 = vmatprep.subr.bf16.mxu0 0
      %1374 = vmatpush1.bf16.msra.mxu0 0
      %1375 = vmatprep.subr.bf16.mxu0 0
      %1376 = vmatpush1.bf16.msra.mxu0 0
      %1377 = vmatprep.subr.bf16.mxu0 0
      %1378 = vmatpush1.bf16.msra.mxu0 0
      %1379 = vmatprep.subr.bf16.mxu0 0
      %1380 = vmatpush1.bf16.msra.mxu0 0
      %1381 = vmatprep.subr.bf16.mxu0 0
      %1382 = vmatpush1.bf16.msra.mxu0 0
      %1383 = vmatprep.subr.bf16.mxu0 0
      %1384 = vmatpush1.bf16.msra.mxu0 0
      %1385 = vmatprep.mubr.bf16.mxu0 0
      %1386 = vmatmul.mubr.bf16.gmra.mrb[0].mxu0 %v1168
      %v1387 = vpop.f32.mrb[0].mxu0
      %v1388 = vadd.f32 %v1213, %v1387
      %v1389 = vpop.f32.mrb[0].mxu0
      %v1390 = vadd.f32 %v1217, %v1389
      %v1391 = vpop.f32.mrb[0].mxu0
      %v1392 = vadd.f32 %v1213, %v1391
      %v1393 = vpop.f32.mrb[0].mxu0
      %v1394 = vadd.f32 %v1217, %v1393
      %1395 = vmatprep.mubr.bf16.mxu0 0
      %1396 = vmatmul.mubr.bf16.gmra.mrb[0].mxu0 %v1169
      %v1397 = vpop.f32.mrb[0].mxu0
      %v1398 = vadd.f32 %v1213, %v1397
      %v1399 = vpop.f32.mrb[0].mxu0
      %v1400 = vadd.f32 %v1217, %v1399
      %v1401 = vpop.f32.mrb[0].mxu0
      %v1402 = vadd.f32 %v1213, %v1401
      %v1403 = vpop.f32.mrb[0].mxu0
      %v1404 = vadd.f32 %v1217, %v1403
      %1405 = vmatprep.mubr.bf16.mxu0 0
      %1406 = vmatmul.mubr.bf16.gmra.mrb[0].mxu0 %v1170
      %v1407 = vpop.f32.mrb[0].mxu0
      %v1408 = vadd.f32 %v1213, %v1407
      %v1409 = vpop.f32.mrb[0].mxu0
      %v1410 = vadd.f32 %v1217, %v1409
      %v1411 = vpop.f32.mrb[0].mxu0
      %v1412 = vadd.f32 %v1213, %v1411
      %v1413 = vpop.f32.mrb[0].mxu0
      %v1414 = vadd.f32 %v1217, %v1413
      %1415 = vmatprep.mubr.bf16.mxu0 0
      %1416 = vmatmul.mubr.bf16.gmra.mrb[0].mxu0 %v1171
      %v1417 = vpop.f32.mrb[0].mxu0
      %v1418 = vadd.f32 %v1213, %v1417
      %v1419 = vpop.f32.mrb[0].mxu0
      %v1420 = vadd.f32 %v1217, %v1419
      %v1421 = vpop.f32.mrb[0].mxu0
      %v1422 = vadd.f32 %v1213, %v1421
      %v1423 = vpop.f32.mrb[0].mxu0
      %v1424 = vadd.f32 %v1217, %v1423
      %1425 = vmatprep.mubr.bf16.mxu0 0
      %1426 = vmatmul.mubr.bf16.gmra.mrb[0].mxu0 %v1172
      %v1427 = vpop.f32.mrb[0].mxu0
      %v1428 = vadd.f32 %v1213, %v1427
      %v1429 = vpop.f32.mrb[0].mxu0
      %v1430 = vadd.f32 %v1217, %v1429
      %v1431 = vpop.f32.mrb[0].mxu0
      %v1432 = vadd.f32 %v1213, %v1431
      %v1433 = vpop.f32.mrb[0].mxu0
      %v1434 = vadd.f32 %v1217, %v1433
      %1435 = vmatprep.mubr.bf16.mxu0 0
      %1436 = vmatmul.mubr.bf16.gmra.mrb[0].mxu0 %v1173
      %v1437 = vpop.f32.mrb[0].mxu0
      %v1438 = vadd.f32 %v1213, %v1437
      %v1439 = vpop.f32.mrb[0].mxu0
      %v1440 = vadd.f32 %v1217, %v1439
      %v1441 = vpop.f32.mrb[0].mxu0
      %v1442 = vadd.f32 %v1213, %v1441
      %v1443 = vpop.f32.mrb[0].mxu0
      %v1444 = vadd.f32 %v1217, %v1443
      %1445 = vmatprep.mubr.bf16.mxu0 0
      %1446 = vmatmul.mubr.bf16.gmra.mrb[0].mxu0 %v1174
      %v1447 = vpop.f32.mrb[0].mxu0
      %v1448 = vadd.f32 %v1213, %v1447
      %v1449 = vpop.f32.mrb[0].mxu0
      %v1450 = vadd.f32 %v1217, %v1449
      %v1451 = vpop.f32.mrb[0].mxu0
      %v1452 = vadd.f32 %v1213, %v1451
      %v1453 = vpop.f32.mrb[0].mxu0
      %v1454 = vadd.f32 %v1217, %v1453
      %1455 = vmatprep.mubr.bf16.mxu0 0
      %1456 = vmatmul.mubr.bf16.gmra.mrb[0].mxu0 %v1175
      %v1457 = vpop.f32.mrb[0].mxu0
      %v1458 = vadd.f32 %v1213, %v1457
      %v1459 = vpop.f32.mrb[0].mxu0
      %v1460 = vadd.f32 %v1217, %v1459
      %v1461 = vpop.f32.mrb[0].mxu0
      %v1462 = vadd.f32 %v1213, %v1461
      %v1463 = vpop.f32.mrb[0].mxu0
      %v1464 = vadd.f32 %v1217, %v1463
      %1465 = vdwg.mxu0
      %1466 = vmatprep.subr.bf16.mxu0 0
      %1467 = vmatpush1.bf16.msra.mxu0 %v1307
      %1468 = vmatprep.subr.bf16.mxu0 0
      %1469 = vmatpush1.bf16.msra.mxu0 %v1310
      %1470 = vmatprep.subr.bf16.mxu0 0
      %1471 = vmatpush1.bf16.msra.mxu0 %v1313
      %1472 = vmatprep.subr.bf16.mxu0 0
      %1473 = vmatpush1.bf16.msra.mxu0 %v1316
      %1474 = vmatprep.subr.bf16.mxu0 0
      %1475 = vmatpush1.bf16.msra.mxu0 %v1319
      %1476 = vmatprep.subr.bf16.mxu0 0
      %1477 = vmatpush1.bf16.msra.mxu0 %v1322
      %1478 = vmatprep.subr.bf16.mxu0 0
      %1479 = vmatpush1.bf16.msra.mxu0 %v1325
      %1480 = vmatprep.subr.bf16.mxu0 0
      %1481 = vmatpush1.bf16.msra.mxu0 %v1328
      %1482 = vmatprep.subr.bf16.mxu0 0
      %1483 = vmatpush1.bf16.msra.mxu0 0
      %1484 = vmatprep.subr.bf16.mxu0 0
      %1485 = vmatpush1.bf16.msra.mxu0 0
      %1486 = vmatprep.subr.bf16.mxu0 0
      %1487 = vmatpush1.bf16.msra.mxu0 0
      %1488 = vmatprep.subr.bf16.mxu0 0
      %1489 = vmatpush1.bf16.msra.mxu0 0
      %1490 = vmatprep.subr.bf16.mxu0 0
      %1491 = vmatpush1.bf16.msra.mxu0 0
      %1492 = vmatprep.subr.bf16.mxu0 0
      %1493 = vmatpush1.bf16.msra.mxu0 0
      %1494 = vmatprep.subr.bf16.mxu0 0
      %1495 = vmatpush1.bf16.msra.mxu0 0
      %1496 = vmatprep.subr.bf16.mxu0 0
      %1497 = vmatpush1.bf16.msra.mxu0 0
      %1498 = vmatprep.mubr.bf16.mxu0 0
      %1499 = vmatmul.mubr.bf16.gmra.mrb[0].mxu0 %v1168
      %v1500 = vpop.f32.mrb[0].mxu0
      %v1501 = vadd.f32 %v1221, %v1500
      %v1502 = vpop.f32.mrb[0].mxu0
      %v1503 = vpop.f32.mrb[0].mxu0
      %v1504 = vadd.f32 %v1221, %v1503
      %v1505 = vpop.f32.mrb[0].mxu0
      %1506 = vmatprep.mubr.bf16.mxu0 0
      %1507 = vmatmul.mubr.bf16.gmra.mrb[0].mxu0 %v1169
      %v1508 = vpop.f32.mrb[0].mxu0
      %v1509 = vadd.f32 %v1221, %v1508
      %v1510 = vpop.f32.mrb[0].mxu0
      %v1511 = vpop.f32.mrb[0].mxu0
      %v1512 = vadd.f32 %v1221, %v1511
      %v1513 = vpop.f32.mrb[0].mxu0
      %1514 = vmatprep.mubr.bf16.mxu0 0
      %1515 = vmatmul.mubr.bf16.gmra.mrb[0].mxu0 %v1170
      %v1516 = vpop.f32.mrb[0].mxu0
      %v1517 = vadd.f32 %v1221, %v1516
      %v1518 = vpop.f32.mrb[0].mxu0
      %v1519 = vpop.f32.mrb[0].mxu0
      %v1520 = vadd.f32 %v1221, %v1519
      %v1521 = vpop.f32.mrb[0].mxu0
      %1522 = vmatprep.mubr.bf16.mxu0 0
      %1523 = vmatmul.mubr.bf16.gmra.mrb[0].mxu0 %v1171
      %v1524 = vpop.f32.mrb[0].mxu0
      %v1525 = vadd.f32 %v1221, %v1524
      %v1526 = vpop.f32.mrb[0].mxu0
      %v1527 = vpop.f32.mrb[0].mxu0
      %v1528 = vadd.f32 %v1221, %v1527
      %v1529 = vpop.f32.mrb[0].mxu0
      %1530 = vmatprep.mubr.bf16.mxu0 0
      %1531 = vmatmul.mubr.bf16.gmra.mrb[0].mxu0 %v1172
      %v1532 = vpop.f32.mrb[0].mxu0
      %v1533 = vadd.f32 %v1221, %v1532
      %v1534 = vpop.f32.mrb[0].mxu0
      %v1535 = vpop.f32.mrb[0].mxu0
      %v1536 = vadd.f32 %v1221, %v1535
      %v1537 = vpop.f32.mrb[0].mxu0
      %1538 = vmatprep.mubr.bf16.mxu0 0
      %1539 = vmatmul.mubr.bf16.gmra.mrb[0].mxu0 %v1173
      %v1540 = vpop.f32.mrb[0].mxu0
      %v1541 = vadd.f32 %v1221, %v1540
      %v1542 = vpop.f32.mrb[0].mxu0
      %v1543 = vpop.f32.mrb[0].mxu0
      %v1544 = vadd.f32 %v1221, %v1543
      %v1545 = vpop.f32.mrb[0].mxu0
      %1546 = vmatprep.mubr.bf16.mxu0 0
      %1547 = vmatmul.mubr.bf16.gmra.mrb[0].mxu0 %v1174
      %v1548 = vpop.f32.mrb[0].mxu0
      %v1549 = vadd.f32 %v1221, %v1548
      %v1550 = vpop.f32.mrb[0].mxu0
      %v1551 = vpop.f32.mrb[0].mxu0
      %v1552 = vadd.f32 %v1221, %v1551
      %v1553 = vpop.f32.mrb[0].mxu0
      %1554 = vmatprep.mubr.bf16.mxu0 0
      %1555 = vmatmul.mubr.bf16.gmra.mrb[0].mxu0 %v1175
      %v1556 = vpop.f32.mrb[0].mxu0
      %v1557 = vadd.f32 %v1221, %v1556
      %v1558 = vpop.f32.mrb[0].mxu0
      %v1559 = vpop.f32.mrb[0].mxu0
      %v1560 = vadd.f32 %v1221, %v1559
      %v1561 = vpop.f32.mrb[0].mxu0
      %1562 = vdwg.mxu0
      %v1563 = vpack.c.bf16 %v1392, %v1388
      %v1564 = vpack.c.bf16 %v1402, %v1398
      %v1565 = vpack.c.bf16 %v1412, %v1408
      %v1566 = vpack.c.bf16 %v1422, %v1418
      %v1567 = vpack.c.bf16 %v1432, %v1428
      %v1568 = vpack.c.bf16 %v1442, %v1438
      %v1569 = vpack.c.bf16 %v1452, %v1448
      %v1570 = vpack.c.bf16 %v1462, %v1458
      %v1571 = vpack.c.bf16 %v1394, %v1390
      %v1572 = vpack.c.bf16 %v1404, %v1400
      %v1573 = vpack.c.bf16 %v1414, %v1410
      %v1574 = vpack.c.bf16 %v1424, %v1420
      %v1575 = vpack.c.bf16 %v1434, %v1430
      %v1576 = vpack.c.bf16 %v1444, %v1440
      %v1577 = vpack.c.bf16 %v1454, %v1450
      %v1578 = vpack.c.bf16 %v1464, %v1460
      %v1579 = vpack.c.bf16 %v1504, %v1501
      %v1580 = vpack.c.bf16 %v1512, %v1509
      %v1581 = vpack.c.bf16 %v1520, %v1517
      %v1582 = vpack.c.bf16 %v1528, %v1525
      %v1583 = vpack.c.bf16 %v1536, %v1533
      %v1584 = vpack.c.bf16 %v1544, %v1541
      %v1585 = vpack.c.bf16 %v1552, %v1549
      %v1586 = vpack.c.bf16 %v1560, %v1557
      %v1587 = vld [vmem:[%s785] sm:$0xf]
      %v1588 = vld [vmem:[%s785 + $0x4] sm:$0xf]
      %v1589 = vld [vmem:[%s785 + $0x8] sm:$0xf]
      %v1590 = vld [vmem:[%s785 + $0xc] sm:$0xf]
      %v1591 = vld [vmem:[%s785 + $0x10] sm:$0xf]
      %v1592 = vld [vmem:[%s785 + $0x14] sm:$0xf]
      %v1593 = vld [vmem:[%s785 + $0x18] sm:$0xf]
      %v1594 = vld [vmem:[%s785 + $0x1c] sm:$0xf]
      %v1595 = vld [vmem:[%s785 + $0x20] sm:$0xf]
      %v1596 = vld [vmem:[%s785 + $0x24] sm:$0xf]
      %v1597 = vld [vmem:[%s785 + $0x28] sm:$0xf]
      %v1598 = vld [vmem:[%s785 + $0x2c] sm:$0xf]
      %v1599 = vld [vmem:[%s785 + $0x30] sm:$0xf]
      %v1600 = vld [vmem:[%s785 + $0x34] sm:$0xf]
      %v1601 = vld [vmem:[%s785 + $0x38] sm:$0xf]
      %v1602 = vld [vmem:[%s785 + $0x3c] sm:$0xf]
      %v1603 = vld [vmem:[#allocation3] sm:$0xff]
      %v1604 = vld [vmem:[#allocation3 + $0x8] sm:$0xff]
      %v1605 = vld [vmem:[#allocation3 + $0x10] sm:$0xff]
      %v1606 = vld [vmem:[#allocation3 + $0x18] sm:$0xff]
      %v1607 = vld [vmem:[#allocation3 + $0x20] sm:$0xff]
      %v1608 = vld [vmem:[#allocation3 + $0x28] sm:$0xff]
      %v1609 = vld [vmem:[#allocation3 + $0x30] sm:$0xff]
      %v1610 = vld [vmem:[#allocation3 + $0x38] sm:$0xff]
      %v1611 = vld [vmem:[#allocation3 + $0x40] sm:$0xff]
      %v1612 = vld [vmem:[#allocation3 + $0x48] sm:$0xff]
      %v1613 = vld [vmem:[#allocation3 + $0x50] sm:$0xff]
      %v1614 = vld [vmem:[#allocation3 + $0x58] sm:$0xff]
      %v1615 = vld [vmem:[#allocation3 + $0x60] sm:$0xff]
      %v1616 = vld [vmem:[#allocation3 + $0x68] sm:$0xff]
      %v1617 = vld [vmem:[#allocation3 + $0x70] sm:$0xff]
      %v1618 = vld [vmem:[#allocation3 + $0x78] sm:$0xff]
      %vm1619 = vcmask 261120
      %v1621 = vsel %vm1619, %v1563, 0
      %v1624 = vsel %vm1619, %v1564, 0
      %v1627 = vsel %vm1619, %v1565, 0
      %v1630 = vsel %vm1619, %v1566, 0
      %v1633 = vsel %vm1619, %v1567, 0
      %v1636 = vsel %vm1619, %v1568, 0
      %v1639 = vsel %vm1619, %v1569, 0
      %v1642 = vsel %vm1619, %v1570, 0
      %v1645 = vsel %vm1619, %v1571, 0
      %v1648 = vsel %vm1619, %v1572, 0
      %v1651 = vsel %vm1619, %v1573, 0
      %v1654 = vsel %vm1619, %v1574, 0
      %v1657 = vsel %vm1619, %v1575, 0
      %v1660 = vsel %vm1619, %v1576, 0
      %v1663 = vsel %vm1619, %v1577, 0
      %v1666 = vsel %vm1619, %v1578, 0
      %1668 = vmatprep.subr.bf16.mxu0 0
      %1669 = vmatpush1.bf16.xpose.msra.mxu0 %v1645
      %1670 = vmatprep.subr.bf16.mxu0 0
      %1671 = vmatpush1.bf16.xpose.msra.mxu0 %v1648
      %1672 = vmatprep.subr.bf16.mxu0 0
      %1673 = vmatpush1.bf16.xpose.msra.mxu0 %v1651
      %1674 = vmatprep.subr.bf16.mxu0 0
      %1675 = vmatpush1.bf16.xpose.msra.mxu0 %v1654
      %1676 = vmatprep.subr.bf16.mxu0 0
      %1677 = vmatpush1.bf16.xpose.msra.mxu0 %v1657
      %1678 = vmatprep.subr.bf16.mxu0 0
      %1679 = vmatpush1.bf16.xpose.msra.mxu0 %v1660
      %1680 = vmatprep.subr.bf16.mxu0 0
      %1681 = vmatpush1.bf16.xpose.msra.mxu0 %v1663
      %1682 = vmatprep.subr.bf16.mxu0 0
      %1683 = vmatpush1.bf16.xpose.msra.mxu0 %v1666
      %1684 = vmatprep.subr.bf16.mxu0 0
      %1685 = vmatpush1.bf16.xpose.msra.mxu0 0
      %1686 = vmatprep.subr.bf16.mxu0 0
      %1687 = vmatpush1.bf16.xpose.msra.mxu0 0
      %1688 = vmatprep.subr.bf16.mxu0 0
      %1689 = vmatpush1.bf16.xpose.msra.mxu0 0
      %1690 = vmatprep.subr.bf16.mxu0 0
      %1691 = vmatpush1.bf16.xpose.msra.mxu0 0
      %1692 = vmatprep.subr.bf16.mxu0 0
      %1693 = vmatpush1.bf16.xpose.msra.mxu0 0
      %1694 = vmatprep.subr.bf16.mxu0 0
      %1695 = vmatpush1.bf16.xpose.msra.mxu0 0
      %1696 = vmatprep.subr.bf16.mxu0 0
      %1697 = vmatpush1.bf16.xpose.msra.mxu0 0
      %1698 = vmatprep.subr.bf16.mxu0 0
      %1699 = vmatpush1.bf16.xpose.msra.mxu0 0
      %1700 = vmatprep.mubr.bf16.mxu0 0
      %1701 = vmatmul.mubr.bf16.gmra.mrb[0].mxu0 %v1621
      %v1702 = vpop.f32.mrb[0].mxu0
      %v1703 = vadd.f32 %v1603, %v1702
      %v1704 = vpop.f32.mrb[0].mxu0
      %v1705 = vpop.f32.mrb[0].mxu0
      %v1706 = vadd.f32 %v1604, %v1705
      %v1707 = vpop.f32.mrb[0].mxu0
      %1708 = vmatprep.mubr.bf16.mxu0 0
      %1709 = vmatmul.mubr.bf16.gmra.mrb[0].mxu0 %v1624
      %v1710 = vpop.f32.mrb[0].mxu0
      %v1711 = vadd.f32 %v1605, %v1710
      %v1712 = vpop.f32.mrb[0].mxu0
      %v1713 = vpop.f32.mrb[0].mxu0
      %v1714 = vadd.f32 %v1606, %v1713
      %v1715 = vpop.f32.mrb[0].mxu0
      %1716 = vmatprep.mubr.bf16.mxu0 0
      %1717 = vmatmul.mubr.bf16.gmra.mrb[0].mxu0 %v1627
      %v1718 = vpop.f32.mrb[0].mxu0
      %v1719 = vadd.f32 %v1607, %v1718
      %v1720 = vpop.f32.mrb[0].mxu0
      %v1721 = vpop.f32.mrb[0].mxu0
      %v1722 = vadd.f32 %v1608, %v1721
      %v1723 = vpop.f32.mrb[0].mxu0
      %1724 = vmatprep.mubr.bf16.mxu0 0
      %1725 = vmatmul.mubr.bf16.gmra.mrb[0].mxu0 %v1630
      %v1726 = vpop.f32.mrb[0].mxu0
      %v1727 = vadd.f32 %v1609, %v1726
      %v1728 = vpop.f32.mrb[0].mxu0
      %v1729 = vpop.f32.mrb[0].mxu0
      %v1730 = vadd.f32 %v1610, %v1729
      %v1731 = vpop.f32.mrb[0].mxu0
      %1732 = vmatprep.mubr.bf16.mxu0 0
      %1733 = vmatmul.mubr.bf16.gmra.mrb[0].mxu0 %v1633
      %v1734 = vpop.f32.mrb[0].mxu0
      %v1735 = vadd.f32 %v1611, %v1734
      %v1736 = vpop.f32.mrb[0].mxu0
      %v1737 = vpop.f32.mrb[0].mxu0
      %v1738 = vadd.f32 %v1612, %v1737
      %v1739 = vpop.f32.mrb[0].mxu0
      %1740 = vmatprep.mubr.bf16.mxu0 0
      %1741 = vmatmul.mubr.bf16.gmra.mrb[0].mxu0 %v1636
      %v1742 = vpop.f32.mrb[0].mxu0
      %v1743 = vadd.f32 %v1613, %v1742
      %v1744 = vpop.f32.mrb[0].mxu0
      %v1745 = vpop.f32.mrb[0].mxu0
      %v1746 = vadd.f32 %v1614, %v1745
      %v1747 = vpop.f32.mrb[0].mxu0
      %1748 = vmatprep.mubr.bf16.mxu0 0
      %1749 = vmatmul.mubr.bf16.gmra.mrb[0].mxu0 %v1639
      %v1750 = vpop.f32.mrb[0].mxu0
      %v1751 = vadd.f32 %v1615, %v1750
      %v1752 = vpop.f32.mrb[0].mxu0
      %v1753 = vpop.f32.mrb[0].mxu0
      %v1754 = vadd.f32 %v1616, %v1753
      %v1755 = vpop.f32.mrb[0].mxu0
      %1756 = vmatprep.mubr.bf16.mxu0 0
      %1757 = vmatmul.mubr.bf16.gmra.mrb[0].mxu0 %v1642
      %v1758 = vpop.f32.mrb[0].mxu0
      %v1759 = vadd.f32 %v1617, %v1758
      %v1760 = vpop.f32.mrb[0].mxu0
      %v1761 = vpop.f32.mrb[0].mxu0
      %v1762 = vadd.f32 %v1618, %v1761
      %v1763 = vpop.f32.mrb[0].mxu0
      %1764 = vdwg.mxu0
      %1765 = vmax.xlane.f32.xlu0 %v1703
      %v1766 = vpop.xlane.xlu0 %1765
      %1767 = vmax.xlane.f32.xlu0 %v1706
      %v1768 = vpop.xlane.xlu0 %1767
      %1769 = vmax.xlane.f32.xlu0 %v1711
      %v1770 = vpop.xlane.xlu0 %1769
      %1771 = vmax.xlane.f32.xlu0 %v1714
      %v1772 = vpop.xlane.xlu0 %1771
      %1773 = vmax.xlane.f32.xlu0 %v1719
      %v1774 = vpop.xlane.xlu0 %1773
      %1775 = vmax.xlane.f32.xlu0 %v1722
      %v1776 = vpop.xlane.xlu0 %1775
      %1777 = vmax.xlane.f32.xlu0 %v1727
      %v1778 = vpop.xlane.xlu0 %1777
      %1779 = vmax.xlane.f32.xlu0 %v1730
      %v1780 = vpop.xlane.xlu0 %1779
      %1781 = vmax.xlane.f32.xlu0 %v1735
      %v1782 = vpop.xlane.xlu0 %1781
      %1783 = vmax.xlane.f32.xlu0 %v1738
      %v1784 = vpop.xlane.xlu0 %1783
      %1785 = vmax.xlane.f32.xlu0 %v1743
      %v1786 = vpop.xlane.xlu0 %1785
      %1787 = vmax.xlane.f32.xlu0 %v1746
      %v1788 = vpop.xlane.xlu0 %1787
      %1789 = vmax.xlane.f32.xlu0 %v1751
      %v1790 = vpop.xlane.xlu0 %1789
      %1791 = vmax.xlane.f32.xlu0 %v1754
      %v1792 = vpop.xlane.xlu0 %1791
      %1793 = vmax.xlane.f32.xlu0 %v1759
      %v1794 = vpop.xlane.xlu0 %1793
      %1795 = vmax.xlane.f32.xlu0 %v1762
      %v1796 = vpop.xlane.xlu0 %1795
      %v1797 = vsub.f32 %v1703, %v1766
      %v1798 = vsub.f32 %v1706, %v1768
      %v1799 = vsub.f32 %v1711, %v1770
      %v1800 = vsub.f32 %v1714, %v1772
      %v1801 = vsub.f32 %v1719, %v1774
      %v1802 = vsub.f32 %v1722, %v1776
      %v1803 = vsub.f32 %v1727, %v1778
      %v1804 = vsub.f32 %v1730, %v1780
      %v1805 = vsub.f32 %v1735, %v1782
      %v1806 = vsub.f32 %v1738, %v1784
      %v1807 = vsub.f32 %v1743, %v1786
      %v1808 = vsub.f32 %v1746, %v1788
      %v1809 = vsub.f32 %v1751, %v1790
      %v1810 = vsub.f32 %v1754, %v1792
      %v1811 = vsub.f32 %v1759, %v1794
      %v1812 = vsub.f32 %v1762, %v1796
      %v1813 = vmul.f32 %v1797, 1.442695
      %v1814 = vpow.pop %v1813
      %v1815 = vmul.f32 %v1798, 1.442695
      %v1816 = vpow.pop %v1815
      %v1817 = vmul.f32 %v1799, 1.442695
      %v1818 = vpow.pop %v1817
      %v1819 = vmul.f32 %v1800, 1.442695
      %v1820 = vpow.pop %v1819
      %v1821 = vmul.f32 %v1801, 1.442695
      %v1822 = vpow.pop %v1821
      %v1823 = vmul.f32 %v1802, 1.442695
      %v1824 = vpow.pop %v1823
      %v1825 = vmul.f32 %v1803, 1.442695
      %v1826 = vpow.pop %v1825
      %v1827 = vmul.f32 %v1804, 1.442695
      %v1828 = vpow.pop %v1827
      %v1829 = vmul.f32 %v1805, 1.442695
      %v1830 = vpow.pop %v1829
      %v1831 = vmul.f32 %v1806, 1.442695
      %v1832 = vpow.pop %v1831
      %v1833 = vmul.f32 %v1807, 1.442695
      %v1834 = vpow.pop %v1833
      %v1835 = vmul.f32 %v1808, 1.442695
      %v1836 = vpow.pop %v1835
      %v1837 = vmul.f32 %v1809, 1.442695
      %v1838 = vpow.pop %v1837
      %v1839 = vmul.f32 %v1810, 1.442695
      %v1840 = vpow.pop %v1839
      %v1841 = vmul.f32 %v1811, 1.442695
      %v1842 = vpow.pop %v1841
      %v1843 = vmul.f32 %v1812, 1.442695
      %v1844 = vpow.pop %v1843
      %v1845 = vpack.c.bf16 %v1816, %v1814
      %v1846 = vpack.c.bf16 %v1820, %v1818
      %v1847 = vpack.c.bf16 %v1824, %v1822
      %v1848 = vpack.c.bf16 %v1828, %v1826
      %v1849 = vpack.c.bf16 %v1832, %v1830
      %v1850 = vpack.c.bf16 %v1836, %v1834
      %v1851 = vpack.c.bf16 %v1840, %v1838
      %v1852 = vpack.c.bf16 %v1844, %v1842
      %1853 = vmatprep.subr.bf16.mxu0 0
      %1854 = vmatpush1.bf16.msra.mxu0 %v1579
      %1855 = vmatprep.subr.bf16.mxu0 0
      %1856 = vmatpush1.bf16.msra.mxu0 %v1580
      %1857 = vmatprep.subr.bf16.mxu0 0
      %1858 = vmatpush1.bf16.msra.mxu0 %v1581
      %1859 = vmatprep.subr.bf16.mxu0 0
      %1860 = vmatpush1.bf16.msra.mxu0 %v1582
      %1861 = vmatprep.subr.bf16.mxu0 0
      %1862 = vmatpush1.bf16.msra.mxu0 %v1583
      %1863 = vmatprep.subr.bf16.mxu0 0
      %1864 = vmatpush1.bf16.msra.mxu0 %v1584
      %1865 = vmatprep.subr.bf16.mxu0 0
      %1866 = vmatpush1.bf16.msra.mxu0 %v1585
      %1867 = vmatprep.subr.bf16.mxu0 0
      %1868 = vmatpush1.bf16.msra.mxu0 %v1586
      %1869 = vmatprep.subr.bf16.mxu0 0
      %1870 = vmatpush1.bf16.msra.mxu0 0
      %1871 = vmatprep.subr.bf16.mxu0 0
      %1872 = vmatpush1.bf16.msra.mxu0 0
      %1873 = vmatprep.subr.bf16.mxu0 0
      %1874 = vmatpush1.bf16.msra.mxu0 0
      %1875 = vmatprep.subr.bf16.mxu0 0
      %1876 = vmatpush1.bf16.msra.mxu0 0
      %1877 = vmatprep.subr.bf16.mxu0 0
      %1878 = vmatpush1.bf16.msra.mxu0 0
      %1879 = vmatprep.subr.bf16.mxu0 0
      %1880 = vmatpush1.bf16.msra.mxu0 0
      %1881 = vmatprep.subr.bf16.mxu0 0
      %1882 = vmatpush1.bf16.msra.mxu0 0
      %1883 = vmatprep.subr.bf16.mxu0 0
      %1884 = vmatpush1.bf16.msra.mxu0 0
      %1885 = vmatprep.mubr.bf16.mxu0 0
      %1886 = vmatmul.mubr.bf16.gmra.mrb[0].mxu0 %v1845
      %v1887 = vpop.f32.mrb[0].mxu0
      %v1888 = vadd.f32 0.0, %v1887
      %v1889 = vpop.f32.mrb[0].mxu0
      %v1890 = vpop.f32.mrb[0].mxu0
      %v1891 = vadd.f32 0.0, %v1890
      %v1892 = vpop.f32.mrb[0].mxu0
      %1893 = vmatprep.mubr.bf16.mxu0 0
      %1894 = vmatmul.mubr.bf16.gmra.mrb[0].mxu0 %v1846
      %v1895 = vpop.f32.mrb[0].mxu0
      %v1896 = vadd.f32 0.0, %v1895
      %v1897 = vpop.f32.mrb[0].mxu0
      %v1898 = vpop.f32.mrb[0].mxu0
      %v1899 = vadd.f32 0.0, %v1898
      %v1900 = vpop.f32.mrb[0].mxu0
      %1901 = vmatprep.mubr.bf16.mxu0 0
      %1902 = vmatmul.mubr.bf16.gmra.mrb[0].mxu0 %v1847
      %v1903 = vpop.f32.mrb[0].mxu0
      %v1904 = vadd.f32 0.0, %v1903
      %v1905 = vpop.f32.mrb[0].mxu0
      %v1906 = vpop.f32.mrb[0].mxu0
      %v1907 = vadd.f32 0.0, %v1906
      %v1908 = vpop.f32.mrb[0].mxu0
      %1909 = vmatprep.mubr.bf16.mxu0 0
      %1910 = vmatmul.mubr.bf16.gmra.mrb[0].mxu0 %v1848
      %v1911 = vpop.f32.mrb[0].mxu0
      %v1912 = vadd.f32 0.0, %v1911
      %v1913 = vpop.f32.mrb[0].mxu0
      %v1914 = vpop.f32.mrb[0].mxu0
      %v1915 = vadd.f32 0.0, %v1914
      %v1916 = vpop.f32.mrb[0].mxu0
      %1917 = vmatprep.mubr.bf16.mxu0 0
      %1918 = vmatmul.mubr.bf16.gmra.mrb[0].mxu0 %v1849
      %v1919 = vpop.f32.mrb[0].mxu0
      %v1920 = vadd.f32 0.0, %v1919
      %v1921 = vpop.f32.mrb[0].mxu0
      %v1922 = vpop.f32.mrb[0].mxu0
      %v1923 = vadd.f32 0.0, %v1922
      %v1924 = vpop.f32.mrb[0].mxu0
      %1925 = vmatprep.mubr.bf16.mxu0 0
      %1926 = vmatmul.mubr.bf16.gmra.mrb[0].mxu0 %v1850
      %v1927 = vpop.f32.mrb[0].mxu0
      %v1928 = vadd.f32 0.0, %v1927
      %v1929 = vpop.f32.mrb[0].mxu0
      %v1930 = vpop.f32.mrb[0].mxu0
      %v1931 = vadd.f32 0.0, %v1930
      %v1932 = vpop.f32.mrb[0].mxu0
      %1933 = vmatprep.mubr.bf16.mxu0 0
      %1934 = vmatmul.mubr.bf16.gmra.mrb[0].mxu0 %v1851
      %v1935 = vpop.f32.mrb[0].mxu0
      %v1936 = vadd.f32 0.0, %v1935
      %v1937 = vpop.f32.mrb[0].mxu0
      %v1938 = vpop.f32.mrb[0].mxu0
      %v1939 = vadd.f32 0.0, %v1938
      %v1940 = vpop.f32.mrb[0].mxu0
      %1941 = vmatprep.mubr.bf16.mxu0 0
      %1942 = vmatmul.mubr.bf16.gmra.mrb[0].mxu0 %v1852
      %v1943 = vpop.f32.mrb[0].mxu0
      %v1944 = vadd.f32 0.0, %v1943
      %v1945 = vpop.f32.mrb[0].mxu0
      %v1946 = vpop.f32.mrb[0].mxu0
      %v1947 = vadd.f32 0.0, %v1946
      %v1948 = vpop.f32.mrb[0].mxu0
      %1949 = vdwg.mxu0
      %1950 = vmatprep.subr.bf16.mxu0 0
      %1951 = vmatpush1.bf16.msra.mxu0 1065369472
      %1952 = vmatprep.subr.bf16.mxu0 0
      %1953 = vmatpush1.bf16.msra.mxu0 1065369472
      %1954 = vmatprep.subr.bf16.mxu0 0
      %1955 = vmatpush1.bf16.msra.mxu0 1065369472
      %1956 = vmatprep.subr.bf16.mxu0 0
      %1957 = vmatpush1.bf16.msra.mxu0 1065369472
      %1958 = vmatprep.subr.bf16.mxu0 0
      %1959 = vmatpush1.bf16.msra.mxu0 1065369472
      %1960 = vmatprep.subr.bf16.mxu0 0
      %1961 = vmatpush1.bf16.msra.mxu0 1065369472
      %1962 = vmatprep.subr.bf16.mxu0 0
      %1963 = vmatpush1.bf16.msra.mxu0 1065369472
      %1964 = vmatprep.subr.bf16.mxu0 0
      %1965 = vmatpush1.bf16.msra.mxu0 1065369472
      %1966 = vmatprep.subr.bf16.mxu0 0
      %1967 = vmatpush1.bf16.msra.mxu0 0
      %1968 = vmatprep.subr.bf16.mxu0 0
      %1969 = vmatpush1.bf16.msra.mxu0 0
      %1970 = vmatprep.subr.bf16.mxu0 0
      %1971 = vmatpush1.bf16.msra.mxu0 0
      %1972 = vmatprep.subr.bf16.mxu0 0
      %1973 = vmatpush1.bf16.msra.mxu0 0
      %1974 = vmatprep.subr.bf16.mxu0 0
      %1975 = vmatpush1.bf16.msra.mxu0 0
      %1976 = vmatprep.subr.bf16.mxu0 0
      %1977 = vmatpush1.bf16.msra.mxu0 0
      %1978 = vmatprep.subr.bf16.mxu0 0
      %1979 = vmatpush1.bf16.msra.mxu0 0
      %1980 = vmatprep.subr.bf16.mxu0 0
      %1981 = vmatpush1.bf16.msra.mxu0 0
      %1982 = vmatprep.mubr.bf16.mxu0 0
      %1983 = vmatmul.mubr.bf16.gmra.mrb[0].mxu0 %v1845
      %v1984 = vpop.f32.mrb[0].mxu0
      %v1985 = vadd.f32 0.0, %v1984
      %v1986 = vpop.f32.mrb[0].mxu0
      %v1987 = vpop.f32.mrb[0].mxu0
      %v1988 = vadd.f32 0.0, %v1987
      %v1989 = vpop.f32.mrb[0].mxu0
      %1990 = vmatprep.mubr.bf16.mxu0 0
      %1991 = vmatmul.mubr.bf16.gmra.mrb[0].mxu0 %v1846
      %v1992 = vpop.f32.mrb[0].mxu0
      %v1993 = vadd.f32 0.0, %v1992
      %v1994 = vpop.f32.mrb[0].mxu0
      %v1995 = vpop.f32.mrb[0].mxu0
      %v1996 = vadd.f32 0.0, %v1995
      %v1997 = vpop.f32.mrb[0].mxu0
      %1998 = vmatprep.mubr.bf16.mxu0 0
      %1999 = vmatmul.mubr.bf16.gmra.mrb[0].mxu0 %v1847
      %v2000 = vpop.f32.mrb[0].mxu0
      %v2001 = vadd.f32 0.0, %v2000
      %v2002 = vpop.f32.mrb[0].mxu0
      %v2003 = vpop.f32.mrb[0].mxu0
      %v2004 = vadd.f32 0.0, %v2003
      %v2005 = vpop.f32.mrb[0].mxu0
      %2006 = vmatprep.mubr.bf16.mxu0 0
      %2007 = vmatmul.mubr.bf16.gmra.mrb[0].mxu0 %v1848
      %v2008 = vpop.f32.mrb[0].mxu0
      %v2009 = vadd.f32 0.0, %v2008
      %v2010 = vpop.f32.mrb[0].mxu0
      %v2011 = vpop.f32.mrb[0].mxu0
      %v2012 = vadd.f32 0.0, %v2011
      %v2013 = vpop.f32.mrb[0].mxu0
      %2014 = vmatprep.mubr.bf16.mxu0 0
      %2015 = vmatmul.mubr.bf16.gmra.mrb[0].mxu0 %v1849
      %v2016 = vpop.f32.mrb[0].mxu0
      %v2017 = vadd.f32 0.0, %v2016
      %v2018 = vpop.f32.mrb[0].mxu0
      %v2019 = vpop.f32.mrb[0].mxu0
      %v2020 = vadd.f32 0.0, %v2019
      %v2021 = vpop.f32.mrb[0].mxu0
      %2022 = vmatprep.mubr.bf16.mxu0 0
      %2023 = vmatmul.mubr.bf16.gmra.mrb[0].mxu0 %v1850
      %v2024 = vpop.f32.mrb[0].mxu0
      %v2025 = vadd.f32 0.0, %v2024
      %v2026 = vpop.f32.mrb[0].mxu0
      %v2027 = vpop.f32.mrb[0].mxu0
      %v2028 = vadd.f32 0.0, %v2027
      %v2029 = vpop.f32.mrb[0].mxu0
      %2030 = vmatprep.mubr.bf16.mxu0 0
      %2031 = vmatmul.mubr.bf16.gmra.mrb[0].mxu0 %v1851
      %v2032 = vpop.f32.mrb[0].mxu0
      %v2033 = vadd.f32 0.0, %v2032
      %v2034 = vpop.f32.mrb[0].mxu0
      %v2035 = vpop.f32.mrb[0].mxu0
      %v2036 = vadd.f32 0.0, %v2035
      %v2037 = vpop.f32.mrb[0].mxu0
      %2038 = vmatprep.mubr.bf16.mxu0 0
      %2039 = vmatmul.mubr.bf16.gmra.mrb[0].mxu0 %v1852
      %v2040 = vpop.f32.mrb[0].mxu0
      %v2041 = vadd.f32 0.0, %v2040
      %v2042 = vpop.f32.mrb[0].mxu0
      %v2043 = vpop.f32.mrb[0].mxu0
      %v2044 = vadd.f32 0.0, %v2043
      %v2045 = vpop.f32.mrb[0].mxu0
      %2046 = vdwg.mxu0
      %v2047 = vrcp.pop %v1985
      %v2048 = vrcp.pop %v1988
      %v2049 = vrcp.pop %v1993
      %v2050 = vrcp.pop %v1996
      %v2051 = vrcp.pop %v2001
      %v2052 = vrcp.pop %v2004
      %v2053 = vrcp.pop %v2009
      %v2054 = vrcp.pop %v2012
      %v2055 = vrcp.pop %v2017
      %v2056 = vrcp.pop %v2020
      %v2057 = vrcp.pop %v2025
      %v2058 = vrcp.pop %v2028
      %v2059 = vrcp.pop %v2033
      %v2060 = vrcp.pop %v2036
      %v2061 = vrcp.pop %v2041
      %v2062 = vrcp.pop %v2044
      %2064 = vset.pattern.permute.xlu0 0
      %2065 = vperm.xlu0 %2064, %v2047
      %v2066 = vpop.permute.xlu0 %2065
      %2069 = vset.pattern.permute.xlu0 0
      %2070 = vperm.xlu0 %2069, %v2048
      %v2071 = vpop.permute.xlu0 %2070
      %2074 = vset.pattern.permute.xlu0 0
      %2075 = vperm.xlu0 %2074, %v2049
      %v2076 = vpop.permute.xlu0 %2075
      %2079 = vset.pattern.permute.xlu0 0
      %2080 = vperm.xlu0 %2079, %v2050
      %v2081 = vpop.permute.xlu0 %2080
      %2084 = vset.pattern.permute.xlu0 0
      %2085 = vperm.xlu0 %2084, %v2051
      %v2086 = vpop.permute.xlu0 %2085
      %2089 = vset.pattern.permute.xlu0 0
      %2090 = vperm.xlu0 %2089, %v2052
      %v2091 = vpop.permute.xlu0 %2090
      %2094 = vset.pattern.permute.xlu0 0
      %2095 = vperm.xlu0 %2094, %v2053
      %v2096 = vpop.permute.xlu0 %2095
      %2099 = vset.pattern.permute.xlu0 0
      %2100 = vperm.xlu0 %2099, %v2054
      %v2101 = vpop.permute.xlu0 %2100
      %2104 = vset.pattern.permute.xlu0 0
      %2105 = vperm.xlu0 %2104, %v2055
      %v2106 = vpop.permute.xlu0 %2105
      %2109 = vset.pattern.permute.xlu0 0
      %2110 = vperm.xlu0 %2109, %v2056
      %v2111 = vpop.permute.xlu0 %2110
      %2114 = vset.pattern.permute.xlu0 0
      %2115 = vperm.xlu0 %2114, %v2057
      %v2116 = vpop.permute.xlu0 %2115
      %2119 = vset.pattern.permute.xlu0 0
      %2120 = vperm.xlu0 %2119, %v2058
      %v2121 = vpop.permute.xlu0 %2120
      %2124 = vset.pattern.permute.xlu0 0
      %2125 = vperm.xlu0 %2124, %v2059
      %v2126 = vpop.permute.xlu0 %2125
      %2129 = vset.pattern.permute.xlu0 0
      %2130 = vperm.xlu0 %2129, %v2060
      %v2131 = vpop.permute.xlu0 %2130
      %2134 = vset.pattern.permute.xlu0 0
      %2135 = vperm.xlu0 %2134, %v2061
      %v2136 = vpop.permute.xlu0 %2135
      %2139 = vset.pattern.permute.xlu0 0
      %2140 = vperm.xlu0 %2139, %v2062
      %v2141 = vpop.permute.xlu0 %2140
      %v2143 = vmul.f32 %v1888, %v2066
      %v2144 = vmul.f32 %v1891, %v2071
      %v2145 = vmul.f32 %v1896, %v2076
      %v2146 = vmul.f32 %v1899, %v2081
      %v2147 = vmul.f32 %v1904, %v2086
      %v2148 = vmul.f32 %v1907, %v2091
      %v2149 = vmul.f32 %v1912, %v2096
      %v2150 = vmul.f32 %v1915, %v2101
      %v2151 = vmul.f32 %v1920, %v2106
      %v2152 = vmul.f32 %v1923, %v2111
      %v2153 = vmul.f32 %v1928, %v2116
      %v2154 = vmul.f32 %v1931, %v2121
      %v2155 = vmul.f32 %v1936, %v2126
      %v2156 = vmul.f32 %v1939, %v2131
      %v2157 = vmul.f32 %v1944, %v2136
      %v2158 = vmul.f32 %v1947, %v2141
      %v2159 = vpack.c.bf16 %v2144, %v2143
      %v2160 = vpack.c.bf16 %v2146, %v2145
      %v2161 = vpack.c.bf16 %v2148, %v2147
      %v2162 = vpack.c.bf16 %v2150, %v2149
      %v2163 = vpack.c.bf16 %v2152, %v2151
      %v2164 = vpack.c.bf16 %v2154, %v2153
      %v2165 = vpack.c.bf16 %v2156, %v2155
      %v2166 = vpack.c.bf16 %v2158, %v2157
      %2175 = vrot.lane.b32.xlu0 %v1563, 96
      %v2176 = vpop.permute.xlu0 %2175
      %2177 = vrot.lane.b32.xlu0 %v1564, 96
      %v2178 = vpop.permute.xlu0 %2177
      %2179 = vrot.lane.b32.xlu0 %v1565, 96
      %v2180 = vpop.permute.xlu0 %2179
      %2181 = vrot.lane.b32.xlu0 %v1566, 96
      %v2182 = vpop.permute.xlu0 %2181
      %2183 = vrot.lane.b32.xlu0 %v1567, 96
      %v2184 = vpop.permute.xlu0 %2183
      %2185 = vrot.lane.b32.xlu0 %v1568, 96
      %v2186 = vpop.permute.xlu0 %2185
      %2187 = vrot.lane.b32.xlu0 %v1569, 96
      %v2188 = vpop.permute.xlu0 %2187
      %2189 = vrot.lane.b32.xlu0 %v1570, 96
      %v2190 = vpop.permute.xlu0 %2189
      %2199 = vrot.lane.b32.xlu0 %v1571, 96
      %v2200 = vpop.permute.xlu0 %2199
      %2201 = vrot.lane.b32.xlu0 %v1572, 96
      %v2202 = vpop.permute.xlu0 %2201
      %2203 = vrot.lane.b32.xlu0 %v1573, 96
      %v2204 = vpop.permute.xlu0 %2203
      %2205 = vrot.lane.b32.xlu0 %v1574, 96
      %v2206 = vpop.permute.xlu0 %2205
      %2207 = vrot.lane.b32.xlu0 %v1575, 96
      %v2208 = vpop.permute.xlu0 %2207
      %2209 = vrot.lane.b32.xlu0 %v1576, 96
      %v2210 = vpop.permute.xlu0 %2209
      %2211 = vrot.lane.b32.xlu0 %v1577, 96
      %v2212 = vpop.permute.xlu0 %2211
      %2213 = vrot.lane.b32.xlu0 %v1578, 96
      %v2214 = vpop.permute.xlu0 %2213
      %v2216 = vsel %vm1619, %v2176, 0
      %v2219 = vsel %vm1619, %v2178, 0
      %v2222 = vsel %vm1619, %v2180, 0
      %v2225 = vsel %vm1619, %v2182, 0
      %v2228 = vsel %vm1619, %v2184, 0
      %v2231 = vsel %vm1619, %v2186, 0
      %v2234 = vsel %vm1619, %v2188, 0
      %v2237 = vsel %vm1619, %v2190, 0
      %v2240 = vsel %vm1619, %v2200, 0
      %v2243 = vsel %vm1619, %v2202, 0
      %v2246 = vsel %vm1619, %v2204, 0
      %v2249 = vsel %vm1619, %v2206, 0
      %v2252 = vsel %vm1619, %v2208, 0
      %v2255 = vsel %vm1619, %v2210, 0
      %v2258 = vsel %vm1619, %v2212, 0
      %v2261 = vsel %vm1619, %v2214, 0
      %2263 = vmatprep.subr.bf16.mxu0 0
      %2264 = vmatpush1.bf16.xpose.msra.mxu0 %v2240
      %2265 = vmatprep.subr.bf16.mxu0 0
      %2266 = vmatpush1.bf16.xpose.msra.mxu0 %v2243
      %2267 = vmatprep.subr.bf16.mxu0 0
      %2268 = vmatpush1.bf16.xpose.msra.mxu0 %v2246
      %2269 = vmatprep.subr.bf16.mxu0 0
      %2270 = vmatpush1.bf16.xpose.msra.mxu0 %v2249
      %2271 = vmatprep.subr.bf16.mxu0 0
      %2272 = vmatpush1.bf16.xpose.msra.mxu0 %v2252
      %2273 = vmatprep.subr.bf16.mxu0 0
      %2274 = vmatpush1.bf16.xpose.msra.mxu0 %v2255
      %2275 = vmatprep.subr.bf16.mxu0 0
      %2276 = vmatpush1.bf16.xpose.msra.mxu0 %v2258
      %2277 = vmatprep.subr.bf16.mxu0 0
      %2278 = vmatpush1.bf16.xpose.msra.mxu0 %v2261
      %2279 = vmatprep.subr.bf16.mxu0 0
      %2280 = vmatpush1.bf16.xpose.msra.mxu0 0
      %2281 = vmatprep.subr.bf16.mxu0 0
      %2282 = vmatpush1.bf16.xpose.msra.mxu0 0
      %2283 = vmatprep.subr.bf16.mxu0 0
      %2284 = vmatpush1.bf16.xpose.msra.mxu0 0
      %2285 = vmatprep.subr.bf16.mxu0 0
      %2286 = vmatpush1.bf16.xpose.msra.mxu0 0
      %2287 = vmatprep.subr.bf16.mxu0 0
      %2288 = vmatpush1.bf16.xpose.msra.mxu0 0
      %2289 = vmatprep.subr.bf16.mxu0 0
      %2290 = vmatpush1.bf16.xpose.msra.mxu0 0
      %2291 = vmatprep.subr.bf16.mxu0 0
      %2292 = vmatpush1.bf16.xpose.msra.mxu0 0
      %2293 = vmatprep.subr.bf16.mxu0 0
      %2294 = vmatpush1.bf16.xpose.msra.mxu0 0
      %2295 = vmatprep.mubr.bf16.mxu0 0
      %2296 = vmatmul.mubr.bf16.gmra.mrb[0].mxu0 %v2216
      %v2297 = vpop.f32.mrb[0].mxu0
      %v2298 = vadd.f32 %v1603, %v2297
      %v2299 = vpop.f32.mrb[0].mxu0
      %v2300 = vpop.f32.mrb[0].mxu0
      %v2301 = vadd.f32 %v1604, %v2300
      %v2302 = vpop.f32.mrb[0].mxu0
      %2303 = vmatprep.mubr.bf16.mxu0 0
      %2304 = vmatmul.mubr.bf16.gmra.mrb[0].mxu0 %v2219
      %v2305 = vpop.f32.mrb[0].mxu0
      %v2306 = vadd.f32 %v1605, %v2305
      %v2307 = vpop.f32.mrb[0].mxu0
      %v2308 = vpop.f32.mrb[0].mxu0
      %v2309 = vadd.f32 %v1606, %v2308
      %v2310 = vpop.f32.mrb[0].mxu0
      %2311 = vmatprep.mubr.bf16.mxu0 0
      %2312 = vmatmul.mubr.bf16.gmra.mrb[0].mxu0 %v2222
      %v2313 = vpop.f32.mrb[0].mxu0
      %v2314 = vadd.f32 %v1607, %v2313
      %v2315 = vpop.f32.mrb[0].mxu0
      %v2316 = vpop.f32.mrb[0].mxu0
      %v2317 = vadd.f32 %v1608, %v2316
      %v2318 = vpop.f32.mrb[0].mxu0
      %2319 = vmatprep.mubr.bf16.mxu0 0
      %2320 = vmatmul.mubr.bf16.gmra.mrb[0].mxu0 %v2225
      %v2321 = vpop.f32.mrb[0].mxu0
      %v2322 = vadd.f32 %v1609, %v2321
      %v2323 = vpop.f32.mrb[0].mxu0
      %v2324 = vpop.f32.mrb[0].mxu0
      %v2325 = vadd.f32 %v1610, %v2324
      %v2326 = vpop.f32.mrb[0].mxu0
      %2327 = vmatprep.mubr.bf16.mxu0 0
      %2328 = vmatmul.mubr.bf16.gmra.mrb[0].mxu0 %v2228
      %v2329 = vpop.f32.mrb[0].mxu0
      %v2330 = vadd.f32 %v1611, %v2329
      %v2331 = vpop.f32.mrb[0].mxu0
      %v2332 = vpop.f32.mrb[0].mxu0
      %v2333 = vadd.f32 %v1612, %v2332
      %v2334 = vpop.f32.mrb[0].mxu0
      %2335 = vmatprep.mubr.bf16.mxu0 0
      %2336 = vmatmul.mubr.bf16.gmra.mrb[0].mxu0 %v2231
      %v2337 = vpop.f32.mrb[0].mxu0
      %v2338 = vadd.f32 %v1613, %v2337
      %v2339 = vpop.f32.mrb[0].mxu0
      %v2340 = vpop.f32.mrb[0].mxu0
      %v2341 = vadd.f32 %v1614, %v2340
      %v2342 = vpop.f32.mrb[0].mxu0
      %2343 = vmatprep.mubr.bf16.mxu0 0
      %2344 = vmatmul.mubr.bf16.gmra.mrb[0].mxu0 %v2234
      %v2345 = vpop.f32.mrb[0].mxu0
      %v2346 = vadd.f32 %v1615, %v2345
      %v2347 = vpop.f32.mrb[0].mxu0
      %v2348 = vpop.f32.mrb[0].mxu0
      %v2349 = vadd.f32 %v1616, %v2348
      %v2350 = vpop.f32.mrb[0].mxu0
      %2351 = vmatprep.mubr.bf16.mxu0 0
      %2352 = vmatmul.mubr.bf16.gmra.mrb[0].mxu0 %v2237
      %v2353 = vpop.f32.mrb[0].mxu0
      %v2354 = vadd.f32 %v1617, %v2353
      %v2355 = vpop.f32.mrb[0].mxu0
      %v2356 = vpop.f32.mrb[0].mxu0
      %v2357 = vadd.f32 %v1618, %v2356
      %v2358 = vpop.f32.mrb[0].mxu0
      %2359 = vdwg.mxu0
      %2360 = vmax.xlane.f32.xlu0 %v2298
      %v2361 = vpop.xlane.xlu0 %2360
      %2362 = vmax.xlane.f32.xlu0 %v2301
      %v2363 = vpop.xlane.xlu0 %2362
      %2364 = vmax.xlane.f32.xlu0 %v2306
      %v2365 = vpop.xlane.xlu0 %2364
      %2366 = vmax.xlane.f32.xlu0 %v2309
      %v2367 = vpop.xlane.xlu0 %2366
      %2368 = vmax.xlane.f32.xlu0 %v2314
      %v2369 = vpop.xlane.xlu0 %2368
      %2370 = vmax.xlane.f32.xlu0 %v2317
      %v2371 = vpop.xlane.xlu0 %2370
      %2372 = vmax.xlane.f32.xlu0 %v2322
      %v2373 = vpop.xlane.xlu0 %2372
      %2374 = vmax.xlane.f32.xlu0 %v2325
      %v2375 = vpop.xlane.xlu0 %2374
      %2376 = vmax.xlane.f32.xlu0 %v2330
      %v2377 = vpop.xlane.xlu0 %2376
      %2378 = vmax.xlane.f32.xlu0 %v2333
      %v2379 = vpop.xlane.xlu0 %2378
      %2380 = vmax.xlane.f32.xlu0 %v2338
      %v2381 = vpop.xlane.xlu0 %2380
      %2382 = vmax.xlane.f32.xlu0 %v2341
      %v2383 = vpop.xlane.xlu0 %2382
      %2384 = vmax.xlane.f32.xlu0 %v2346
      %v2385 = vpop.xlane.xlu0 %2384
      %2386 = vmax.xlane.f32.xlu0 %v2349
      %v2387 = vpop.xlane.xlu0 %2386
      %2388 = vmax.xlane.f32.xlu0 %v2354
      %v2389 = vpop.xlane.xlu0 %2388
      %2390 = vmax.xlane.f32.xlu0 %v2357
      %v2391 = vpop.xlane.xlu0 %2390
      %v2392 = vsub.f32 %v2298, %v2361
      %v2393 = vsub.f32 %v2301, %v2363
      %v2394 = vsub.f32 %v2306, %v2365
      %v2395 = vsub.f32 %v2309, %v2367
      %v2396 = vsub.f32 %v2314, %v2369
      %v2397 = vsub.f32 %v2317, %v2371
      %v2398 = vsub.f32 %v2322, %v2373
      %v2399 = vsub.f32 %v2325, %v2375
      %v2400 = vsub.f32 %v2330, %v2377
      %v2401 = vsub.f32 %v2333, %v2379
      %v2402 = vsub.f32 %v2338, %v2381
      %v2403 = vsub.f32 %v2341, %v2383
      %v2404 = vsub.f32 %v2346, %v2385
      %v2405 = vsub.f32 %v2349, %v2387
      %v2406 = vsub.f32 %v2354, %v2389
      %v2407 = vsub.f32 %v2357, %v2391
      %v2408 = vmul.f32 %v2392, 1.442695
      %v2409 = vpow.pop %v2408
      %v2410 = vmul.f32 %v2393, 1.442695
      %v2411 = vpow.pop %v2410
      %v2412 = vmul.f32 %v2394, 1.442695
      %v2413 = vpow.pop %v2412
      %v2414 = vmul.f32 %v2395, 1.442695
      %v2415 = vpow.pop %v2414
      %v2416 = vmul.f32 %v2396, 1.442695
      %v2417 = vpow.pop %v2416
      %v2418 = vmul.f32 %v2397, 1.442695
      %v2419 = vpow.pop %v2418
      %v2420 = vmul.f32 %v2398, 1.442695
      %v2421 = vpow.pop %v2420
      %v2422 = vmul.f32 %v2399, 1.442695
      %v2423 = vpow.pop %v2422
      %v2424 = vmul.f32 %v2400, 1.442695
      %v2425 = vpow.pop %v2424
      %v2426 = vmul.f32 %v2401, 1.442695
      %v2427 = vpow.pop %v2426
      %v2428 = vmul.f32 %v2402, 1.442695
      %v2429 = vpow.pop %v2428
      %v2430 = vmul.f32 %v2403, 1.442695
      %v2431 = vpow.pop %v2430
      %v2432 = vmul.f32 %v2404, 1.442695
      %v2433 = vpow.pop %v2432
      %v2434 = vmul.f32 %v2405, 1.442695
      %v2435 = vpow.pop %v2434
      %v2436 = vmul.f32 %v2406, 1.442695
      %v2437 = vpow.pop %v2436
      %v2438 = vmul.f32 %v2407, 1.442695
      %v2439 = vpow.pop %v2438
      %v2440 = vpack.c.bf16 %v2411, %v2409
      %v2441 = vpack.c.bf16 %v2415, %v2413
      %v2442 = vpack.c.bf16 %v2419, %v2417
      %v2443 = vpack.c.bf16 %v2423, %v2421
      %v2444 = vpack.c.bf16 %v2427, %v2425
      %v2445 = vpack.c.bf16 %v2431, %v2429
      %v2446 = vpack.c.bf16 %v2435, %v2433
      %v2447 = vpack.c.bf16 %v2439, %v2437
      %2456 = vrot.lane.b32.xlu0 %v1579, 96
      %v2457 = vpop.permute.xlu0 %2456
      %2458 = vrot.lane.b32.xlu0 %v1580, 96
      %v2459 = vpop.permute.xlu0 %2458
      %2460 = vrot.lane.b32.xlu0 %v1581, 96
      %v2461 = vpop.permute.xlu0 %2460
      %2462 = vrot.lane.b32.xlu0 %v1582, 96
      %v2463 = vpop.permute.xlu0 %2462
      %2464 = vrot.lane.b32.xlu0 %v1583, 96
      %v2465 = vpop.permute.xlu0 %2464
      %2466 = vrot.lane.b32.xlu0 %v1584, 96
      %v2467 = vpop.permute.xlu0 %2466
      %2468 = vrot.lane.b32.xlu0 %v1585, 96
      %v2469 = vpop.permute.xlu0 %2468
      %2470 = vrot.lane.b32.xlu0 %v1586, 96
      %v2471 = vpop.permute.xlu0 %2470
      %2480 = vmatprep.subr.bf16.mxu0 0
      %2481 = vmatpush1.bf16.msra.mxu0 %v2457
      %2482 = vmatprep.subr.bf16.mxu0 0
      %2483 = vmatpush1.bf16.msra.mxu0 %v2459
      %2484 = vmatprep.subr.bf16.mxu0 0
      %2485 = vmatpush1.bf16.msra.mxu0 %v2461
      %2486 = vmatprep.subr.bf16.mxu0 0
      %2487 = vmatpush1.bf16.msra.mxu0 %v2463
      %2488 = vmatprep.subr.bf16.mxu0 0
      %2489 = vmatpush1.bf16.msra.mxu0 %v2465
      %2490 = vmatprep.subr.bf16.mxu0 0
      %2491 = vmatpush1.bf16.msra.mxu0 %v2467
      %2492 = vmatprep.subr.bf16.mxu0 0
      %2493 = vmatpush1.bf16.msra.mxu0 %v2469
      %2494 = vmatprep.subr.bf16.mxu0 0
      %2495 = vmatpush1.bf16.msra.mxu0 %v2471
      %2496 = vmatprep.subr.bf16.mxu0 0
      %2497 = vmatpush1.bf16.msra.mxu0 0
      %2498 = vmatprep.subr.bf16.mxu0 0
      %2499 = vmatpush1.bf16.msra.mxu0 0
      %2500 = vmatprep.subr.bf16.mxu0 0
      %2501 = vmatpush1.bf16.msra.mxu0 0
      %2502 = vmatprep.subr.bf16.mxu0 0
      %2503 = vmatpush1.bf16.msra.mxu0 0
      %2504 = vmatprep.subr.bf16.mxu0 0
      %2505 = vmatpush1.bf16.msra.mxu0 0
      %2506 = vmatprep.subr.bf16.mxu0 0
      %2507 = vmatpush1.bf16.msra.mxu0 0
      %2508 = vmatprep.subr.bf16.mxu0 0
      %2509 = vmatpush1.bf16.msra.mxu0 0
      %2510 = vmatprep.subr.bf16.mxu0 0
      %2511 = vmatpush1.bf16.msra.mxu0 0
      %2512 = vmatprep.mubr.bf16.mxu0 0
      %2513 = vmatmul.mubr.bf16.gmra.mrb[0].mxu0 %v2440
      %v2514 = vpop.f32.mrb[0].mxu0
      %v2515 = vadd.f32 0.0, %v2514
      %v2516 = vpop.f32.mrb[0].mxu0
      %v2517 = vpop.f32.mrb[0].mxu0
      %v2518 = vadd.f32 0.0, %v2517
      %v2519 = vpop.f32.mrb[0].mxu0
      %2520 = vmatprep.mubr.bf16.mxu0 0
      %2521 = vmatmul.mubr.bf16.gmra.mrb[0].mxu0 %v2441
      %v2522 = vpop.f32.mrb[0].mxu0
      %v2523 = vadd.f32 0.0, %v2522
      %v2524 = vpop.f32.mrb[0].mxu0
      %v2525 = vpop.f32.mrb[0].mxu0
      %v2526 = vadd.f32 0.0, %v2525
      %v2527 = vpop.f32.mrb[0].mxu0
      %2528 = vmatprep.mubr.bf16.mxu0 0
      %2529 = vmatmul.mubr.bf16.gmra.mrb[0].mxu0 %v2442
      %v2530 = vpop.f32.mrb[0].mxu0
      %v2531 = vadd.f32 0.0, %v2530
      %v2532 = vpop.f32.mrb[0].mxu0
      %v2533 = vpop.f32.mrb[0].mxu0
      %v2534 = vadd.f32 0.0, %v2533
      %v2535 = vpop.f32.mrb[0].mxu0
      %2536 = vmatprep.mubr.bf16.mxu0 0
      %2537 = vmatmul.mubr.bf16.gmra.mrb[0].mxu0 %v2443
      %v2538 = vpop.f32.mrb[0].mxu0
      %v2539 = vadd.f32 0.0, %v2538
      %v2540 = vpop.f32.mrb[0].mxu0
      %v2541 = vpop.f32.mrb[0].mxu0
      %v2542 = vadd.f32 0.0, %v2541
      %v2543 = vpop.f32.mrb[0].mxu0
      %2544 = vmatprep.mubr.bf16.mxu0 0
      %2545 = vmatmul.mubr.bf16.gmra.mrb[0].mxu0 %v2444
      %v2546 = vpop.f32.mrb[0].mxu0
      %v2547 = vadd.f32 0.0, %v2546
      %v2548 = vpop.f32.mrb[0].mxu0
      %v2549 = vpop.f32.mrb[0].mxu0
      %v2550 = vadd.f32 0.0, %v2549
      %v2551 = vpop.f32.mrb[0].mxu0
      %2552 = vmatprep.mubr.bf16.mxu0 0
      %2553 = vmatmul.mubr.bf16.gmra.mrb[0].mxu0 %v2445
      %v2554 = vpop.f32.mrb[0].mxu0
      %v2555 = vadd.f32 0.0, %v2554
      %v2556 = vpop.f32.mrb[0].mxu0
      %v2557 = vpop.f32.mrb[0].mxu0
      %v2558 = vadd.f32 0.0, %v2557
      %v2559 = vpop.f32.mrb[0].mxu0
      %2560 = vmatprep.mubr.bf16.mxu0 0
      %2561 = vmatmul.mubr.bf16.gmra.mrb[0].mxu0 %v2446
      %v2562 = vpop.f32.mrb[0].mxu0
      %v2563 = vadd.f32 0.0, %v2562
      %v2564 = vpop.f32.mrb[0].mxu0
      %v2565 = vpop.f32.mrb[0].mxu0
      %v2566 = vadd.f32 0.0, %v2565
      %v2567 = vpop.f32.mrb[0].mxu0
      %2568 = vmatprep.mubr.bf16.mxu0 0
      %2569 = vmatmul.mubr.bf16.gmra.mrb[0].mxu0 %v2447
      %v2570 = vpop.f32.mrb[0].mxu0
      %v2571 = vadd.f32 0.0, %v2570
      %v2572 = vpop.f32.mrb[0].mxu0
      %v2573 = vpop.f32.mrb[0].mxu0
      %v2574 = vadd.f32 0.0, %v2573
      %v2575 = vpop.f32.mrb[0].mxu0
      %2576 = vdwg.mxu0
      %2577 = vmatprep.subr.bf16.mxu0 0
      %2578 = vmatpush1.bf16.msra.mxu0 1065369472
      %2579 = vmatprep.subr.bf16.mxu0 0
      %2580 = vmatpush1.bf16.msra.mxu0 1065369472
      %2581 = vmatprep.subr.bf16.mxu0 0
      %2582 = vmatpush1.bf16.msra.mxu0 1065369472
      %2583 = vmatprep.subr.bf16.mxu0 0
      %2584 = vmatpush1.bf16.msra.mxu0 1065369472
      %2585 = vmatprep.subr.bf16.mxu0 0
      %2586 = vmatpush1.bf16.msra.mxu0 1065369472
      %2587 = vmatprep.subr.bf16.mxu0 0
      %2588 = vmatpush1.bf16.msra.mxu0 1065369472
      %2589 = vmatprep.subr.bf16.mxu0 0
      %2590 = vmatpush1.bf16.msra.mxu0 1065369472
      %2591 = vmatprep.subr.bf16.mxu0 0
      %2592 = vmatpush1.bf16.msra.mxu0 1065369472
      %2593 = vmatprep.subr.bf16.mxu0 0
      %2594 = vmatpush1.bf16.msra.mxu0 0
      %2595 = vmatprep.subr.bf16.mxu0 0
      %2596 = vmatpush1.bf16.msra.mxu0 0
      %2597 = vmatprep.subr.bf16.mxu0 0
      %2598 = vmatpush1.bf16.msra.mxu0 0
      %2599 = vmatprep.subr.bf16.mxu0 0
      %2600 = vmatpush1.bf16.msra.mxu0 0
      %2601 = vmatprep.subr.bf16.mxu0 0
      %2602 = vmatpush1.bf16.msra.mxu0 0
      %2603 = vmatprep.subr.bf16.mxu0 0
      %2604 = vmatpush1.bf16.msra.mxu0 0
      %2605 = vmatprep.subr.bf16.mxu0 0
      %2606 = vmatpush1.bf16.msra.mxu0 0
      %2607 = vmatprep.subr.bf16.mxu0 0
      %2608 = vmatpush1.bf16.msra.mxu0 0
      %2609 = vmatprep.mubr.bf16.mxu0 0
      %2610 = vmatmul.mubr.bf16.gmra.mrb[0].mxu0 %v2440
      %v2611 = vpop.f32.mrb[0].mxu0
      %v2612 = vadd.f32 0.0, %v2611
      %v2613 = vpop.f32.mrb[0].mxu0
      %v2614 = vpop.f32.mrb[0].mxu0
      %v2615 = vadd.f32 0.0, %v2614
      %v2616 = vpop.f32.mrb[0].mxu0
      %2617 = vmatprep.mubr.bf16.mxu0 0
      %2618 = vmatmul.mubr.bf16.gmra.mrb[0].mxu0 %v2441
      %v2619 = vpop.f32.mrb[0].mxu0
      %v2620 = vadd.f32 0.0, %v2619
      %v2621 = vpop.f32.mrb[0].mxu0
      %v2622 = vpop.f32.mrb[0].mxu0
      %v2623 = vadd.f32 0.0, %v2622
      %v2624 = vpop.f32.mrb[0].mxu0
      %2625 = vmatprep.mubr.bf16.mxu0 0
      %2626 = vmatmul.mubr.bf16.gmra.mrb[0].mxu0 %v2442
      %v2627 = vpop.f32.mrb[0].mxu0
      %v2628 = vadd.f32 0.0, %v2627
      %v2629 = vpop.f32.mrb[0].mxu0
      %v2630 = vpop.f32.mrb[0].mxu0
      %v2631 = vadd.f32 0.0, %v2630
      %v2632 = vpop.f32.mrb[0].mxu0
      %2633 = vmatprep.mubr.bf16.mxu0 0
      %2634 = vmatmul.mubr.bf16.gmra.mrb[0].mxu0 %v2443
      %v2635 = vpop.f32.mrb[0].mxu0
      %v2636 = vadd.f32 0.0, %v2635
      %v2637 = vpop.f32.mrb[0].mxu0
      %v2638 = vpop.f32.mrb[0].mxu0
      %v2639 = vadd.f32 0.0, %v2638
      %v2640 = vpop.f32.mrb[0].mxu0
      %2641 = vmatprep.mubr.bf16.mxu0 0
      %2642 = vmatmul.mubr.bf16.gmra.mrb[0].mxu0 %v2444
      %v2643 = vpop.f32.mrb[0].mxu0
      %v2644 = vadd.f32 0.0, %v2643
      %v2645 = vpop.f32.mrb[0].mxu0
      %v2646 = vpop.f32.mrb[0].mxu0
      %v2647 = vadd.f32 0.0, %v2646
      %v2648 = vpop.f32.mrb[0].mxu0
      %2649 = vmatprep.mubr.bf16.mxu0 0
      %2650 = vmatmul.mubr.bf16.gmra.mrb[0].mxu0 %v2445
      %v2651 = vpop.f32.mrb[0].mxu0
      %v2652 = vadd.f32 0.0, %v2651
      %v2653 = vpop.f32.mrb[0].mxu0
      %v2654 = vpop.f32.mrb[0].mxu0
      %v2655 = vadd.f32 0.0, %v2654
      %v2656 = vpop.f32.mrb[0].mxu0
      %2657 = vmatprep.mubr.bf16.mxu0 0
      %2658 = vmatmul.mubr.bf16.gmra.mrb[0].mxu0 %v2446
      %v2659 = vpop.f32.mrb[0].mxu0
      %v2660 = vadd.f32 0.0, %v2659
      %v2661 = vpop.f32.mrb[0].mxu0
      %v2662 = vpop.f32.mrb[0].mxu0
      %v2663 = vadd.f32 0.0, %v2662
      %v2664 = vpop.f32.mrb[0].mxu0
      %2665 = vmatprep.mubr.bf16.mxu0 0
      %2666 = vmatmul.mubr.bf16.gmra.mrb[0].mxu0 %v2447
      %v2667 = vpop.f32.mrb[0].mxu0
      %v2668 = vadd.f32 0.0, %v2667
      %v2669 = vpop.f32.mrb[0].mxu0
      %v2670 = vpop.f32.mrb[0].mxu0
      %v2671 = vadd.f32 0.0, %v2670
      %v2672 = vpop.f32.mrb[0].mxu0
      %2673 = vdwg.mxu0
      %v2674 = vrcp.pop %v2612
      %v2675 = vrcp.pop %v2615
      %v2676 = vrcp.pop %v2620
      %v2677 = vrcp.pop %v2623
      %v2678 = vrcp.pop %v2628
      %v2679 = vrcp.pop %v2631
      %v2680 = vrcp.pop %v2636
      %v2681 = vrcp.pop %v2639
      %v2682 = vrcp.pop %v2644
      %v2683 = vrcp.pop %v2647
      %v2684 = vrcp.pop %v2652
      %v2685 = vrcp.pop %v2655
      %v2686 = vrcp.pop %v2660
      %v2687 = vrcp.pop %v2663
      %v2688 = vrcp.pop %v2668
      %v2689 = vrcp.pop %v2671
      %2691 = vset.pattern.permute.xlu0 0
      %2692 = vperm.xlu0 %2691, %v2674
      %v2693 = vpop.permute.xlu0 %2692
      %2696 = vset.pattern.permute.xlu0 0
      %2697 = vperm.xlu0 %2696, %v2675
      %v2698 = vpop.permute.xlu0 %2697
      %2701 = vset.pattern.permute.xlu0 0
      %2702 = vperm.xlu0 %2701, %v2676
      %v2703 = vpop.permute.xlu0 %2702
      %2706 = vset.pattern.permute.xlu0 0
      %2707 = vperm.xlu0 %2706, %v2677
      %v2708 = vpop.permute.xlu0 %2707
      %2711 = vset.pattern.permute.xlu0 0
      %2712 = vperm.xlu0 %2711, %v2678
      %v2713 = vpop.permute.xlu0 %2712
      %2716 = vset.pattern.permute.xlu0 0
      %2717 = vperm.xlu0 %2716, %v2679
      %v2718 = vpop.permute.xlu0 %2717
      %2721 = vset.pattern.permute.xlu0 0
      %2722 = vperm.xlu0 %2721, %v2680
      %v2723 = vpop.permute.xlu0 %2722
      %2726 = vset.pattern.permute.xlu0 0
      %2727 = vperm.xlu0 %2726, %v2681
      %v2728 = vpop.permute.xlu0 %2727
      %2731 = vset.pattern.permute.xlu0 0
      %2732 = vperm.xlu0 %2731, %v2682
      %v2733 = vpop.permute.xlu0 %2732
      %2736 = vset.pattern.permute.xlu0 0
      %2737 = vperm.xlu0 %2736, %v2683
      %v2738 = vpop.permute.xlu0 %2737
      %2741 = vset.pattern.permute.xlu0 0
      %2742 = vperm.xlu0 %2741, %v2684
      %v2743 = vpop.permute.xlu0 %2742
      %2746 = vset.pattern.permute.xlu0 0
      %2747 = vperm.xlu0 %2746, %v2685
      %v2748 = vpop.permute.xlu0 %2747
      %2751 = vset.pattern.permute.xlu0 0
      %2752 = vperm.xlu0 %2751, %v2686
      %v2753 = vpop.permute.xlu0 %2752
      %2756 = vset.pattern.permute.xlu0 0
      %2757 = vperm.xlu0 %2756, %v2687
      %v2758 = vpop.permute.xlu0 %2757
      %2761 = vset.pattern.permute.xlu0 0
      %2762 = vperm.xlu0 %2761, %v2688
      %v2763 = vpop.permute.xlu0 %2762
      %2766 = vset.pattern.permute.xlu0 0
      %2767 = vperm.xlu0 %2766, %v2689
      %v2768 = vpop.permute.xlu0 %2767
      %v2770 = vmul.f32 %v2515, %v2693
      %v2771 = vmul.f32 %v2518, %v2698
      %v2772 = vmul.f32 %v2523, %v2703
      %v2773 = vmul.f32 %v2526, %v2708
      %v2774 = vmul.f32 %v2531, %v2713
      %v2775 = vmul.f32 %v2534, %v2718
      %v2776 = vmul.f32 %v2539, %v2723
      %v2777 = vmul.f32 %v2542, %v2728
      %v2778 = vmul.f32 %v2547, %v2733
      %v2779 = vmul.f32 %v2550, %v2738
      %v2780 = vmul.f32 %v2555, %v2743
      %v2781 = vmul.f32 %v2558, %v2748
      %v2782 = vmul.f32 %v2563, %v2753
      %v2783 = vmul.f32 %v2566, %v2758
      %v2784 = vmul.f32 %v2571, %v2763
      %v2785 = vmul.f32 %v2574, %v2768
      %v2786 = vpack.c.bf16 %v2771, %v2770
      %v2787 = vpack.c.bf16 %v2773, %v2772
      %v2788 = vpack.c.bf16 %v2775, %v2774
      %v2789 = vpack.c.bf16 %v2777, %v2776
      %v2790 = vpack.c.bf16 %v2779, %v2778
      %v2791 = vpack.c.bf16 %v2781, %v2780
      %v2792 = vpack.c.bf16 %v2783, %v2782
      %v2793 = vpack.c.bf16 %v2785, %v2784
      %v2798 = vunpack.c.l.b16 %v1591
      %v2799 = vunpack.c.l.b16 %v1592
      %v2800 = vunpack.c.l.b16 %v1593
      %v2801 = vunpack.c.l.b16 %v1594
      %v2802 = vpack.c.b16 %v2799, %v2798
      %v2803 = vpack.c.b16 %v2801, %v2800
      %v2807 = vsel %vm1619, %v2786, 0
      %v2810 = vsel %vm1619, %v2787, 0
      %v2813 = vsel %vm1619, %v2788, 0
      %v2816 = vsel %vm1619, %v2789, 0
      %v2819 = vsel %vm1619, %v2790, 0
      %v2822 = vsel %vm1619, %v2791, 0
      %v2825 = vsel %vm1619, %v2792, 0
      %v2828 = vsel %vm1619, %v2793, 0
      %2830 = vmatprep.subr.bf16.mxu0 0
      %2831 = vmatpush1.bf16.msra.mxu0 %v2802
      %2832 = vmatprep.subr.bf16.mxu0 0
      %2833 = vmatpush1.bf16.msra.mxu0 %v2803
      %2834 = vmatprep.subr.bf16.mxu0 0
      %2835 = vmatpush1.bf16.msra.mxu0 0
      %2836 = vmatprep.subr.bf16.mxu0 0
      %2837 = vmatpush1.bf16.msra.mxu0 0
      %2838 = vmatprep.subr.bf16.mxu0 0
      %2839 = vmatpush1.bf16.msra.mxu0 0
      %2840 = vmatprep.subr.bf16.mxu0 0
      %2841 = vmatpush1.bf16.msra.mxu0 0
      %2842 = vmatprep.subr.bf16.mxu0 0
      %2843 = vmatpush1.bf16.msra.mxu0 0
      %2844 = vmatprep.subr.bf16.mxu0 0
      %2845 = vmatpush1.bf16.msra.mxu0 0
      %2846 = vmatprep.subr.bf16.mxu0 0
      %2847 = vmatpush1.bf16.msra.mxu0 0
      %2848 = vmatprep.subr.bf16.mxu0 0
      %2849 = vmatpush1.bf16.msra.mxu0 0
      %2850 = vmatprep.subr.bf16.mxu0 0
      %2851 = vmatpush1.bf16.msra.mxu0 0
      %2852 = vmatprep.subr.bf16.mxu0 0
      %2853 = vmatpush1.bf16.msra.mxu0 0
      %2854 = vmatprep.subr.bf16.mxu0 0
      %2855 = vmatpush1.bf16.msra.mxu0 0
      %2856 = vmatprep.subr.bf16.mxu0 0
      %2857 = vmatpush1.bf16.msra.mxu0 0
      %2858 = vmatprep.subr.bf16.mxu0 0
      %2859 = vmatpush1.bf16.msra.mxu0 0
      %2860 = vmatprep.subr.bf16.mxu0 0
      %2861 = vmatpush1.bf16.msra.mxu0 0
      %2862 = vmatprep.mubr.bf16.mxu0 0
      %2863 = vmatmul.mubr.bf16.gmra.mrb[0].mxu0 %v2807
      %v2864 = vpop.f32.mrb[0].mxu0
      %v2865 = vadd.f32 0.0, %v2864
      %v2866 = vpop.f32.mrb[0].mxu0
      %v2867 = vpop.f32.mrb[0].mxu0
      %v2868 = vadd.f32 0.0, %v2867
      %v2869 = vpop.f32.mrb[0].mxu0
      %2870 = vmatprep.mubr.bf16.mxu0 0
      %2871 = vmatmul.mubr.bf16.gmra.mrb[0].mxu0 %v2810
      %v2872 = vpop.f32.mrb[0].mxu0
      %v2873 = vadd.f32 0.0, %v2872
      %v2874 = vpop.f32.mrb[0].mxu0
      %v2875 = vpop.f32.mrb[0].mxu0
      %v2876 = vadd.f32 0.0, %v2875
      %v2877 = vpop.f32.mrb[0].mxu0
      %2878 = vmatprep.mubr.bf16.mxu0 0
      %2879 = vmatmul.mubr.bf16.gmra.mrb[0].mxu0 %v2813
      %v2880 = vpop.f32.mrb[0].mxu0
      %v2881 = vadd.f32 0.0, %v2880
      %v2882 = vpop.f32.mrb[0].mxu0
      %v2883 = vpop.f32.mrb[0].mxu0
      %v2884 = vadd.f32 0.0, %v2883
      %v2885 = vpop.f32.mrb[0].mxu0
      %2886 = vmatprep.mubr.bf16.mxu0 0
      %2887 = vmatmul.mubr.bf16.gmra.mrb[0].mxu0 %v2816
      %v2888 = vpop.f32.mrb[0].mxu0
      %v2889 = vadd.f32 0.0, %v2888
      %v2890 = vpop.f32.mrb[0].mxu0
      %v2891 = vpop.f32.mrb[0].mxu0
      %v2892 = vadd.f32 0.0, %v2891
      %v2893 = vpop.f32.mrb[0].mxu0
      %2894 = vmatprep.mubr.bf16.mxu0 0
      %2895 = vmatmul.mubr.bf16.gmra.mrb[0].mxu0 %v2819
      %v2896 = vpop.f32.mrb[0].mxu0
      %v2897 = vadd.f32 0.0, %v2896
      %v2898 = vpop.f32.mrb[0].mxu0
      %v2899 = vpop.f32.mrb[0].mxu0
      %v2900 = vadd.f32 0.0, %v2899
      %v2901 = vpop.f32.mrb[0].mxu0
      %2902 = vmatprep.mubr.bf16.mxu0 0
      %2903 = vmatmul.mubr.bf16.gmra.mrb[0].mxu0 %v2822
      %v2904 = vpop.f32.mrb[0].mxu0
      %v2905 = vadd.f32 0.0, %v2904
      %v2906 = vpop.f32.mrb[0].mxu0
      %v2907 = vpop.f32.mrb[0].mxu0
      %v2908 = vadd.f32 0.0, %v2907
      %v2909 = vpop.f32.mrb[0].mxu0
      %2910 = vmatprep.mubr.bf16.mxu0 0
      %2911 = vmatmul.mubr.bf16.gmra.mrb[0].mxu0 %v2825
      %v2912 = vpop.f32.mrb[0].mxu0
      %v2913 = vadd.f32 0.0, %v2912
      %v2914 = vpop.f32.mrb[0].mxu0
      %v2915 = vpop.f32.mrb[0].mxu0
      %v2916 = vadd.f32 0.0, %v2915
      %v2917 = vpop.f32.mrb[0].mxu0
      %2918 = vmatprep.mubr.bf16.mxu0 0
      %2919 = vmatmul.mubr.bf16.gmra.mrb[0].mxu0 %v2828
      %v2920 = vpop.f32.mrb[0].mxu0
      %v2921 = vadd.f32 0.0, %v2920
      %v2922 = vpop.f32.mrb[0].mxu0
      %v2923 = vpop.f32.mrb[0].mxu0
      %v2924 = vadd.f32 0.0, %v2923
      %v2925 = vpop.f32.mrb[0].mxu0
      %2926 = vdwg.mxu0
      %v2931 = vunpack.c.l.b16 %v1587
      %v2932 = vunpack.c.l.b16 %v1588
      %v2933 = vunpack.c.l.b16 %v1589
      %v2934 = vunpack.c.l.b16 %v1590
      %v2935 = vpack.c.b16 %v2932, %v2931
      %v2936 = vpack.c.b16 %v2934, %v2933
      %v2940 = vsel %vm1619, %v2159, 0
      %v2943 = vsel %vm1619, %v2160, 0
      %v2946 = vsel %vm1619, %v2161, 0
      %v2949 = vsel %vm1619, %v2162, 0
      %v2952 = vsel %vm1619, %v2163, 0
      %v2955 = vsel %vm1619, %v2164, 0
      %v2958 = vsel %vm1619, %v2165, 0
      %v2961 = vsel %vm1619, %v2166, 0
      %2963 = vmatprep.subr.bf16.mxu0 0
      %2964 = vmatpush1.bf16.msra.mxu0 %v2935
      %2965 = vmatprep.subr.bf16.mxu0 0
      %2966 = vmatpush1.bf16.msra.mxu0 %v2936
      %2967 = vmatprep.subr.bf16.mxu0 0
      %2968 = vmatpush1.bf16.msra.mxu0 0
      %2969 = vmatprep.subr.bf16.mxu0 0
      %2970 = vmatpush1.bf16.msra.mxu0 0
      %2971 = vmatprep.subr.bf16.mxu0 0
      %2972 = vmatpush1.bf16.msra.mxu0 0
      %2973 = vmatprep.subr.bf16.mxu0 0
      %2974 = vmatpush1.bf16.msra.mxu0 0
      %2975 = vmatprep.subr.bf16.mxu0 0
      %2976 = vmatpush1.bf16.msra.mxu0 0
      %2977 = vmatprep.subr.bf16.mxu0 0
      %2978 = vmatpush1.bf16.msra.mxu0 0
      %2979 = vmatprep.subr.bf16.mxu0 0
      %2980 = vmatpush1.bf16.msra.mxu0 0
      %2981 = vmatprep.subr.bf16.mxu0 0
      %2982 = vmatpush1.bf16.msra.mxu0 0
      %2983 = vmatprep.subr.bf16.mxu0 0
      %2984 = vmatpush1.bf16.msra.mxu0 0
      %2985 = vmatprep.subr.bf16.mxu0 0
      %2986 = vmatpush1.bf16.msra.mxu0 0
      %2987 = vmatprep.subr.bf16.mxu0 0
      %2988 = vmatpush1.bf16.msra.mxu0 0
      %2989 = vmatprep.subr.bf16.mxu0 0
      %2990 = vmatpush1.bf16.msra.mxu0 0
      %2991 = vmatprep.subr.bf16.mxu0 0
      %2992 = vmatpush1.bf16.msra.mxu0 0
      %2993 = vmatprep.subr.bf16.mxu0 0
      %2994 = vmatpush1.bf16.msra.mxu0 0
      %2995 = vmatprep.mubr.bf16.mxu0 0
      %2996 = vmatmul.mubr.bf16.gmra.mrb[0].mxu0 %v2940
      %v2997 = vpop.f32.mrb[0].mxu0
      %v2998 = vadd.f32 %v2865, %v2997
      %v2999 = vpop.f32.mrb[0].mxu0
      %v3000 = vpop.f32.mrb[0].mxu0
      %v3001 = vadd.f32 %v2868, %v3000
      %v3002 = vpop.f32.mrb[0].mxu0
      %3003 = vmatprep.mubr.bf16.mxu0 0
      %3004 = vmatmul.mubr.bf16.gmra.mrb[0].mxu0 %v2943
      %v3005 = vpop.f32.mrb[0].mxu0
      %v3006 = vadd.f32 %v2873, %v3005
      %v3007 = vpop.f32.mrb[0].mxu0
      %v3008 = vpop.f32.mrb[0].mxu0
      %v3009 = vadd.f32 %v2876, %v3008
      %v3010 = vpop.f32.mrb[0].mxu0
      %3011 = vmatprep.mubr.bf16.mxu0 0
      %3012 = vmatmul.mubr.bf16.gmra.mrb[0].mxu0 %v2946
      %v3013 = vpop.f32.mrb[0].mxu0
      %v3014 = vadd.f32 %v2881, %v3013
      %v3015 = vpop.f32.mrb[0].mxu0
      %v3016 = vpop.f32.mrb[0].mxu0
      %v3017 = vadd.f32 %v2884, %v3016
      %v3018 = vpop.f32.mrb[0].mxu0
      %3019 = vmatprep.mubr.bf16.mxu0 0
      %3020 = vmatmul.mubr.bf16.gmra.mrb[0].mxu0 %v2949
      %v3021 = vpop.f32.mrb[0].mxu0
      %v3022 = vadd.f32 %v2889, %v3021
      %v3023 = vpop.f32.mrb[0].mxu0
      %v3024 = vpop.f32.mrb[0].mxu0
      %v3025 = vadd.f32 %v2892, %v3024
      %v3026 = vpop.f32.mrb[0].mxu0
      %3027 = vmatprep.mubr.bf16.mxu0 0
      %3028 = vmatmul.mubr.bf16.gmra.mrb[0].mxu0 %v2952
      %v3029 = vpop.f32.mrb[0].mxu0
      %v3030 = vadd.f32 %v2897, %v3029
      %v3031 = vpop.f32.mrb[0].mxu0
      %v3032 = vpop.f32.mrb[0].mxu0
      %v3033 = vadd.f32 %v2900, %v3032
      %v3034 = vpop.f32.mrb[0].mxu0
      %3035 = vmatprep.mubr.bf16.mxu0 0
      %3036 = vmatmul.mubr.bf16.gmra.mrb[0].mxu0 %v2955
      %v3037 = vpop.f32.mrb[0].mxu0
      %v3038 = vadd.f32 %v2905, %v3037
      %v3039 = vpop.f32.mrb[0].mxu0
      %v3040 = vpop.f32.mrb[0].mxu0
      %v3041 = vadd.f32 %v2908, %v3040
      %v3042 = vpop.f32.mrb[0].mxu0
      %3043 = vmatprep.mubr.bf16.mxu0 0
      %3044 = vmatmul.mubr.bf16.gmra.mrb[0].mxu0 %v2958
      %v3045 = vpop.f32.mrb[0].mxu0
      %v3046 = vadd.f32 %v2913, %v3045
      %v3047 = vpop.f32.mrb[0].mxu0
      %v3048 = vpop.f32.mrb[0].mxu0
      %v3049 = vadd.f32 %v2916, %v3048
      %v3050 = vpop.f32.mrb[0].mxu0
      %3051 = vmatprep.mubr.bf16.mxu0 0
      %3052 = vmatmul.mubr.bf16.gmra.mrb[0].mxu0 %v2961
      %v3053 = vpop.f32.mrb[0].mxu0
      %v3054 = vadd.f32 %v2921, %v3053
      %v3055 = vpop.f32.mrb[0].mxu0
      %v3056 = vpop.f32.mrb[0].mxu0
      %v3057 = vadd.f32 %v2924, %v3056
      %v3058 = vpop.f32.mrb[0].mxu0
      %3059 = vdwg.mxu0
      %3060 = vrot.lane.b32.xlu0 %v1563, 64
      %v3061 = vpop.permute.xlu0 %3060
      %3062 = vrot.lane.b32.xlu0 %v1564, 64
      %v3063 = vpop.permute.xlu0 %3062
      %3064 = vrot.lane.b32.xlu0 %v1565, 64
      %v3065 = vpop.permute.xlu0 %3064
      %3066 = vrot.lane.b32.xlu0 %v1566, 64
      %v3067 = vpop.permute.xlu0 %3066
      %3068 = vrot.lane.b32.xlu0 %v1567, 64
      %v3069 = vpop.permute.xlu0 %3068
      %3070 = vrot.lane.b32.xlu0 %v1568, 64
      %v3071 = vpop.permute.xlu0 %3070
      %3072 = vrot.lane.b32.xlu0 %v1569, 64
      %v3073 = vpop.permute.xlu0 %3072
      %3074 = vrot.lane.b32.xlu0 %v1570, 64
      %v3075 = vpop.permute.xlu0 %3074
      %3076 = vrot.lane.b32.xlu0 %v1571, 64
      %v3077 = vpop.permute.xlu0 %3076
      %3078 = vrot.lane.b32.xlu0 %v1572, 64
      %v3079 = vpop.permute.xlu0 %3078
      %3080 = vrot.lane.b32.xlu0 %v1573, 64
      %v3081 = vpop.permute.xlu0 %3080
      %3082 = vrot.lane.b32.xlu0 %v1574, 64
      %v3083 = vpop.permute.xlu0 %3082
      %3084 = vrot.lane.b32.xlu0 %v1575, 64
      %v3085 = vpop.permute.xlu0 %3084
      %3086 = vrot.lane.b32.xlu0 %v1576, 64
      %v3087 = vpop.permute.xlu0 %3086
      %3088 = vrot.lane.b32.xlu0 %v1577, 64
      %v3089 = vpop.permute.xlu0 %3088
      %3090 = vrot.lane.b32.xlu0 %v1578, 64
      %v3091 = vpop.permute.xlu0 %3090
      %v3093 = vsel %vm1619, %v3061, 0
      %v3096 = vsel %vm1619, %v3063, 0
      %v3099 = vsel %vm1619, %v3065, 0
      %v3102 = vsel %vm1619, %v3067, 0
      %v3105 = vsel %vm1619, %v3069, 0
      %v3108 = vsel %vm1619, %v3071, 0
      %v3111 = vsel %vm1619, %v3073, 0
      %v3114 = vsel %vm1619, %v3075, 0
      %v3117 = vsel %vm1619, %v3077, 0
      %v3120 = vsel %vm1619, %v3079, 0
      %v3123 = vsel %vm1619, %v3081, 0
      %v3126 = vsel %vm1619, %v3083, 0
      %v3129 = vsel %vm1619, %v3085, 0
      %v3132 = vsel %vm1619, %v3087, 0
      %v3135 = vsel %vm1619, %v3089, 0
      %v3138 = vsel %vm1619, %v3091, 0
      %3140 = vmatprep.subr.bf16.mxu0 0
      %3141 = vmatpush1.bf16.xpose.msra.mxu0 %v3117
      %3142 = vmatprep.subr.bf16.mxu0 0
      %3143 = vmatpush1.bf16.xpose.msra.mxu0 %v3120
      %3144 = vmatprep.subr.bf16.mxu0 0
      %3145 = vmatpush1.bf16.xpose.msra.mxu0 %v3123
      %3146 = vmatprep.subr.bf16.mxu0 0
      %3147 = vmatpush1.bf16.xpose.msra.mxu0 %v3126
      %3148 = vmatprep.subr.bf16.mxu0 0
      %3149 = vmatpush1.bf16.xpose.msra.mxu0 %v3129
      %3150 = vmatprep.subr.bf16.mxu0 0
      %3151 = vmatpush1.bf16.xpose.msra.mxu0 %v3132
      %3152 = vmatprep.subr.bf16.mxu0 0
      %3153 = vmatpush1.bf16.xpose.msra.mxu0 %v3135
      %3154 = vmatprep.subr.bf16.mxu0 0
      %3155 = vmatpush1.bf16.xpose.msra.mxu0 %v3138
      %3156 = vmatprep.subr.bf16.mxu0 0
      %3157 = vmatpush1.bf16.xpose.msra.mxu0 0
      %3158 = vmatprep.subr.bf16.mxu0 0
      %3159 = vmatpush1.bf16.xpose.msra.mxu0 0
      %3160 = vmatprep.subr.bf16.mxu0 0
      %3161 = vmatpush1.bf16.xpose.msra.mxu0 0
      %3162 = vmatprep.subr.bf16.mxu0 0
      %3163 = vmatpush1.bf16.xpose.msra.mxu0 0
      %3164 = vmatprep.subr.bf16.mxu0 0
      %3165 = vmatpush1.bf16.xpose.msra.mxu0 0
      %3166 = vmatprep.subr.bf16.mxu0 0
      %3167 = vmatpush1.bf16.xpose.msra.mxu0 0
      %3168 = vmatprep.subr.bf16.mxu0 0
      %3169 = vmatpush1.bf16.xpose.msra.mxu0 0
      %3170 = vmatprep.subr.bf16.mxu0 0
      %3171 = vmatpush1.bf16.xpose.msra.mxu0 0
      %3172 = vmatprep.mubr.bf16.mxu0 0
      %3173 = vmatmul.mubr.bf16.gmra.mrb[0].mxu0 %v3093
      %v3174 = vpop.f32.mrb[0].mxu0
      %v3175 = vadd.f32 %v1603, %v3174
      %v3176 = vpop.f32.mrb[0].mxu0
      %v3177 = vpop.f32.mrb[0].mxu0
      %v3178 = vadd.f32 %v1604, %v3177
      %v3179 = vpop.f32.mrb[0].mxu0
      %3180 = vmatprep.mubr.bf16.mxu0 0
      %3181 = vmatmul.mubr.bf16.gmra.mrb[0].mxu0 %v3096
      %v3182 = vpop.f32.mrb[0].mxu0
      %v3183 = vadd.f32 %v1605, %v3182
      %v3184 = vpop.f32.mrb[0].mxu0
      %v3185 = vpop.f32.mrb[0].mxu0
      %v3186 = vadd.f32 %v1606, %v3185
      %v3187 = vpop.f32.mrb[0].mxu0
      %3188 = vmatprep.mubr.bf16.mxu0 0
      %3189 = vmatmul.mubr.bf16.gmra.mrb[0].mxu0 %v3099
      %v3190 = vpop.f32.mrb[0].mxu0
      %v3191 = vadd.f32 %v1607, %v3190
      %v3192 = vpop.f32.mrb[0].mxu0
      %v3193 = vpop.f32.mrb[0].mxu0
      %v3194 = vadd.f32 %v1608, %v3193
      %v3195 = vpop.f32.mrb[0].mxu0
      %3196 = vmatprep.mubr.bf16.mxu0 0
      %3197 = vmatmul.mubr.bf16.gmra.mrb[0].mxu0 %v3102
      %v3198 = vpop.f32.mrb[0].mxu0
      %v3199 = vadd.f32 %v1609, %v3198
      %v3200 = vpop.f32.mrb[0].mxu0
      %v3201 = vpop.f32.mrb[0].mxu0
      %v3202 = vadd.f32 %v1610, %v3201
      %v3203 = vpop.f32.mrb[0].mxu0
      %3204 = vmatprep.mubr.bf16.mxu0 0
      %3205 = vmatmul.mubr.bf16.gmra.mrb[0].mxu0 %v3105
      %v3206 = vpop.f32.mrb[0].mxu0
      %v3207 = vadd.f32 %v1611, %v3206
      %v3208 = vpop.f32.mrb[0].mxu0
      %v3209 = vpop.f32.mrb[0].mxu0
      %v3210 = vadd.f32 %v1612, %v3209
      %v3211 = vpop.f32.mrb[0].mxu0
      %3212 = vmatprep.mubr.bf16.mxu0 0
      %3213 = vmatmul.mubr.bf16.gmra.mrb[0].mxu0 %v3108
      %v3214 = vpop.f32.mrb[0].mxu0
      %v3215 = vadd.f32 %v1613, %v3214
      %v3216 = vpop.f32.mrb[0].mxu0
      %v3217 = vpop.f32.mrb[0].mxu0
      %v3218 = vadd.f32 %v1614, %v3217
      %v3219 = vpop.f32.mrb[0].mxu0
      %3220 = vmatprep.mubr.bf16.mxu0 0
      %3221 = vmatmul.mubr.bf16.gmra.mrb[0].mxu0 %v3111
      %v3222 = vpop.f32.mrb[0].mxu0
      %v3223 = vadd.f32 %v1615, %v3222
      %v3224 = vpop.f32.mrb[0].mxu0
      %v3225 = vpop.f32.mrb[0].mxu0
      %v3226 = vadd.f32 %v1616, %v3225
      %v3227 = vpop.f32.mrb[0].mxu0
      %3228 = vmatprep.mubr.bf16.mxu0 0
      %3229 = vmatmul.mubr.bf16.gmra.mrb[0].mxu0 %v3114
      %v3230 = vpop.f32.mrb[0].mxu0
      %v3231 = vadd.f32 %v1617, %v3230
      %v3232 = vpop.f32.mrb[0].mxu0
      %v3233 = vpop.f32.mrb[0].mxu0
      %v3234 = vadd.f32 %v1618, %v3233
      %v3235 = vpop.f32.mrb[0].mxu0
      %3236 = vdwg.mxu0
      %3237 = vmax.xlane.f32.xlu0 %v3175
      %v3238 = vpop.xlane.xlu0 %3237
      %3239 = vmax.xlane.f32.xlu0 %v3178
      %v3240 = vpop.xlane.xlu0 %3239
      %3241 = vmax.xlane.f32.xlu0 %v3183
      %v3242 = vpop.xlane.xlu0 %3241
      %3243 = vmax.xlane.f32.xlu0 %v3186
      %v3244 = vpop.xlane.xlu0 %3243
      %3245 = vmax.xlane.f32.xlu0 %v3191
      %v3246 = vpop.xlane.xlu0 %3245
      %3247 = vmax.xlane.f32.xlu0 %v3194
      %v3248 = vpop.xlane.xlu0 %3247
      %3249 = vmax.xlane.f32.xlu0 %v3199
      %v3250 = vpop.xlane.xlu0 %3249
      %3251 = vmax.xlane.f32.xlu0 %v3202
      %v3252 = vpop.xlane.xlu0 %3251
      %3253 = vmax.xlane.f32.xlu0 %v3207
      %v3254 = vpop.xlane.xlu0 %3253
      %3255 = vmax.xlane.f32.xlu0 %v3210
      %v3256 = vpop.xlane.xlu0 %3255
      %3257 = vmax.xlane.f32.xlu0 %v3215
      %v3258 = vpop.xlane.xlu0 %3257
      %3259 = vmax.xlane.f32.xlu0 %v3218
      %v3260 = vpop.xlane.xlu0 %3259
      %3261 = vmax.xlane.f32.xlu0 %v3223
      %v3262 = vpop.xlane.xlu0 %3261
      %3263 = vmax.xlane.f32.xlu0 %v3226
      %v3264 = vpop.xlane.xlu0 %3263
      %3265 = vmax.xlane.f32.xlu0 %v3231
      %v3266 = vpop.xlane.xlu0 %3265
      %3267 = vmax.xlane.f32.xlu0 %v3234
      %v3268 = vpop.xlane.xlu0 %3267
      %v3269 = vsub.f32 %v3175, %v3238
      %v3270 = vsub.f32 %v3178, %v3240
      %v3271 = vsub.f32 %v3183, %v3242
      %v3272 = vsub.f32 %v3186, %v3244
      %v3273 = vsub.f32 %v3191, %v3246
      %v3274 = vsub.f32 %v3194, %v3248
      %v3275 = vsub.f32 %v3199, %v3250
      %v3276 = vsub.f32 %v3202, %v3252
      %v3277 = vsub.f32 %v3207, %v3254
      %v3278 = vsub.f32 %v3210, %v3256
      %v3279 = vsub.f32 %v3215, %v3258
      %v3280 = vsub.f32 %v3218, %v3260
      %v3281 = vsub.f32 %v3223, %v3262
      %v3282 = vsub.f32 %v3226, %v3264
      %v3283 = vsub.f32 %v3231, %v3266
      %v3284 = vsub.f32 %v3234, %v3268
      %v3285 = vmul.f32 %v3269, 1.442695
      %v3286 = vpow.pop %v3285
      %v3287 = vmul.f32 %v3270, 1.442695
      %v3288 = vpow.pop %v3287
      %v3289 = vmul.f32 %v3271, 1.442695
      %v3290 = vpow.pop %v3289
      %v3291 = vmul.f32 %v3272, 1.442695
      %v3292 = vpow.pop %v3291
      %v3293 = vmul.f32 %v3273, 1.442695
      %v3294 = vpow.pop %v3293
      %v3295 = vmul.f32 %v3274, 1.442695
      %v3296 = vpow.pop %v3295
      %v3297 = vmul.f32 %v3275, 1.442695
      %v3298 = vpow.pop %v3297
      %v3299 = vmul.f32 %v3276, 1.442695
      %v3300 = vpow.pop %v3299
      %v3301 = vmul.f32 %v3277, 1.442695
      %v3302 = vpow.pop %v3301
      %v3303 = vmul.f32 %v3278, 1.442695
      %v3304 = vpow.pop %v3303
      %v3305 = vmul.f32 %v3279, 1.442695
      %v3306 = vpow.pop %v3305
      %v3307 = vmul.f32 %v3280, 1.442695
      %v3308 = vpow.pop %v3307
      %v3309 = vmul.f32 %v3281, 1.442695
      %v3310 = vpow.pop %v3309
      %v3311 = vmul.f32 %v3282, 1.442695
      %v3312 = vpow.pop %v3311
      %v3313 = vmul.f32 %v3283, 1.442695
      %v3314 = vpow.pop %v3313
      %v3315 = vmul.f32 %v3284, 1.442695
      %v3316 = vpow.pop %v3315
      %v3317 = vpack.c.bf16 %v3288, %v3286
      %v3318 = vpack.c.bf16 %v3292, %v3290
      %v3319 = vpack.c.bf16 %v3296, %v3294
      %v3320 = vpack.c.bf16 %v3300, %v3298
      %v3321 = vpack.c.bf16 %v3304, %v3302
      %v3322 = vpack.c.bf16 %v3308, %v3306
      %v3323 = vpack.c.bf16 %v3312, %v3310
      %v3324 = vpack.c.bf16 %v3316, %v3314
      %3325 = vrot.lane.b32.xlu0 %v1579, 64
      %v3326 = vpop.permute.xlu0 %3325
      %3327 = vrot.lane.b32.xlu0 %v1580, 64
      %v3328 = vpop.permute.xlu0 %3327
      %3329 = vrot.lane.b32.xlu0 %v1581, 64
      %v3330 = vpop.permute.xlu0 %3329
      %3331 = vrot.lane.b32.xlu0 %v1582, 64
      %v3332 = vpop.permute.xlu0 %3331
      %3333 = vrot.lane.b32.xlu0 %v1583, 64
      %v3334 = vpop.permute.xlu0 %3333
      %3335 = vrot.lane.b32.xlu0 %v1584, 64
      %v3336 = vpop.permute.xlu0 %3335
      %3337 = vrot.lane.b32.xlu0 %v1585, 64
      %v3338 = vpop.permute.xlu0 %3337
      %3339 = vrot.lane.b32.xlu0 %v1586, 64
      %v3340 = vpop.permute.xlu0 %3339
      %3349 = vmatprep.subr.bf16.mxu0 0
      %3350 = vmatpush1.bf16.msra.mxu0 %v3326
      %3351 = vmatprep.subr.bf16.mxu0 0
      %3352 = vmatpush1.bf16.msra.mxu0 %v3328
      %3353 = vmatprep.subr.bf16.mxu0 0
      %3354 = vmatpush1.bf16.msra.mxu0 %v3330
      %3355 = vmatprep.subr.bf16.mxu0 0
      %3356 = vmatpush1.bf16.msra.mxu0 %v3332
      %3357 = vmatprep.subr.bf16.mxu0 0
      %3358 = vmatpush1.bf16.msra.mxu0 %v3334
      %3359 = vmatprep.subr.bf16.mxu0 0
      %3360 = vmatpush1.bf16.msra.mxu0 %v3336
      %3361 = vmatprep.subr.bf16.mxu0 0
      %3362 = vmatpush1.bf16.msra.mxu0 %v3338
      %3363 = vmatprep.subr.bf16.mxu0 0
      %3364 = vmatpush1.bf16.msra.mxu0 %v3340
      %3365 = vmatprep.subr.bf16.mxu0 0
      %3366 = vmatpush1.bf16.msra.mxu0 0
      %3367 = vmatprep.subr.bf16.mxu0 0
      %3368 = vmatpush1.bf16.msra.mxu0 0
      %3369 = vmatprep.subr.bf16.mxu0 0
      %3370 = vmatpush1.bf16.msra.mxu0 0
      %3371 = vmatprep.subr.bf16.mxu0 0
      %3372 = vmatpush1.bf16.msra.mxu0 0
      %3373 = vmatprep.subr.bf16.mxu0 0
      %3374 = vmatpush1.bf16.msra.mxu0 0
      %3375 = vmatprep.subr.bf16.mxu0 0
      %3376 = vmatpush1.bf16.msra.mxu0 0
      %3377 = vmatprep.subr.bf16.mxu0 0
      %3378 = vmatpush1.bf16.msra.mxu0 0
      %3379 = vmatprep.subr.bf16.mxu0 0
      %3380 = vmatpush1.bf16.msra.mxu0 0
      %3381 = vmatprep.mubr.bf16.mxu0 0
      %3382 = vmatmul.mubr.bf16.gmra.mrb[0].mxu0 %v3317
      %v3383 = vpop.f32.mrb[0].mxu0
      %v3384 = vadd.f32 0.0, %v3383
      %v3385 = vpop.f32.mrb[0].mxu0
      %v3386 = vpop.f32.mrb[0].mxu0
      %v3387 = vadd.f32 0.0, %v3386
      %v3388 = vpop.f32.mrb[0].mxu0
      %3389 = vmatprep.mubr.bf16.mxu0 0
      %3390 = vmatmul.mubr.bf16.gmra.mrb[0].mxu0 %v3318
      %v3391 = vpop.f32.mrb[0].mxu0
      %v3392 = vadd.f32 0.0, %v3391
      %v3393 = vpop.f32.mrb[0].mxu0
      %v3394 = vpop.f32.mrb[0].mxu0
      %v3395 = vadd.f32 0.0, %v3394
      %v3396 = vpop.f32.mrb[0].mxu0
      %3397 = vmatprep.mubr.bf16.mxu0 0
      %3398 = vmatmul.mubr.bf16.gmra.mrb[0].mxu0 %v3319
      %v3399 = vpop.f32.mrb[0].mxu0
      %v3400 = vadd.f32 0.0, %v3399
      %v3401 = vpop.f32.mrb[0].mxu0
      %v3402 = vpop.f32.mrb[0].mxu0
      %v3403 = vadd.f32 0.0, %v3402
      %v3404 = vpop.f32.mrb[0].mxu0
      %3405 = vmatprep.mubr.bf16.mxu0 0
      %3406 = vmatmul.mubr.bf16.gmra.mrb[0].mxu0 %v3320
      %v3407 = vpop.f32.mrb[0].mxu0
      %v3408 = vadd.f32 0.0, %v3407
      %v3409 = vpop.f32.mrb[0].mxu0
      %v3410 = vpop.f32.mrb[0].mxu0
      %v3411 = vadd.f32 0.0, %v3410
      %v3412 = vpop.f32.mrb[0].mxu0
      %3413 = vmatprep.mubr.bf16.mxu0 0
      %3414 = vmatmul.mubr.bf16.gmra.mrb[0].mxu0 %v3321
      %v3415 = vpop.f32.mrb[0].mxu0
      %v3416 = vadd.f32 0.0, %v3415
      %v3417 = vpop.f32.mrb[0].mxu0
      %v3418 = vpop.f32.mrb[0].mxu0
      %v3419 = vadd.f32 0.0, %v3418
      %v3420 = vpop.f32.mrb[0].mxu0
      %3421 = vmatprep.mubr.bf16.mxu0 0
      %3422 = vmatmul.mubr.bf16.gmra.mrb[0].mxu0 %v3322
      %v3423 = vpop.f32.mrb[0].mxu0
      %v3424 = vadd.f32 0.0, %v3423
      %v3425 = vpop.f32.mrb[0].mxu0
      %v3426 = vpop.f32.mrb[0].mxu0
      %v3427 = vadd.f32 0.0, %v3426
      %v3428 = vpop.f32.mrb[0].mxu0
      %3429 = vmatprep.mubr.bf16.mxu0 0
      %3430 = vmatmul.mubr.bf16.gmra.mrb[0].mxu0 %v3323
      %v3431 = vpop.f32.mrb[0].mxu0
      %v3432 = vadd.f32 0.0, %v3431
      %v3433 = vpop.f32.mrb[0].mxu0
      %v3434 = vpop.f32.mrb[0].mxu0
      %v3435 = vadd.f32 0.0, %v3434
      %v3436 = vpop.f32.mrb[0].mxu0
      %3437 = vmatprep.mubr.bf16.mxu0 0
      %3438 = vmatmul.mubr.bf16.gmra.mrb[0].mxu0 %v3324
      %v3439 = vpop.f32.mrb[0].mxu0
      %v3440 = vadd.f32 0.0, %v3439
      %v3441 = vpop.f32.mrb[0].mxu0
      %v3442 = vpop.f32.mrb[0].mxu0
      %v3443 = vadd.f32 0.0, %v3442
      %v3444 = vpop.f32.mrb[0].mxu0
      %3445 = vdwg.mxu0
      %3446 = vmatprep.subr.bf16.mxu0 0
      %3447 = vmatpush1.bf16.msra.mxu0 1065369472
      %3448 = vmatprep.subr.bf16.mxu0 0
      %3449 = vmatpush1.bf16.msra.mxu0 1065369472
      %3450 = vmatprep.subr.bf16.mxu0 0
      %3451 = vmatpush1.bf16.msra.mxu0 1065369472
      %3452 = vmatprep.subr.bf16.mxu0 0
      %3453 = vmatpush1.bf16.msra.mxu0 1065369472
      %3454 = vmatprep.subr.bf16.mxu0 0
      %3455 = vmatpush1.bf16.msra.mxu0 1065369472
      %3456 = vmatprep.subr.bf16.mxu0 0
      %3457 = vmatpush1.bf16.msra.mxu0 1065369472
      %3458 = vmatprep.subr.bf16.mxu0 0
      %3459 = vmatpush1.bf16.msra.mxu0 1065369472
      %3460 = vmatprep.subr.bf16.mxu0 0
      %3461 = vmatpush1.bf16.msra.mxu0 1065369472
      %3462 = vmatprep.subr.bf16.mxu0 0
      %3463 = vmatpush1.bf16.msra.mxu0 0
      %3464 = vmatprep.subr.bf16.mxu0 0
      %3465 = vmatpush1.bf16.msra.mxu0 0
      %3466 = vmatprep.subr.bf16.mxu0 0
      %3467 = vmatpush1.bf16.msra.mxu0 0
      %3468 = vmatprep.subr.bf16.mxu0 0
      %3469 = vmatpush1.bf16.msra.mxu0 0
      %3470 = vmatprep.subr.bf16.mxu0 0
      %3471 = vmatpush1.bf16.msra.mxu0 0
      %3472 = vmatprep.subr.bf16.mxu0 0
      %3473 = vmatpush1.bf16.msra.mxu0 0
      %3474 = vmatprep.subr.bf16.mxu0 0
      %3475 = vmatpush1.bf16.msra.mxu0 0
      %3476 = vmatprep.subr.bf16.mxu0 0
      %3477 = vmatpush1.bf16.msra.mxu0 0
      %3478 = vmatprep.mubr.bf16.mxu0 0
      %3479 = vmatmul.mubr.bf16.gmra.mrb[0].mxu0 %v3317
      %v3480 = vpop.f32.mrb[0].mxu0
      %v3481 = vadd.f32 0.0, %v3480
      %v3482 = vpop.f32.mrb[0].mxu0
      %v3483 = vpop.f32.mrb[0].mxu0
      %v3484 = vadd.f32 0.0, %v3483
      %v3485 = vpop.f32.mrb[0].mxu0
      %3486 = vmatprep.mubr.bf16.mxu0 0
      %3487 = vmatmul.mubr.bf16.gmra.mrb[0].mxu0 %v3318
      %v3488 = vpop.f32.mrb[0].mxu0
      %v3489 = vadd.f32 0.0, %v3488
      %v3490 = vpop.f32.mrb[0].mxu0
      %v3491 = vpop.f32.mrb[0].mxu0
      %v3492 = vadd.f32 0.0, %v3491
      %v3493 = vpop.f32.mrb[0].mxu0
      %3494 = vmatprep.mubr.bf16.mxu0 0
      %3495 = vmatmul.mubr.bf16.gmra.mrb[0].mxu0 %v3319
      %v3496 = vpop.f32.mrb[0].mxu0
      %v3497 = vadd.f32 0.0, %v3496
      %v3498 = vpop.f32.mrb[0].mxu0
      %v3499 = vpop.f32.mrb[0].mxu0
      %v3500 = vadd.f32 0.0, %v3499
      %v3501 = vpop.f32.mrb[0].mxu0
      %3502 = vmatprep.mubr.bf16.mxu0 0
      %3503 = vmatmul.mubr.bf16.gmra.mrb[0].mxu0 %v3320
      %v3504 = vpop.f32.mrb[0].mxu0
      %v3505 = vadd.f32 0.0, %v3504
      %v3506 = vpop.f32.mrb[0].mxu0
      %v3507 = vpop.f32.mrb[0].mxu0
      %v3508 = vadd.f32 0.0, %v3507
      %v3509 = vpop.f32.mrb[0].mxu0
      %3510 = vmatprep.mubr.bf16.mxu0 0
      %3511 = vmatmul.mubr.bf16.gmra.mrb[0].mxu0 %v3321
      %v3512 = vpop.f32.mrb[0].mxu0
      %v3513 = vadd.f32 0.0, %v3512
      %v3514 = vpop.f32.mrb[0].mxu0
      %v3515 = vpop.f32.mrb[0].mxu0
      %v3516 = vadd.f32 0.0, %v3515
      %v3517 = vpop.f32.mrb[0].mxu0
      %3518 = vmatprep.mubr.bf16.mxu0 0
      %3519 = vmatmul.mubr.bf16.gmra.mrb[0].mxu0 %v3322
      %v3520 = vpop.f32.mrb[0].mxu0
      %v3521 = vadd.f32 0.0, %v3520
      %v3522 = vpop.f32.mrb[0].mxu0
      %v3523 = vpop.f32.mrb[0].mxu0
      %v3524 = vadd.f32 0.0, %v3523
      %v3525 = vpop.f32.mrb[0].mxu0
      %3526 = vmatprep.mubr.bf16.mxu0 0
      %3527 = vmatmul.mubr.bf16.gmra.mrb[0].mxu0 %v3323
      %v3528 = vpop.f32.mrb[0].mxu0
      %v3529 = vadd.f32 0.0, %v3528
      %v3530 = vpop.f32.mrb[0].mxu0
      %v3531 = vpop.f32.mrb[0].mxu0
      %v3532 = vadd.f32 0.0, %v3531
      %v3533 = vpop.f32.mrb[0].mxu0
      %3534 = vmatprep.mubr.bf16.mxu0 0
      %3535 = vmatmul.mubr.bf16.gmra.mrb[0].mxu0 %v3324
      %v3536 = vpop.f32.mrb[0].mxu0
      %v3537 = vadd.f32 0.0, %v3536
      %v3538 = vpop.f32.mrb[0].mxu0
      %v3539 = vpop.f32.mrb[0].mxu0
      %v3540 = vadd.f32 0.0, %v3539
      %v3541 = vpop.f32.mrb[0].mxu0
      %3542 = vdwg.mxu0
      %v3543 = vrcp.pop %v3481
      %v3544 = vrcp.pop %v3484
      %v3545 = vrcp.pop %v3489
      %v3546 = vrcp.pop %v3492
      %v3547 = vrcp.pop %v3497
      %v3548 = vrcp.pop %v3500
      %v3549 = vrcp.pop %v3505
      %v3550 = vrcp.pop %v3508
      %v3551 = vrcp.pop %v3513
      %v3552 = vrcp.pop %v3516
      %v3553 = vrcp.pop %v3521
      %v3554 = vrcp.pop %v3524
      %v3555 = vrcp.pop %v3529
      %v3556 = vrcp.pop %v3532
      %v3557 = vrcp.pop %v3537
      %v3558 = vrcp.pop %v3540
      %3560 = vset.pattern.permute.xlu0 0
      %3561 = vperm.xlu0 %3560, %v3543
      %v3562 = vpop.permute.xlu0 %3561
      %3565 = vset.pattern.permute.xlu0 0
      %3566 = vperm.xlu0 %3565, %v3544
      %v3567 = vpop.permute.xlu0 %3566
      %3570 = vset.pattern.permute.xlu0 0
      %3571 = vperm.xlu0 %3570, %v3545
      %v3572 = vpop.permute.xlu0 %3571
      %3575 = vset.pattern.permute.xlu0 0
      %3576 = vperm.xlu0 %3575, %v3546
      %v3577 = vpop.permute.xlu0 %3576
      %3580 = vset.pattern.permute.xlu0 0
      %3581 = vperm.xlu0 %3580, %v3547
      %v3582 = vpop.permute.xlu0 %3581
      %3585 = vset.pattern.permute.xlu0 0
      %3586 = vperm.xlu0 %3585, %v3548
      %v3587 = vpop.permute.xlu0 %3586
      %3590 = vset.pattern.permute.xlu0 0
      %3591 = vperm.xlu0 %3590, %v3549
      %v3592 = vpop.permute.xlu0 %3591
      %3595 = vset.pattern.permute.xlu0 0
      %3596 = vperm.xlu0 %3595, %v3550
      %v3597 = vpop.permute.xlu0 %3596
      %3600 = vset.pattern.permute.xlu0 0
      %3601 = vperm.xlu0 %3600, %v3551
      %v3602 = vpop.permute.xlu0 %3601
      %3605 = vset.pattern.permute.xlu0 0
      %3606 = vperm.xlu0 %3605, %v3552
      %v3607 = vpop.permute.xlu0 %3606
      %3610 = vset.pattern.permute.xlu0 0
      %3611 = vperm.xlu0 %3610, %v3553
      %v3612 = vpop.permute.xlu0 %3611
      %3615 = vset.pattern.permute.xlu0 0
      %3616 = vperm.xlu0 %3615, %v3554
      %v3617 = vpop.permute.xlu0 %3616
      %3620 = vset.pattern.permute.xlu0 0
      %3621 = vperm.xlu0 %3620, %v3555
      %v3622 = vpop.permute.xlu0 %3621
      %3625 = vset.pattern.permute.xlu0 0
      %3626 = vperm.xlu0 %3625, %v3556
      %v3627 = vpop.permute.xlu0 %3626
      %3630 = vset.pattern.permute.xlu0 0
      %3631 = vperm.xlu0 %3630, %v3557
      %v3632 = vpop.permute.xlu0 %3631
      %3635 = vset.pattern.permute.xlu0 0
      %3636 = vperm.xlu0 %3635, %v3558
      %v3637 = vpop.permute.xlu0 %3636
      %v3639 = vmul.f32 %v3384, %v3562
      %v3640 = vmul.f32 %v3387, %v3567
      %v3641 = vmul.f32 %v3392, %v3572
      %v3642 = vmul.f32 %v3395, %v3577
      %v3643 = vmul.f32 %v3400, %v3582
      %v3644 = vmul.f32 %v3403, %v3587
      %v3645 = vmul.f32 %v3408, %v3592
      %v3646 = vmul.f32 %v3411, %v3597
      %v3647 = vmul.f32 %v3416, %v3602
      %v3648 = vmul.f32 %v3419, %v3607
      %v3649 = vmul.f32 %v3424, %v3612
      %v3650 = vmul.f32 %v3427, %v3617
      %v3651 = vmul.f32 %v3432, %v3622
      %v3652 = vmul.f32 %v3435, %v3627
      %v3653 = vmul.f32 %v3440, %v3632
      %v3654 = vmul.f32 %v3443, %v3637
      %v3655 = vpack.c.bf16 %v3640, %v3639
      %v3656 = vpack.c.bf16 %v3642, %v3641
      %v3657 = vpack.c.bf16 %v3644, %v3643
      %v3658 = vpack.c.bf16 %v3646, %v3645
      %v3659 = vpack.c.bf16 %v3648, %v3647
      %v3660 = vpack.c.bf16 %v3650, %v3649
      %v3661 = vpack.c.bf16 %v3652, %v3651
      %v3662 = vpack.c.bf16 %v3654, %v3653
      %v3667 = vunpack.c.l.b16 %v1595
      %v3668 = vunpack.c.l.b16 %v1596
      %v3669 = vunpack.c.l.b16 %v1597
      %v3670 = vunpack.c.l.b16 %v1598
      %v3671 = vpack.c.b16 %v3668, %v3667
      %v3672 = vpack.c.b16 %v3670, %v3669
      %v3676 = vsel %vm1619, %v3655, 0
      %v3679 = vsel %vm1619, %v3656, 0
      %v3682 = vsel %vm1619, %v3657, 0
      %v3685 = vsel %vm1619, %v3658, 0
      %v3688 = vsel %vm1619, %v3659, 0
      %v3691 = vsel %vm1619, %v3660, 0
      %v3694 = vsel %vm1619, %v3661, 0
      %v3697 = vsel %vm1619, %v3662, 0
      %3699 = vmatprep.subr.bf16.mxu0 0
      %3700 = vmatpush1.bf16.msra.mxu0 %v3671
      %3701 = vmatprep.subr.bf16.mxu0 0
      %3702 = vmatpush1.bf16.msra.mxu0 %v3672
      %3703 = vmatprep.subr.bf16.mxu0 0
      %3704 = vmatpush1.bf16.msra.mxu0 0
      %3705 = vmatprep.subr.bf16.mxu0 0
      %3706 = vmatpush1.bf16.msra.mxu0 0
      %3707 = vmatprep.subr.bf16.mxu0 0
      %3708 = vmatpush1.bf16.msra.mxu0 0
      %3709 = vmatprep.subr.bf16.mxu0 0
      %3710 = vmatpush1.bf16.msra.mxu0 0
      %3711 = vmatprep.subr.bf16.mxu0 0
      %3712 = vmatpush1.bf16.msra.mxu0 0
      %3713 = vmatprep.subr.bf16.mxu0 0
      %3714 = vmatpush1.bf16.msra.mxu0 0
      %3715 = vmatprep.subr.bf16.mxu0 0
      %3716 = vmatpush1.bf16.msra.mxu0 0
      %3717 = vmatprep.subr.bf16.mxu0 0
      %3718 = vmatpush1.bf16.msra.mxu0 0
      %3719 = vmatprep.subr.bf16.mxu0 0
      %3720 = vmatpush1.bf16.msra.mxu0 0
      %3721 = vmatprep.subr.bf16.mxu0 0
      %3722 = vmatpush1.bf16.msra.mxu0 0
      %3723 = vmatprep.subr.bf16.mxu0 0
      %3724 = vmatpush1.bf16.msra.mxu0 0
      %3725 = vmatprep.subr.bf16.mxu0 0
      %3726 = vmatpush1.bf16.msra.mxu0 0
      %3727 = vmatprep.subr.bf16.mxu0 0
      %3728 = vmatpush1.bf16.msra.mxu0 0
      %3729 = vmatprep.subr.bf16.mxu0 0
      %3730 = vmatpush1.bf16.msra.mxu0 0
      %3731 = vmatprep.mubr.bf16.mxu0 0
      %3732 = vmatmul.mubr.bf16.gmra.mrb[0].mxu0 %v3676
      %v3733 = vpop.f32.mrb[0].mxu0
      %v3734 = vadd.f32 0.0, %v3733
      %v3735 = vpop.f32.mrb[0].mxu0
      %v3736 = vpop.f32.mrb[0].mxu0
      %v3737 = vadd.f32 0.0, %v3736
      %v3738 = vpop.f32.mrb[0].mxu0
      %3739 = vmatprep.mubr.bf16.mxu0 0
      %3740 = vmatmul.mubr.bf16.gmra.mrb[0].mxu0 %v3679
      %v3741 = vpop.f32.mrb[0].mxu0
      %v3742 = vadd.f32 0.0, %v3741
      %v3743 = vpop.f32.mrb[0].mxu0
      %v3744 = vpop.f32.mrb[0].mxu0
      %v3745 = vadd.f32 0.0, %v3744
      %v3746 = vpop.f32.mrb[0].mxu0
      %3747 = vmatprep.mubr.bf16.mxu0 0
      %3748 = vmatmul.mubr.bf16.gmra.mrb[0].mxu0 %v3682
      %v3749 = vpop.f32.mrb[0].mxu0
      %v3750 = vadd.f32 0.0, %v3749
      %v3751 = vpop.f32.mrb[0].mxu0
      %v3752 = vpop.f32.mrb[0].mxu0
      %v3753 = vadd.f32 0.0, %v3752
      %v3754 = vpop.f32.mrb[0].mxu0
      %3755 = vmatprep.mubr.bf16.mxu0 0
      %3756 = vmatmul.mubr.bf16.gmra.mrb[0].mxu0 %v3685
      %v3757 = vpop.f32.mrb[0].mxu0
      %v3758 = vadd.f32 0.0, %v3757
      %v3759 = vpop.f32.mrb[0].mxu0
      %v3760 = vpop.f32.mrb[0].mxu0
      %v3761 = vadd.f32 0.0, %v3760
      %v3762 = vpop.f32.mrb[0].mxu0
      %3763 = vmatprep.mubr.bf16.mxu0 0
      %3764 = vmatmul.mubr.bf16.gmra.mrb[0].mxu0 %v3688
      %v3765 = vpop.f32.mrb[0].mxu0
      %v3766 = vadd.f32 0.0, %v3765
      %v3767 = vpop.f32.mrb[0].mxu0
      %v3768 = vpop.f32.mrb[0].mxu0
      %v3769 = vadd.f32 0.0, %v3768
      %v3770 = vpop.f32.mrb[0].mxu0
      %3771 = vmatprep.mubr.bf16.mxu0 0
      %3772 = vmatmul.mubr.bf16.gmra.mrb[0].mxu0 %v3691
      %v3773 = vpop.f32.mrb[0].mxu0
      %v3774 = vadd.f32 0.0, %v3773
      %v3775 = vpop.f32.mrb[0].mxu0
      %v3776 = vpop.f32.mrb[0].mxu0
      %v3777 = vadd.f32 0.0, %v3776
      %v3778 = vpop.f32.mrb[0].mxu0
      %3779 = vmatprep.mubr.bf16.mxu0 0
      %3780 = vmatmul.mubr.bf16.gmra.mrb[0].mxu0 %v3694
      %v3781 = vpop.f32.mrb[0].mxu0
      %v3782 = vadd.f32 0.0, %v3781
      %v3783 = vpop.f32.mrb[0].mxu0
      %v3784 = vpop.f32.mrb[0].mxu0
      %v3785 = vadd.f32 0.0, %v3784
      %v3786 = vpop.f32.mrb[0].mxu0
      %3787 = vmatprep.mubr.bf16.mxu0 0
      %3788 = vmatmul.mubr.bf16.gmra.mrb[0].mxu0 %v3697
      %v3789 = vpop.f32.mrb[0].mxu0
      %v3790 = vadd.f32 0.0, %v3789
      %v3791 = vpop.f32.mrb[0].mxu0
      %v3792 = vpop.f32.mrb[0].mxu0
      %v3793 = vadd.f32 0.0, %v3792
      %v3794 = vpop.f32.mrb[0].mxu0
      %3795 = vdwg.mxu0
      %v3796 = vadd.f32 %v2998, %v3734
      %v3797 = vadd.f32 %v3001, %v3737
      %v3798 = vadd.f32 %v3006, %v3742
      %v3799 = vadd.f32 %v3009, %v3745
      %v3800 = vadd.f32 %v3014, %v3750
      %v3801 = vadd.f32 %v3017, %v3753
      %v3802 = vadd.f32 %v3022, %v3758
      %v3803 = vadd.f32 %v3025, %v3761
      %v3804 = vadd.f32 %v3030, %v3766
      %v3805 = vadd.f32 %v3033, %v3769
      %v3806 = vadd.f32 %v3038, %v3774
      %v3807 = vadd.f32 %v3041, %v3777
      %v3808 = vadd.f32 %v3046, %v3782
      %v3809 = vadd.f32 %v3049, %v3785
      %v3810 = vadd.f32 %v3054, %v3790
      %v3811 = vadd.f32 %v3057, %v3793
      %3812 = vrot.lane.b32.xlu0 %v1563, 32
      %v3813 = vpop.permute.xlu0 %3812
      %3814 = vrot.lane.b32.xlu0 %v1564, 32
      %v3815 = vpop.permute.xlu0 %3814
      %3816 = vrot.lane.b32.xlu0 %v1565, 32
      %v3817 = vpop.permute.xlu0 %3816
      %3818 = vrot.lane.b32.xlu0 %v1566, 32
      %v3819 = vpop.permute.xlu0 %3818
      %3820 = vrot.lane.b32.xlu0 %v1567, 32
      %v3821 = vpop.permute.xlu0 %3820
      %3822 = vrot.lane.b32.xlu0 %v1568, 32
      %v3823 = vpop.permute.xlu0 %3822
      %3824 = vrot.lane.b32.xlu0 %v1569, 32
      %v3825 = vpop.permute.xlu0 %3824
      %3826 = vrot.lane.b32.xlu0 %v1570, 32
      %v3827 = vpop.permute.xlu0 %3826
      %3828 = vrot.lane.b32.xlu0 %v1571, 32
      %v3829 = vpop.permute.xlu0 %3828
      %3830 = vrot.lane.b32.xlu0 %v1572, 32
      %v3831 = vpop.permute.xlu0 %3830
      %3832 = vrot.lane.b32.xlu0 %v1573, 32
      %v3833 = vpop.permute.xlu0 %3832
      %3834 = vrot.lane.b32.xlu0 %v1574, 32
      %v3835 = vpop.permute.xlu0 %3834
      %3836 = vrot.lane.b32.xlu0 %v1575, 32
      %v3837 = vpop.permute.xlu0 %3836
      %3838 = vrot.lane.b32.xlu0 %v1576, 32
      %v3839 = vpop.permute.xlu0 %3838
      %3840 = vrot.lane.b32.xlu0 %v1577, 32
      %v3841 = vpop.permute.xlu0 %3840
      %3842 = vrot.lane.b32.xlu0 %v1578, 32
      %v3843 = vpop.permute.xlu0 %3842
      %v3845 = vsel %vm1619, %v3813, 0
      %v3848 = vsel %vm1619, %v3815, 0
      %v3851 = vsel %vm1619, %v3817, 0
      %v3854 = vsel %vm1619, %v3819, 0
      %v3857 = vsel %vm1619, %v3821, 0
      %v3860 = vsel %vm1619, %v3823, 0
      %v3863 = vsel %vm1619, %v3825, 0
      %v3866 = vsel %vm1619, %v3827, 0
      %v3869 = vsel %vm1619, %v3829, 0
      %v3872 = vsel %vm1619, %v3831, 0
      %v3875 = vsel %vm1619, %v3833, 0
      %v3878 = vsel %vm1619, %v3835, 0
      %v3881 = vsel %vm1619, %v3837, 0
      %v3884 = vsel %vm1619, %v3839, 0
      %v3887 = vsel %vm1619, %v3841, 0
      %v3890 = vsel %vm1619, %v3843, 0
      %3892 = vmatprep.subr.bf16.mxu0 0
      %3893 = vmatpush1.bf16.xpose.msra.mxu0 %v3869
      %3894 = vmatprep.subr.bf16.mxu0 0
      %3895 = vmatpush1.bf16.xpose.msra.mxu0 %v3872
      %3896 = vmatprep.subr.bf16.mxu0 0
      %3897 = vmatpush1.bf16.xpose.msra.mxu0 %v3875
      %3898 = vmatprep.subr.bf16.mxu0 0
      %3899 = vmatpush1.bf16.xpose.msra.mxu0 %v3878
      %3900 = vmatprep.subr.bf16.mxu0 0
      %3901 = vmatpush1.bf16.xpose.msra.mxu0 %v3881
      %3902 = vmatprep.subr.bf16.mxu0 0
      %3903 = vmatpush1.bf16.xpose.msra.mxu0 %v3884
      %3904 = vmatprep.subr.bf16.mxu0 0
      %3905 = vmatpush1.bf16.xpose.msra.mxu0 %v3887
      %3906 = vmatprep.subr.bf16.mxu0 0
      %3907 = vmatpush1.bf16.xpose.msra.mxu0 %v3890
      %3908 = vmatprep.subr.bf16.mxu0 0
      %3909 = vmatpush1.bf16.xpose.msra.mxu0 0
      %3910 = vmatprep.subr.bf16.mxu0 0
      %3911 = vmatpush1.bf16.xpose.msra.mxu0 0
      %3912 = vmatprep.subr.bf16.mxu0 0
      %3913 = vmatpush1.bf16.xpose.msra.mxu0 0
      %3914 = vmatprep.subr.bf16.mxu0 0
      %3915 = vmatpush1.bf16.xpose.msra.mxu0 0
      %3916 = vmatprep.subr.bf16.mxu0 0
      %3917 = vmatpush1.bf16.xpose.msra.mxu0 0
      %3918 = vmatprep.subr.bf16.mxu0 0
      %3919 = vmatpush1.bf16.xpose.msra.mxu0 0
      %3920 = vmatprep.subr.bf16.mxu0 0
      %3921 = vmatpush1.bf16.xpose.msra.mxu0 0
      %3922 = vmatprep.subr.bf16.mxu0 0
      %3923 = vmatpush1.bf16.xpose.msra.mxu0 0
      %3924 = vmatprep.mubr.bf16.mxu0 0
      %3925 = vmatmul.mubr.bf16.gmra.mrb[0].mxu0 %v3845
      %v3926 = vpop.f32.mrb[0].mxu0
      %v3927 = vadd.f32 %v1603, %v3926
      %v3928 = vpop.f32.mrb[0].mxu0
      %v3929 = vpop.f32.mrb[0].mxu0
      %v3930 = vadd.f32 %v1604, %v3929
      %v3931 = vpop.f32.mrb[0].mxu0
      %3932 = vmatprep.mubr.bf16.mxu0 0
      %3933 = vmatmul.mubr.bf16.gmra.mrb[0].mxu0 %v3848
      %v3934 = vpop.f32.mrb[0].mxu0
      %v3935 = vadd.f32 %v1605, %v3934
      %v3936 = vpop.f32.mrb[0].mxu0
      %v3937 = vpop.f32.mrb[0].mxu0
      %v3938 = vadd.f32 %v1606, %v3937
      %v3939 = vpop.f32.mrb[0].mxu0
      %3940 = vmatprep.mubr.bf16.mxu0 0
      %3941 = vmatmul.mubr.bf16.gmra.mrb[0].mxu0 %v3851
      %v3942 = vpop.f32.mrb[0].mxu0
      %v3943 = vadd.f32 %v1607, %v3942
      %v3944 = vpop.f32.mrb[0].mxu0
      %v3945 = vpop.f32.mrb[0].mxu0
      %v3946 = vadd.f32 %v1608, %v3945
      %v3947 = vpop.f32.mrb[0].mxu0
      %3948 = vmatprep.mubr.bf16.mxu0 0
      %3949 = vmatmul.mubr.bf16.gmra.mrb[0].mxu0 %v3854
      %v3950 = vpop.f32.mrb[0].mxu0
      %v3951 = vadd.f32 %v1609, %v3950
      %v3952 = vpop.f32.mrb[0].mxu0
      %v3953 = vpop.f32.mrb[0].mxu0
      %v3954 = vadd.f32 %v1610, %v3953
      %v3955 = vpop.f32.mrb[0].mxu0
      %3956 = vmatprep.mubr.bf16.mxu0 0
      %3957 = vmatmul.mubr.bf16.gmra.mrb[0].mxu0 %v3857
      %v3958 = vpop.f32.mrb[0].mxu0
      %v3959 = vadd.f32 %v1611, %v3958
      %v3960 = vpop.f32.mrb[0].mxu0
      %v3961 = vpop.f32.mrb[0].mxu0
      %v3962 = vadd.f32 %v1612, %v3961
      %v3963 = vpop.f32.mrb[0].mxu0
      %3964 = vmatprep.mubr.bf16.mxu0 0
      %3965 = vmatmul.mubr.bf16.gmra.mrb[0].mxu0 %v3860
      %v3966 = vpop.f32.mrb[0].mxu0
      %v3967 = vadd.f32 %v1613, %v3966
      %v3968 = vpop.f32.mrb[0].mxu0
      %v3969 = vpop.f32.mrb[0].mxu0
      %v3970 = vadd.f32 %v1614, %v3969
      %v3971 = vpop.f32.mrb[0].mxu0
      %3972 = vmatprep.mubr.bf16.mxu0 0
      %3973 = vmatmul.mubr.bf16.gmra.mrb[0].mxu0 %v3863
      %v3974 = vpop.f32.mrb[0].mxu0
      %v3975 = vadd.f32 %v1615, %v3974
      %v3976 = vpop.f32.mrb[0].mxu0
      %v3977 = vpop.f32.mrb[0].mxu0
      %v3978 = vadd.f32 %v1616, %v3977
      %v3979 = vpop.f32.mrb[0].mxu0
      %3980 = vmatprep.mubr.bf16.mxu0 0
      %3981 = vmatmul.mubr.bf16.gmra.mrb[0].mxu0 %v3866
      %v3982 = vpop.f32.mrb[0].mxu0
      %v3983 = vadd.f32 %v1617, %v3982
      %v3984 = vpop.f32.mrb[0].mxu0
      %v3985 = vpop.f32.mrb[0].mxu0
      %v3986 = vadd.f32 %v1618, %v3985
      %v3987 = vpop.f32.mrb[0].mxu0
      %3988 = vdwg.mxu0
      %3989 = vmax.xlane.f32.xlu0 %v3927
      %v3990 = vpop.xlane.xlu0 %3989
      %3991 = vmax.xlane.f32.xlu0 %v3930
      %v3992 = vpop.xlane.xlu0 %3991
      %3993 = vmax.xlane.f32.xlu0 %v3935
      %v3994 = vpop.xlane.xlu0 %3993
      %3995 = vmax.xlane.f32.xlu0 %v3938
      %v3996 = vpop.xlane.xlu0 %3995
      %3997 = vmax.xlane.f32.xlu0 %v3943
      %v3998 = vpop.xlane.xlu0 %3997
      %3999 = vmax.xlane.f32.xlu0 %v3946
      %v4000 = vpop.xlane.xlu0 %3999
      %4001 = vmax.xlane.f32.xlu0 %v3951
      %v4002 = vpop.xlane.xlu0 %4001
      %4003 = vmax.xlane.f32.xlu0 %v3954
      %v4004 = vpop.xlane.xlu0 %4003
      %4005 = vmax.xlane.f32.xlu0 %v3959
      %v4006 = vpop.xlane.xlu0 %4005
      %4007 = vmax.xlane.f32.xlu0 %v3962
      %v4008 = vpop.xlane.xlu0 %4007
      %4009 = vmax.xlane.f32.xlu0 %v3967
      %v4010 = vpop.xlane.xlu0 %4009
      %4011 = vmax.xlane.f32.xlu0 %v3970
      %v4012 = vpop.xlane.xlu0 %4011
      %4013 = vmax.xlane.f32.xlu0 %v3975
      %v4014 = vpop.xlane.xlu0 %4013
      %4015 = vmax.xlane.f32.xlu0 %v3978
      %v4016 = vpop.xlane.xlu0 %4015
      %4017 = vmax.xlane.f32.xlu0 %v3983
      %v4018 = vpop.xlane.xlu0 %4017
      %4019 = vmax.xlane.f32.xlu0 %v3986
      %v4020 = vpop.xlane.xlu0 %4019
      %v4021 = vsub.f32 %v3927, %v3990
      %v4022 = vsub.f32 %v3930, %v3992
      %v4023 = vsub.f32 %v3935, %v3994
      %v4024 = vsub.f32 %v3938, %v3996
      %v4025 = vsub.f32 %v3943, %v3998
      %v4026 = vsub.f32 %v3946, %v4000
      %v4027 = vsub.f32 %v3951, %v4002
      %v4028 = vsub.f32 %v3954, %v4004
      %v4029 = vsub.f32 %v3959, %v4006
      %v4030 = vsub.f32 %v3962, %v4008
      %v4031 = vsub.f32 %v3967, %v4010
      %v4032 = vsub.f32 %v3970, %v4012
      %v4033 = vsub.f32 %v3975, %v4014
      %v4034 = vsub.f32 %v3978, %v4016
      %v4035 = vsub.f32 %v3983, %v4018
      %v4036 = vsub.f32 %v3986, %v4020
      %v4037 = vmul.f32 %v4021, 1.442695
      %v4038 = vpow.pop %v4037
      %v4039 = vmul.f32 %v4022, 1.442695
      %v4040 = vpow.pop %v4039
      %v4041 = vmul.f32 %v4023, 1.442695
      %v4042 = vpow.pop %v4041
      %v4043 = vmul.f32 %v4024, 1.442695
      %v4044 = vpow.pop %v4043
      %v4045 = vmul.f32 %v4025, 1.442695
      %v4046 = vpow.pop %v4045
      %v4047 = vmul.f32 %v4026, 1.442695
      %v4048 = vpow.pop %v4047
      %v4049 = vmul.f32 %v4027, 1.442695
      %v4050 = vpow.pop %v4049
      %v4051 = vmul.f32 %v4028, 1.442695
      %v4052 = vpow.pop %v4051
      %v4053 = vmul.f32 %v4029, 1.442695
      %v4054 = vpow.pop %v4053
      %v4055 = vmul.f32 %v4030, 1.442695
      %v4056 = vpow.pop %v4055
      %v4057 = vmul.f32 %v4031, 1.442695
      %v4058 = vpow.pop %v4057
      %v4059 = vmul.f32 %v4032, 1.442695
      %v4060 = vpow.pop %v4059
      %v4061 = vmul.f32 %v4033, 1.442695
      %v4062 = vpow.pop %v4061
      %v4063 = vmul.f32 %v4034, 1.442695
      %v4064 = vpow.pop %v4063
      %v4065 = vmul.f32 %v4035, 1.442695
      %v4066 = vpow.pop %v4065
      %v4067 = vmul.f32 %v4036, 1.442695
      %v4068 = vpow.pop %v4067
      %v4069 = vpack.c.bf16 %v4040, %v4038
      %v4070 = vpack.c.bf16 %v4044, %v4042
      %v4071 = vpack.c.bf16 %v4048, %v4046
      %v4072 = vpack.c.bf16 %v4052, %v4050
      %v4073 = vpack.c.bf16 %v4056, %v4054
      %v4074 = vpack.c.bf16 %v4060, %v4058
      %v4075 = vpack.c.bf16 %v4064, %v4062
      %v4076 = vpack.c.bf16 %v4068, %v4066
      %4077 = vrot.lane.b32.xlu0 %v1579, 32
      %v4078 = vpop.permute.xlu0 %4077
      %4079 = vrot.lane.b32.xlu0 %v1580, 32
      %v4080 = vpop.permute.xlu0 %4079
      %4081 = vrot.lane.b32.xlu0 %v1581, 32
      %v4082 = vpop.permute.xlu0 %4081
      %4083 = vrot.lane.b32.xlu0 %v1582, 32
      %v4084 = vpop.permute.xlu0 %4083
      %4085 = vrot.lane.b32.xlu0 %v1583, 32
      %v4086 = vpop.permute.xlu0 %4085
      %4087 = vrot.lane.b32.xlu0 %v1584, 32
      %v4088 = vpop.permute.xlu0 %4087
      %4089 = vrot.lane.b32.xlu0 %v1585, 32
      %v4090 = vpop.permute.xlu0 %4089
      %4091 = vrot.lane.b32.xlu0 %v1586, 32
      %v4092 = vpop.permute.xlu0 %4091
      %4101 = vmatprep.subr.bf16.mxu0 0
      %4102 = vmatpush1.bf16.msra.mxu0 %v4078
      %4103 = vmatprep.subr.bf16.mxu0 0
      %4104 = vmatpush1.bf16.msra.mxu0 %v4080
      %4105 = vmatprep.subr.bf16.mxu0 0
      %4106 = vmatpush1.bf16.msra.mxu0 %v4082
      %4107 = vmatprep.subr.bf16.mxu0 0
      %4108 = vmatpush1.bf16.msra.mxu0 %v4084
      %4109 = vmatprep.subr.bf16.mxu0 0
      %4110 = vmatpush1.bf16.msra.mxu0 %v4086
      %4111 = vmatprep.subr.bf16.mxu0 0
      %4112 = vmatpush1.bf16.msra.mxu0 %v4088
      %4113 = vmatprep.subr.bf16.mxu0 0
      %4114 = vmatpush1.bf16.msra.mxu0 %v4090
      %4115 = vmatprep.subr.bf16.mxu0 0
      %4116 = vmatpush1.bf16.msra.mxu0 %v4092
      %4117 = vmatprep.subr.bf16.mxu0 0
      %4118 = vmatpush1.bf16.msra.mxu0 0
      %4119 = vmatprep.subr.bf16.mxu0 0
      %4120 = vmatpush1.bf16.msra.mxu0 0
      %4121 = vmatprep.subr.bf16.mxu0 0
      %4122 = vmatpush1.bf16.msra.mxu0 0
      %4123 = vmatprep.subr.bf16.mxu0 0
      %4124 = vmatpush1.bf16.msra.mxu0 0
      %4125 = vmatprep.subr.bf16.mxu0 0
      %4126 = vmatpush1.bf16.msra.mxu0 0
      %4127 = vmatprep.subr.bf16.mxu0 0
      %4128 = vmatpush1.bf16.msra.mxu0 0
      %4129 = vmatprep.subr.bf16.mxu0 0
      %4130 = vmatpush1.bf16.msra.mxu0 0
      %4131 = vmatprep.subr.bf16.mxu0 0
      %4132 = vmatpush1.bf16.msra.mxu0 0
      %4133 = vmatprep.mubr.bf16.mxu0 0
      %4134 = vmatmul.mubr.bf16.gmra.mrb[0].mxu0 %v4069
      %v4135 = vpop.f32.mrb[0].mxu0
      %v4136 = vadd.f32 0.0, %v4135
      %v4137 = vpop.f32.mrb[0].mxu0
      %v4138 = vpop.f32.mrb[0].mxu0
      %v4139 = vadd.f32 0.0, %v4138
      %v4140 = vpop.f32.mrb[0].mxu0
      %4141 = vmatprep.mubr.bf16.mxu0 0
      %4142 = vmatmul.mubr.bf16.gmra.mrb[0].mxu0 %v4070
      %v4143 = vpop.f32.mrb[0].mxu0
      %v4144 = vadd.f32 0.0, %v4143
      %v4145 = vpop.f32.mrb[0].mxu0
      %v4146 = vpop.f32.mrb[0].mxu0
      %v4147 = vadd.f32 0.0, %v4146
      %v4148 = vpop.f32.mrb[0].mxu0
      %4149 = vmatprep.mubr.bf16.mxu0 0
      %4150 = vmatmul.mubr.bf16.gmra.mrb[0].mxu0 %v4071
      %v4151 = vpop.f32.mrb[0].mxu0
      %v4152 = vadd.f32 0.0, %v4151
      %v4153 = vpop.f32.mrb[0].mxu0
      %v4154 = vpop.f32.mrb[0].mxu0
      %v4155 = vadd.f32 0.0, %v4154
      %v4156 = vpop.f32.mrb[0].mxu0
      %4157 = vmatprep.mubr.bf16.mxu0 0
      %4158 = vmatmul.mubr.bf16.gmra.mrb[0].mxu0 %v4072
      %v4159 = vpop.f32.mrb[0].mxu0
      %v4160 = vadd.f32 0.0, %v4159
      %v4161 = vpop.f32.mrb[0].mxu0
      %v4162 = vpop.f32.mrb[0].mxu0
      %v4163 = vadd.f32 0.0, %v4162
      %v4164 = vpop.f32.mrb[0].mxu0
      %4165 = vmatprep.mubr.bf16.mxu0 0
      %4166 = vmatmul.mubr.bf16.gmra.mrb[0].mxu0 %v4073
      %v4167 = vpop.f32.mrb[0].mxu0
      %v4168 = vadd.f32 0.0, %v4167
      %v4169 = vpop.f32.mrb[0].mxu0
      %v4170 = vpop.f32.mrb[0].mxu0
      %v4171 = vadd.f32 0.0, %v4170
      %v4172 = vpop.f32.mrb[0].mxu0
      %4173 = vmatprep.mubr.bf16.mxu0 0
      %4174 = vmatmul.mubr.bf16.gmra.mrb[0].mxu0 %v4074
      %v4175 = vpop.f32.mrb[0].mxu0
      %v4176 = vadd.f32 0.0, %v4175
      %v4177 = vpop.f32.mrb[0].mxu0
      %v4178 = vpop.f32.mrb[0].mxu0
      %v4179 = vadd.f32 0.0, %v4178
      %v4180 = vpop.f32.mrb[0].mxu0
      %4181 = vmatprep.mubr.bf16.mxu0 0
      %4182 = vmatmul.mubr.bf16.gmra.mrb[0].mxu0 %v4075
      %v4183 = vpop.f32.mrb[0].mxu0
      %v4184 = vadd.f32 0.0, %v4183
      %v4185 = vpop.f32.mrb[0].mxu0
      %v4186 = vpop.f32.mrb[0].mxu0
      %v4187 = vadd.f32 0.0, %v4186
      %v4188 = vpop.f32.mrb[0].mxu0
      %4189 = vmatprep.mubr.bf16.mxu0 0
      %4190 = vmatmul.mubr.bf16.gmra.mrb[0].mxu0 %v4076
      %v4191 = vpop.f32.mrb[0].mxu0
      %v4192 = vadd.f32 0.0, %v4191
      %v4193 = vpop.f32.mrb[0].mxu0
      %v4194 = vpop.f32.mrb[0].mxu0
      %v4195 = vadd.f32 0.0, %v4194
      %v4196 = vpop.f32.mrb[0].mxu0
      %4197 = vdwg.mxu0
      %4198 = vmatprep.subr.bf16.mxu0 0
      %4199 = vmatpush1.bf16.msra.mxu0 1065369472
      %4200 = vmatprep.subr.bf16.mxu0 0
      %4201 = vmatpush1.bf16.msra.mxu0 1065369472
      %4202 = vmatprep.subr.bf16.mxu0 0
      %4203 = vmatpush1.bf16.msra.mxu0 1065369472
      %4204 = vmatprep.subr.bf16.mxu0 0
      %4205 = vmatpush1.bf16.msra.mxu0 1065369472
      %4206 = vmatprep.subr.bf16.mxu0 0
      %4207 = vmatpush1.bf16.msra.mxu0 1065369472
      %4208 = vmatprep.subr.bf16.mxu0 0
      %4209 = vmatpush1.bf16.msra.mxu0 1065369472
      %4210 = vmatprep.subr.bf16.mxu0 0
      %4211 = vmatpush1.bf16.msra.mxu0 1065369472
      %4212 = vmatprep.subr.bf16.mxu0 0
      %4213 = vmatpush1.bf16.msra.mxu0 1065369472
      %4214 = vmatprep.subr.bf16.mxu0 0
      %4215 = vmatpush1.bf16.msra.mxu0 0
      %4216 = vmatprep.subr.bf16.mxu0 0
      %4217 = vmatpush1.bf16.msra.mxu0 0
      %4218 = vmatprep.subr.bf16.mxu0 0
      %4219 = vmatpush1.bf16.msra.mxu0 0
      %4220 = vmatprep.subr.bf16.mxu0 0
      %4221 = vmatpush1.bf16.msra.mxu0 0
      %4222 = vmatprep.subr.bf16.mxu0 0
      %4223 = vmatpush1.bf16.msra.mxu0 0
      %4224 = vmatprep.subr.bf16.mxu0 0
      %4225 = vmatpush1.bf16.msra.mxu0 0
      %4226 = vmatprep.subr.bf16.mxu0 0
      %4227 = vmatpush1.bf16.msra.mxu0 0
      %4228 = vmatprep.subr.bf16.mxu0 0
      %4229 = vmatpush1.bf16.msra.mxu0 0
      %4230 = vmatprep.mubr.bf16.mxu0 0
      %4231 = vmatmul.mubr.bf16.gmra.mrb[0].mxu0 %v4069
      %v4232 = vpop.f32.mrb[0].mxu0
      %v4233 = vadd.f32 0.0, %v4232
      %v4234 = vpop.f32.mrb[0].mxu0
      %v4235 = vpop.f32.mrb[0].mxu0
      %v4236 = vadd.f32 0.0, %v4235
      %v4237 = vpop.f32.mrb[0].mxu0
      %4238 = vmatprep.mubr.bf16.mxu0 0
      %4239 = vmatmul.mubr.bf16.gmra.mrb[0].mxu0 %v4070
      %v4240 = vpop.f32.mrb[0].mxu0
      %v4241 = vadd.f32 0.0, %v4240
      %v4242 = vpop.f32.mrb[0].mxu0
      %v4243 = vpop.f32.mrb[0].mxu0
      %v4244 = vadd.f32 0.0, %v4243
      %v4245 = vpop.f32.mrb[0].mxu0
      %4246 = vmatprep.mubr.bf16.mxu0 0
      %4247 = vmatmul.mubr.bf16.gmra.mrb[0].mxu0 %v4071
      %v4248 = vpop.f32.mrb[0].mxu0
      %v4249 = vadd.f32 0.0, %v4248
      %v4250 = vpop.f32.mrb[0].mxu0
      %v4251 = vpop.f32.mrb[0].mxu0
      %v4252 = vadd.f32 0.0, %v4251
      %v4253 = vpop.f32.mrb[0].mxu0
      %4254 = vmatprep.mubr.bf16.mxu0 0
      %4255 = vmatmul.mubr.bf16.gmra.mrb[0].mxu0 %v4072
      %v4256 = vpop.f32.mrb[0].mxu0
      %v4257 = vadd.f32 0.0, %v4256
      %v4258 = vpop.f32.mrb[0].mxu0
      %v4259 = vpop.f32.mrb[0].mxu0
      %v4260 = vadd.f32 0.0, %v4259
      %v4261 = vpop.f32.mrb[0].mxu0
      %4262 = vmatprep.mubr.bf16.mxu0 0
      %4263 = vmatmul.mubr.bf16.gmra.mrb[0].mxu0 %v4073
      %v4264 = vpop.f32.mrb[0].mxu0
      %v4265 = vadd.f32 0.0, %v4264
      %v4266 = vpop.f32.mrb[0].mxu0
      %v4267 = vpop.f32.mrb[0].mxu0
      %v4268 = vadd.f32 0.0, %v4267
      %v4269 = vpop.f32.mrb[0].mxu0
      %4270 = vmatprep.mubr.bf16.mxu0 0
      %4271 = vmatmul.mubr.bf16.gmra.mrb[0].mxu0 %v4074
      %v4272 = vpop.f32.mrb[0].mxu0
      %v4273 = vadd.f32 0.0, %v4272
      %v4274 = vpop.f32.mrb[0].mxu0
      %v4275 = vpop.f32.mrb[0].mxu0
      %v4276 = vadd.f32 0.0, %v4275
      %v4277 = vpop.f32.mrb[0].mxu0
      %4278 = vmatprep.mubr.bf16.mxu0 0
      %4279 = vmatmul.mubr.bf16.gmra.mrb[0].mxu0 %v4075
      %v4280 = vpop.f32.mrb[0].mxu0
      %v4281 = vadd.f32 0.0, %v4280
      %v4282 = vpop.f32.mrb[0].mxu0
      %v4283 = vpop.f32.mrb[0].mxu0
      %v4284 = vadd.f32 0.0, %v4283
      %v4285 = vpop.f32.mrb[0].mxu0
      %4286 = vmatprep.mubr.bf16.mxu0 0
      %4287 = vmatmul.mubr.bf16.gmra.mrb[0].mxu0 %v4076
      %v4288 = vpop.f32.mrb[0].mxu0
      %v4289 = vadd.f32 0.0, %v4288
      %v4290 = vpop.f32.mrb[0].mxu0
      %v4291 = vpop.f32.mrb[0].mxu0
      %v4292 = vadd.f32 0.0, %v4291
      %v4293 = vpop.f32.mrb[0].mxu0
      %4294 = vdwg.mxu0
      %v4295 = vrcp.pop %v4233
      %v4296 = vrcp.pop %v4236
      %v4297 = vrcp.pop %v4241
      %v4298 = vrcp.pop %v4244
      %v4299 = vrcp.pop %v4249
      %v4300 = vrcp.pop %v4252
      %v4301 = vrcp.pop %v4257
      %v4302 = vrcp.pop %v4260
      %v4303 = vrcp.pop %v4265
      %v4304 = vrcp.pop %v4268
      %v4305 = vrcp.pop %v4273
      %v4306 = vrcp.pop %v4276
      %v4307 = vrcp.pop %v4281
      %v4308 = vrcp.pop %v4284
      %v4309 = vrcp.pop %v4289
      %v4310 = vrcp.pop %v4292
      %4312 = vset.pattern.permute.xlu0 0
      %4313 = vperm.xlu0 %4312, %v4295
      %v4314 = vpop.permute.xlu0 %4313
      %4317 = vset.pattern.permute.xlu0 0
      %4318 = vperm.xlu0 %4317, %v4296
      %v4319 = vpop.permute.xlu0 %4318
      %4322 = vset.pattern.permute.xlu0 0
      %4323 = vperm.xlu0 %4322, %v4297
      %v4324 = vpop.permute.xlu0 %4323
      %4327 = vset.pattern.permute.xlu0 0
      %4328 = vperm.xlu0 %4327, %v4298
      %v4329 = vpop.permute.xlu0 %4328
      %4332 = vset.pattern.permute.xlu0 0
      %4333 = vperm.xlu0 %4332, %v4299
      %v4334 = vpop.permute.xlu0 %4333
      %4337 = vset.pattern.permute.xlu0 0
      %4338 = vperm.xlu0 %4337, %v4300
      %v4339 = vpop.permute.xlu0 %4338
      %4342 = vset.pattern.permute.xlu0 0
      %4343 = vperm.xlu0 %4342, %v4301
      %v4344 = vpop.permute.xlu0 %4343
      %4347 = vset.pattern.permute.xlu0 0
      %4348 = vperm.xlu0 %4347, %v4302
      %v4349 = vpop.permute.xlu0 %4348
      %4352 = vset.pattern.permute.xlu0 0
      %4353 = vperm.xlu0 %4352, %v4303
      %v4354 = vpop.permute.xlu0 %4353
      %4357 = vset.pattern.permute.xlu0 0
      %4358 = vperm.xlu0 %4357, %v4304
      %v4359 = vpop.permute.xlu0 %4358
      %4362 = vset.pattern.permute.xlu0 0
      %4363 = vperm.xlu0 %4362, %v4305
      %v4364 = vpop.permute.xlu0 %4363
      %4367 = vset.pattern.permute.xlu0 0
      %4368 = vperm.xlu0 %4367, %v4306
      %v4369 = vpop.permute.xlu0 %4368
      %4372 = vset.pattern.permute.xlu0 0
      %4373 = vperm.xlu0 %4372, %v4307
      %v4374 = vpop.permute.xlu0 %4373
      %4377 = vset.pattern.permute.xlu0 0
      %4378 = vperm.xlu0 %4377, %v4308
      %v4379 = vpop.permute.xlu0 %4378
      %4382 = vset.pattern.permute.xlu0 0
      %4383 = vperm.xlu0 %4382, %v4309
      %v4384 = vpop.permute.xlu0 %4383
      %4387 = vset.pattern.permute.xlu0 0
      %4388 = vperm.xlu0 %4387, %v4310
      %v4389 = vpop.permute.xlu0 %4388
      %v4391 = vmul.f32 %v4136, %v4314
      %v4392 = vmul.f32 %v4139, %v4319
      %v4393 = vmul.f32 %v4144, %v4324
      %v4394 = vmul.f32 %v4147, %v4329
      %v4395 = vmul.f32 %v4152, %v4334
      %v4396 = vmul.f32 %v4155, %v4339
      %v4397 = vmul.f32 %v4160, %v4344
      %v4398 = vmul.f32 %v4163, %v4349
      %v4399 = vmul.f32 %v4168, %v4354
      %v4400 = vmul.f32 %v4171, %v4359
      %v4401 = vmul.f32 %v4176, %v4364
      %v4402 = vmul.f32 %v4179, %v4369
      %v4403 = vmul.f32 %v4184, %v4374
      %v4404 = vmul.f32 %v4187, %v4379
      %v4405 = vmul.f32 %v4192, %v4384
      %v4406 = vmul.f32 %v4195, %v4389
      %v4407 = vpack.c.bf16 %v4392, %v4391
      %v4408 = vpack.c.bf16 %v4394, %v4393
      %v4409 = vpack.c.bf16 %v4396, %v4395
      %v4410 = vpack.c.bf16 %v4398, %v4397
      %v4411 = vpack.c.bf16 %v4400, %v4399
      %v4412 = vpack.c.bf16 %v4402, %v4401
      %v4413 = vpack.c.bf16 %v4404, %v4403
      %v4414 = vpack.c.bf16 %v4406, %v4405
      %v4419 = vunpack.c.l.b16 %v1599
      %v4420 = vunpack.c.l.b16 %v1600
      %v4421 = vunpack.c.l.b16 %v1601
      %v4422 = vunpack.c.l.b16 %v1602
      %v4423 = vpack.c.b16 %v4420, %v4419
      %v4424 = vpack.c.b16 %v4422, %v4421
      %v4428 = vsel %vm1619, %v4407, 0
      %v4431 = vsel %vm1619, %v4408, 0
      %v4434 = vsel %vm1619, %v4409, 0
      %v4437 = vsel %vm1619, %v4410, 0
      %v4440 = vsel %vm1619, %v4411, 0
      %v4443 = vsel %vm1619, %v4412, 0
      %v4446 = vsel %vm1619, %v4413, 0
      %v4449 = vsel %vm1619, %v4414, 0
      %4451 = vmatprep.subr.bf16.mxu0 0
      %4452 = vmatpush1.bf16.msra.mxu0 %v4423
      %4453 = vmatprep.subr.bf16.mxu0 0
      %4454 = vmatpush1.bf16.msra.mxu0 %v4424
      %4455 = vmatprep.subr.bf16.mxu0 0
      %4456 = vmatpush1.bf16.msra.mxu0 0
      %4457 = vmatprep.subr.bf16.mxu0 0
      %4458 = vmatpush1.bf16.msra.mxu0 0
      %4459 = vmatprep.subr.bf16.mxu0 0
      %4460 = vmatpush1.bf16.msra.mxu0 0
      %4461 = vmatprep.subr.bf16.mxu0 0
      %4462 = vmatpush1.bf16.msra.mxu0 0
      %4463 = vmatprep.subr.bf16.mxu0 0
      %4464 = vmatpush1.bf16.msra.mxu0 0
      %4465 = vmatprep.subr.bf16.mxu0 0
      %4466 = vmatpush1.bf16.msra.mxu0 0
      %4467 = vmatprep.subr.bf16.mxu0 0
      %4468 = vmatpush1.bf16.msra.mxu0 0
      %4469 = vmatprep.subr.bf16.mxu0 0
      %4470 = vmatpush1.bf16.msra.mxu0 0
      %4471 = vmatprep.subr.bf16.mxu0 0
      %4472 = vmatpush1.bf16.msra.mxu0 0
      %4473 = vmatprep.subr.bf16.mxu0 0
      %4474 = vmatpush1.bf16.msra.mxu0 0
      %4475 = vmatprep.subr.bf16.mxu0 0
      %4476 = vmatpush1.bf16.msra.mxu0 0
      %4477 = vmatprep.subr.bf16.mxu0 0
      %4478 = vmatpush1.bf16.msra.mxu0 0
      %4479 = vmatprep.subr.bf16.mxu0 0
      %4480 = vmatpush1.bf16.msra.mxu0 0
      %4481 = vmatprep.subr.bf16.mxu0 0
      %4482 = vmatpush1.bf16.msra.mxu0 0
      %4483 = vmatprep.mubr.bf16.mxu0 0
      %4484 = vmatmul.mubr.bf16.gmra.mrb[0].mxu0 %v4428
      %v4485 = vpop.f32.mrb[0].mxu0
      %v4486 = vadd.f32 0.0, %v4485
      %v4487 = vpop.f32.mrb[0].mxu0
      %v4488 = vpop.f32.mrb[0].mxu0
      %v4489 = vadd.f32 0.0, %v4488
      %v4490 = vpop.f32.mrb[0].mxu0
      %4491 = vmatprep.mubr.bf16.mxu0 0
      %4492 = vmatmul.mubr.bf16.gmra.mrb[0].mxu0 %v4431
      %v4493 = vpop.f32.mrb[0].mxu0
      %v4494 = vadd.f32 0.0, %v4493
      %v4495 = vpop.f32.mrb[0].mxu0
      %v4496 = vpop.f32.mrb[0].mxu0
      %v4497 = vadd.f32 0.0, %v4496
      %v4498 = vpop.f32.mrb[0].mxu0
      %4499 = vmatprep.mubr.bf16.mxu0 0
      %4500 = vmatmul.mubr.bf16.gmra.mrb[0].mxu0 %v4434
      %v4501 = vpop.f32.mrb[0].mxu0
      %v4502 = vadd.f32 0.0, %v4501
      %v4503 = vpop.f32.mrb[0].mxu0
      %v4504 = vpop.f32.mrb[0].mxu0
      %v4505 = vadd.f32 0.0, %v4504
      %v4506 = vpop.f32.mrb[0].mxu0
      %4507 = vmatprep.mubr.bf16.mxu0 0
      %4508 = vmatmul.mubr.bf16.gmra.mrb[0].mxu0 %v4437
      %v4509 = vpop.f32.mrb[0].mxu0
      %v4510 = vadd.f32 0.0, %v4509
      %v4511 = vpop.f32.mrb[0].mxu0
      %v4512 = vpop.f32.mrb[0].mxu0
      %v4513 = vadd.f32 0.0, %v4512
      %v4514 = vpop.f32.mrb[0].mxu0
      %4515 = vmatprep.mubr.bf16.mxu0 0
      %4516 = vmatmul.mubr.bf16.gmra.mrb[0].mxu0 %v4440
      %v4517 = vpop.f32.mrb[0].mxu0
      %v4518 = vadd.f32 0.0, %v4517
      %v4519 = vpop.f32.mrb[0].mxu0
      %v4520 = vpop.f32.mrb[0].mxu0
      %v4521 = vadd.f32 0.0, %v4520
      %v4522 = vpop.f32.mrb[0].mxu0
      %4523 = vmatprep.mubr.bf16.mxu0 0
      %4524 = vmatmul.mubr.bf16.gmra.mrb[0].mxu0 %v4443
      %v4525 = vpop.f32.mrb[0].mxu0
      %v4526 = vadd.f32 0.0, %v4525
      %v4527 = vpop.f32.mrb[0].mxu0
      %v4528 = vpop.f32.mrb[0].mxu0
      %v4529 = vadd.f32 0.0, %v4528
      %v4530 = vpop.f32.mrb[0].mxu0
      %4531 = vmatprep.mubr.bf16.mxu0 0
      %4532 = vmatmul.mubr.bf16.gmra.mrb[0].mxu0 %v4446
      %v4533 = vpop.f32.mrb[0].mxu0
      %v4534 = vadd.f32 0.0, %v4533
      %v4535 = vpop.f32.mrb[0].mxu0
      %v4536 = vpop.f32.mrb[0].mxu0
      %v4537 = vadd.f32 0.0, %v4536
      %v4538 = vpop.f32.mrb[0].mxu0
      %4539 = vmatprep.mubr.bf16.mxu0 0
      %4540 = vmatmul.mubr.bf16.gmra.mrb[0].mxu0 %v4449
      %v4541 = vpop.f32.mrb[0].mxu0
      %v4542 = vadd.f32 0.0, %v4541
      %v4543 = vpop.f32.mrb[0].mxu0
      %v4544 = vpop.f32.mrb[0].mxu0
      %v4545 = vadd.f32 0.0, %v4544
      %v4546 = vpop.f32.mrb[0].mxu0
      %4547 = vdwg.mxu0
      %v4548 = vadd.f32 %v3796, %v4486
      %v4549 = vadd.f32 %v3797, %v4489
      %v4550 = vadd.f32 %v3798, %v4494
      %v4551 = vadd.f32 %v3799, %v4497
      %v4552 = vadd.f32 %v3800, %v4502
      %v4553 = vadd.f32 %v3801, %v4505
      %v4554 = vadd.f32 %v3802, %v4510
      %v4555 = vadd.f32 %v3803, %v4513
      %v4556 = vadd.f32 %v3804, %v4518
      %v4557 = vadd.f32 %v3805, %v4521
      %v4558 = vadd.f32 %v3806, %v4526
      %v4559 = vadd.f32 %v3807, %v4529
      %v4560 = vadd.f32 %v3808, %v4534
      %v4561 = vadd.f32 %v3809, %v4537
      %v4562 = vadd.f32 %v3810, %v4542
      %v4563 = vadd.f32 %v3811, %v4545
      %v4564 = vadd.f32 %v929, %v4548
      %v4565 = vadd.f32 %v930, %v4549
      %v4566 = vadd.f32 %v931, %v4550
      %v4567 = vadd.f32 %v932, %v4551
      %v4568 = vadd.f32 %v933, %v4552
      %v4569 = vadd.f32 %v934, %v4553
      %v4570 = vadd.f32 %v935, %v4554
      %v4571 = vadd.f32 %v936, %v4555
      %v4572 = vadd.f32 %v937, %v4556
      %v4573 = vadd.f32 %v938, %v4557
      %v4574 = vadd.f32 %v939, %v4558
      %v4575 = vadd.f32 %v940, %v4559
      %v4576 = vadd.f32 %v941, %v4560
      %v4577 = vadd.f32 %v942, %v4561
      %v4578 = vadd.f32 %v943, %v4562
      %v4579 = vadd.f32 %v944, %v4563
      %v4580 = vld [vmem:[%s788] sm:$0x1]
      %v4582 = vlaneseq
      %v4583 = vshrl.u32 %v4582, 7
      %v4584 = vsub.s32 0, %v4583
      %v4585 = vrot.slane %v4580, %v4584
      %v4587 = vadd.f32 %v4564, %v4585
      %v4588 = vadd.f32 %v4565, %v4585
      %v4589 = vadd.f32 %v4566, %v4585
      %v4590 = vadd.f32 %v4567, %v4585
      %v4591 = vadd.f32 %v4568, %v4585
      %v4592 = vadd.f32 %v4569, %v4585
      %v4593 = vadd.f32 %v4570, %v4585
      %v4594 = vadd.f32 %v4571, %v4585
      %v4595 = vadd.f32 %v4572, %v4585
      %v4596 = vadd.f32 %v4573, %v4585
      %v4597 = vadd.f32 %v4574, %v4585
      %v4598 = vadd.f32 %v4575, %v4585
      %v4599 = vadd.f32 %v4576, %v4585
      %v4600 = vadd.f32 %v4577, %v4585
      %v4601 = vadd.f32 %v4578, %v4585
      %v4602 = vadd.f32 %v4579, %v4585
      %v4603 = vld [vmem:[%s791] sm:$0x1]
      %v4604 = vld [vmem:[%s794] sm:$0x1]
      %4605 = vadd.xlane.f32.xlu0 %v4587
      %v4606 = vpop.xlane.xlu0 %4605
      %4607 = vadd.xlane.f32.xlu0 %v4588
      %v4608 = vpop.xlane.xlu0 %4607
      %4609 = vadd.xlane.f32.xlu0 %v4589
      %v4610 = vpop.xlane.xlu0 %4609
      %4611 = vadd.xlane.f32.xlu0 %v4590
      %v4612 = vpop.xlane.xlu0 %4611
      %4613 = vadd.xlane.f32.xlu0 %v4591
      %v4614 = vpop.xlane.xlu0 %4613
      %4615 = vadd.xlane.f32.xlu0 %v4592
      %v4616 = vpop.xlane.xlu0 %4615
      %4617 = vadd.xlane.f32.xlu0 %v4593
      %v4618 = vpop.xlane.xlu0 %4617
      %4619 = vadd.xlane.f32.xlu0 %v4594
      %v4620 = vpop.xlane.xlu0 %4619
      %4621 = vadd.xlane.f32.xlu0 %v4595
      %v4622 = vpop.xlane.xlu0 %4621
      %4623 = vadd.xlane.f32.xlu0 %v4596
      %v4624 = vpop.xlane.xlu0 %4623
      %4625 = vadd.xlane.f32.xlu0 %v4597
      %v4626 = vpop.xlane.xlu0 %4625
      %4627 = vadd.xlane.f32.xlu0 %v4598
      %v4628 = vpop.xlane.xlu0 %4627
      %4629 = vadd.xlane.f32.xlu0 %v4599
      %v4630 = vpop.xlane.xlu0 %4629
      %4631 = vadd.xlane.f32.xlu0 %v4600
      %v4632 = vpop.xlane.xlu0 %4631
      %4633 = vadd.xlane.f32.xlu0 %v4601
      %v4634 = vpop.xlane.xlu0 %4633
      %4635 = vadd.xlane.f32.xlu0 %v4602
      %v4636 = vpop.xlane.xlu0 %4635
      %v4637 = vmul.f32 %v4606, %v979
      %v4638 = vmul.f32 %v4608, %v979
      %v4639 = vmul.f32 %v4610, %v979
      %v4640 = vmul.f32 %v4612, %v979
      %v4641 = vmul.f32 %v4614, %v979
      %v4642 = vmul.f32 %v4616, %v979
      %v4643 = vmul.f32 %v4618, %v979
      %v4644 = vmul.f32 %v4620, %v979
      %v4645 = vmul.f32 %v4622, %v979
      %v4646 = vmul.f32 %v4624, %v979
      %v4647 = vmul.f32 %v4626, %v979
      %v4648 = vmul.f32 %v4628, %v979
      %v4649 = vmul.f32 %v4630, %v979
      %v4650 = vmul.f32 %v4632, %v979
      %v4651 = vmul.f32 %v4634, %v979
      %v4652 = vmul.f32 %v4636, %v979
      %v4653 = vsub.f32 %v4587, %v4637
      %v4654 = vsub.f32 %v4588, %v4638
      %v4655 = vsub.f32 %v4589, %v4639
      %v4656 = vsub.f32 %v4590, %v4640
      %v4657 = vsub.f32 %v4591, %v4641
      %v4658 = vsub.f32 %v4592, %v4642
      %v4659 = vsub.f32 %v4593, %v4643
      %v4660 = vsub.f32 %v4594, %v4644
      %v4661 = vsub.f32 %v4595, %v4645
      %v4662 = vsub.f32 %v4596, %v4646
      %v4663 = vsub.f32 %v4597, %v4647
      %v4664 = vsub.f32 %v4598, %v4648
      %v4665 = vsub.f32 %v4599, %v4649
      %v4666 = vsub.f32 %v4600, %v4650
      %v4667 = vsub.f32 %v4601, %v4651
      %v4668 = vsub.f32 %v4602, %v4652
      %v4669 = vmul.f32 %v4653, %v4653
      %v4670 = vmul.f32 %v4654, %v4654
      %v4671 = vmul.f32 %v4655, %v4655
      %v4672 = vmul.f32 %v4656, %v4656
      %v4673 = vmul.f32 %v4657, %v4657
      %v4674 = vmul.f32 %v4658, %v4658
      %v4675 = vmul.f32 %v4659, %v4659
      %v4676 = vmul.f32 %v4660, %v4660
      %v4677 = vmul.f32 %v4661, %v4661
      %v4678 = vmul.f32 %v4662, %v4662
      %v4679 = vmul.f32 %v4663, %v4663
      %v4680 = vmul.f32 %v4664, %v4664
      %v4681 = vmul.f32 %v4665, %v4665
      %v4682 = vmul.f32 %v4666, %v4666
      %v4683 = vmul.f32 %v4667, %v4667
      %v4684 = vmul.f32 %v4668, %v4668
      %4685 = vadd.xlane.f32.xlu0 %v4669
      %v4686 = vpop.xlane.xlu0 %4685
      %4687 = vadd.xlane.f32.xlu0 %v4670
      %v4688 = vpop.xlane.xlu0 %4687
      %4689 = vadd.xlane.f32.xlu0 %v4671
      %v4690 = vpop.xlane.xlu0 %4689
      %4691 = vadd.xlane.f32.xlu0 %v4672
      %v4692 = vpop.xlane.xlu0 %4691
      %4693 = vadd.xlane.f32.xlu0 %v4673
      %v4694 = vpop.xlane.xlu0 %4693
      %4695 = vadd.xlane.f32.xlu0 %v4674
      %v4696 = vpop.xlane.xlu0 %4695
      %4697 = vadd.xlane.f32.xlu0 %v4675
      %v4698 = vpop.xlane.xlu0 %4697
      %4699 = vadd.xlane.f32.xlu0 %v4676
      %v4700 = vpop.xlane.xlu0 %4699
      %4701 = vadd.xlane.f32.xlu0 %v4677
      %v4702 = vpop.xlane.xlu0 %4701
      %4703 = vadd.xlane.f32.xlu0 %v4678
      %v4704 = vpop.xlane.xlu0 %4703
      %4705 = vadd.xlane.f32.xlu0 %v4679
      %v4706 = vpop.xlane.xlu0 %4705
      %4707 = vadd.xlane.f32.xlu0 %v4680
      %v4708 = vpop.xlane.xlu0 %4707
      %4709 = vadd.xlane.f32.xlu0 %v4681
      %v4710 = vpop.xlane.xlu0 %4709
      %4711 = vadd.xlane.f32.xlu0 %v4682
      %v4712 = vpop.xlane.xlu0 %4711
      %4713 = vadd.xlane.f32.xlu0 %v4683
      %v4714 = vpop.xlane.xlu0 %4713
      %4715 = vadd.xlane.f32.xlu0 %v4684
      %v4716 = vpop.xlane.xlu0 %4715
      %v4717 = vmul.f32 %v4686, %v979
      %v4718 = vmul.f32 %v4688, %v979
      %v4719 = vmul.f32 %v4690, %v979
      %v4720 = vmul.f32 %v4692, %v979
      %v4721 = vmul.f32 %v4694, %v979
      %v4722 = vmul.f32 %v4696, %v979
      %v4723 = vmul.f32 %v4698, %v979
      %v4724 = vmul.f32 %v4700, %v979
      %v4725 = vmul.f32 %v4702, %v979
      %v4726 = vmul.f32 %v4704, %v979
      %v4727 = vmul.f32 %v4706, %v979
      %v4728 = vmul.f32 %v4708, %v979
      %v4729 = vmul.f32 %v4710, %v979
      %v4730 = vmul.f32 %v4712, %v979
      %v4731 = vmul.f32 %v4714, %v979
      %v4732 = vmul.f32 %v4716, %v979
      %v4733 = vadd.f32 %v4717, 1e-05
      %v4734 = vadd.f32 %v4718, 1e-05
      %v4735 = vadd.f32 %v4719, 1e-05
      %v4736 = vadd.f32 %v4720, 1e-05
      %v4737 = vadd.f32 %v4721, 1e-05
      %v4738 = vadd.f32 %v4722, 1e-05
      %v4739 = vadd.f32 %v4723, 1e-05
      %v4740 = vadd.f32 %v4724, 1e-05
      %v4741 = vadd.f32 %v4725, 1e-05
      %v4742 = vadd.f32 %v4726, 1e-05
      %v4743 = vadd.f32 %v4727, 1e-05
      %v4744 = vadd.f32 %v4728, 1e-05
      %v4745 = vadd.f32 %v4729, 1e-05
      %v4746 = vadd.f32 %v4730, 1e-05
      %v4747 = vadd.f32 %v4731, 1e-05
      %v4748 = vadd.f32 %v4732, 1e-05
      %v4749 = vrsqrt.pop %v4733
      %v4750 = vrsqrt.pop %v4734
      %v4751 = vrsqrt.pop %v4735
      %v4752 = vrsqrt.pop %v4736
      %v4753 = vrsqrt.pop %v4737
      %v4754 = vrsqrt.pop %v4738
      %v4755 = vrsqrt.pop %v4739
      %v4756 = vrsqrt.pop %v4740
      %v4757 = vrsqrt.pop %v4741
      %v4758 = vrsqrt.pop %v4742
      %v4759 = vrsqrt.pop %v4743
      %v4760 = vrsqrt.pop %v4744
      %v4761 = vrsqrt.pop %v4745
      %v4762 = vrsqrt.pop %v4746
      %v4763 = vrsqrt.pop %v4747
      %v4764 = vrsqrt.pop %v4748
      %v4765 = vmul.f32 %v4653, %v4749
      %v4766 = vmul.f32 %v4654, %v4750
      %v4767 = vmul.f32 %v4655, %v4751
      %v4768 = vmul.f32 %v4656, %v4752
      %v4769 = vmul.f32 %v4657, %v4753
      %v4770 = vmul.f32 %v4658, %v4754
      %v4771 = vmul.f32 %v4659, %v4755
      %v4772 = vmul.f32 %v4660, %v4756
      %v4773 = vmul.f32 %v4661, %v4757
      %v4774 = vmul.f32 %v4662, %v4758
      %v4775 = vmul.f32 %v4663, %v4759
      %v4776 = vmul.f32 %v4664, %v4760
      %v4777 = vmul.f32 %v4665, %v4761
      %v4778 = vmul.f32 %v4666, %v4762
      %v4779 = vmul.f32 %v4667, %v4763
      %v4780 = vmul.f32 %v4668, %v4764
      %v4782 = vlaneseq
      %v4783 = vshrl.u32 %v4782, 7
      %v4784 = vsub.s32 0, %v4783
      %v4785 = vrot.slane %v4603, %v4784
      %v4787 = vmul.f32 %v4765, %v4785
      %v4788 = vmul.f32 %v4766, %v4785
      %v4789 = vmul.f32 %v4767, %v4785
      %v4790 = vmul.f32 %v4768, %v4785
      %v4791 = vmul.f32 %v4769, %v4785
      %v4792 = vmul.f32 %v4770, %v4785
      %v4793 = vmul.f32 %v4771, %v4785
      %v4794 = vmul.f32 %v4772, %v4785
      %v4795 = vmul.f32 %v4773, %v4785
      %v4796 = vmul.f32 %v4774, %v4785
      %v4797 = vmul.f32 %v4775, %v4785
      %v4798 = vmul.f32 %v4776, %v4785
      %v4799 = vmul.f32 %v4777, %v4785
      %v4800 = vmul.f32 %v4778, %v4785
      %v4801 = vmul.f32 %v4779, %v4785
      %v4802 = vmul.f32 %v4780, %v4785
      %v4804 = vlaneseq
      %v4805 = vshrl.u32 %v4804, 7
      %v4806 = vsub.s32 0, %v4805
      %v4807 = vrot.slane %v4604, %v4806
      %v4809 = vadd.f32 %v4787, %v4807
      %v4810 = vadd.f32 %v4788, %v4807
      %v4811 = vadd.f32 %v4789, %v4807
      %v4812 = vadd.f32 %v4790, %v4807
      %v4813 = vadd.f32 %v4791, %v4807
      %v4814 = vadd.f32 %v4792, %v4807
      %v4815 = vadd.f32 %v4793, %v4807
      %v4816 = vadd.f32 %v4794, %v4807
      %v4817 = vadd.f32 %v4795, %v4807
      %v4818 = vadd.f32 %v4796, %v4807
      %v4819 = vadd.f32 %v4797, %v4807
      %v4820 = vadd.f32 %v4798, %v4807
      %v4821 = vadd.f32 %v4799, %v4807
      %v4822 = vadd.f32 %v4800, %v4807
      %v4823 = vadd.f32 %v4801, %v4807
      %v4824 = vadd.f32 %v4802, %v4807
      %v4825 = vpack.c.bf16 %v4810, %v4809
      %v4826 = vpack.c.bf16 %v4812, %v4811
      %v4827 = vpack.c.bf16 %v4814, %v4813
      %v4828 = vpack.c.bf16 %v4816, %v4815
      %v4829 = vpack.c.bf16 %v4818, %v4817
      %v4830 = vpack.c.bf16 %v4820, %v4819
      %v4831 = vpack.c.bf16 %v4822, %v4821
      %v4832 = vpack.c.bf16 %v4824, %v4823
      %v4833 = vld [vmem:[%s799] sm:$0xff]
      %v4834 = vld [vmem:[%s799 + $0x8] sm:$0xff]
      %v4835 = vld [vmem:[%s799 + $0x10] sm:$0xff]
      %v4836 = vld [vmem:[%s799 + $0x18] sm:$0xff]
      %v4837 = vld [vmem:[%s799 + $0x20] sm:$0xff]
      %v4838 = vld [vmem:[%s799 + $0x28] sm:$0xff]
      %v4839 = vld [vmem:[%s799 + $0x30] sm:$0xff]
      %v4840 = vld [vmem:[%s799 + $0x38] sm:$0xff]
      %v4841 = vld [vmem:[%s799 + $0x40] sm:$0xff]
      %v4842 = vld [vmem:[%s799 + $0x48] sm:$0xff]
      %v4843 = vld [vmem:[%s799 + $0x50] sm:$0xff]
      %v4844 = vld [vmem:[%s799 + $0x58] sm:$0xff]
      %v4845 = vld [vmem:[%s799 + $0x60] sm:$0xff]
      %v4846 = vld [vmem:[%s799 + $0x68] sm:$0xff]
      %v4847 = vld [vmem:[%s799 + $0x70] sm:$0xff]
      %v4848 = vld [vmem:[%s799 + $0x78] sm:$0xff]
      %v4849 = vld [vmem:[%s799 + $0x80] sm:$0xff]
      %v4850 = vld [vmem:[%s799 + $0x88] sm:$0xff]
      %v4851 = vld [vmem:[%s799 + $0x90] sm:$0xff]
      %v4852 = vld [vmem:[%s799 + $0x98] sm:$0xff]
      %v4853 = vld [vmem:[%s799 + $0xa0] sm:$0xff]
      %v4854 = vld [vmem:[%s799 + $0xa8] sm:$0xff]
      %v4855 = vld [vmem:[%s799 + $0xb0] sm:$0xff]
      %v4856 = vld [vmem:[%s799 + $0xb8] sm:$0xff]
      %v4857 = vld [vmem:[%s799 + $0xc0] sm:$0xff]
      %v4858 = vld [vmem:[%s799 + $0xc8] sm:$0xff]
      %v4859 = vld [vmem:[%s799 + $0xd0] sm:$0xff]
      %v4860 = vld [vmem:[%s799 + $0xd8] sm:$0xff]
      %v4861 = vld [vmem:[%s799 + $0xe0] sm:$0xff]
      %v4862 = vld [vmem:[%s799 + $0xe8] sm:$0xff]
      %v4863 = vld [vmem:[%s799 + $0xf0] sm:$0xff]
      %v4864 = vld [vmem:[%s799 + $0xf8] sm:$0xff]
      %v4865 = vld [vmem:[%s803] sm:$0xf]
      %v4867 = vlaneseq
      %v4868 = vshrl.u32 %v4867, 7
      %v4869 = vsub.s32 0, %v4868
      %v4870 = vrot.slane %v4865, %v4869
      %v4871 = vlaneseq
      %v4872 = vshrl.u32 %v4871, 7
      %v4873 = vsub.s32 1, %v4872
      %v4874 = vrot.slane %v4865, %v4873
      %v4875 = vlaneseq
      %v4876 = vshrl.u32 %v4875, 7
      %v4877 = vsub.s32 2, %v4876
      %v4878 = vrot.slane %v4865, %v4877
      %v4879 = vlaneseq
      %v4880 = vshrl.u32 %v4879, 7
      %v4881 = vsub.s32 3, %v4880
      %v4882 = vrot.slane %v4865, %v4881
      %v4919 = vunpack.c.l.b16 %v4833
      %v4920 = vunpack.c.h.b16 %v4833
      %v4921 = vunpack.c.l.b16 %v4834
      %v4922 = vunpack.c.h.b16 %v4834
      %v4923 = vunpack.c.l.b16 %v4835
      %v4924 = vunpack.c.h.b16 %v4835
      %v4925 = vunpack.c.l.b16 %v4836
      %v4926 = vunpack.c.h.b16 %v4836
      %v4927 = vunpack.c.l.b16 %v4837
      %v4928 = vunpack.c.h.b16 %v4837
      %v4929 = vunpack.c.l.b16 %v4838
      %v4930 = vunpack.c.h.b16 %v4838
      %v4931 = vunpack.c.l.b16 %v4839
      %v4932 = vunpack.c.h.b16 %v4839
      %v4933 = vunpack.c.l.b16 %v4840
      %v4934 = vunpack.c.h.b16 %v4840
      %v4935 = vunpack.c.l.b16 %v4841
      %v4936 = vunpack.c.h.b16 %v4841
      %v4937 = vunpack.c.l.b16 %v4842
      %v4938 = vunpack.c.h.b16 %v4842
      %v4939 = vunpack.c.l.b16 %v4843
      %v4940 = vunpack.c.h.b16 %v4843
      %v4941 = vunpack.c.l.b16 %v4844
      %v4942 = vunpack.c.h.b16 %v4844
      %v4943 = vunpack.c.l.b16 %v4845
      %v4944 = vunpack.c.h.b16 %v4845
      %v4945 = vunpack.c.l.b16 %v4846
      %v4946 = vunpack.c.h.b16 %v4846
      %v4947 = vunpack.c.l.b16 %v4847
      %v4948 = vunpack.c.h.b16 %v4847
      %v4949 = vunpack.c.l.b16 %v4848
      %v4950 = vunpack.c.h.b16 %v4848
      %v4951 = vunpack.c.l.b16 %v4849
      %v4952 = vunpack.c.h.b16 %v4849
      %v4953 = vunpack.c.l.b16 %v4850
      %v4954 = vunpack.c.h.b16 %v4850
      %v4955 = vunpack.c.l.b16 %v4851
      %v4956 = vunpack.c.h.b16 %v4851
      %v4957 = vunpack.c.l.b16 %v4852
      %v4958 = vunpack.c.h.b16 %v4852
      %v4959 = vunpack.c.l.b16 %v4853
      %v4960 = vunpack.c.h.b16 %v4853
      %v4961 = vunpack.c.l.b16 %v4854
      %v4962 = vunpack.c.h.b16 %v4854
      %v4963 = vunpack.c.l.b16 %v4855
      %v4964 = vunpack.c.h.b16 %v4855
      %v4965 = vunpack.c.l.b16 %v4856
      %v4966 = vunpack.c.h.b16 %v4856
      %v4967 = vunpack.c.l.b16 %v4857
      %v4968 = vunpack.c.h.b16 %v4857
      %v4969 = vunpack.c.l.b16 %v4858
      %v4970 = vunpack.c.h.b16 %v4858
      %v4971 = vunpack.c.l.b16 %v4859
      %v4972 = vunpack.c.h.b16 %v4859
      %v4973 = vunpack.c.l.b16 %v4860
      %v4974 = vunpack.c.h.b16 %v4860
      %v4975 = vunpack.c.l.b16 %v4861
      %v4976 = vunpack.c.h.b16 %v4861
      %v4977 = vunpack.c.l.b16 %v4862
      %v4978 = vunpack.c.h.b16 %v4862
      %v4979 = vunpack.c.l.b16 %v4863
      %v4980 = vunpack.c.h.b16 %v4863
      %v4981 = vunpack.c.l.b16 %v4864
      %v4982 = vunpack.c.h.b16 %v4864
      %v4983 = vpack.c.b16 %v4923, %v4919
      %v4984 = vpack.c.b16 %v4924, %v4920
      %v4985 = vpack.c.b16 %v4925, %v4921
      %v4986 = vpack.c.b16 %v4926, %v4922
      %v4987 = vpack.c.b16 %v4931, %v4927
      %v4988 = vpack.c.b16 %v4932, %v4928
      %v4989 = vpack.c.b16 %v4933, %v4929
      %v4990 = vpack.c.b16 %v4934, %v4930
      %v4991 = vpack.c.b16 %v4939, %v4935
      %v4992 = vpack.c.b16 %v4940, %v4936
      %v4993 = vpack.c.b16 %v4941, %v4937
      %v4994 = vpack.c.b16 %v4942, %v4938
      %v4995 = vpack.c.b16 %v4947, %v4943
      %v4996 = vpack.c.b16 %v4948, %v4944
      %v4997 = vpack.c.b16 %v4949, %v4945
      %v4998 = vpack.c.b16 %v4950, %v4946
      %v4999 = vpack.c.b16 %v4955, %v4951
      %v5000 = vpack.c.b16 %v4956, %v4952
      %v5001 = vpack.c.b16 %v4957, %v4953
      %v5002 = vpack.c.b16 %v4958, %v4954
      %v5003 = vpack.c.b16 %v4963, %v4959
      %v5004 = vpack.c.b16 %v4964, %v4960
      %v5005 = vpack.c.b16 %v4965, %v4961
      %v5006 = vpack.c.b16 %v4966, %v4962
      %v5007 = vpack.c.b16 %v4971, %v4967
      %v5008 = vpack.c.b16 %v4972, %v4968
      %v5009 = vpack.c.b16 %v4973, %v4969
      %v5010 = vpack.c.b16 %v4974, %v4970
      %v5011 = vpack.c.b16 %v4979, %v4975
      %v5012 = vpack.c.b16 %v4980, %v4976
      %v5013 = vpack.c.b16 %v4981, %v4977
      %v5014 = vpack.c.b16 %v4982, %v4978
      %5047 = vmatprep.subr.bf16.mxu0 %v4984
      %5048 = vmatpush1.bf16.msra.mxu0 %v4983
      %5049 = vmatprep.subr.bf16.mxu0 %v4988
      %5050 = vmatpush1.bf16.msra.mxu0 %v4987
      %5051 = vmatprep.subr.bf16.mxu0 %v4992
      %5052 = vmatpush1.bf16.msra.mxu0 %v4991
      %5053 = vmatprep.subr.bf16.mxu0 %v4996
      %5054 = vmatpush1.bf16.msra.mxu0 %v4995
      %5055 = vmatprep.subr.bf16.mxu0 %v5000
      %5056 = vmatpush1.bf16.msra.mxu0 %v4999
      %5057 = vmatprep.subr.bf16.mxu0 %v5004
      %5058 = vmatpush1.bf16.msra.mxu0 %v5003
      %5059 = vmatprep.subr.bf16.mxu0 %v5008
      %5060 = vmatpush1.bf16.msra.mxu0 %v5007
      %5061 = vmatprep.subr.bf16.mxu0 %v5012
      %5062 = vmatpush1.bf16.msra.mxu0 %v5011
      %5063 = vmatprep.subr.bf16.mxu0 0
      %5064 = vmatpush1.bf16.msra.mxu0 0
      %5065 = vmatprep.subr.bf16.mxu0 0
      %5066 = vmatpush1.bf16.msra.mxu0 0
      %5067 = vmatprep.subr.bf16.mxu0 0
      %5068 = vmatpush1.bf16.msra.mxu0 0
      %5069 = vmatprep.subr.bf16.mxu0 0
      %5070 = vmatpush1.bf16.msra.mxu0 0
      %5071 = vmatprep.subr.bf16.mxu0 0
      %5072 = vmatpush1.bf16.msra.mxu0 0
      %5073 = vmatprep.subr.bf16.mxu0 0
      %5074 = vmatpush1.bf16.msra.mxu0 0
      %5075 = vmatprep.subr.bf16.mxu0 0
      %5076 = vmatpush1.bf16.msra.mxu0 0
      %5077 = vmatprep.subr.bf16.mxu0 0
      %5078 = vmatpush1.bf16.msra.mxu0 0
      %5079 = vmatprep.mubr.bf16.mxu0 0
      %5080 = vmatmul.mubr.bf16.gmra.mrb[0].mxu0 %v4825
      %v5081 = vpop.f32.mrb[0].mxu0
      %v5082 = vadd.f32 %v4870, %v5081
      %v5083 = vpop.f32.mrb[0].mxu0
      %v5084 = vadd.f32 %v4874, %v5083
      %v5085 = vpop.f32.mrb[0].mxu0
      %v5086 = vadd.f32 %v4870, %v5085
      %v5087 = vpop.f32.mrb[0].mxu0
      %v5088 = vadd.f32 %v4874, %v5087
      %5089 = vmatprep.mubr.bf16.mxu0 0
      %5090 = vmatmul.mubr.bf16.gmra.mrb[0].mxu0 %v4826
      %v5091 = vpop.f32.mrb[0].mxu0
      %v5092 = vadd.f32 %v4870, %v5091
      %v5093 = vpop.f32.mrb[0].mxu0
      %v5094 = vadd.f32 %v4874, %v5093
      %v5095 = vpop.f32.mrb[0].mxu0
      %v5096 = vadd.f32 %v4870, %v5095
      %v5097 = vpop.f32.mrb[0].mxu0
      %v5098 = vadd.f32 %v4874, %v5097
      %5099 = vmatprep.mubr.bf16.mxu0 0
      %5100 = vmatmul.mubr.bf16.gmra.mrb[0].mxu0 %v4827
      %v5101 = vpop.f32.mrb[0].mxu0
      %v5102 = vadd.f32 %v4870, %v5101
      %v5103 = vpop.f32.mrb[0].mxu0
      %v5104 = vadd.f32 %v4874, %v5103
      %v5105 = vpop.f32.mrb[0].mxu0
      %v5106 = vadd.f32 %v4870, %v5105
      %v5107 = vpop.f32.mrb[0].mxu0
      %v5108 = vadd.f32 %v4874, %v5107
      %5109 = vmatprep.mubr.bf16.mxu0 0
      %5110 = vmatmul.mubr.bf16.gmra.mrb[0].mxu0 %v4828
      %v5111 = vpop.f32.mrb[0].mxu0
      %v5112 = vadd.f32 %v4870, %v5111
      %v5113 = vpop.f32.mrb[0].mxu0
      %v5114 = vadd.f32 %v4874, %v5113
      %v5115 = vpop.f32.mrb[0].mxu0
      %v5116 = vadd.f32 %v4870, %v5115
      %v5117 = vpop.f32.mrb[0].mxu0
      %v5118 = vadd.f32 %v4874, %v5117
      %5119 = vmatprep.mubr.bf16.mxu0 0
      %5120 = vmatmul.mubr.bf16.gmra.mrb[0].mxu0 %v4829
      %v5121 = vpop.f32.mrb[0].mxu0
      %v5122 = vadd.f32 %v4870, %v5121
      %v5123 = vpop.f32.mrb[0].mxu0
      %v5124 = vadd.f32 %v4874, %v5123
      %v5125 = vpop.f32.mrb[0].mxu0
      %v5126 = vadd.f32 %v4870, %v5125
      %v5127 = vpop.f32.mrb[0].mxu0
      %v5128 = vadd.f32 %v4874, %v5127
      %5129 = vmatprep.mubr.bf16.mxu0 0
      %5130 = vmatmul.mubr.bf16.gmra.mrb[0].mxu0 %v4830
      %v5131 = vpop.f32.mrb[0].mxu0
      %v5132 = vadd.f32 %v4870, %v5131
      %v5133 = vpop.f32.mrb[0].mxu0
      %v5134 = vadd.f32 %v4874, %v5133
      %v5135 = vpop.f32.mrb[0].mxu0
      %v5136 = vadd.f32 %v4870, %v5135
      %v5137 = vpop.f32.mrb[0].mxu0
      %v5138 = vadd.f32 %v4874, %v5137
      %5139 = vmatprep.mubr.bf16.mxu0 0
      %5140 = vmatmul.mubr.bf16.gmra.mrb[0].mxu0 %v4831
      %v5141 = vpop.f32.mrb[0].mxu0
      %v5142 = vadd.f32 %v4870, %v5141
      %v5143 = vpop.f32.mrb[0].mxu0
      %v5144 = vadd.f32 %v4874, %v5143
      %v5145 = vpop.f32.mrb[0].mxu0
      %v5146 = vadd.f32 %v4870, %v5145
      %v5147 = vpop.f32.mrb[0].mxu0
      %v5148 = vadd.f32 %v4874, %v5147
      %5149 = vmatprep.mubr.bf16.mxu0 0
      %5150 = vmatmul.mubr.bf16.gmra.mrb[0].mxu0 %v4832
      %v5151 = vpop.f32.mrb[0].mxu0
      %v5152 = vadd.f32 %v4870, %v5151
      %v5153 = vpop.f32.mrb[0].mxu0
      %v5154 = vadd.f32 %v4874, %v5153
      %v5155 = vpop.f32.mrb[0].mxu0
      %v5156 = vadd.f32 %v4870, %v5155
      %v5157 = vpop.f32.mrb[0].mxu0
      %v5158 = vadd.f32 %v4874, %v5157
      %5159 = vdwg.mxu0
      %5160 = vmatprep.subr.bf16.mxu0 %v4986
      %5161 = vmatpush1.bf16.msra.mxu0 %v4985
      %5162 = vmatprep.subr.bf16.mxu0 %v4990
      %5163 = vmatpush1.bf16.msra.mxu0 %v4989
      %5164 = vmatprep.subr.bf16.mxu0 %v4994
      %5165 = vmatpush1.bf16.msra.mxu0 %v4993
      %5166 = vmatprep.subr.bf16.mxu0 %v4998
      %5167 = vmatpush1.bf16.msra.mxu0 %v4997
      %5168 = vmatprep.subr.bf16.mxu0 %v5002
      %5169 = vmatpush1.bf16.msra.mxu0 %v5001
      %5170 = vmatprep.subr.bf16.mxu0 %v5006
      %5171 = vmatpush1.bf16.msra.mxu0 %v5005
      %5172 = vmatprep.subr.bf16.mxu0 %v5010
      %5173 = vmatpush1.bf16.msra.mxu0 %v5009
      %5174 = vmatprep.subr.bf16.mxu0 %v5014
      %5175 = vmatpush1.bf16.msra.mxu0 %v5013
      %5176 = vmatprep.subr.bf16.mxu0 0
      %5177 = vmatpush1.bf16.msra.mxu0 0
      %5178 = vmatprep.subr.bf16.mxu0 0
      %5179 = vmatpush1.bf16.msra.mxu0 0
      %5180 = vmatprep.subr.bf16.mxu0 0
      %5181 = vmatpush1.bf16.msra.mxu0 0
      %5182 = vmatprep.subr.bf16.mxu0 0
      %5183 = vmatpush1.bf16.msra.mxu0 0
      %5184 = vmatprep.subr.bf16.mxu0 0
      %5185 = vmatpush1.bf16.msra.mxu0 0
      %5186 = vmatprep.subr.bf16.mxu0 0
      %5187 = vmatpush1.bf16.msra.mxu0 0
      %5188 = vmatprep.subr.bf16.mxu0 0
      %5189 = vmatpush1.bf16.msra.mxu0 0
      %5190 = vmatprep.subr.bf16.mxu0 0
      %5191 = vmatpush1.bf16.msra.mxu0 0
      %5192 = vmatprep.mubr.bf16.mxu0 0
      %5193 = vmatmul.mubr.bf16.gmra.mrb[0].mxu0 %v4825
      %v5194 = vpop.f32.mrb[0].mxu0
      %v5195 = vadd.f32 %v4878, %v5194
      %v5196 = vpop.f32.mrb[0].mxu0
      %v5197 = vadd.f32 %v4882, %v5196
      %v5198 = vpop.f32.mrb[0].mxu0
      %v5199 = vadd.f32 %v4878, %v5198
      %v5200 = vpop.f32.mrb[0].mxu0
      %v5201 = vadd.f32 %v4882, %v5200
      %5202 = vmatprep.mubr.bf16.mxu0 0
      %5203 = vmatmul.mubr.bf16.gmra.mrb[0].mxu0 %v4826
      %v5204 = vpop.f32.mrb[0].mxu0
      %v5205 = vadd.f32 %v4878, %v5204
      %v5206 = vpop.f32.mrb[0].mxu0
      %v5207 = vadd.f32 %v4882, %v5206
      %v5208 = vpop.f32.mrb[0].mxu0
      %v5209 = vadd.f32 %v4878, %v5208
      %v5210 = vpop.f32.mrb[0].mxu0
      %v5211 = vadd.f32 %v4882, %v5210
      %5212 = vmatprep.mubr.bf16.mxu0 0
      %5213 = vmatmul.mubr.bf16.gmra.mrb[0].mxu0 %v4827
      %v5214 = vpop.f32.mrb[0].mxu0
      %v5215 = vadd.f32 %v4878, %v5214
      %v5216 = vpop.f32.mrb[0].mxu0
      %v5217 = vadd.f32 %v4882, %v5216
      %v5218 = vpop.f32.mrb[0].mxu0
      %v5219 = vadd.f32 %v4878, %v5218
      %v5220 = vpop.f32.mrb[0].mxu0
      %v5221 = vadd.f32 %v4882, %v5220
      %5222 = vmatprep.mubr.bf16.mxu0 0
      %5223 = vmatmul.mubr.bf16.gmra.mrb[0].mxu0 %v4828
      %v5224 = vpop.f32.mrb[0].mxu0
      %v5225 = vadd.f32 %v4878, %v5224
      %v5226 = vpop.f32.mrb[0].mxu0
      %v5227 = vadd.f32 %v4882, %v5226
      %v5228 = vpop.f32.mrb[0].mxu0
      %v5229 = vadd.f32 %v4878, %v5228
      %v5230 = vpop.f32.mrb[0].mxu0
      %v5231 = vadd.f32 %v4882, %v5230
      %5232 = vmatprep.mubr.bf16.mxu0 0
      %5233 = vmatmul.mubr.bf16.gmra.mrb[0].mxu0 %v4829
      %v5234 = vpop.f32.mrb[0].mxu0
      %v5235 = vadd.f32 %v4878, %v5234
      %v5236 = vpop.f32.mrb[0].mxu0
      %v5237 = vadd.f32 %v4882, %v5236
      %v5238 = vpop.f32.mrb[0].mxu0
      %v5239 = vadd.f32 %v4878, %v5238
      %v5240 = vpop.f32.mrb[0].mxu0
      %v5241 = vadd.f32 %v4882, %v5240
      %5242 = vmatprep.mubr.bf16.mxu0 0
      %5243 = vmatmul.mubr.bf16.gmra.mrb[0].mxu0 %v4830
      %v5244 = vpop.f32.mrb[0].mxu0
      %v5245 = vadd.f32 %v4878, %v5244
      %v5246 = vpop.f32.mrb[0].mxu0
      %v5247 = vadd.f32 %v4882, %v5246
      %v5248 = vpop.f32.mrb[0].mxu0
      %v5249 = vadd.f32 %v4878, %v5248
      %v5250 = vpop.f32.mrb[0].mxu0
      %v5251 = vadd.f32 %v4882, %v5250
      %5252 = vmatprep.mubr.bf16.mxu0 0
      %5253 = vmatmul.mubr.bf16.gmra.mrb[0].mxu0 %v4831
      %v5254 = vpop.f32.mrb[0].mxu0
      %v5255 = vadd.f32 %v4878, %v5254
      %v5256 = vpop.f32.mrb[0].mxu0
      %v5257 = vadd.f32 %v4882, %v5256
      %v5258 = vpop.f32.mrb[0].mxu0
      %v5259 = vadd.f32 %v4878, %v5258
      %v5260 = vpop.f32.mrb[0].mxu0
      %v5261 = vadd.f32 %v4882, %v5260
      %5262 = vmatprep.mubr.bf16.mxu0 0
      %5263 = vmatmul.mubr.bf16.gmra.mrb[0].mxu0 %v4832
      %v5264 = vpop.f32.mrb[0].mxu0
      %v5265 = vadd.f32 %v4878, %v5264
      %v5266 = vpop.f32.mrb[0].mxu0
      %v5267 = vadd.f32 %v4882, %v5266
      %v5268 = vpop.f32.mrb[0].mxu0
      %v5269 = vadd.f32 %v4878, %v5268
      %v5270 = vpop.f32.mrb[0].mxu0
      %v5271 = vadd.f32 %v4882, %v5270
      %5272 = vdwg.mxu0
      %v5273 = vpack.c.bf16 %v5086, %v5082
      %v5274 = vpack.c.bf16 %v5088, %v5084
      %v5275 = vpack.c.bf16 %v5199, %v5195
      %v5276 = vpack.c.bf16 %v5201, %v5197
      %v5277 = vpack.c.bf16 %v5096, %v5092
      %v5278 = vpack.c.bf16 %v5098, %v5094
      %v5279 = vpack.c.bf16 %v5209, %v5205
      %v5280 = vpack.c.bf16 %v5211, %v5207
      %v5281 = vpack.c.bf16 %v5106, %v5102
      %v5282 = vpack.c.bf16 %v5108, %v5104
      %v5283 = vpack.c.bf16 %v5219, %v5215
      %v5284 = vpack.c.bf16 %v5221, %v5217
      %v5285 = vpack.c.bf16 %v5116, %v5112
      %v5286 = vpack.c.bf16 %v5118, %v5114
      %v5287 = vpack.c.bf16 %v5229, %v5225
      %v5288 = vpack.c.bf16 %v5231, %v5227
      %v5289 = vpack.c.bf16 %v5126, %v5122
      %v5290 = vpack.c.bf16 %v5128, %v5124
      %v5291 = vpack.c.bf16 %v5239, %v5235
      %v5292 = vpack.c.bf16 %v5241, %v5237
      %v5293 = vpack.c.bf16 %v5136, %v5132
      %v5294 = vpack.c.bf16 %v5138, %v5134
      %v5295 = vpack.c.bf16 %v5249, %v5245
      %v5296 = vpack.c.bf16 %v5251, %v5247
      %v5297 = vpack.c.bf16 %v5146, %v5142
      %v5298 = vpack.c.bf16 %v5148, %v5144
      %v5299 = vpack.c.bf16 %v5259, %v5255
      %v5300 = vpack.c.bf16 %v5261, %v5257
      %v5301 = vpack.c.bf16 %v5156, %v5152
      %v5302 = vpack.c.bf16 %v5158, %v5154
      %v5303 = vpack.c.bf16 %v5269, %v5265
      %v5304 = vpack.c.bf16 %v5271, %v5267
      %v5305 = vmul.bf16 %v5273, 1071267802
      %v5306 = vmul.bf16 %v5274, 1071267802
      %v5307 = vmul.bf16 %v5275, 1071267802
      %v5308 = vmul.bf16 %v5276, 1071267802
      %v5309 = vmul.bf16 %v5277, 1071267802
      %v5310 = vmul.bf16 %v5278, 1071267802
      %v5311 = vmul.bf16 %v5279, 1071267802
      %v5312 = vmul.bf16 %v5280, 1071267802
      %v5313 = vmul.bf16 %v5281, 1071267802
      %v5314 = vmul.bf16 %v5282, 1071267802
      %v5315 = vmul.bf16 %v5283, 1071267802
      %v5316 = vmul.bf16 %v5284, 1071267802
      %v5317 = vmul.bf16 %v5285, 1071267802
      %v5318 = vmul.bf16 %v5286, 1071267802
      %v5319 = vmul.bf16 %v5287, 1071267802
      %v5320 = vmul.bf16 %v5288, 1071267802
      %v5321 = vmul.bf16 %v5289, 1071267802
      %v5322 = vmul.bf16 %v5290, 1071267802
      %v5323 = vmul.bf16 %v5291, 1071267802
      %v5324 = vmul.bf16 %v5292, 1071267802
      %v5325 = vmul.bf16 %v5293, 1071267802
      %v5326 = vmul.bf16 %v5294, 1071267802
      %v5327 = vmul.bf16 %v5295, 1071267802
      %v5328 = vmul.bf16 %v5296, 1071267802
      %v5329 = vmul.bf16 %v5297, 1071267802
      %v5330 = vmul.bf16 %v5298, 1071267802
      %v5331 = vmul.bf16 %v5299, 1071267802
      %v5332 = vmul.bf16 %v5300, 1071267802
      %v5333 = vmul.bf16 %v5301, 1071267802
      %v5334 = vmul.bf16 %v5302, 1071267802
      %v5335 = vmul.bf16 %v5303, 1071267802
      %v5336 = vmul.bf16 %v5304, 1071267802
      %v5337 = vxor.u32 %v5305, 2147516416
      %v5338 = vxor.u32 %v5306, 2147516416
      %v5339 = vxor.u32 %v5307, 2147516416
      %v5340 = vxor.u32 %v5308, 2147516416
      %v5341 = vxor.u32 %v5309, 2147516416
      %v5342 = vxor.u32 %v5310, 2147516416
      %v5343 = vxor.u32 %v5311, 2147516416
      %v5344 = vxor.u32 %v5312, 2147516416
      %v5345 = vxor.u32 %v5313, 2147516416
      %v5346 = vxor.u32 %v5314, 2147516416
      %v5347 = vxor.u32 %v5315, 2147516416
      %v5348 = vxor.u32 %v5316, 2147516416
      %v5349 = vxor.u32 %v5317, 2147516416
      %v5350 = vxor.u32 %v5318, 2147516416
      %v5351 = vxor.u32 %v5319, 2147516416
      %v5352 = vxor.u32 %v5320, 2147516416
      %v5353 = vxor.u32 %v5321, 2147516416
      %v5354 = vxor.u32 %v5322, 2147516416
      %v5355 = vxor.u32 %v5323, 2147516416
      %v5356 = vxor.u32 %v5324, 2147516416
      %v5357 = vxor.u32 %v5325, 2147516416
      %v5358 = vxor.u32 %v5326, 2147516416
      %v5359 = vxor.u32 %v5327, 2147516416
      %v5360 = vxor.u32 %v5328, 2147516416
      %v5361 = vxor.u32 %v5329, 2147516416
      %v5362 = vxor.u32 %v5330, 2147516416
      %v5363 = vxor.u32 %v5331, 2147516416
      %v5364 = vxor.u32 %v5332, 2147516416
      %v5365 = vxor.u32 %v5333, 2147516416
      %v5366 = vxor.u32 %v5334, 2147516416
      %v5367 = vxor.u32 %v5335, 2147516416
      %v5368 = vxor.u32 %v5336, 2147516416
      %v5370 = vmul.bf16 %v5337, 1069105081
      %v5371 = vpow.bf16.pop %v5370
      %v5373 = vmul.bf16 %v5338, 1069105081
      %v5374 = vpow.bf16.pop %v5373
      %v5376 = vmul.bf16 %v5339, 1069105081
      %v5377 = vpow.bf16.pop %v5376
      %v5379 = vmul.bf16 %v5340, 1069105081
      %v5380 = vpow.bf16.pop %v5379
      %v5382 = vmul.bf16 %v5341, 1069105081
      %v5383 = vpow.bf16.pop %v5382
      %v5385 = vmul.bf16 %v5342, 1069105081
      %v5386 = vpow.bf16.pop %v5385
      %v5388 = vmul.bf16 %v5343, 1069105081
      %v5389 = vpow.bf16.pop %v5388
      %v5391 = vmul.bf16 %v5344, 1069105081
      %v5392 = vpow.bf16.pop %v5391
      %v5394 = vmul.bf16 %v5345, 1069105081
      %v5395 = vpow.bf16.pop %v5394
      %v5397 = vmul.bf16 %v5346, 1069105081
      %v5398 = vpow.bf16.pop %v5397
      %v5400 = vmul.bf16 %v5347, 1069105081
      %v5401 = vpow.bf16.pop %v5400
      %v5403 = vmul.bf16 %v5348, 1069105081
      %v5404 = vpow.bf16.pop %v5403
      %v5406 = vmul.bf16 %v5349, 1069105081
      %v5407 = vpow.bf16.pop %v5406
      %v5409 = vmul.bf16 %v5350, 1069105081
      %v5410 = vpow.bf16.pop %v5409
      %v5412 = vmul.bf16 %v5351, 1069105081
      %v5413 = vpow.bf16.pop %v5412
      %v5415 = vmul.bf16 %v5352, 1069105081
      %v5416 = vpow.bf16.pop %v5415
      %v5418 = vmul.bf16 %v5353, 1069105081
      %v5419 = vpow.bf16.pop %v5418
      %v5421 = vmul.bf16 %v5354, 1069105081
      %v5422 = vpow.bf16.pop %v5421
      %v5424 = vmul.bf16 %v5355, 1069105081
      %v5425 = vpow.bf16.pop %v5424
      %v5427 = vmul.bf16 %v5356, 1069105081
      %v5428 = vpow.bf16.pop %v5427
      %v5430 = vmul.bf16 %v5357, 1069105081
      %v5431 = vpow.bf16.pop %v5430
      %v5433 = vmul.bf16 %v5358, 1069105081
      %v5434 = vpow.bf16.pop %v5433
      %v5436 = vmul.bf16 %v5359, 1069105081
      %v5437 = vpow.bf16.pop %v5436
      %v5439 = vmul.bf16 %v5360, 1069105081
      %v5440 = vpow.bf16.pop %v5439
      %v5442 = vmul.bf16 %v5361, 1069105081
      %v5443 = vpow.bf16.pop %v5442
      %v5445 = vmul.bf16 %v5362, 1069105081
      %v5446 = vpow.bf16.pop %v5445
      %v5448 = vmul.bf16 %v5363, 1069105081
      %v5449 = vpow.bf16.pop %v5448
      %v5451 = vmul.bf16 %v5364, 1069105081
      %v5452 = vpow.bf16.pop %v5451
      %v5454 = vmul.bf16 %v5365, 1069105081
      %v5455 = vpow.bf16.pop %v5454
      %v5457 = vmul.bf16 %v5366, 1069105081
      %v5458 = vpow.bf16.pop %v5457
      %v5460 = vmul.bf16 %v5367, 1069105081
      %v5461 = vpow.bf16.pop %v5460
      %v5463 = vmul.bf16 %v5368, 1069105081
      %v5464 = vpow.bf16.pop %v5463
      %v5465 = vadd.bf16 %v5371, 1065369472
      %v5466 = vadd.bf16 %v5374, 1065369472
      %v5467 = vadd.bf16 %v5377, 1065369472
      %v5468 = vadd.bf16 %v5380, 1065369472
      %v5469 = vadd.bf16 %v5383, 1065369472
      %v5470 = vadd.bf16 %v5386, 1065369472
      %v5471 = vadd.bf16 %v5389, 1065369472
      %v5472 = vadd.bf16 %v5392, 1065369472
      %v5473 = vadd.bf16 %v5395, 1065369472
      %v5474 = vadd.bf16 %v5398, 1065369472
      %v5475 = vadd.bf16 %v5401, 1065369472
      %v5476 = vadd.bf16 %v5404, 1065369472
      %v5477 = vadd.bf16 %v5407, 1065369472
      %v5478 = vadd.bf16 %v5410, 1065369472
      %v5479 = vadd.bf16 %v5413, 1065369472
      %v5480 = vadd.bf16 %v5416, 1065369472
      %v5481 = vadd.bf16 %v5419, 1065369472
      %v5482 = vadd.bf16 %v5422, 1065369472
      %v5483 = vadd.bf16 %v5425, 1065369472
      %v5484 = vadd.bf16 %v5428, 1065369472
      %v5485 = vadd.bf16 %v5431, 1065369472
      %v5486 = vadd.bf16 %v5434, 1065369472
      %v5487 = vadd.bf16 %v5437, 1065369472
      %v5488 = vadd.bf16 %v5440, 1065369472
      %v5489 = vadd.bf16 %v5443, 1065369472
      %v5490 = vadd.bf16 %v5446, 1065369472
      %v5491 = vadd.bf16 %v5449, 1065369472
      %v5492 = vadd.bf16 %v5452, 1065369472
      %v5493 = vadd.bf16 %v5455, 1065369472
      %v5494 = vadd.bf16 %v5458, 1065369472
      %v5495 = vadd.bf16 %v5461, 1065369472
      %v5496 = vadd.bf16 %v5464, 1065369472
      %v5497 = vrcp.bf16.pop %v5465
      %v5498 = vmul.bf16 1065369472, %v5497
      %v5499 = vrcp.bf16.pop %v5466
      %v5500 = vmul.bf16 1065369472, %v5499
      %v5501 = vrcp.bf16.pop %v5467
      %v5502 = vmul.bf16 1065369472, %v5501
      %v5503 = vrcp.bf16.pop %v5468
      %v5504 = vmul.bf16 1065369472, %v5503
      %v5505 = vrcp.bf16.pop %v5469
      %v5506 = vmul.bf16 1065369472, %v5505
      %v5507 = vrcp.bf16.pop %v5470
      %v5508 = vmul.bf16 1065369472, %v5507
      %v5509 = vrcp.bf16.pop %v5471
      %v5510 = vmul.bf16 1065369472, %v5509
      %v5511 = vrcp.bf16.pop %v5472
      %v5512 = vmul.bf16 1065369472, %v5511
      %v5513 = vrcp.bf16.pop %v5473
      %v5514 = vmul.bf16 1065369472, %v5513
      %v5515 = vrcp.bf16.pop %v5474
      %v5516 = vmul.bf16 1065369472, %v5515
      %v5517 = vrcp.bf16.pop %v5475
      %v5518 = vmul.bf16 1065369472, %v5517
      %v5519 = vrcp.bf16.pop %v5476
      %v5520 = vmul.bf16 1065369472, %v5519
      %v5521 = vrcp.bf16.pop %v5477
      %v5522 = vmul.bf16 1065369472, %v5521
      %v5523 = vrcp.bf16.pop %v5478
      %v5524 = vmul.bf16 1065369472, %v5523
      %v5525 = vrcp.bf16.pop %v5479
      %v5526 = vmul.bf16 1065369472, %v5525
      %v5527 = vrcp.bf16.pop %v5480
      %v5528 = vmul.bf16 1065369472, %v5527
      %v5529 = vrcp.bf16.pop %v5481
      %v5530 = vmul.bf16 1065369472, %v5529
      %v5531 = vrcp.bf16.pop %v5482
      %v5532 = vmul.bf16 1065369472, %v5531
      %v5533 = vrcp.bf16.pop %v5483
      %v5534 = vmul.bf16 1065369472, %v5533
      %v5535 = vrcp.bf16.pop %v5484
      %v5536 = vmul.bf16 1065369472, %v5535
      %v5537 = vrcp.bf16.pop %v5485
      %v5538 = vmul.bf16 1065369472, %v5537
      %v5539 = vrcp.bf16.pop %v5486
      %v5540 = vmul.bf16 1065369472, %v5539
      %v5541 = vrcp.bf16.pop %v5487
      %v5542 = vmul.bf16 1065369472, %v5541
      %v5543 = vrcp.bf16.pop %v5488
      %v5544 = vmul.bf16 1065369472, %v5543
      %v5545 = vrcp.bf16.pop %v5489
      %v5546 = vmul.bf16 1065369472, %v5545
      %v5547 = vrcp.bf16.pop %v5490
      %v5548 = vmul.bf16 1065369472, %v5547
      %v5549 = vrcp.bf16.pop %v5491
      %v5550 = vmul.bf16 1065369472, %v5549
      %v5551 = vrcp.bf16.pop %v5492
      %v5552 = vmul.bf16 1065369472, %v5551
      %v5553 = vrcp.bf16.pop %v5493
      %v5554 = vmul.bf16 1065369472, %v5553
      %v5555 = vrcp.bf16.pop %v5494
      %v5556 = vmul.bf16 1065369472, %v5555
      %v5557 = vrcp.bf16.pop %v5495
      %v5558 = vmul.bf16 1065369472, %v5557
      %v5559 = vrcp.bf16.pop %v5496
      %v5560 = vmul.bf16 1065369472, %v5559
      %v5561 = vmul.bf16 %v5273, %v5498
      %v5562 = vmul.bf16 %v5274, %v5500
      %v5563 = vmul.bf16 %v5275, %v5502
      %v5564 = vmul.bf16 %v5276, %v5504
      %v5565 = vmul.bf16 %v5277, %v5506
      %v5566 = vmul.bf16 %v5278, %v5508
      %v5567 = vmul.bf16 %v5279, %v5510
      %v5568 = vmul.bf16 %v5280, %v5512
      %v5569 = vmul.bf16 %v5281, %v5514
      %v5570 = vmul.bf16 %v5282, %v5516
      %v5571 = vmul.bf16 %v5283, %v5518
      %v5572 = vmul.bf16 %v5284, %v5520
      %v5573 = vmul.bf16 %v5285, %v5522
      %v5574 = vmul.bf16 %v5286, %v5524
      %v5575 = vmul.bf16 %v5287, %v5526
      %v5576 = vmul.bf16 %v5288, %v5528
      %v5577 = vmul.bf16 %v5289, %v5530
      %v5578 = vmul.bf16 %v5290, %v5532
      %v5579 = vmul.bf16 %v5291, %v5534
      %v5580 = vmul.bf16 %v5292, %v5536
      %v5581 = vmul.bf16 %v5293, %v5538
      %v5582 = vmul.bf16 %v5294, %v5540
      %v5583 = vmul.bf16 %v5295, %v5542
      %v5584 = vmul.bf16 %v5296, %v5544
      %v5585 = vmul.bf16 %v5297, %v5546
      %v5586 = vmul.bf16 %v5298, %v5548
      %v5587 = vmul.bf16 %v5299, %v5550
      %v5588 = vmul.bf16 %v5300, %v5552
      %v5589 = vmul.bf16 %v5301, %v5554
      %v5590 = vmul.bf16 %v5302, %v5556
      %v5591 = vmul.bf16 %v5303, %v5558
      %v5592 = vmul.bf16 %v5304, %v5560
      %v5593 = vld [vmem:[%s808] sm:$0xf]
      %v5594 = vld [vmem:[%s808 + $0x4] sm:$0xf]
      %v5595 = vld [vmem:[%s808 + $0x8] sm:$0xf]
      %v5596 = vld [vmem:[%s808 + $0xc] sm:$0xf]
      %v5597 = vld [vmem:[%s808 + $0x10] sm:$0xf]
      %v5598 = vld [vmem:[%s808 + $0x14] sm:$0xf]
      %v5599 = vld [vmem:[%s808 + $0x18] sm:$0xf]
      %v5600 = vld [vmem:[%s808 + $0x1c] sm:$0xf]
      %v5601 = vld [vmem:[%s808 + $0x20] sm:$0xf]
      %v5602 = vld [vmem:[%s808 + $0x24] sm:$0xf]
      %v5603 = vld [vmem:[%s808 + $0x28] sm:$0xf]
      %v5604 = vld [vmem:[%s808 + $0x2c] sm:$0xf]
      %v5605 = vld [vmem:[%s808 + $0x30] sm:$0xf]
      %v5606 = vld [vmem:[%s808 + $0x34] sm:$0xf]
      %v5607 = vld [vmem:[%s808 + $0x38] sm:$0xf]
      %v5608 = vld [vmem:[%s808 + $0x3c] sm:$0xf]
      %v5609 = vld [vmem:[%s808 + $0x40] sm:$0xf]
      %v5610 = vld [vmem:[%s808 + $0x44] sm:$0xf]
      %v5611 = vld [vmem:[%s808 + $0x48] sm:$0xf]
      %v5612 = vld [vmem:[%s808 + $0x4c] sm:$0xf]
      %v5613 = vld [vmem:[%s808 + $0x50] sm:$0xf]
      %v5614 = vld [vmem:[%s808 + $0x54] sm:$0xf]
      %v5615 = vld [vmem:[%s808 + $0x58] sm:$0xf]
      %v5616 = vld [vmem:[%s808 + $0x5c] sm:$0xf]
      %v5617 = vld [vmem:[%s808 + $0x60] sm:$0xf]
      %v5618 = vld [vmem:[%s808 + $0x64] sm:$0xf]
      %v5619 = vld [vmem:[%s808 + $0x68] sm:$0xf]
      %v5620 = vld [vmem:[%s808 + $0x6c] sm:$0xf]
      %v5621 = vld [vmem:[%s808 + $0x70] sm:$0xf]
      %v5622 = vld [vmem:[%s808 + $0x74] sm:$0xf]
      %v5623 = vld [vmem:[%s808 + $0x78] sm:$0xf]
      %v5624 = vld [vmem:[%s808 + $0x7c] sm:$0xf]
      %v5625 = vld [vmem:[%s808 + $0x80] sm:$0xf]
      %v5626 = vld [vmem:[%s808 + $0x84] sm:$0xf]
      %v5627 = vld [vmem:[%s808 + $0x88] sm:$0xf]
      %v5628 = vld [vmem:[%s808 + $0x8c] sm:$0xf]
      %v5629 = vld [vmem:[%s808 + $0x90] sm:$0xf]
      %v5630 = vld [vmem:[%s808 + $0x94] sm:$0xf]
      %v5631 = vld [vmem:[%s808 + $0x98] sm:$0xf]
      %v5632 = vld [vmem:[%s808 + $0x9c] sm:$0xf]
      %v5633 = vld [vmem:[%s808 + $0xa0] sm:$0xf]
      %v5634 = vld [vmem:[%s808 + $0xa4] sm:$0xf]
      %v5635 = vld [vmem:[%s808 + $0xa8] sm:$0xf]
      %v5636 = vld [vmem:[%s808 + $0xac] sm:$0xf]
      %v5637 = vld [vmem:[%s808 + $0xb0] sm:$0xf]
      %v5638 = vld [vmem:[%s808 + $0xb4] sm:$0xf]
      %v5639 = vld [vmem:[%s808 + $0xb8] sm:$0xf]
      %v5640 = vld [vmem:[%s808 + $0xbc] sm:$0xf]
      %v5641 = vld [vmem:[%s808 + $0xc0] sm:$0xf]
      %v5642 = vld [vmem:[%s808 + $0xc4] sm:$0xf]
      %v5643 = vld [vmem:[%s808 + $0xc8] sm:$0xf]
      %v5644 = vld [vmem:[%s808 + $0xcc] sm:$0xf]
      %v5645 = vld [vmem:[%s808 + $0xd0] sm:$0xf]
      %v5646 = vld [vmem:[%s808 + $0xd4] sm:$0xf]
      %v5647 = vld [vmem:[%s808 + $0xd8] sm:$0xf]
      %v5648 = vld [vmem:[%s808 + $0xdc] sm:$0xf]
      %v5649 = vld [vmem:[%s808 + $0xe0] sm:$0xf]
      %v5650 = vld [vmem:[%s808 + $0xe4] sm:$0xf]
      %v5651 = vld [vmem:[%s808 + $0xe8] sm:$0xf]
      %v5652 = vld [vmem:[%s808 + $0xec] sm:$0xf]
      %v5653 = vld [vmem:[%s808 + $0xf0] sm:$0xf]
      %v5654 = vld [vmem:[%s808 + $0xf4] sm:$0xf]
      %v5655 = vld [vmem:[%s808 + $0xf8] sm:$0xf]
      %v5656 = vld [vmem:[%s808 + $0xfc] sm:$0xf]
      %v5657 = vld [vmem:[%s811] sm:$0x1]
      %v5659 = vlaneseq
      %v5660 = vshrl.u32 %v5659, 7
      %v5661 = vsub.s32 0, %v5660
      %v5662 = vrot.slane %v5657, %v5661
      %v5728 = vunpack.c.l.b16 %v5593
      %v5729 = vunpack.c.l.b16 %v5594
      %v5730 = vunpack.c.l.b16 %v5595
      %v5731 = vunpack.c.l.b16 %v5596
      %v5732 = vunpack.c.l.b16 %v5597
      %v5733 = vunpack.c.l.b16 %v5598
      %v5734 = vunpack.c.l.b16 %v5599
      %v5735 = vunpack.c.l.b16 %v5600
      %v5736 = vunpack.c.l.b16 %v5601
      %v5737 = vunpack.c.l.b16 %v5602
      %v5738 = vunpack.c.l.b16 %v5603
      %v5739 = vunpack.c.l.b16 %v5604
      %v5740 = vunpack.c.l.b16 %v5605
      %v5741 = vunpack.c.l.b16 %v5606
      %v5742 = vunpack.c.l.b16 %v5607
      %v5743 = vunpack.c.l.b16 %v5608
      %v5744 = vunpack.c.l.b16 %v5609
      %v5745 = vunpack.c.l.b16 %v5610
      %v5746 = vunpack.c.l.b16 %v5611
      %v5747 = vunpack.c.l.b16 %v5612
      %v5748 = vunpack.c.l.b16 %v5613
      %v5749 = vunpack.c.l.b16 %v5614
      %v5750 = vunpack.c.l.b16 %v5615
      %v5751 = vunpack.c.l.b16 %v5616
      %v5752 = vunpack.c.l.b16 %v5617
      %v5753 = vunpack.c.l.b16 %v5618
      %v5754 = vunpack.c.l.b16 %v5619
      %v5755 = vunpack.c.l.b16 %v5620
      %v5756 = vunpack.c.l.b16 %v5621
      %v5757 = vunpack.c.l.b16 %v5622
      %v5758 = vunpack.c.l.b16 %v5623
      %v5759 = vunpack.c.l.b16 %v5624
      %v5760 = vunpack.c.l.b16 %v5625
      %v5761 = vunpack.c.l.b16 %v5626
      %v5762 = vunpack.c.l.b16 %v5627
      %v5763 = vunpack.c.l.b16 %v5628
      %v5764 = vunpack.c.l.b16 %v5629
      %v5765 = vunpack.c.l.b16 %v5630
      %v5766 = vunpack.c.l.b16 %v5631
      %v5767 = vunpack.c.l.b16 %v5632
      %v5768 = vunpack.c.l.b16 %v5633
      %v5769 = vunpack.c.l.b16 %v5634
      %v5770 = vunpack.c.l.b16 %v5635
      %v5771 = vunpack.c.l.b16 %v5636
      %v5772 = vunpack.c.l.b16 %v5637
      %v5773 = vunpack.c.l.b16 %v5638
      %v5774 = vunpack.c.l.b16 %v5639
      %v5775 = vunpack.c.l.b16 %v5640
      %v5776 = vunpack.c.l.b16 %v5641
      %v5777 = vunpack.c.l.b16 %v5642
      %v5778 = vunpack.c.l.b16 %v5643
      %v5779 = vunpack.c.l.b16 %v5644
      %v5780 = vunpack.c.l.b16 %v5645
      %v5781 = vunpack.c.l.b16 %v5646
      %v5782 = vunpack.c.l.b16 %v5647
      %v5783 = vunpack.c.l.b16 %v5648
      %v5784 = vunpack.c.l.b16 %v5649
      %v5785 = vunpack.c.l.b16 %v5650
      %v5786 = vunpack.c.l.b16 %v5651
      %v5787 = vunpack.c.l.b16 %v5652
      %v5788 = vunpack.c.l.b16 %v5653
      %v5789 = vunpack.c.l.b16 %v5654
      %v5790 = vunpack.c.l.b16 %v5655
      %v5791 = vunpack.c.l.b16 %v5656
      %v5792 = vpack.c.b16 %v5729, %v5728
      %v5793 = vpack.c.b16 %v5731, %v5730
      %v5794 = vpack.c.b16 %v5733, %v5732
      %v5795 = vpack.c.b16 %v5735, %v5734
      %v5796 = vpack.c.b16 %v5737, %v5736
      %v5797 = vpack.c.b16 %v5739, %v5738
      %v5798 = vpack.c.b16 %v5741, %v5740
      %v5799 = vpack.c.b16 %v5743, %v5742
      %v5800 = vpack.c.b16 %v5745, %v5744
      %v5801 = vpack.c.b16 %v5747, %v5746
      %v5802 = vpack.c.b16 %v5749, %v5748
      %v5803 = vpack.c.b16 %v5751, %v5750
      %v5804 = vpack.c.b16 %v5753, %v5752
      %v5805 = vpack.c.b16 %v5755, %v5754
      %v5806 = vpack.c.b16 %v5757, %v5756
      %v5807 = vpack.c.b16 %v5759, %v5758
      %v5808 = vpack.c.b16 %v5761, %v5760
      %v5809 = vpack.c.b16 %v5763, %v5762
      %v5810 = vpack.c.b16 %v5765, %v5764
      %v5811 = vpack.c.b16 %v5767, %v5766
      %v5812 = vpack.c.b16 %v5769, %v5768
      %v5813 = vpack.c.b16 %v5771, %v5770
      %v5814 = vpack.c.b16 %v5773, %v5772
      %v5815 = vpack.c.b16 %v5775, %v5774
      %v5816 = vpack.c.b16 %v5777, %v5776
      %v5817 = vpack.c.b16 %v5779, %v5778
      %v5818 = vpack.c.b16 %v5781, %v5780
      %v5819 = vpack.c.b16 %v5783, %v5782
      %v5820 = vpack.c.b16 %v5785, %v5784
      %v5821 = vpack.c.b16 %v5787, %v5786
      %v5822 = vpack.c.b16 %v5789, %v5788
      %v5823 = vpack.c.b16 %v5791, %v5790
      %5856 = vmatprep.subr.bf16.mxu0 0
      %5857 = vmatpush1.bf16.msra.mxu0 %v5792
      %5858 = vmatprep.subr.bf16.mxu0 0
      %5859 = vmatpush1.bf16.msra.mxu0 %v5793
      %5860 = vmatprep.subr.bf16.mxu0 0
      %5861 = vmatpush1.bf16.msra.mxu0 %v5794
      %5862 = vmatprep.subr.bf16.mxu0 0
      %5863 = vmatpush1.bf16.msra.mxu0 %v5795
      %5864 = vmatprep.subr.bf16.mxu0 0
      %5865 = vmatpush1.bf16.msra.mxu0 %v5796
      %5866 = vmatprep.subr.bf16.mxu0 0
      %5867 = vmatpush1.bf16.msra.mxu0 %v5797
      %5868 = vmatprep.subr.bf16.mxu0 0
      %5869 = vmatpush1.bf16.msra.mxu0 %v5798
      %5870 = vmatprep.subr.bf16.mxu0 0
      %5871 = vmatpush1.bf16.msra.mxu0 %v5799
      %5872 = vmatprep.subr.bf16.mxu0 0
      %5873 = vmatpush1.bf16.msra.mxu0 %v5800
      %5874 = vmatprep.subr.bf16.mxu0 0
      %5875 = vmatpush1.bf16.msra.mxu0 %v5801
      %5876 = vmatprep.subr.bf16.mxu0 0
      %5877 = vmatpush1.bf16.msra.mxu0 %v5802
      %5878 = vmatprep.subr.bf16.mxu0 0
      %5879 = vmatpush1.bf16.msra.mxu0 %v5803
      %5880 = vmatprep.subr.bf16.mxu0 0
      %5881 = vmatpush1.bf16.msra.mxu0 %v5804
      %5882 = vmatprep.subr.bf16.mxu0 0
      %5883 = vmatpush1.bf16.msra.mxu0 %v5805
      %5884 = vmatprep.subr.bf16.mxu0 0
      %5885 = vmatpush1.bf16.msra.mxu0 %v5806
      %5886 = vmatprep.subr.bf16.mxu0 0
      %5887 = vmatpush1.bf16.msra.mxu0 %v5807
      %5888 = vmatprep.mubr.bf16.mxu0 %v5562
      %5889 = vmatmul.mubr.bf16.gmra.mrb[0].mxu0 %v5561
      %v5890 = vpop.f32.mrb[0].mxu0
      %v5891 = vadd.f32 %v5662, %v5890
      %v5892 = vpop.f32.mrb[0].mxu0
      %v5893 = vpop.f32.mrb[0].mxu0
      %v5894 = vadd.f32 %v5662, %v5893
      %v5895 = vpop.f32.mrb[0].mxu0
      %5896 = vmatprep.mubr.bf16.mxu0 %v5566
      %5897 = vmatmul.mubr.bf16.gmra.mrb[0].mxu0 %v5565
      %v5898 = vpop.f32.mrb[0].mxu0
      %v5899 = vadd.f32 %v5662, %v5898
      %v5900 = vpop.f32.mrb[0].mxu0
      %v5901 = vpop.f32.mrb[0].mxu0
      %v5902 = vadd.f32 %v5662, %v5901
      %v5903 = vpop.f32.mrb[0].mxu0
      %5904 = vmatprep.mubr.bf16.mxu0 %v5570
      %5905 = vmatmul.mubr.bf16.gmra.mrb[0].mxu0 %v5569
      %v5906 = vpop.f32.mrb[0].mxu0
      %v5907 = vadd.f32 %v5662, %v5906
      %v5908 = vpop.f32.mrb[0].mxu0
      %v5909 = vpop.f32.mrb[0].mxu0
      %v5910 = vadd.f32 %v5662, %v5909
      %v5911 = vpop.f32.mrb[0].mxu0
      %5912 = vmatprep.mubr.bf16.mxu0 %v5574
      %5913 = vmatmul.mubr.bf16.gmra.mrb[0].mxu0 %v5573
      %v5914 = vpop.f32.mrb[0].mxu0
      %v5915 = vadd.f32 %v5662, %v5914
      %v5916 = vpop.f32.mrb[0].mxu0
      %v5917 = vpop.f32.mrb[0].mxu0
      %v5918 = vadd.f32 %v5662, %v5917
      %v5919 = vpop.f32.mrb[0].mxu0
      %5920 = vmatprep.mubr.bf16.mxu0 %v5578
      %5921 = vmatmul.mubr.bf16.gmra.mrb[0].mxu0 %v5577
      %v5922 = vpop.f32.mrb[0].mxu0
      %v5923 = vadd.f32 %v5662, %v5922
      %v5924 = vpop.f32.mrb[0].mxu0
      %v5925 = vpop.f32.mrb[0].mxu0
      %v5926 = vadd.f32 %v5662, %v5925
      %v5927 = vpop.f32.mrb[0].mxu0
      %5928 = vmatprep.mubr.bf16.mxu0 %v5582
      %5929 = vmatmul.mubr.bf16.gmra.mrb[0].mxu0 %v5581
      %v5930 = vpop.f32.mrb[0].mxu0
      %v5931 = vadd.f32 %v5662, %v5930
      %v5932 = vpop.f32.mrb[0].mxu0
      %v5933 = vpop.f32.mrb[0].mxu0
      %v5934 = vadd.f32 %v5662, %v5933
      %v5935 = vpop.f32.mrb[0].mxu0
      %5936 = vmatprep.mubr.bf16.mxu0 %v5586
      %5937 = vmatmul.mubr.bf16.gmra.mrb[0].mxu0 %v5585
      %v5938 = vpop.f32.mrb[0].mxu0
      %v5939 = vadd.f32 %v5662, %v5938
      %v5940 = vpop.f32.mrb[0].mxu0
      %v5941 = vpop.f32.mrb[0].mxu0
      %v5942 = vadd.f32 %v5662, %v5941
      %v5943 = vpop.f32.mrb[0].mxu0
      %5944 = vmatprep.mubr.bf16.mxu0 %v5590
      %5945 = vmatmul.mubr.bf16.gmra.mrb[0].mxu0 %v5589
      %v5946 = vpop.f32.mrb[0].mxu0
      %v5947 = vadd.f32 %v5662, %v5946
      %v5948 = vpop.f32.mrb[0].mxu0
      %v5949 = vpop.f32.mrb[0].mxu0
      %v5950 = vadd.f32 %v5662, %v5949
      %v5951 = vpop.f32.mrb[0].mxu0
      %5952 = vdwg.mxu0
      %5953 = vmatprep.subr.bf16.mxu0 0
      %5954 = vmatpush1.bf16.msra.mxu0 %v5808
      %5955 = vmatprep.subr.bf16.mxu0 0
      %5956 = vmatpush1.bf16.msra.mxu0 %v5809
      %5957 = vmatprep.subr.bf16.mxu0 0
      %5958 = vmatpush1.bf16.msra.mxu0 %v5810
      %5959 = vmatprep.subr.bf16.mxu0 0
      %5960 = vmatpush1.bf16.msra.mxu0 %v5811
      %5961 = vmatprep.subr.bf16.mxu0 0
      %5962 = vmatpush1.bf16.msra.mxu0 %v5812
      %5963 = vmatprep.subr.bf16.mxu0 0
      %5964 = vmatpush1.bf16.msra.mxu0 %v5813
      %5965 = vmatprep.subr.bf16.mxu0 0
      %5966 = vmatpush1.bf16.msra.mxu0 %v5814
      %5967 = vmatprep.subr.bf16.mxu0 0
      %5968 = vmatpush1.bf16.msra.mxu0 %v5815
      %5969 = vmatprep.subr.bf16.mxu0 0
      %5970 = vmatpush1.bf16.msra.mxu0 %v5816
      %5971 = vmatprep.subr.bf16.mxu0 0
      %5972 = vmatpush1.bf16.msra.mxu0 %v5817
      %5973 = vmatprep.subr.bf16.mxu0 0
      %5974 = vmatpush1.bf16.msra.mxu0 %v5818
      %5975 = vmatprep.subr.bf16.mxu0 0
      %5976 = vmatpush1.bf16.msra.mxu0 %v5819
      %5977 = vmatprep.subr.bf16.mxu0 0
      %5978 = vmatpush1.bf16.msra.mxu0 %v5820
      %5979 = vmatprep.subr.bf16.mxu0 0
      %5980 = vmatpush1.bf16.msra.mxu0 %v5821
      %5981 = vmatprep.subr.bf16.mxu0 0
      %5982 = vmatpush1.bf16.msra.mxu0 %v5822
      %5983 = vmatprep.subr.bf16.mxu0 0
      %5984 = vmatpush1.bf16.msra.mxu0 %v5823
      %5985 = vmatprep.mubr.bf16.mxu0 %v5564
      %5986 = vmatmul.mubr.bf16.gmra.mrb[0].mxu0 %v5563
      %v5987 = vpop.f32.mrb[0].mxu0
      %v5988 = vadd.f32 %v5891, %v5987
      %v5989 = vpop.f32.mrb[0].mxu0
      %v5990 = vpop.f32.mrb[0].mxu0
      %v5991 = vadd.f32 %v5894, %v5990
      %v5992 = vpop.f32.mrb[0].mxu0
      %5993 = vmatprep.mubr.bf16.mxu0 %v5568
      %5994 = vmatmul.mubr.bf16.gmra.mrb[0].mxu0 %v5567
      %v5995 = vpop.f32.mrb[0].mxu0
      %v5996 = vadd.f32 %v5899, %v5995
      %v5997 = vpop.f32.mrb[0].mxu0
      %v5998 = vpop.f32.mrb[0].mxu0
      %v5999 = vadd.f32 %v5902, %v5998
      %v6000 = vpop.f32.mrb[0].mxu0
      %6001 = vmatprep.mubr.bf16.mxu0 %v5572
      %6002 = vmatmul.mubr.bf16.gmra.mrb[0].mxu0 %v5571
      %v6003 = vpop.f32.mrb[0].mxu0
      %v6004 = vadd.f32 %v5907, %v6003
      %v6005 = vpop.f32.mrb[0].mxu0
      %v6006 = vpop.f32.mrb[0].mxu0
      %v6007 = vadd.f32 %v5910, %v6006
      %v6008 = vpop.f32.mrb[0].mxu0
      %6009 = vmatprep.mubr.bf16.mxu0 %v5576
      %6010 = vmatmul.mubr.bf16.gmra.mrb[0].mxu0 %v5575
      %v6011 = vpop.f32.mrb[0].mxu0
      %v6012 = vadd.f32 %v5915, %v6011
      %v6013 = vpop.f32.mrb[0].mxu0
      %v6014 = vpop.f32.mrb[0].mxu0
      %v6015 = vadd.f32 %v5918, %v6014
      %v6016 = vpop.f32.mrb[0].mxu0
      %6017 = vmatprep.mubr.bf16.mxu0 %v5580
      %6018 = vmatmul.mubr.bf16.gmra.mrb[0].mxu0 %v5579
      %v6019 = vpop.f32.mrb[0].mxu0
      %v6020 = vadd.f32 %v5923, %v6019
      %v6021 = vpop.f32.mrb[0].mxu0
      %v6022 = vpop.f32.mrb[0].mxu0
      %v6023 = vadd.f32 %v5926, %v6022
      %v6024 = vpop.f32.mrb[0].mxu0
      %6025 = vmatprep.mubr.bf16.mxu0 %v5584
      %6026 = vmatmul.mubr.bf16.gmra.mrb[0].mxu0 %v5583
      %v6027 = vpop.f32.mrb[0].mxu0
      %v6028 = vadd.f32 %v5931, %v6027
      %v6029 = vpop.f32.mrb[0].mxu0
      %v6030 = vpop.f32.mrb[0].mxu0
      %v6031 = vadd.f32 %v5934, %v6030
      %v6032 = vpop.f32.mrb[0].mxu0
      %6033 = vmatprep.mubr.bf16.mxu0 %v5588
      %6034 = vmatmul.mubr.bf16.gmra.mrb[0].mxu0 %v5587
      %v6035 = vpop.f32.mrb[0].mxu0
      %v6036 = vadd.f32 %v5939, %v6035
      %v6037 = vpop.f32.mrb[0].mxu0
      %v6038 = vpop.f32.mrb[0].mxu0
      %v6039 = vadd.f32 %v5942, %v6038
      %v6040 = vpop.f32.mrb[0].mxu0
      %6041 = vmatprep.mubr.bf16.mxu0 %v5592
      %6042 = vmatmul.mubr.bf16.gmra.mrb[0].mxu0 %v5591
      %v6043 = vpop.f32.mrb[0].mxu0
      %v6044 = vadd.f32 %v5947, %v6043
      %v6045 = vpop.f32.mrb[0].mxu0
      %v6046 = vpop.f32.mrb[0].mxu0
      %v6047 = vadd.f32 %v5950, %v6046
      %v6048 = vpop.f32.mrb[0].mxu0
      %6049 = vdwg.mxu0
      %v6050 = vadd.f32 %v4587, %v5988
      %v6051 = vadd.f32 %v4588, %v5991
      %v6052 = vadd.f32 %v4589, %v5996
      %v6053 = vadd.f32 %v4590, %v5999
      %v6054 = vadd.f32 %v4591, %v6004
      %v6055 = vadd.f32 %v4592, %v6007
      %v6056 = vadd.f32 %v4593, %v6012
      %v6057 = vadd.f32 %v4594, %v6015
      %v6058 = vadd.f32 %v4595, %v6020
      %v6059 = vadd.f32 %v4596, %v6023
      %v6060 = vadd.f32 %v4597, %v6028
      %v6061 = vadd.f32 %v4598, %v6031
      %v6062 = vadd.f32 %v4599, %v6036
      %v6063 = vadd.f32 %v4600, %v6039
      %v6064 = vadd.f32 %v4601, %v6044
      %v6065 = vadd.f32 %v4602, %v6047
      %6066 = vst [vmem:[#allocation2] sm:$0xff] %v6050
      %6067 = vst [vmem:[#allocation2 + $0x8] sm:$0xff] %v6051
      %6068 = vst [vmem:[#allocation2 + $0x10] sm:$0xff] %v6052
      %6069 = vst [vmem:[#allocation2 + $0x18] sm:$0xff] %v6053
      %6070 = vst [vmem:[#allocation2 + $0x20] sm:$0xff] %v6054
      %6071 = vst [vmem:[#allocation2 + $0x28] sm:$0xff] %v6055
      %6072 = vst [vmem:[#allocation2 + $0x30] sm:$0xff] %v6056
      %6073 = vst [vmem:[#allocation2 + $0x38] sm:$0xff] %v6057
      %6074 = vst [vmem:[#allocation2 + $0x40] sm:$0xff] %v6058
      %6075 = vst [vmem:[#allocation2 + $0x48] sm:$0xff] %v6059
      %6076 = vst [vmem:[#allocation2 + $0x50] sm:$0xff] %v6060
      %6077 = vst [vmem:[#allocation2 + $0x58] sm:$0xff] %v6061
      %6078 = vst [vmem:[#allocation2 + $0x60] sm:$0xff] %v6062
      %6079 = vst [vmem:[#allocation2 + $0x68] sm:$0xff] %v6063
      %6080 = vst [vmem:[#allocation2 + $0x70] sm:$0xff] %v6064
      %6081 = vst [vmem:[#allocation2 + $0x78] sm:$0xff] %v6065
      %p6082 = scmp.eq.s32.totalorder %s35, 1
      // Predicated region
      $region89: #{frozen_clip_forward.1} parent=83 // pred_check
        %p6083 = pneg %p6082
      $region90: #{frozen_clip_forward.1} parent=83 // pred_check_branch
        %6085 = sbr.rel (%p6083) target = $region92
      $region91: #{frozen_clip_forward.1} parent=83 // pred_region
        %v6086 = vld [vmem:[%s14] sm:$0x1]
        %v6087 = vld [vmem:[%s15] sm:$0x1]
        %6088 = vadd.xlane.f32.xlu0 %v6050
        %v6089 = vpop.xlane.xlu0 %6088
        %6090 = vadd.xlane.f32.xlu0 %v6051
        %v6091 = vpop.xlane.xlu0 %6090
        %6092 = vadd.xlane.f32.xlu0 %v6052
        %v6093 = vpop.xlane.xlu0 %6092
        %6094 = vadd.xlane.f32.xlu0 %v6053
        %v6095 = vpop.xlane.xlu0 %6094
        %6096 = vadd.xlane.f32.xlu0 %v6054
        %v6097 = vpop.xlane.xlu0 %6096
        %6098 = vadd.xlane.f32.xlu0 %v6055
        %v6099 = vpop.xlane.xlu0 %6098
        %6100 = vadd.xlane.f32.xlu0 %v6056
        %v6101 = vpop.xlane.xlu0 %6100
        %6102 = vadd.xlane.f32.xlu0 %v6057
        %v6103 = vpop.xlane.xlu0 %6102
        %6104 = vadd.xlane.f32.xlu0 %v6058
        %v6105 = vpop.xlane.xlu0 %6104
        %6106 = vadd.xlane.f32.xlu0 %v6059
        %v6107 = vpop.xlane.xlu0 %6106
        %6108 = vadd.xlane.f32.xlu0 %v6060
        %v6109 = vpop.xlane.xlu0 %6108
        %6110 = vadd.xlane.f32.xlu0 %v6061
        %v6111 = vpop.xlane.xlu0 %6110
        %6112 = vadd.xlane.f32.xlu0 %v6062
        %v6113 = vpop.xlane.xlu0 %6112
        %6114 = vadd.xlane.f32.xlu0 %v6063
        %v6115 = vpop.xlane.xlu0 %6114
        %6116 = vadd.xlane.f32.xlu0 %v6064
        %v6117 = vpop.xlane.xlu0 %6116
        %6118 = vadd.xlane.f32.xlu0 %v6065
        %v6119 = vpop.xlane.xlu0 %6118
        %v6120 = vmul.f32 %v6089, %v979
        %v6121 = vmul.f32 %v6091, %v979
        %v6122 = vmul.f32 %v6093, %v979
        %v6123 = vmul.f32 %v6095, %v979
        %v6124 = vmul.f32 %v6097, %v979
        %v6125 = vmul.f32 %v6099, %v979
        %v6126 = vmul.f32 %v6101, %v979
        %v6127 = vmul.f32 %v6103, %v979
        %v6128 = vmul.f32 %v6105, %v979
        %v6129 = vmul.f32 %v6107, %v979
        %v6130 = vmul.f32 %v6109, %v979
        %v6131 = vmul.f32 %v6111, %v979
        %v6132 = vmul.f32 %v6113, %v979
        %v6133 = vmul.f32 %v6115, %v979
        %v6134 = vmul.f32 %v6117, %v979
        %v6135 = vmul.f32 %v6119, %v979
        %v6136 = vsub.f32 %v6050, %v6120
        %v6137 = vsub.f32 %v6051, %v6121
        %v6138 = vsub.f32 %v6052, %v6122
        %v6139 = vsub.f32 %v6053, %v6123
        %v6140 = vsub.f32 %v6054, %v6124
        %v6141 = vsub.f32 %v6055, %v6125
        %v6142 = vsub.f32 %v6056, %v6126
        %v6143 = vsub.f32 %v6057, %v6127
        %v6144 = vsub.f32 %v6058, %v6128
        %v6145 = vsub.f32 %v6059, %v6129
        %v6146 = vsub.f32 %v6060, %v6130
        %v6147 = vsub.f32 %v6061, %v6131
        %v6148 = vsub.f32 %v6062, %v6132
        %v6149 = vsub.f32 %v6063, %v6133
        %v6150 = vsub.f32 %v6064, %v6134
        %v6151 = vsub.f32 %v6065, %v6135
        %v6152 = vmul.f32 %v6136, %v6136
        %v6153 = vmul.f32 %v6137, %v6137
        %v6154 = vmul.f32 %v6138, %v6138
        %v6155 = vmul.f32 %v6139, %v6139
        %v6156 = vmul.f32 %v6140, %v6140
        %v6157 = vmul.f32 %v6141, %v6141
        %v6158 = vmul.f32 %v6142, %v6142
        %v6159 = vmul.f32 %v6143, %v6143
        %v6160 = vmul.f32 %v6144, %v6144
        %v6161 = vmul.f32 %v6145, %v6145
        %v6162 = vmul.f32 %v6146, %v6146
        %v6163 = vmul.f32 %v6147, %v6147
        %v6164 = vmul.f32 %v6148, %v6148
        %v6165 = vmul.f32 %v6149, %v6149
        %v6166 = vmul.f32 %v6150, %v6150
        %v6167 = vmul.f32 %v6151, %v6151
        %6168 = vadd.xlane.f32.xlu0 %v6152
        %v6169 = vpop.xlane.xlu0 %6168
        %6170 = vadd.xlane.f32.xlu0 %v6153
        %v6171 = vpop.xlane.xlu0 %6170
        %6172 = vadd.xlane.f32.xlu0 %v6154
        %v6173 = vpop.xlane.xlu0 %6172
        %6174 = vadd.xlane.f32.xlu0 %v6155
        %v6175 = vpop.xlane.xlu0 %6174
        %6176 = vadd.xlane.f32.xlu0 %v6156
        %v6177 = vpop.xlane.xlu0 %6176
        %6178 = vadd.xlane.f32.xlu0 %v6157
        %v6179 = vpop.xlane.xlu0 %6178
        %6180 = vadd.xlane.f32.xlu0 %v6158
        %v6181 = vpop.xlane.xlu0 %6180
        %6182 = vadd.xlane.f32.xlu0 %v6159
        %v6183 = vpop.xlane.xlu0 %6182
        %6184 = vadd.xlane.f32.xlu0 %v6160
        %v6185 = vpop.xlane.xlu0 %6184
        %6186 = vadd.xlane.f32.xlu0 %v6161
        %v6187 = vpop.xlane.xlu0 %6186
        %6188 = vadd.xlane.f32.xlu0 %v6162
        %v6189 = vpop.xlane.xlu0 %6188
        %6190 = vadd.xlane.f32.xlu0 %v6163
        %v6191 = vpop.xlane.xlu0 %6190
        %6192 = vadd.xlane.f32.xlu0 %v6164
        %v6193 = vpop.xlane.xlu0 %6192
        %6194 = vadd.xlane.f32.xlu0 %v6165
        %v6195 = vpop.xlane.xlu0 %6194
        %6196 = vadd.xlane.f32.xlu0 %v6166
        %v6197 = vpop.xlane.xlu0 %6196
        %6198 = vadd.xlane.f32.xlu0 %v6167
        %v6199 = vpop.xlane.xlu0 %6198
        %v6200 = vmul.f32 %v6169, %v979
        %v6201 = vmul.f32 %v6171, %v979
        %v6202 = vmul.f32 %v6173, %v979
        %v6203 = vmul.f32 %v6175, %v979
        %v6204 = vmul.f32 %v6177, %v979
        %v6205 = vmul.f32 %v6179, %v979
        %v6206 = vmul.f32 %v6181, %v979
        %v6207 = vmul.f32 %v6183, %v979
        %v6208 = vmul.f32 %v6185, %v979
        %v6209 = vmul.f32 %v6187, %v979
        %v6210 = vmul.f32 %v6189, %v979
        %v6211 = vmul.f32 %v6191, %v979
        %v6212 = vmul.f32 %v6193, %v979
        %v6213 = vmul.f32 %v6195, %v979
        %v6214 = vmul.f32 %v6197, %v979
        %v6215 = vmul.f32 %v6199, %v979
        %v6216 = vadd.f32 %v6200, 1e-05
        %v6217 = vadd.f32 %v6201, 1e-05
        %v6218 = vadd.f32 %v6202, 1e-05
        %v6219 = vadd.f32 %v6203, 1e-05
        %v6220 = vadd.f32 %v6204, 1e-05
        %v6221 = vadd.f32 %v6205, 1e-05
        %v6222 = vadd.f32 %v6206, 1e-05
        %v6223 = vadd.f32 %v6207, 1e-05
        %v6224 = vadd.f32 %v6208, 1e-05
        %v6225 = vadd.f32 %v6209, 1e-05
        %v6226 = vadd.f32 %v6210, 1e-05
        %v6227 = vadd.f32 %v6211, 1e-05
        %v6228 = vadd.f32 %v6212, 1e-05
        %v6229 = vadd.f32 %v6213, 1e-05
        %v6230 = vadd.f32 %v6214, 1e-05
        %v6231 = vadd.f32 %v6215, 1e-05
        %v6232 = vrsqrt.pop %v6216
        %v6233 = vrsqrt.pop %v6217
        %v6234 = vrsqrt.pop %v6218
        %v6235 = vrsqrt.pop %v6219
        %v6236 = vrsqrt.pop %v6220
        %v6237 = vrsqrt.pop %v6221
        %v6238 = vrsqrt.pop %v6222
        %v6239 = vrsqrt.pop %v6223
        %v6240 = vrsqrt.pop %v6224
        %v6241 = vrsqrt.pop %v6225
        %v6242 = vrsqrt.pop %v6226
        %v6243 = vrsqrt.pop %v6227
        %v6244 = vrsqrt.pop %v6228
        %v6245 = vrsqrt.pop %v6229
        %v6246 = vrsqrt.pop %v6230
        %v6247 = vrsqrt.pop %v6231
        %v6248 = vmul.f32 %v6136, %v6232
        %v6249 = vmul.f32 %v6137, %v6233
        %v6250 = vmul.f32 %v6138, %v6234
        %v6251 = vmul.f32 %v6139, %v6235
        %v6252 = vmul.f32 %v6140, %v6236
        %v6253 = vmul.f32 %v6141, %v6237
        %v6254 = vmul.f32 %v6142, %v6238
        %v6255 = vmul.f32 %v6143, %v6239
        %v6256 = vmul.f32 %v6144, %v6240
        %v6257 = vmul.f32 %v6145, %v6241
        %v6258 = vmul.f32 %v6146, %v6242
        %v6259 = vmul.f32 %v6147, %v6243
        %v6260 = vmul.f32 %v6148, %v6244
        %v6261 = vmul.f32 %v6149, %v6245
        %v6262 = vmul.f32 %v6150, %v6246
        %v6263 = vmul.f32 %v6151, %v6247
        %v6265 = vlaneseq
        %v6266 = vshrl.u32 %v6265, 7
        %v6267 = vsub.s32 0, %v6266
        %v6268 = vrot.slane %v6086, %v6267
        %v6270 = vmul.f32 %v6248, %v6268
        %v6271 = vmul.f32 %v6249, %v6268
        %v6272 = vmul.f32 %v6250, %v6268
        %v6273 = vmul.f32 %v6251, %v6268
        %v6274 = vmul.f32 %v6252, %v6268
        %v6275 = vmul.f32 %v6253, %v6268
        %v6276 = vmul.f32 %v6254, %v6268
        %v6277 = vmul.f32 %v6255, %v6268
        %v6278 = vmul.f32 %v6256, %v6268
        %v6279 = vmul.f32 %v6257, %v6268
        %v6280 = vmul.f32 %v6258, %v6268
        %v6281 = vmul.f32 %v6259, %v6268
        %v6282 = vmul.f32 %v6260, %v6268
        %v6283 = vmul.f32 %v6261, %v6268
        %v6284 = vmul.f32 %v6262, %v6268
        %v6285 = vmul.f32 %v6263, %v6268
        %v6287 = vlaneseq
        %v6288 = vshrl.u32 %v6287, 7
        %v6289 = vsub.s32 0, %v6288
        %v6290 = vrot.slane %v6087, %v6289
        %v6292 = vadd.f32 %v6270, %v6290
        %v6293 = vadd.f32 %v6271, %v6290
        %v6294 = vadd.f32 %v6272, %v6290
        %v6295 = vadd.f32 %v6273, %v6290
        %v6296 = vadd.f32 %v6274, %v6290
        %v6297 = vadd.f32 %v6275, %v6290
        %v6298 = vadd.f32 %v6276, %v6290
        %v6299 = vadd.f32 %v6277, %v6290
        %v6300 = vadd.f32 %v6278, %v6290
        %v6301 = vadd.f32 %v6279, %v6290
        %v6302 = vadd.f32 %v6280, %v6290
        %v6303 = vadd.f32 %v6281, %v6290
        %v6304 = vadd.f32 %v6282, %v6290
        %v6305 = vadd.f32 %v6283, %v6290
        %v6306 = vadd.f32 %v6284, %v6290
        %v6307 = vadd.f32 %v6285, %v6290
        %v6308 = vlaneseq
        %v6309 = vshrl.u32 %v6308, 7
        %v6310 = vadd.s32 %v6309, 8
        %v6311 = vadd.s32 %v6309, 16
        %v6312 = vadd.s32 %v6309, 24
        %v6313 = vadd.s32 %v6309, 32
        %v6314 = vadd.s32 %v6309, 40
        %v6315 = vadd.s32 %v6309, 48
        %v6316 = vadd.s32 %v6309, 56
        %v6317 = vadd.s32 %v6309, 64
        %v6318 = vadd.s32 %v6309, 72
        %v6319 = vadd.s32 %v6309, 80
        %v6320 = vadd.s32 %v6309, 88
        %v6321 = vadd.s32 %v6309, 96
        %v6322 = vadd.s32 %v6309, 104
        %v6323 = vadd.s32 %v6309, 112
        %v6324 = vadd.s32 %v6309, 120
        %vm6325 = vcmp.lt.s32.totalorder %v6309, 77
        %vm6326 = vcmp.lt.s32.totalorder %v6310, 77
        %vm6327 = vcmp.lt.s32.totalorder %v6311, 77
        %vm6328 = vcmp.lt.s32.totalorder %v6312, 77
        %vm6329 = vcmp.lt.s32.totalorder %v6313, 77
        %vm6330 = vcmp.lt.s32.totalorder %v6314, 77
        %vm6331 = vcmp.lt.s32.totalorder %v6315, 77
        %vm6332 = vcmp.lt.s32.totalorder %v6316, 77
        %vm6333 = vcmp.lt.s32.totalorder %v6317, 77
        %vm6334 = vcmp.lt.s32.totalorder %v6318, 77
        %vm6335 = vcmp.lt.s32.totalorder %v6319, 77
        %vm6336 = vcmp.lt.s32.totalorder %v6320, 77
        %vm6337 = vcmp.lt.s32.totalorder %v6321, 77
        %vm6338 = vcmp.lt.s32.totalorder %v6322, 77
        %vm6339 = vcmp.lt.s32.totalorder %v6323, 77
        %vm6340 = vcmp.lt.s32.totalorder %v6324, 77
        %v6341 = vsel %vm6325, 1, 0
        %v6342 = vsel %vm6326, 1, 0
        %v6343 = vsel %vm6327, 1, 0
        %v6344 = vsel %vm6328, 1, 0
        %v6345 = vsel %vm6329, 1, 0
        %v6346 = vsel %vm6330, 1, 0
        %v6347 = vsel %vm6331, 1, 0
        %v6348 = vsel %vm6332, 1, 0
        %v6349 = vsel %vm6333, 1, 0
        %v6350 = vsel %vm6334, 1, 0
        %v6351 = vsel %vm6335, 1, 0
        %v6352 = vsel %vm6336, 1, 0
        %v6353 = vsel %vm6337, 1, 0
        %v6354 = vsel %vm6338, 1, 0
        %v6355 = vsel %vm6339, 1, 0
        %v6356 = vsel %vm6340, 1, 0
        %vm6357 = vcmp.eq.s32.totalorder %v6341, 1
        %vm6358 = vcmp.eq.s32.totalorder %v6342, 1
        %vm6359 = vcmp.eq.s32.totalorder %v6343, 1
        %vm6360 = vcmp.eq.s32.totalorder %v6344, 1
        %vm6361 = vcmp.eq.s32.totalorder %v6345, 1
        %vm6362 = vcmp.eq.s32.totalorder %v6346, 1
        %vm6363 = vcmp.eq.s32.totalorder %v6347, 1
        %vm6364 = vcmp.eq.s32.totalorder %v6348, 1
        %vm6365 = vcmp.eq.s32.totalorder %v6349, 1
        %vm6366 = vcmp.eq.s32.totalorder %v6350, 1
        %vm6367 = vcmp.eq.s32.totalorder %v6351, 1
        %vm6368 = vcmp.eq.s32.totalorder %v6352, 1
        %vm6369 = vcmp.eq.s32.totalorder %v6353, 1
        %vm6370 = vcmp.eq.s32.totalorder %v6354, 1
        %vm6371 = vcmp.eq.s32.totalorder %v6355, 1
        %vm6372 = vcmp.eq.s32.totalorder %v6356, 1
        %v6373 = vsel %vm6357, %v6292, 0.0
        %v6374 = vsel %vm6358, %v6293, 0.0
        %v6375 = vsel %vm6359, %v6294, 0.0
        %v6376 = vsel %vm6360, %v6295, 0.0
        %v6377 = vsel %vm6361, %v6296, 0.0
        %v6378 = vsel %vm6362, %v6297, 0.0
        %v6379 = vsel %vm6363, %v6298, 0.0
        %v6380 = vsel %vm6364, %v6299, 0.0
        %v6381 = vsel %vm6365, %v6300, 0.0
        %v6382 = vsel %vm6366, %v6301, 0.0
        %v6383 = vsel %vm6367, %v6302, 0.0
        %v6384 = vsel %vm6368, %v6303, 0.0
        %v6385 = vsel %vm6369, %v6304, 0.0
        %v6386 = vsel %vm6370, %v6305, 0.0
        %v6387 = vsel %vm6371, %v6306, 0.0
        %v6388 = vsel %vm6372, %v6307, 0.0
        %v6389 = vld [vmem:[%s765] sm:$0xff]
        %v6390 = vld [vmem:[%s765 + $0x8] sm:$0xff]
        %v6391 = vld [vmem:[%s765 + $0x10] sm:$0xff]
        %v6392 = vld [vmem:[%s765 + $0x18] sm:$0xff]
        %v6393 = vld [vmem:[%s765 + $0x20] sm:$0xff]
        %v6394 = vld [vmem:[%s765 + $0x28] sm:$0xff]
        %v6395 = vld [vmem:[%s765 + $0x30] sm:$0xff]
        %v6396 = vld [vmem:[%s765 + $0x38] sm:$0xff]
        %v6397 = vld [vmem:[%s765 + $0x40] sm:$0xff]
        %v6398 = vld [vmem:[%s765 + $0x48] sm:$0xff]
        %v6399 = vld [vmem:[%s765 + $0x50] sm:$0xff]
        %v6400 = vld [vmem:[%s765 + $0x58] sm:$0xff]
        %v6401 = vld [vmem:[%s765 + $0x60] sm:$0xff]
        %v6402 = vld [vmem:[%s765 + $0x68] sm:$0xff]
        %v6403 = vld [vmem:[%s765 + $0x70] sm:$0xff]
        %v6404 = vld [vmem:[%s765 + $0x78] sm:$0xff]
        %6406 = vset.pattern.permute.xlu0 0
        %6407 = vperm.xlu0 %6406, %v6389
        %v6408 = vpop.permute.xlu0 %6407
        %6411 = vset.pattern.permute.xlu0 0
        %6412 = vperm.xlu0 %6411, %v6390
        %v6413 = vpop.permute.xlu0 %6412
        %6416 = vset.pattern.permute.xlu0 0
        %6417 = vperm.xlu0 %6416, %v6391
        %v6418 = vpop.permute.xlu0 %6417
        %6421 = vset.pattern.permute.xlu0 0
        %6422 = vperm.xlu0 %6421, %v6392
        %v6423 = vpop.permute.xlu0 %6422
        %6426 = vset.pattern.permute.xlu0 0
        %6427 = vperm.xlu0 %6426, %v6393
        %v6428 = vpop.permute.xlu0 %6427
        %6431 = vset.pattern.permute.xlu0 0
        %6432 = vperm.xlu0 %6431, %v6394
        %v6433 = vpop.permute.xlu0 %6432
        %6436 = vset.pattern.permute.xlu0 0
        %6437 = vperm.xlu0 %6436, %v6395
        %v6438 = vpop.permute.xlu0 %6437
        %6441 = vset.pattern.permute.xlu0 0
        %6442 = vperm.xlu0 %6441, %v6396
        %v6443 = vpop.permute.xlu0 %6442
        %6446 = vset.pattern.permute.xlu0 0
        %6447 = vperm.xlu0 %6446, %v6397
        %v6448 = vpop.permute.xlu0 %6447
        %6451 = vset.pattern.permute.xlu0 0
        %6452 = vperm.xlu0 %6451, %v6398
        %v6453 = vpop.permute.xlu0 %6452
        %6456 = vset.pattern.permute.xlu0 0
        %6457 = vperm.xlu0 %6456, %v6399
        %v6458 = vpop.permute.xlu0 %6457
        %6461 = vset.pattern.permute.xlu0 0
        %6462 = vperm.xlu0 %6461, %v6400
        %v6463 = vpop.permute.xlu0 %6462
        %6466 = vset.pattern.permute.xlu0 0
        %6467 = vperm.xlu0 %6466, %v6401
        %v6468 = vpop.permute.xlu0 %6467
        %6471 = vset.pattern.permute.xlu0 0
        %6472 = vperm.xlu0 %6471, %v6402
        %v6473 = vpop.permute.xlu0 %6472
        %6476 = vset.pattern.permute.xlu0 0
        %6477 = vperm.xlu0 %6476, %v6403
        %v6478 = vpop.permute.xlu0 %6477
        %6481 = vset.pattern.permute.xlu0 0
        %6482 = vperm.xlu0 %6481, %v6404
        %v6483 = vpop.permute.xlu0 %6482
        %v6485 = vmul.f32 %v6373, %v6408
        %v6486 = vmul.f32 %v6374, %v6413
        %v6487 = vmul.f32 %v6375, %v6418
        %v6488 = vmul.f32 %v6376, %v6423
        %v6489 = vmul.f32 %v6377, %v6428
        %v6490 = vmul.f32 %v6378, %v6433
        %v6491 = vmul.f32 %v6379, %v6438
        %v6492 = vmul.f32 %v6380, %v6443
        %v6493 = vmul.f32 %v6381, %v6448
        %v6494 = vmul.f32 %v6382, %v6453
        %v6495 = vmul.f32 %v6383, %v6458
        %v6496 = vmul.f32 %v6384, %v6463
        %v6497 = vmul.f32 %v6385, %v6468
        %v6498 = vmul.f32 %v6386, %v6473
        %v6499 = vmul.f32 %v6387, %v6478
        %v6500 = vmul.f32 %v6388, %v6483
        %6501 = vst [vmem:[%s816] sm:$0xff] %v6485
        %6502 = vst [vmem:[%s816 + $0x8] sm:$0xff] %v6486
        %6503 = vst [vmem:[%s816 + $0x10] sm:$0xff] %v6487
        %6504 = vst [vmem:[%s816 + $0x18] sm:$0xff] %v6488
        %6505 = vst [vmem:[%s816 + $0x20] sm:$0xff] %v6489
        %6506 = vst [vmem:[%s816 + $0x28] sm:$0xff] %v6490
        %6507 = vst [vmem:[%s816 + $0x30] sm:$0xff] %v6491
        %6508 = vst [vmem:[%s816 + $0x38] sm:$0xff] %v6492
        %6509 = vst [vmem:[%s816 + $0x40] sm:$0xff] %v6493
        %6510 = vst [vmem:[%s816 + $0x48] sm:$0xff] %v6494
        %6511 = vst [vmem:[%s816 + $0x50] sm:$0xff] %v6495
        %6512 = vst [vmem:[%s816 + $0x58] sm:$0xff] %v6496
        %6513 = vst [vmem:[%s816 + $0x60] sm:$0xff] %v6497
        %6514 = vst [vmem:[%s816 + $0x68] sm:$0xff] %v6498
        %6515 = vst [vmem:[%s816 + $0x70] sm:$0xff] %v6499
        %6516 = vst [vmem:[%s816 + $0x78] sm:$0xff] %v6500
        %v6517 = vadd.f32 %v6373, %v6374
        %v6518 = vadd.f32 %v6517, %v6375
        %v6519 = vadd.f32 %v6518, %v6376
        %v6520 = vadd.f32 %v6519, %v6377
        %v6521 = vadd.f32 %v6520, %v6378
        %v6522 = vadd.f32 %v6521, %v6379
        %v6523 = vadd.f32 %v6522, %v6380
        %v6524 = vadd.f32 %v6523, %v6381
        %v6525 = vadd.f32 %v6524, %v6382
        %v6526 = vadd.f32 %v6525, %v6383
        %v6527 = vadd.f32 %v6526, %v6384
        %v6528 = vadd.f32 %v6527, %v6385
        %v6529 = vadd.f32 %v6528, %v6386
        %v6530 = vadd.f32 %v6529, %v6387
        %v6531 = vadd.f32 %v6530, %v6388
        %v6532 = vrot.slane %v6531, 4
        %v6533 = vadd.f32 %v6531, %v6532
        %v6534 = vrot.slane %v6533, 2
        %v6535 = vadd.f32 %v6533, %v6534
        %v6536 = vrot.slane %v6535, 1
        %v6537 = vadd.f32 %v6535, %v6536
        %6538 = vst [vmem:[%s819] sm:$0x1] %v6537
        %v6539 = vadd.f32 %v6485, %v6486
        %v6540 = vadd.f32 %v6539, %v6487
        %v6541 = vadd.f32 %v6540, %v6488
        %v6542 = vadd.f32 %v6541, %v6489
        %v6543 = vadd.f32 %v6542, %v6490
        %v6544 = vadd.f32 %v6543, %v6491
        %v6545 = vadd.f32 %v6544, %v6492
        %v6546 = vadd.f32 %v6545, %v6493
        %v6547 = vadd.f32 %v6546, %v6494
        %v6548 = vadd.f32 %v6547, %v6495
        %v6549 = vadd.f32 %v6548, %v6496
        %v6550 = vadd.f32 %v6549, %v6497
        %v6551 = vadd.f32 %v6550, %v6498
        %v6552 = vadd.f32 %v6551, %v6499
        %v6553 = vadd.f32 %v6552, %v6500
        %v6554 = vrot.slane %v6553, 4
        %v6555 = vadd.f32 %v6553, %v6554
        %v6556 = vrot.slane %v6555, 2
        %v6557 = vadd.f32 %v6555, %v6556
        %v6558 = vrot.slane %v6557, 1
        %v6559 = vadd.f32 %v6557, %v6558
        %6560 = vst [vmem:[%s822] sm:$0x1] %v6559
      $region92: #{frozen_clip_forward.1} parent=83 // pred_fallthru
        _
      %p6561 = scmp.lt.s32.totalorder %s34, 1
      %s6562 = scalar_select %p6561, %s34, 1
      %s6563 = smul.addr %s6562, 16
      %s6564 = smul.addr %s6563, 8
      %s6565 = scalar_lea.vmem %s16, %s6564
      %p6566 = scmp.lt.s32.totalorder %s34, 1
      %s6567 = scalar_select %p6566, %s34, 1
      %s6568 = scalar_lea.vmem %s17, %s6567
      %p6569 = scmp.lt.s32.totalorder %s34, 1
      %s6570 = scalar_select %p6569, %s34, 1
      %s6571 = scalar_lea.vmem %s18, %s6570
      // Predicated region
      $region93: #{frozen_clip_forward.1} parent=83 // pred_check
        %p6572 = pneg %p466
      $region94: #{frozen_clip_forward.1} parent=83 // pred_check_branch
        %6574 = sbr.rel (%p6572) target = $region96
      $region95: #{frozen_clip_forward.1} parent=83 // pred_region
        _
      $region96: #{frozen_clip_forward.1} parent=83 // pred_fallthru
        _
      // Predicated region
      $region97: #{frozen_clip_forward.1} parent=83 // pred_check
        %p6575 = pneg %p492
      $region98: #{frozen_clip_forward.1} parent=83 // pred_check_branch
        %6577 = sbr.rel (%p6575) target = $region100
      $region99: #{frozen_clip_forward.1} parent=83 // pred_region
        _
      $region100: #{frozen_clip_forward.1} parent=83 // pred_fallthru
        _
      // Predicated region
      $region101: #{frozen_clip_forward.1} parent=83 // pred_check
        %p6578 = pneg %p518
      $region102: #{frozen_clip_forward.1} parent=83 // pred_check_branch
        %6580 = sbr.rel (%p6578) target = $region104
      $region103: #{frozen_clip_forward.1} parent=83 // pred_region
        _
      $region104: #{frozen_clip_forward.1} parent=83 // pred_fallthru
        _
    $region84: #{frozen_clip_forward.1} parent=5 // pred_fallthru
      _
    %p6581 = scmp.le.s32.totalorder 2, %s25
    // Predicated region
    $region105: #{frozen_clip_forward.1} parent=5 // pred_check
      %p6582 = pneg %p6581
    $region106: #{frozen_clip_forward.1} parent=5 // pred_check_branch
      %6584 = sbr.rel (%p6582) target = $region108
    $region107: #{frozen_clip_forward.1} parent=5 // pred_region
      %s6585 = ssub.s32 %s25, 2
      // Predicated region
      $region109: #{frozen_clip_forward.1} parent=107 // pred_check
        %p6586 = pneg %p472
      $region110: #{frozen_clip_forward.1} parent=107 // pred_check_branch
        %6588 = sbr.rel (%p6586) target = $region112
      $region111: #{frozen_clip_forward.1} parent=107 // pred_region
        %p6589 = scmp.lt.s32.totalorder %s36, 1
        %s6590 = scalar_select %p6589, %s36, 1
        %s6591 = smul.addr %s6590, 16
        %s6592 = smul.addr %s6591, 8
        %s6593 = scalar_lea.vmem %s16, %s6592
      $region112: #{frozen_clip_forward.1} parent=107 // pred_fallthru
        _
      // Predicated region
      $region113: #{frozen_clip_forward.1} parent=107 // pred_check
        %p6594 = pneg %p498
      $region114: #{frozen_clip_forward.1} parent=107 // pred_check_branch
        %6596 = sbr.rel (%p6594) target = $region116
      $region115: #{frozen_clip_forward.1} parent=107 // pred_region
        %p6597 = scmp.lt.s32.totalorder %s36, 1
        %s6598 = scalar_select %p6597, %s36, 1
        %s6599 = scalar_lea.vmem %s17, %s6598
      $region116: #{frozen_clip_forward.1} parent=107 // pred_fallthru
        _
      // Predicated region
      $region117: #{frozen_clip_forward.1} parent=107 // pred_check
        %p6600 = pneg %p524
      $region118: #{frozen_clip_forward.1} parent=107 // pred_check_branch
        %6602 = sbr.rel (%p6600) target = $region120
      $region119: #{frozen_clip_forward.1} parent=107 // pred_region
        %p6603 = scmp.lt.s32.totalorder %s36, 1
        %s6604 = scalar_select %p6603, %s36, 1
        %s6605 = scalar_lea.vmem %s18, %s6604
      $region120: #{frozen_clip_forward.1} parent=107 // pred_fallthru
        _
    $region108: #{frozen_clip_forward.1} parent=5 // pred_fallthru
      _
  $region6: #{frozen_clip_forward.1} parent=0 // loop_footer
    %s29 = sadd.s32 1, %s25
  $region7: #{frozen_clip_forward.1} parent=0 // loop_footer_branch
    %24 = sbr.rel target = $region3
  $region8: #{frozen_clip_forward.1} parent=0 // loop_exit
    _

</llo_original>
